<compile_context>
chip_gen: v7x
topology: tpu7x:2x2x1
jax: 0.10.0
libtpu: 0.0.40
codegen_flags: <defaults>
</compile_context>

<pallas_src>
import functools

import jax
import jax.numpy as jnp
from jax.experimental import pallas as pl
from jax.experimental.pallas import tpu as pltpu

OMEGA_0 = 30.0
HIDDEN = 128
MAX_TM = 4096


def siren_kernel(x_ref, w0_ref, b0_ref, w1_ref, b1_ref, w2_ref, b2_ref,
                 w3_ref, b3_ref, wo_ref, bo_ref, o_ref):
    # x_ref: (1, tm) f32          w0/b0: (128, 1) f32
    # w1/w2/w3: (128, 128) mm_dt  b1/b2/b3: (128, 1) ew_dt
    # wo: (1, 128) mm_dt          bo: (1, 1) f32
    # omega_0 is already folded into w0..w3 / b0..b3.
    mm_dt = w1_ref.dtype          # MXU operand dtype (f32 or bf16)
    ew_dt = b1_ref.dtype          # hidden-layer elementwise dtype (f32 or bf16)

    x = x_ref[...]                                            # (1, tm) f32

    # First sine layer (in_features == 1): outer-product broadcast on the VPU,
    # no K=1 matmul. Kept in f32 (arguments reach ~ +/-60).
    h = jnp.sin(w0_ref[...] * x + b0_ref[...]).astype(mm_dt)  # (128, tm)

    # Three hidden sine layers: MXU matmuls with f32 accumulation; bias add +
    # sin in ew_dt (bf16 on v6e/v7x halves work on the saturating VPU/EUP slot;
    # the astype() calls are no-ops whenever the dtypes already match).
    for w_ref, b_ref in ((w1_ref, b1_ref), (w2_ref, b2_ref), (w3_ref, b3_ref)):
        acc = jnp.dot(w_ref[...], h, preferred_element_type=jnp.float32)
        h = jnp.sin(acc.astype(ew_dt) + b_ref[...]).astype(mm_dt)   # (128, tm)

    # Outermost linear layer: (1,128) @ (128,tm) -> lane-dense (1, tm) output.
    # Final bias add stays in f32.
    o_ref[...] = (jnp.dot(wo_ref[...], h, preferred_element_type=jnp.float32)
                  + bo_ref[...]).astype(o_ref.dtype)


@functools.partial(jax.jit, static_argnames=("tm",))
def _siren_pallas(x_row, kparams, *, tm):
    _, n_pad = x_row.shape
    w0, b0, w1, b1, w2, b2, w3, b3, wo, bo = kparams
    const = lambda shape: pl.BlockSpec(shape, lambda i: (0, 0))

    # Advisory cost hint so XLA's scheduler overlaps surrounding ops correctly.
    flops_per_elem = 2 * HIDDEN + 3 * (2 * HIDDEN * HIDDEN) + 2 * HIDDEN
    weight_bytes = sum(int(p.size) * p.dtype.itemsize for p in kparams)
    cost = pl.CostEstimate(flops=flops_per_elem * n_pad,
                           transcendentals=4 * HIDDEN * n_pad,
                           bytes_accessed=8 * n_pad + weight_bytes)

    return pl.pallas_call(
        siren_kernel,
        out_shape=jax.ShapeDtypeStruct((1, n_pad), jnp.float32),
        grid_spec=pltpu.PrefetchScalarGridSpec(
            num_scalar_prefetch=0,
            grid=(n_pad // tm,),
            in_specs=[
                pl.BlockSpec((1, tm), lambda i: (0, i)),       # x (batch on lanes)
                const((HIDDEN, 1)), const((HIDDEN, 1)),        # w0, b0
                const((HIDDEN, HIDDEN)), const((HIDDEN, 1)),   # w1, b1
                const((HIDDEN, HIDDEN)), const((HIDDEN, 1)),   # w2, b2
                const((HIDDEN, HIDDEN)), const((HIDDEN, 1)),   # w3, b3
                const((1, HIDDEN)), const((1, 1)),             # wo, bo
            ],
            out_specs=pl.BlockSpec((1, tm), lambda i: (0, i)),
        ),
        compiler_params=pltpu.CompilerParams(
            dimension_semantics=("parallel",)),
        cost_estimate=cost,
    )(x_row, w0, b0, w1, b1, w2, b2, w3, b3, wo, bo)


def _auto_tm(N):
    """Pick a lane-dense tile size giving >= 2 (preferably an even number of)
    'parallel' grid steps so both v7x TensorCores get work, capped at MAX_TM."""
    nb = pl.cdiv(N, 128)                       # number of 128-lane blocks
    if nb <= 1:
        return 128                             # too small to split
    tm = min(MAX_TM, pl.cdiv(nb, 2) * 128)     # ~half the data per tile
    if pl.cdiv(N, tm) % 2 != 0:                # prefer an even step count
        for cand in range(tm, 1023, -128):     # (balanced megacore split);
            if pl.cdiv(N, cand) % 2 == 0:      # >=1024 keeps per-step
                tm = cand                      # overhead < 5%
                break
    return tm


def siren_forward(x, kernel_params, *, tm=None):
    """x: (N, 1) coordinates. Returns (N, 1) float32 == model_duo.forward(x)."""
    N = x.shape[0]
    if tm is None:
        tm = _auto_tm(N)
    else:
        assert tm >= 128 and tm % 128 == 0, (
            "tm must be a positive multiple of 128 (lane-dense (1, tm) blocks)")
    n_pad = pl.cdiv(N, tm) * tm
    x_row = x.reshape(1, N).astype(jnp.float32)
    if n_pad != N:
        # Padded lanes compute garbage that is trimmed below; never fold a
        # reduction over the padded region into the kernel.
        x_row = jnp.pad(x_row, ((0, 0), (0, n_pad - N)))
    out_row = _siren_pallas(x_row, tuple(kernel_params), tm=tm)
    return out_row[0, :N].reshape(N, 1)


def init_siren_params(key):
    """Raw parameters mirroring the PyTorch/Siren init scheme.
    Weights are stored in PyTorch (out_features, in_features) orientation."""
    ks = jax.random.split(key, 10)
    u = lambda k, shape, lim: jax.random.uniform(
        k, shape, jnp.float32, minval=-lim, maxval=lim)

    hid_lim = float(jnp.sqrt(6.0 / HIDDEN) / OMEGA_0)
    bias_lim = float(1.0 / jnp.sqrt(jnp.float32(HIDDEN)))

    w0 = u(ks[0], (HIDDEN, 1), 1.0)        # first SineLayer: U(-1/in, 1/in), in=1
    b0 = u(ks[1], (HIDDEN,), 1.0)          # nn.Linear default bias bound 1/sqrt(in)=1
    w1 = u(ks[2], (HIDDEN, HIDDEN), hid_lim)
    b1 = u(ks[3], (HIDDEN,), bias_lim)
    w2 = u(ks[4], (HIDDEN, HIDDEN), hid_lim)
    b2 = u(ks[5], (HIDDEN,), bias_lim)
    w3 = u(ks[6], (HIDDEN, HIDDEN), hid_lim)
    b3 = u(ks[7], (HIDDEN,), bias_lim)
    wo = u(ks[8], (1, HIDDEN), hid_lim)    # outermost linear 128 -> 1
    bo = u(ks[9], (1,), bias_lim)
    return (w0, b0, w1, b1, w2, b2, w3, b3, wo, bo)


def prepare_kernel_params(params, *, mm_dtype=jnp.float32, ew_dtype=jnp.float32):
    """Fold omega_0 into the sine-layer weights/biases once and lay them out
    for the kernel.

    mm_dtype: dtype of the MXU matmul operands (weights / activations).
    ew_dtype: dtype of the hidden-layer elementwise path (bias add + sin).
    First sine layer and final bias always stay f32."""
    w0, b0, w1, b1, w2, b2, w3, b3, wo, bo = params
    col = lambda b, dt: b.reshape(HIDDEN, 1).astype(dt)
    return (
        (OMEGA_0 * w0).astype(jnp.float32), col(OMEGA_0 * b0, jnp.float32),
        (OMEGA_0 * w1).astype(mm_dtype), col(OMEGA_0 * b1, ew_dtype),
        (OMEGA_0 * w2).astype(mm_dtype), col(OMEGA_0 * b2, ew_dtype),
        (OMEGA_0 * w3).astype(mm_dtype), col(OMEGA_0 * b3, ew_dtype),
        wo.astype(mm_dtype), bo.reshape(1, 1).astype(jnp.float32),
    )


def default_fast_dtypes():
    """Per-generation fast-path dtypes (per the perf review):
       - matmul operands bf16 everywhere (MXU is bf16-native; halves weight
         DMA/VMEM; f32 accumulation preserves accuracy),
       - elementwise (bias add + sin) bf16 only where the VPU/EUP has native
         bf16 (v6e / v7x); f32 on v5e and older."""
    kind = jax.devices()[0].device_kind.lower()
    bf16_vpu = any(t in kind for t in ("v6", "v7", "7x"))
    return jnp.bfloat16, (jnp.bfloat16 if bf16_vpu else jnp.float32)


def siren_reference(x, params):
    """Pure-JAX reference matching the PyTorch module math exactly."""
    w0, b0, w1, b1, w2, b2, w3, b3, wo, bo = params
    h = jnp.sin(OMEGA_0 * (x @ w0.T + b0))
    h = jnp.sin(OMEGA_0 * (h @ w1.T + b1))
    h = jnp.sin(OMEGA_0 * (h @ w2.T + b2))
    h = jnp.sin(OMEGA_0 * (h @ w3.T + b3))
    return h @ wo.T + bo


if __name__ == "__main__":
    key = jax.random.PRNGKey(0)
    k_param, k_x = jax.random.split(key)
    params = init_siren_params(k_param)

    # Small demo: N = 256 coordinate samples -> two lane-dense (1, 128) tiles
    # (>= 2 parallel steps keeps both v7x TensorCores busy even at small N).
    N = 256
    x = jax.random.uniform(k_x, (N, 1), jnp.float32, minval=-1.0, maxval=1.0)
    ref = siren_reference(x, params)

    # Exact f32 path (reference-accuracy anchor; v5e-friendly elementwise math).
    kp_f32 = prepare_kernel_params(params)
    out = jax.block_until_ready(siren_forward(x, kp_f32))
    assert out.shape == (N, 1)
    assert jnp.allclose(out, ref, atol=5e-4, rtol=5e-4), \
        float(jnp.max(jnp.abs(out - ref)))

    # Multi-tile grid with caller-supplied tm (exercises the pipelined path
    # and the multiple-of-128 tile guard).
    N2 = 1024
    x2 = jax.random.uniform(jax.random.PRNGKey(1), (N2, 1), jnp.float32,
                            minval=-1.0, maxval=1.0)
    ref2 = siren_reference(x2, params)
    out2 = jax.block_until_ready(siren_forward(x2, kp_f32, tm=256))
    assert jnp.allclose(out2, ref2, atol=5e-4, rtol=5e-4), \
        float(jnp.max(jnp.abs(out2 - ref2)))

    # Generation-tuned fast path: bf16 MXU operands everywhere; bf16
    # elementwise sin where the VPU supports it (v6e / v7x), f32 otherwise.
    mm_dt, ew_dt = default_fast_dtypes()
    kp_fast = prepare_kernel_params(params, mm_dtype=mm_dt, ew_dtype=ew_dt)
    out_fast = jax.block_until_ready(siren_forward(x, kp_fast))
    assert jnp.allclose(out_fast, ref, atol=1e-1, rtol=1e-1), \
        float(jnp.max(jnp.abs(out_fast - ref)))

    print("KERNEL_OK")
</pallas_src>

<mosaic_0001>
module attributes {stable_mosaic.version = 11 : i64} {
  func.func @siren_kernel(%arg0: i32, %arg1: memref<1x128xf32, #tpu.memory_space<vmem>>, %arg2: memref<128x1xf32, #tpu.memory_space<vmem>>, %arg3: memref<128x1xf32, #tpu.memory_space<vmem>>, %arg4: memref<128x128xf32, #tpu.memory_space<vmem>>, %arg5: memref<128x1xf32, #tpu.memory_space<vmem>>, %arg6: memref<128x128xf32, #tpu.memory_space<vmem>>, %arg7: memref<128x1xf32, #tpu.memory_space<vmem>>, %arg8: memref<128x128xf32, #tpu.memory_space<vmem>>, %arg9: memref<128x1xf32, #tpu.memory_space<vmem>>, %arg10: memref<1x128xf32, #tpu.memory_space<vmem>>, %arg11: memref<1x1xf32, #tpu.memory_space<vmem>>, %arg12: memref<1x128xf32, #tpu.memory_space<vmem>>) attributes {dimension_semantics = [#tpu.dimension_semantics<parallel>], iteration_bounds = array<i64: 2>, scalar_prefetch = 0 : i64, scratch_operands = 0 : i64, tpu.core_type = #tpu.core_type<tc>, window_params = [{transform_indices = @transform_0, window_bounds = array<i64: 1, 128>}, {pipeline_mode = #tpu.pipeline_mode<synchronous>, transform_indices = @transform_1, window_bounds = array<i64: 128, 1>}, {pipeline_mode = #tpu.pipeline_mode<synchronous>, transform_indices = @transform_2, window_bounds = array<i64: 128, 1>}, {pipeline_mode = #tpu.pipeline_mode<synchronous>, transform_indices = @transform_3, window_bounds = array<i64: 128, 128>}, {pipeline_mode = #tpu.pipeline_mode<synchronous>, transform_indices = @transform_4, window_bounds = array<i64: 128, 1>}, {pipeline_mode = #tpu.pipeline_mode<synchronous>, transform_indices = @transform_5, window_bounds = array<i64: 128, 128>}, {pipeline_mode = #tpu.pipeline_mode<synchronous>, transform_indices = @transform_6, window_bounds = array<i64: 128, 1>}, {pipeline_mode = #tpu.pipeline_mode<synchronous>, transform_indices = @transform_7, window_bounds = array<i64: 128, 128>}, {pipeline_mode = #tpu.pipeline_mode<synchronous>, transform_indices = @transform_8, window_bounds = array<i64: 128, 1>}, {pipeline_mode = #tpu.pipeline_mode<synchronous>, transform_indices = @transform_9, window_bounds = array<i64: 1, 128>}, {pipeline_mode = #tpu.pipeline_mode<synchronous>, transform_indices = @transform_10, window_bounds = array<i64: 1, 1>}, {transform_indices = @transform_11, window_bounds = array<i64: 1, 128>}]} {
    %c0 = arith.constant 0 : index
    %c0_0 = arith.constant 0 : index
    %0 = vector.load %arg1[%c0, %c0_0] : memref<1x128xf32, #tpu.memory_space<vmem>>, vector<1x128xf32>
    %c0_1 = arith.constant 0 : index
    %c0_2 = arith.constant 0 : index
    %1 = vector.load %arg2[%c0_1, %c0_2] : memref<128x1xf32, #tpu.memory_space<vmem>>, vector<128x1xf32>
    %2 = vector.broadcast %1 : vector<128x1xf32> to vector<128x128xf32>
    %3 = vector.broadcast %0 : vector<1x128xf32> to vector<128x128xf32>
    %4 = arith.mulf %2, %3 : vector<128x128xf32>
    %c0_3 = arith.constant 0 : index
    %c0_4 = arith.constant 0 : index
    %5 = vector.load %arg3[%c0_3, %c0_4] : memref<128x1xf32, #tpu.memory_space<vmem>>, vector<128x1xf32>
    %6 = vector.broadcast %5 : vector<128x1xf32> to vector<128x128xf32>
    %7 = arith.addf %4, %6 : vector<128x128xf32>
    %8 = math.sin %7 : vector<128x128xf32>
    %c0_5 = arith.constant 0 : index
    %c0_6 = arith.constant 0 : index
    %9 = vector.load %arg4[%c0_5, %c0_6] : memref<128x128xf32, #tpu.memory_space<vmem>>, vector<128x128xf32>
    %cst = arith.constant dense<0.000000e+00> : vector<128x128xf32>
    %10 = tpu.matmul %9, %8, %cst {dimension_numbers = #tpu.dot_dimension_numbers<[1], [0], [0], [1], [0, 0, 1, 1], [], []>} : vector<128x128xf32>, vector<128x128xf32>, vector<128x128xf32> -> vector<128x128xf32>
    %c0_7 = arith.constant 0 : index
    %c0_8 = arith.constant 0 : index
    %11 = vector.load %arg5[%c0_7, %c0_8] : memref<128x1xf32, #tpu.memory_space<vmem>>, vector<128x1xf32>
    %12 = vector.broadcast %11 : vector<128x1xf32> to vector<128x128xf32>
    %13 = arith.addf %10, %12 : vector<128x128xf32>
    %14 = math.sin %13 : vector<128x128xf32>
    %c0_9 = arith.constant 0 : index
    %c0_10 = arith.constant 0 : index
    %15 = vector.load %arg6[%c0_9, %c0_10] : memref<128x128xf32, #tpu.memory_space<vmem>>, vector<128x128xf32>
    %cst_11 = arith.constant dense<0.000000e+00> : vector<128x128xf32>
    %16 = tpu.matmul %15, %14, %cst_11 {dimension_numbers = #tpu.dot_dimension_numbers<[1], [0], [0], [1], [0, 0, 1, 1], [], []>} : vector<128x128xf32>, vector<128x128xf32>, vector<128x128xf32> -> vector<128x128xf32>
    %c0_12 = arith.constant 0 : index
    %c0_13 = arith.constant 0 : index
    %17 = vector.load %arg7[%c0_12, %c0_13] : memref<128x1xf32, #tpu.memory_space<vmem>>, vector<128x1xf32>
    %18 = vector.broadcast %17 : vector<128x1xf32> to vector<128x128xf32>
    %19 = arith.addf %16, %18 : vector<128x128xf32>
    %20 = math.sin %19 : vector<128x128xf32>
    %c0_14 = arith.constant 0 : index
    %c0_15 = arith.constant 0 : index
    %21 = vector.load %arg8[%c0_14, %c0_15] : memref<128x128xf32, #tpu.memory_space<vmem>>, vector<128x128xf32>
    %cst_16 = arith.constant dense<0.000000e+00> : vector<128x128xf32>
    %22 = tpu.matmul %21, %20, %cst_16 {dimension_numbers = #tpu.dot_dimension_numbers<[1], [0], [0], [1], [0, 0, 1, 1], [], []>} : vector<128x128xf32>, vector<128x128xf32>, vector<128x128xf32> -> vector<128x128xf32>
    %c0_17 = arith.constant 0 : index
    %c0_18 = arith.constant 0 : index
    %23 = vector.load %arg9[%c0_17, %c0_18] : memref<128x1xf32, #tpu.memory_space<vmem>>, vector<128x1xf32>
    %24 = vector.broadcast %23 : vector<128x1xf32> to vector<128x128xf32>
    %25 = arith.addf %22, %24 : vector<128x128xf32>
    %26 = math.sin %25 : vector<128x128xf32>
    %c0_19 = arith.constant 0 : index
    %c0_20 = arith.constant 0 : index
    %27 = vector.load %arg10[%c0_19, %c0_20] : memref<1x128xf32, #tpu.memory_space<vmem>>, vector<1x128xf32>
    %cst_21 = arith.constant dense<0.000000e+00> : vector<1x128xf32>
    %28 = tpu.matmul %27, %26, %cst_21 {dimension_numbers = #tpu.dot_dimension_numbers<[1], [0], [0], [1], [0, 0, 1, 1], [], []>} : vector<1x128xf32>, vector<128x128xf32>, vector<1x128xf32> -> vector<1x128xf32>
    %c0_22 = arith.constant 0 : index
    %c0_23 = arith.constant 0 : index
    %29 = vector.load %arg11[%c0_22, %c0_23] : memref<1x1xf32, #tpu.memory_space<vmem>>, vector<1x1xf32>
    %30 = vector.broadcast %29 : vector<1x1xf32> to vector<1x128xf32>
    %31 = arith.addf %28, %30 : vector<1x128xf32>
    %c0_24 = arith.constant 0 : index
    %c0_25 = arith.constant 0 : index
    %32 = vector.load %arg12[%c0_24, %c0_25] : memref<1x128xf32, #tpu.memory_space<vmem>>, vector<1x128xf32>
    tpu.vector_store %arg12[%c0_24, %c0_25], %31 {strides = array<i32>} : memref<1x128xf32, #tpu.memory_space<vmem>>, vector<1x128xf32>,
    return
  }
  func.func @transform_0(%arg0: i32) -> (i32, i32) {
    %c0_i32 = arith.constant 0 : i32
    %c0_i32_0 = arith.constant 0 : i32
    return %c0_i32, %arg0 : i32, i32
  }
  func.func @transform_1(%arg0: i32) -> (i32, i32) {
    %c0_i32 = arith.constant 0 : i32
    %c0_i32_0 = arith.constant 0 : i32
    %c0_i32_1 = arith.constant 0 : i32
    return %c0_i32, %c0_i32_0 : i32, i32
  }
  func.func @transform_2(%arg0: i32) -> (i32, i32) {
    %c0_i32 = arith.constant 0 : i32
    %c0_i32_0 = arith.constant 0 : i32
    %c0_i32_1 = arith.constant 0 : i32
    return %c0_i32, %c0_i32_0 : i32, i32
  }
  func.func @transform_3(%arg0: i32) -> (i32, i32) {
    %c0_i32 = arith.constant 0 : i32
    %c0_i32_0 = arith.constant 0 : i32
    %c0_i32_1 = arith.constant 0 : i32
    return %c0_i32, %c0_i32_0 : i32, i32
  }
  func.func @transform_4(%arg0: i32) -> (i32, i32) {
    %c0_i32 = arith.constant 0 : i32
    %c0_i32_0 = arith.constant 0 : i32
    %c0_i32_1 = arith.constant 0 : i32
    return %c0_i32, %c0_i32_0 : i32, i32
  }
  func.func @transform_5(%arg0: i32) -> (i32, i32) {
    %c0_i32 = arith.constant 0 : i32
    %c0_i32_0 = arith.constant 0 : i32
    %c0_i32_1 = arith.constant 0 : i32
    return %c0_i32, %c0_i32_0 : i32, i32
  }
  func.func @transform_6(%arg0: i32) -> (i32, i32) {
    %c0_i32 = arith.constant 0 : i32
    %c0_i32_0 = arith.constant 0 : i32
    %c0_i32_1 = arith.constant 0 : i32
    return %c0_i32, %c0_i32_0 : i32, i32
  }
  func.func @transform_7(%arg0: i32) -> (i32, i32) {
    %c0_i32 = arith.constant 0 : i32
    %c0_i32_0 = arith.constant 0 : i32
    %c0_i32_1 = arith.constant 0 : i32
    return %c0_i32, %c0_i32_0 : i32, i32
  }
  func.func @transform_8(%arg0: i32) -> (i32, i32) {
    %c0_i32 = arith.constant 0 : i32
    %c0_i32_0 = arith.constant 0 : i32
    %c0_i32_1 = arith.constant 0 : i32
    return %c0_i32, %c0_i32_0 : i32, i32
  }
  func.func @transform_9(%arg0: i32) -> (i32, i32) {
    %c0_i32 = arith.constant 0 : i32
    %c0_i32_0 = arith.constant 0 : i32
    %c0_i32_1 = arith.constant 0 : i32
    return %c0_i32, %c0_i32_0 : i32, i32
  }
  func.func @transform_10(%arg0: i32) -> (i32, i32) {
    %c0_i32 = arith.constant 0 : i32
    %c0_i32_0 = arith.constant 0 : i32
    %c0_i32_1 = arith.constant 0 : i32
    return %c0_i32, %c0_i32_0 : i32, i32
  }
  func.func @transform_11(%arg0: i32) -> (i32, i32) {
    %c0_i32 = arith.constant 0 : i32
    %c0_i32_0 = arith.constant 0 : i32
    return %c0_i32, %arg0 : i32, i32
  }
}

</mosaic_0001>

<llo_original>
// kernel: _siren_pallas.1
$region0: #{_siren_pallas.1}
  #allocation0 [shape = 'u32[]', space=smem, size = 0x4, offset = 0x4, fixed_abs, tag = 'smem constant byte address 0x4 - core index']
  #allocation1 [shape = 'u32[144,128]{1,0:T(1,128)}', space=vmem, size = 0x12000, scoped, tag = 'internal scratch']
  #allocation2 [shape = 'f32[1,1]{1,0:T(1,128)S(1)}', space=vmem, size = 0x200, scoped, tag = 'scoped memory for _siren_pallas.1']
  %s0 = inlined_call_operand.vmem [shape: f32[1,256], index: 0, kind: input, shape index: {}]
  %s1 = inlined_call_operand.vmem [shape: f32[128,1], index: 1, kind: input, shape index: {}]
  %s2 = inlined_call_operand.vmem [shape: f32[128,1], index: 2, kind: input, shape index: {}]
  %s3 = inlined_call_operand.vmem [shape: f32[128,128], index: 3, kind: input, shape index: {}]
  %s4 = inlined_call_operand.vmem [shape: f32[128,1], index: 4, kind: input, shape index: {}]
  %s5 = inlined_call_operand.vmem [shape: f32[128,128], index: 5, kind: input, shape index: {}]
  %s6 = inlined_call_operand.vmem [shape: f32[128,1], index: 6, kind: input, shape index: {}]
  %s7 = inlined_call_operand.vmem [shape: f32[128,128], index: 7, kind: input, shape index: {}]
  %s8 = inlined_call_operand.vmem [shape: f32[128,1], index: 8, kind: input, shape index: {}]
  %s9 = inlined_call_operand.vmem [shape: f32[1,128], index: 9, kind: input, shape index: {}]
  %s10 = inlined_call_operand.<no memory space> [shape: f32[1,1], index: 10, kind: input, shape index: {}]
  %s11 = inlined_call_operand.hbm [shape: f32[1,256], index: 11, kind: output, shape index: {}]
  %s12 = sld [smem:[#allocation0]]
  $region77: #{_siren_pallas.1} parent=0
    _
  %s14 = ssub.s32 1, %s12
  %s15 = scalar_select 0, %s14, %s12
  %v16 = vstv %s10
  %17 = vst [vmem:[#allocation2] sm:$0x1] %v16
  $region1: #{_siren_pallas.1} parent=0
    #allocation3 [shape = 'u8[1024]{0}', space=vmem, size = 0x400, scoped, tag = 'output window, operand 0']
    #allocation4 [shape = 's32[2]{0}', space=sflag, size = 0x8, scoped, tag = 'scoped memory for _siren_pallas.1']
    %18 = vsyncpa [#allocation4], 0
    %s19 = scalar_lea.sflag [#allocation4], 1
    %20 = vsyncpa %s19, 0
    loop: start=0, step=1, limit=4
    $region2: #{_siren_pallas.1} parent=1 // loop_pre_header
      _
    $region3: #{_siren_pallas.1} parent=1 // loop_header
      %s22 = sphi 0, %s26
      %p23 = scmp.ge.s32.totalorder %s22, 4
      %s32 = sphi 0, %s34
      %s35 = sphi 0, %s32
      %s36 = sphi 0, %s35
      %s52 = sphi 0, %s36
      %s56 = sphi 0, %s56
      %s58 = sphi 0, %s56
      %s59 = sphi 0, %s58
      %s73 = sphi 0, %s59
      %s77 = sphi 0, %s77
      %s79 = sphi 0, %s77
      %s80 = sphi 0, %s79
      %s94 = sphi 0, %s80
      %s98 = sphi 0, %s98
      %s100 = sphi 0, %s98
      %s101 = sphi 0, %s100
      %s115 = sphi 0, %s101
      %s119 = sphi 0, %s119
      %s121 = sphi 0, %s119
      %s122 = sphi 0, %s121
      %s136 = sphi 0, %s122
      %s140 = sphi 0, %s140
      %s142 = sphi 0, %s140
      %s143 = sphi 0, %s142
      %s157 = sphi 0, %s143
      %s161 = sphi 0, %s161
      %s163 = sphi 0, %s161
      %s164 = sphi 0, %s163
      %s178 = sphi 0, %s164
      %s182 = sphi 0, %s182
      %s184 = sphi 0, %s182
      %s185 = sphi 0, %s184
      %s199 = sphi 0, %s185
      %s203 = sphi 0, %s203
      %s205 = sphi 0, %s203
      %s206 = sphi 0, %s205
      %s220 = sphi 0, %s206
      %s224 = sphi 0, %s224
      %s226 = sphi 0, %s224
      %s227 = sphi 0, %s226
      %s241 = sphi 0, %s227
      %s245 = sphi 0, %s245
      %s247 = sphi 0, %s245
      %s248 = sphi 0, %s247
      %s262 = sphi 0, %s248
      %s268 = sphi 0, %s270
      %s271 = sphi 0, %s268
      %s272 = sphi 0, %s271
      %s288 = sphi 0, %s272
    $region4: #{_siren_pallas.1} parent=1 // loop_header_branch
      %25 = sbr.rel (%p23) target = $region8
    $region5: #{_siren_pallas.1} parent=1 // loop_body
      %s27 = ssub.s32 %s22, 1
      %s28 = ssub.s32 %s22, 2
      %s29 = sadd.s32 %s22, 1
      %s30 = ssub.s32 %s22, %s29
      %p31 = scmp.eq.s32.totalorder %s30, 0
      %s33 = sadd.s32 %s32, 1
      %s34 = scalar_select %p31, %s32, %s33
      %p37 = pneg %p31
      %p38 = scmp.eq.s32.totalorder %s22, 1
      %p39 = por %p37, %p38
      %p40 = scmp.ne.s32.totalorder %s32, %s35
      %p41 = scmp.eq.s32.totalorder %s22, 0
      %p42 = por %p40, %p41
      %p43 = scmp.ne.s32.totalorder %s32, %s35
      %p44 = scmp.eq.s32.totalorder %s27, 1
      %p45 = por %p43, %p44
      %p46 = scmp.ne.s32.totalorder %s35, %s36
      %p47 = scmp.eq.s32.totalorder %s27, 0
      %p48 = por %p46, %p47
      %p49 = scmp.ne.s32.totalorder %s35, %s36
      %p50 = scmp.eq.s32.totalorder %s28, 1
      %p51 = por %p49, %p50
      %p53 = scmp.ne.s32.totalorder %s36, %s52
      %p54 = scmp.eq.s32.totalorder %s28, 0
      %p55 = por %p53, %p54
      %s57 = sadd.s32 %s56, 1
      %p60 = scmp.eq.s32.totalorder %s22, 1
      %p61 = scmp.ne.s32.totalorder %s56, %s58
      %p62 = scmp.eq.s32.totalorder %s22, 0
      %p63 = por %p61, %p62
      %p64 = scmp.ne.s32.totalorder %s56, %s58
      %p65 = scmp.eq.s32.totalorder %s27, 1
      %p66 = por %p64, %p65
      %p67 = scmp.ne.s32.totalorder %s58, %s59
      %p68 = scmp.eq.s32.totalorder %s27, 0
      %p69 = por %p67, %p68
      %p70 = scmp.ne.s32.totalorder %s58, %s59
      %p71 = scmp.eq.s32.totalorder %s28, 1
      %p72 = por %p70, %p71
      %p74 = scmp.ne.s32.totalorder %s59, %s73
      %p75 = scmp.eq.s32.totalorder %s28, 0
      %p76 = por %p74, %p75
      %s78 = sadd.s32 %s77, 1
      %p81 = scmp.eq.s32.totalorder %s22, 1
      %p82 = scmp.ne.s32.totalorder %s77, %s79
      %p83 = scmp.eq.s32.totalorder %s22, 0
      %p84 = por %p82, %p83
      %p85 = scmp.ne.s32.totalorder %s77, %s79
      %p86 = scmp.eq.s32.totalorder %s27, 1
      %p87 = por %p85, %p86
      %p88 = scmp.ne.s32.totalorder %s79, %s80
      %p89 = scmp.eq.s32.totalorder %s27, 0
      %p90 = por %p88, %p89
      %p91 = scmp.ne.s32.totalorder %s79, %s80
      %p92 = scmp.eq.s32.totalorder %s28, 1
      %p93 = por %p91, %p92
      %p95 = scmp.ne.s32.totalorder %s80, %s94
      %p96 = scmp.eq.s32.totalorder %s28, 0
      %p97 = por %p95, %p96
      %s99 = sadd.s32 %s98, 1
      %p102 = scmp.eq.s32.totalorder %s22, 1
      %p103 = scmp.ne.s32.totalorder %s98, %s100
      %p104 = scmp.eq.s32.totalorder %s22, 0
      %p105 = por %p103, %p104
      %p106 = scmp.ne.s32.totalorder %s98, %s100
      %p107 = scmp.eq.s32.totalorder %s27, 1
      %p108 = por %p106, %p107
      %p109 = scmp.ne.s32.totalorder %s100, %s101
      %p110 = scmp.eq.s32.totalorder %s27, 0
      %p111 = por %p109, %p110
      %p112 = scmp.ne.s32.totalorder %s100, %s101
      %p113 = scmp.eq.s32.totalorder %s28, 1
      %p114 = por %p112, %p113
      %p116 = scmp.ne.s32.totalorder %s101, %s115
      %p117 = scmp.eq.s32.totalorder %s28, 0
      %p118 = por %p116, %p117
      %s120 = sadd.s32 %s119, 1
      %p123 = scmp.eq.s32.totalorder %s22, 1
      %p124 = scmp.ne.s32.totalorder %s119, %s121
      %p125 = scmp.eq.s32.totalorder %s22, 0
      %p126 = por %p124, %p125
      %p127 = scmp.ne.s32.totalorder %s119, %s121
      %p128 = scmp.eq.s32.totalorder %s27, 1
      %p129 = por %p127, %p128
      %p130 = scmp.ne.s32.totalorder %s121, %s122
      %p131 = scmp.eq.s32.totalorder %s27, 0
      %p132 = por %p130, %p131
      %p133 = scmp.ne.s32.totalorder %s121, %s122
      %p134 = scmp.eq.s32.totalorder %s28, 1
      %p135 = por %p133, %p134
      %p137 = scmp.ne.s32.totalorder %s122, %s136
      %p138 = scmp.eq.s32.totalorder %s28, 0
      %p139 = por %p137, %p138
      %s141 = sadd.s32 %s140, 1
      %p144 = scmp.eq.s32.totalorder %s22, 1
      %p145 = scmp.ne.s32.totalorder %s140, %s142
      %p146 = scmp.eq.s32.totalorder %s22, 0
      %p147 = por %p145, %p146
      %p148 = scmp.ne.s32.totalorder %s140, %s142
      %p149 = scmp.eq.s32.totalorder %s27, 1
      %p150 = por %p148, %p149
      %p151 = scmp.ne.s32.totalorder %s142, %s143
      %p152 = scmp.eq.s32.totalorder %s27, 0
      %p153 = por %p151, %p152
      %p154 = scmp.ne.s32.totalorder %s142, %s143
      %p155 = scmp.eq.s32.totalorder %s28, 1
      %p156 = por %p154, %p155
      %p158 = scmp.ne.s32.totalorder %s143, %s157
      %p159 = scmp.eq.s32.totalorder %s28, 0
      %p160 = por %p158, %p159
      %s162 = sadd.s32 %s161, 1
      %p165 = scmp.eq.s32.totalorder %s22, 1
      %p166 = scmp.ne.s32.totalorder %s161, %s163
      %p167 = scmp.eq.s32.totalorder %s22, 0
      %p168 = por %p166, %p167
      %p169 = scmp.ne.s32.totalorder %s161, %s163
      %p170 = scmp.eq.s32.totalorder %s27, 1
      %p171 = por %p169, %p170
      %p172 = scmp.ne.s32.totalorder %s163, %s164
      %p173 = scmp.eq.s32.totalorder %s27, 0
      %p174 = por %p172, %p173
      %p175 = scmp.ne.s32.totalorder %s163, %s164
      %p176 = scmp.eq.s32.totalorder %s28, 1
      %p177 = por %p175, %p176
      %p179 = scmp.ne.s32.totalorder %s164, %s178
      %p180 = scmp.eq.s32.totalorder %s28, 0
      %p181 = por %p179, %p180
      %s183 = sadd.s32 %s182, 1
      %p186 = scmp.eq.s32.totalorder %s22, 1
      %p187 = scmp.ne.s32.totalorder %s182, %s184
      %p188 = scmp.eq.s32.totalorder %s22, 0
      %p189 = por %p187, %p188
      %p190 = scmp.ne.s32.totalorder %s182, %s184
      %p191 = scmp.eq.s32.totalorder %s27, 1
      %p192 = por %p190, %p191
      %p193 = scmp.ne.s32.totalorder %s184, %s185
      %p194 = scmp.eq.s32.totalorder %s27, 0
      %p195 = por %p193, %p194
      %p196 = scmp.ne.s32.totalorder %s184, %s185
      %p197 = scmp.eq.s32.totalorder %s28, 1
      %p198 = por %p196, %p197
      %p200 = scmp.ne.s32.totalorder %s185, %s199
      %p201 = scmp.eq.s32.totalorder %s28, 0
      %p202 = por %p200, %p201
      %s204 = sadd.s32 %s203, 1
      %p207 = scmp.eq.s32.totalorder %s22, 1
      %p208 = scmp.ne.s32.totalorder %s203, %s205
      %p209 = scmp.eq.s32.totalorder %s22, 0
      %p210 = por %p208, %p209
      %p211 = scmp.ne.s32.totalorder %s203, %s205
      %p212 = scmp.eq.s32.totalorder %s27, 1
      %p213 = por %p211, %p212
      %p214 = scmp.ne.s32.totalorder %s205, %s206
      %p215 = scmp.eq.s32.totalorder %s27, 0
      %p216 = por %p214, %p215
      %p217 = scmp.ne.s32.totalorder %s205, %s206
      %p218 = scmp.eq.s32.totalorder %s28, 1
      %p219 = por %p217, %p218
      %p221 = scmp.ne.s32.totalorder %s206, %s220
      %p222 = scmp.eq.s32.totalorder %s28, 0
      %p223 = por %p221, %p222
      %s225 = sadd.s32 %s224, 1
      %p228 = scmp.eq.s32.totalorder %s22, 1
      %p229 = scmp.ne.s32.totalorder %s224, %s226
      %p230 = scmp.eq.s32.totalorder %s22, 0
      %p231 = por %p229, %p230
      %p232 = scmp.ne.s32.totalorder %s224, %s226
      %p233 = scmp.eq.s32.totalorder %s27, 1
      %p234 = por %p232, %p233
      %p235 = scmp.ne.s32.totalorder %s226, %s227
      %p236 = scmp.eq.s32.totalorder %s27, 0
      %p237 = por %p235, %p236
      %p238 = scmp.ne.s32.totalorder %s226, %s227
      %p239 = scmp.eq.s32.totalorder %s28, 1
      %p240 = por %p238, %p239
      %p242 = scmp.ne.s32.totalorder %s227, %s241
      %p243 = scmp.eq.s32.totalorder %s28, 0
      %p244 = por %p242, %p243
      %s246 = sadd.s32 %s245, 1
      %p249 = scmp.eq.s32.totalorder %s22, 1
      %p250 = scmp.ne.s32.totalorder %s245, %s247
      %p251 = scmp.eq.s32.totalorder %s22, 0
      %p252 = por %p250, %p251
      %p253 = scmp.ne.s32.totalorder %s245, %s247
      %p254 = scmp.eq.s32.totalorder %s27, 1
      %p255 = por %p253, %p254
      %p256 = scmp.ne.s32.totalorder %s247, %s248
      %p257 = scmp.eq.s32.totalorder %s27, 0
      %p258 = por %p256, %p257
      %p259 = scmp.ne.s32.totalorder %s247, %s248
      %p260 = scmp.eq.s32.totalorder %s28, 1
      %p261 = por %p259, %p260
      %p263 = scmp.ne.s32.totalorder %s248, %s262
      %p264 = scmp.eq.s32.totalorder %s28, 0
      %p265 = por %p263, %p264
      %s266 = ssub.s32 %s22, %s29
      %p267 = scmp.eq.s32.totalorder %s266, 0
      %s269 = sadd.s32 %s268, 1
      %s270 = scalar_select %p267, %s268, %s269
      %p273 = pneg %p267
      %p274 = scmp.eq.s32.totalorder %s22, 1
      %p275 = por %p273, %p274
      %p276 = scmp.ne.s32.totalorder %s268, %s271
      %p277 = scmp.eq.s32.totalorder %s22, 0
      %p278 = por %p276, %p277
      %p279 = scmp.ne.s32.totalorder %s268, %s271
      %p280 = scmp.eq.s32.totalorder %s27, 1
      %p281 = por %p279, %p280
      %p282 = scmp.ne.s32.totalorder %s271, %s272
      %p283 = scmp.eq.s32.totalorder %s27, 0
      %p284 = por %p282, %p283
      %p285 = scmp.ne.s32.totalorder %s271, %s272
      %p286 = scmp.eq.s32.totalorder %s28, 1
      %p287 = por %p285, %p286
      %p289 = scmp.ne.s32.totalorder %s272, %s288
      %p290 = scmp.eq.s32.totalorder %s28, 0
      %p291 = por %p289, %p290
      %p292 = scmp.le.s32.totalorder 1, %s22
      %p293 = scmp.lt.s32.totalorder %s22, 3
      %p294 = pnand %p292, %p293
      %p295 = pneg %p294
      // Predicated region
      $region9: #{_siren_pallas.1} parent=5 // pred_check
        _
      $region10: #{_siren_pallas.1} parent=5 // pred_check_branch
        %297 = sbr.rel (%p294) target = $region12
      $region11: #{_siren_pallas.1} parent=5 // pred_region
        %s298 = ssub.s32 %s22, 1
        // Predicated region
        $region13: #{_siren_pallas.1} parent=11 // pred_check
          %p299 = pneg %p69
        $region14: #{_siren_pallas.1} parent=11 // pred_check_branch
          %301 = sbr.rel (%p299) target = $region16
        $region15: #{_siren_pallas.1} parent=11 // pred_region
          _
        $region16: #{_siren_pallas.1} parent=11 // pred_fallthru
          _
        // Predicated region
        $region17: #{_siren_pallas.1} parent=11 // pred_check
          %p302 = pneg %p90
        $region18: #{_siren_pallas.1} parent=11 // pred_check_branch
          %304 = sbr.rel (%p302) target = $region20
        $region19: #{_siren_pallas.1} parent=11 // pred_region
          _
        $region20: #{_siren_pallas.1} parent=11 // pred_fallthru
          _
        // Predicated region
        $region21: #{_siren_pallas.1} parent=11 // pred_check
          %p305 = pneg %p111
        $region22: #{_siren_pallas.1} parent=11 // pred_check_branch
          %307 = sbr.rel (%p305) target = $region24
        $region23: #{_siren_pallas.1} parent=11 // pred_region
          _
        $region24: #{_siren_pallas.1} parent=11 // pred_fallthru
          _
        // Predicated region
        $region25: #{_siren_pallas.1} parent=11 // pred_check
          %p308 = pneg %p132
        $region26: #{_siren_pallas.1} parent=11 // pred_check_branch
          %310 = sbr.rel (%p308) target = $region28
        $region27: #{_siren_pallas.1} parent=11 // pred_region
          _
        $region28: #{_siren_pallas.1} parent=11 // pred_fallthru
          _
        // Predicated region
        $region29: #{_siren_pallas.1} parent=11 // pred_check
          %p311 = pneg %p153
        $region30: #{_siren_pallas.1} parent=11 // pred_check_branch
          %313 = sbr.rel (%p311) target = $region32
        $region31: #{_siren_pallas.1} parent=11 // pred_region
          _
        $region32: #{_siren_pallas.1} parent=11 // pred_fallthru
          _
        // Predicated region
        $region33: #{_siren_pallas.1} parent=11 // pred_check
          %p314 = pneg %p174
        $region34: #{_siren_pallas.1} parent=11 // pred_check_branch
          %316 = sbr.rel (%p314) target = $region36
        $region35: #{_siren_pallas.1} parent=11 // pred_region
          _
        $region36: #{_siren_pallas.1} parent=11 // pred_fallthru
          _
        // Predicated region
        $region37: #{_siren_pallas.1} parent=11 // pred_check
          %p317 = pneg %p195
        $region38: #{_siren_pallas.1} parent=11 // pred_check_branch
          %319 = sbr.rel (%p317) target = $region40
        $region39: #{_siren_pallas.1} parent=11 // pred_region
          _
        $region40: #{_siren_pallas.1} parent=11 // pred_fallthru
          _
        // Predicated region
        $region41: #{_siren_pallas.1} parent=11 // pred_check
          %p320 = pneg %p216
        $region42: #{_siren_pallas.1} parent=11 // pred_check_branch
          %322 = sbr.rel (%p320) target = $region44
        $region43: #{_siren_pallas.1} parent=11 // pred_region
          _
        $region44: #{_siren_pallas.1} parent=11 // pred_fallthru
          _
        // Predicated region
        $region45: #{_siren_pallas.1} parent=11 // pred_check
          %p323 = pneg %p237
        $region46: #{_siren_pallas.1} parent=11 // pred_check_branch
          %325 = sbr.rel (%p323) target = $region48
        $region47: #{_siren_pallas.1} parent=11 // pred_region
          _
        $region48: #{_siren_pallas.1} parent=11 // pred_fallthru
          _
        // Predicated region
        $region49: #{_siren_pallas.1} parent=11 // pred_check
          %p326 = pneg %p258
        $region50: #{_siren_pallas.1} parent=11 // pred_check_branch
          %328 = sbr.rel (%p326) target = $region52
        $region51: #{_siren_pallas.1} parent=11 // pred_region
          _
        $region52: #{_siren_pallas.1} parent=11 // pred_fallthru
          _
      $region12: #{_siren_pallas.1} parent=5 // pred_fallthru
        _
      %p329 = scmp.lt.s32.totalorder %s22, 2
      // Predicated region
      $region53: #{_siren_pallas.1} parent=5 // pred_check
        %p330 = pneg %p329
      $region54: #{_siren_pallas.1} parent=5 // pred_check_branch
        %332 = sbr.rel (%p330) target = $region56
      $region55: #{_siren_pallas.1} parent=5 // pred_region
        // Predicated region
        $region57: #{_siren_pallas.1} parent=55 // pred_check
          %p333 = pneg %p42
        $region58: #{_siren_pallas.1} parent=55 // pred_check_branch
          %335 = sbr.rel (%p333) target = $region60
        $region59: #{_siren_pallas.1} parent=55 // pred_region
          %p336 = scmp.lt.s32.totalorder %s22, 1
          %s337 = scalar_select %p336, %s22, 1
          %s338 = scalar_lea.vmem %s0, %s337
        $region60: #{_siren_pallas.1} parent=55 // pred_fallthru
          _
      $region56: #{_siren_pallas.1} parent=5 // pred_fallthru
        _
      %p339 = scmp.le.s32.totalorder 1, %s22
      %p340 = scmp.lt.s32.totalorder %s22, 3
      %p341 = pnand %p339, %p340
      %p342 = pneg %p341
      // Predicated region
      $region61: #{_siren_pallas.1} parent=5 // pred_check
        _
      $region62: #{_siren_pallas.1} parent=5 // pred_check_branch
        %344 = sbr.rel (%p341) target = $region64
      $region63: #{_siren_pallas.1} parent=5 // pred_region
        %s345 = ssub.s32 %s22, 1
        %p346 = scmp.lt.s32.totalorder %s27, 1
        %s347 = scalar_select %p346, %s27, 1
        %s348 = scalar_lea.vmem %s0, %s347
        %p349 = pneg %p48
        %p350 = pneg %p45
        %p351 = pneg %p69
        %p352 = pneg %p66
        %p353 = pneg %p90
        %p354 = pneg %p87
        %p355 = pneg %p111
        %p356 = pneg %p108
        %p357 = pneg %p132
        %p358 = pneg %p129
        %p359 = pneg %p153
        %p360 = pneg %p150
        %p361 = pneg %p174
        %p362 = pneg %p171
        %p363 = pneg %p195
        %p364 = pneg %p192
        %p365 = pneg %p216
        %p366 = pneg %p213
        %p367 = pneg %p237
        %p368 = pneg %p234
        %p369 = pneg %p258
        %p370 = pneg %p255
        %p371 = pneg %p284
        %p372 = pneg %p281
        %s373 = sand.u32 %s271, 1
        %s374 = scalar_lea.sflag [#allocation4], %s373
        %s375 = sand.u32 %s271, 1
        %s376 = scalar_lea.vmem [#allocation3], %s375
        %p377 = scmp.lt.s32.totalorder %s27, 1
        %s378 = scalar_select %p377, %s27, 1
        %s379 = scalar_lea.vmem %s0, %s378
        %v380 = vld [vmem:[%s379] sm:$0x1]
        %v381 = vld [vmem:[%s1] sm:$0xff]
        %v382 = vld [vmem:[%s1 + $0x8] sm:$0xff]
        %v383 = vld [vmem:[%s1 + $0x10] sm:$0xff]
        %v384 = vld [vmem:[%s1 + $0x18] sm:$0xff]
        %v385 = vld [vmem:[%s1 + $0x20] sm:$0xff]
        %v386 = vld [vmem:[%s1 + $0x28] sm:$0xff]
        %v387 = vld [vmem:[%s1 + $0x30] sm:$0xff]
        %v388 = vld [vmem:[%s1 + $0x38] sm:$0xff]
        %v389 = vld [vmem:[%s1 + $0x40] sm:$0xff]
        %v390 = vld [vmem:[%s1 + $0x48] sm:$0xff]
        %v391 = vld [vmem:[%s1 + $0x50] sm:$0xff]
        %v392 = vld [vmem:[%s1 + $0x58] sm:$0xff]
        %v393 = vld [vmem:[%s1 + $0x60] sm:$0xff]
        %v394 = vld [vmem:[%s1 + $0x68] sm:$0xff]
        %v395 = vld [vmem:[%s1 + $0x70] sm:$0xff]
        %v396 = vld [vmem:[%s1 + $0x78] sm:$0xff]
        %398 = vset.pattern.permute.xlu0 0
        %399 = vperm.xlu0 %398, %v381
        %v400 = vpop.permute.xlu0 %399
        %403 = vset.pattern.permute.xlu0 0
        %404 = vperm.xlu0 %403, %v382
        %v405 = vpop.permute.xlu0 %404
        %408 = vset.pattern.permute.xlu0 0
        %409 = vperm.xlu0 %408, %v383
        %v410 = vpop.permute.xlu0 %409
        %413 = vset.pattern.permute.xlu0 0
        %414 = vperm.xlu0 %413, %v384
        %v415 = vpop.permute.xlu0 %414
        %418 = vset.pattern.permute.xlu0 0
        %419 = vperm.xlu0 %418, %v385
        %v420 = vpop.permute.xlu0 %419
        %423 = vset.pattern.permute.xlu0 0
        %424 = vperm.xlu0 %423, %v386
        %v425 = vpop.permute.xlu0 %424
        %428 = vset.pattern.permute.xlu0 0
        %429 = vperm.xlu0 %428, %v387
        %v430 = vpop.permute.xlu0 %429
        %433 = vset.pattern.permute.xlu0 0
        %434 = vperm.xlu0 %433, %v388
        %v435 = vpop.permute.xlu0 %434
        %438 = vset.pattern.permute.xlu0 0
        %439 = vperm.xlu0 %438, %v389
        %v440 = vpop.permute.xlu0 %439
        %443 = vset.pattern.permute.xlu0 0
        %444 = vperm.xlu0 %443, %v390
        %v445 = vpop.permute.xlu0 %444
        %448 = vset.pattern.permute.xlu0 0
        %449 = vperm.xlu0 %448, %v391
        %v450 = vpop.permute.xlu0 %449
        %453 = vset.pattern.permute.xlu0 0
        %454 = vperm.xlu0 %453, %v392
        %v455 = vpop.permute.xlu0 %454
        %458 = vset.pattern.permute.xlu0 0
        %459 = vperm.xlu0 %458, %v393
        %v460 = vpop.permute.xlu0 %459
        %463 = vset.pattern.permute.xlu0 0
        %464 = vperm.xlu0 %463, %v394
        %v465 = vpop.permute.xlu0 %464
        %468 = vset.pattern.permute.xlu0 0
        %469 = vperm.xlu0 %468, %v395
        %v470 = vpop.permute.xlu0 %469
        %473 = vset.pattern.permute.xlu0 0
        %474 = vperm.xlu0 %473, %v396
        %v475 = vpop.permute.xlu0 %474
        %v478 = vlaneseq
        %v479 = vshrl.u32 %v478, 7
        %v480 = vsub.s32 0, %v479
        %v481 = vrot.slane %v380, %v480
        %v483 = vmul.f32 %v400, %v481
        %v484 = vmul.f32 %v405, %v481
        %v485 = vmul.f32 %v410, %v481
        %v486 = vmul.f32 %v415, %v481
        %v487 = vmul.f32 %v420, %v481
        %v488 = vmul.f32 %v425, %v481
        %v489 = vmul.f32 %v430, %v481
        %v490 = vmul.f32 %v435, %v481
        %v491 = vmul.f32 %v440, %v481
        %v492 = vmul.f32 %v445, %v481
        %v493 = vmul.f32 %v450, %v481
        %v494 = vmul.f32 %v455, %v481
        %v495 = vmul.f32 %v460, %v481
        %v496 = vmul.f32 %v465, %v481
        %v497 = vmul.f32 %v470, %v481
        %v498 = vmul.f32 %v475, %v481
        %v499 = vld [vmem:[%s2] sm:$0xff]
        %v500 = vld [vmem:[%s2 + $0x8] sm:$0xff]
        %v501 = vld [vmem:[%s2 + $0x10] sm:$0xff]
        %v502 = vld [vmem:[%s2 + $0x18] sm:$0xff]
        %v503 = vld [vmem:[%s2 + $0x20] sm:$0xff]
        %v504 = vld [vmem:[%s2 + $0x28] sm:$0xff]
        %v505 = vld [vmem:[%s2 + $0x30] sm:$0xff]
        %v506 = vld [vmem:[%s2 + $0x38] sm:$0xff]
        %v507 = vld [vmem:[%s2 + $0x40] sm:$0xff]
        %v508 = vld [vmem:[%s2 + $0x48] sm:$0xff]
        %v509 = vld [vmem:[%s2 + $0x50] sm:$0xff]
        %v510 = vld [vmem:[%s2 + $0x58] sm:$0xff]
        %v511 = vld [vmem:[%s2 + $0x60] sm:$0xff]
        %v512 = vld [vmem:[%s2 + $0x68] sm:$0xff]
        %v513 = vld [vmem:[%s2 + $0x70] sm:$0xff]
        %v514 = vld [vmem:[%s2 + $0x78] sm:$0xff]
        %516 = vset.pattern.permute.xlu0 0
        %517 = vperm.xlu0 %516, %v499
        %v518 = vpop.permute.xlu0 %517
        %521 = vset.pattern.permute.xlu0 0
        %522 = vperm.xlu0 %521, %v500
        %v523 = vpop.permute.xlu0 %522
        %526 = vset.pattern.permute.xlu0 0
        %527 = vperm.xlu0 %526, %v501
        %v528 = vpop.permute.xlu0 %527
        %531 = vset.pattern.permute.xlu0 0
        %532 = vperm.xlu0 %531, %v502
        %v533 = vpop.permute.xlu0 %532
        %536 = vset.pattern.permute.xlu0 0
        %537 = vperm.xlu0 %536, %v503
        %v538 = vpop.permute.xlu0 %537
        %541 = vset.pattern.permute.xlu0 0
        %542 = vperm.xlu0 %541, %v504
        %v543 = vpop.permute.xlu0 %542
        %546 = vset.pattern.permute.xlu0 0
        %547 = vperm.xlu0 %546, %v505
        %v548 = vpop.permute.xlu0 %547
        %551 = vset.pattern.permute.xlu0 0
        %552 = vperm.xlu0 %551, %v506
        %v553 = vpop.permute.xlu0 %552
        %556 = vset.pattern.permute.xlu0 0
        %557 = vperm.xlu0 %556, %v507
        %v558 = vpop.permute.xlu0 %557
        %561 = vset.pattern.permute.xlu0 0
        %562 = vperm.xlu0 %561, %v508
        %v563 = vpop.permute.xlu0 %562
        %566 = vset.pattern.permute.xlu0 0
        %567 = vperm.xlu0 %566, %v509
        %v568 = vpop.permute.xlu0 %567
        %571 = vset.pattern.permute.xlu0 0
        %572 = vperm.xlu0 %571, %v510
        %v573 = vpop.permute.xlu0 %572
        %576 = vset.pattern.permute.xlu0 0
        %577 = vperm.xlu0 %576, %v511
        %v578 = vpop.permute.xlu0 %577
        %581 = vset.pattern.permute.xlu0 0
        %582 = vperm.xlu0 %581, %v512
        %v583 = vpop.permute.xlu0 %582
        %586 = vset.pattern.permute.xlu0 0
        %587 = vperm.xlu0 %586, %v513
        %v588 = vpop.permute.xlu0 %587
        %591 = vset.pattern.permute.xlu0 0
        %592 = vperm.xlu0 %591, %v514
        %v593 = vpop.permute.xlu0 %592
        %v595 = vadd.f32 %v483, %v518
        %v596 = vadd.f32 %v484, %v523
        %v597 = vadd.f32 %v485, %v528
        %v598 = vadd.f32 %v486, %v533
        %v599 = vadd.f32 %v487, %v538
        %v600 = vadd.f32 %v488, %v543
        %v601 = vadd.f32 %v489, %v548
        %v602 = vadd.f32 %v490, %v553
        %v603 = vadd.f32 %v491, %v558
        %v604 = vadd.f32 %v492, %v563
        %v605 = vadd.f32 %v493, %v568
        %v606 = vadd.f32 %v494, %v573
        %v607 = vadd.f32 %v495, %v578
        %v608 = vadd.f32 %v496, %v583
        %v609 = vadd.f32 %v497, %v588
        %v610 = vadd.f32 %v498, %v593
        %v611 = vand.u32 2147483647, %v595
        %vm612 = vcmp.le.f32.partialorder %v611, 0.7853982
        %vm613 = vcmp.lt.s32.totalorder %v595, 0
        %v614 = vand.u32 %v595, 2139095040
        %v615 = vshrl.u32 %v614, 23
        %v616 = vsub.s32 %v615, 127
        %v617 = vand.u32 2147483647, %v595
        %v618 = vand.u32 %v617, 8388607
        %v619 = vor.u32 %v618, 8388608
        %v620 = vsub.s32 0, %v619
        %v621 = vadd.s32 %v616, 1
        %vm622 = vcmp.gt.s32.totalorder %v621, 0
        %v623 = vsel %vm622, %v621, 0
        %v624 = vshrl.u32 %v623, 5
        %v625 = vand.u32 %v623, 31
        %v626 = vsub.s32 32, %v625
        %v627 = vshrl.u32 683565275, %v626
        %v628 = vshll.u32 683565275, %v625
        %v629 = vshrl.u32 2475754826, %v626
        %v630 = vor.u32 %v628, %v629
        %v631 = vshll.u32 2475754826, %v625
        %v632 = vshrl.u32 2131351028, %v626
        %v633 = vor.u32 %v631, %v632
        %v634 = vshll.u32 2131351028, %v625
        %v635 = vshrl.u32 2102212464, %v626
        %v636 = vor.u32 %v634, %v635
        %v637 = vshll.u32 2102212464, %v625
        %v638 = vshrl.u32 920167782, %v626
        %v639 = vor.u32 %v637, %v638
        %v640 = vshll.u32 920167782, %v625
        %v641 = vshrl.u32 1326507024, %v626
        %v642 = vor.u32 %v640, %v641
        %vm643 = vcmp.lt.s32.totalorder %v624, 1
        %vm644 = vcmp.lt.s32.totalorder %v624, 2
        %vm645 = vcmp.lt.s32.totalorder %v624, 3
        %vm646 = vcmp.lt.s32.totalorder %v624, 4
        %v647 = vsel %vm643, %v627, %v630
        %v648 = vsel %vm646, %v636, 2102212464
        %v649 = vsel %vm645, %v633, %v648
        %v650 = vsel %vm644, %v647, %v649
        %v651 = vsel %vm643, %v630, %v633
        %v652 = vsel %vm646, %v639, 920167782
        %v653 = vsel %vm645, %v636, %v652
        %v654 = vsel %vm644, %v651, %v653
        %v655 = vsel %vm643, %v633, %v636
        %v656 = vsel %vm646, %v642, 1326507024
        %v657 = vsel %vm645, %v639, %v656
        %v658 = vsel %vm644, %v655, %v657
        %v659 = vshll.u32 %v619, 8
        %v660 = vmul.u32.u64.compose %v659, %v658
        %v661 = vextract.low.u32 %v660
        %v662 = vextract.high.u32 %v660
        %v663 = vmul.u32.u64.compose %v659, %v654
        %v664 = vextract.low.u32 %v663
        %v665 = vextract.high.u32 %v663
        %v666 = vmul.u32 %v659, %v650
        %v667 = vadd.s32 %v662, %v664
        %vm668 = vc.u32 %v662, %v664
        %v669 = vadd.s32 %v665, 1
        %v670 = vsel %vm668, %v669, %v665
        %v671 = vadd.s32 %v666, %v670
        %v672 = vadd.s32 %v671, 536870912
        %v673 = vshrl.u32 %v672, 30
        %v674 = vshll.u32 %v673, 30
        %v675 = vsub.s32 %v671, %v674
        %vm676 = vcmp.lt.s32.totalorder %v675, 0
        %v677 = vsub.s32 0, %v675
        %v678 = vsel %vm676, %v677, %v675
        %v679 = vclz %v678
        %v680 = vsub.s32 %v679, 2
        %vm681 = vcmp.gt.s32.totalorder 0, %v680
        %v682 = vsel %vm681, 0, %v680
        %v683 = vsub.s32 32, %v682
        %v684 = vshll.u32 %v675, %v682
        %v685 = vshrl.u32 %v667, %v683
        %v686 = vor.u32 %v684, %v685
        %v687 = vsub.s32 4294967266, %v682
        %v688 = vadd.s32 %v687, 127
        %v689 = vshll.u32 %v688, 23
        %v690 = vor.u32 4788187, %v689
        %v691 = vand.u32 2147483647, %v690
        %v693 = vcvt.s32.f32 %v686
        %v694 = vmul.f32 %v693, %v691
        %v695 = vxor.u32 %v694, 2147483648
        %v696 = vsel %vm613, %v695, %v694
        %v697 = vsub.s32 4, %v673
        %v698 = vsel %vm613, %v697, %v673
        %v699 = vsel %vm612, %v595, %v696
        %v700 = vsel %vm612, 0, %v698
        %v701 = vcosq.f32.pop %v699
        %v702 = vsinq.f32.pop %v699
        %vm703 = vweird.f32 %v595
        %v704 = vadd.s32 %v700, 3
        %v705 = vand.u32 %v704, 3
        %vm706 = vcmp.lt.s32.totalorder %v705, 2
        %vm707 = vcmp.eq.s32.totalorder %v705, 0
        %v708 = vxor.u32 %v702, 2147483648
        %v709 = vsel %vm707, %v701, %v708
        %vm710 = vcmp.eq.s32.totalorder %v705, 2
        %v711 = vxor.u32 %v701, 2147483648
        %v712 = vsel %vm710, %v711, %v702
        %v713 = vsel %vm706, %v709, %v712
        %v714 = vsel %vm703, nan, %v713
        %v715 = vand.u32 2147483647, %v596
        %vm716 = vcmp.le.f32.partialorder %v715, 0.7853982
        %vm717 = vcmp.lt.s32.totalorder %v596, 0
        %v718 = vand.u32 %v596, 2139095040
        %v719 = vshrl.u32 %v718, 23
        %v720 = vsub.s32 %v719, 127
        %v721 = vand.u32 2147483647, %v596
        %v722 = vand.u32 %v721, 8388607
        %v723 = vor.u32 %v722, 8388608
        %v724 = vsub.s32 0, %v723
        %v725 = vadd.s32 %v720, 1
        %vm726 = vcmp.gt.s32.totalorder %v725, 0
        %v727 = vsel %vm726, %v725, 0
        %v728 = vshrl.u32 %v727, 5
        %v729 = vand.u32 %v727, 31
        %v730 = vsub.s32 32, %v729
        %v731 = vshrl.u32 683565275, %v730
        %v732 = vshll.u32 683565275, %v729
        %v733 = vshrl.u32 2475754826, %v730
        %v734 = vor.u32 %v732, %v733
        %v735 = vshll.u32 2475754826, %v729
        %v736 = vshrl.u32 2131351028, %v730
        %v737 = vor.u32 %v735, %v736
        %v738 = vshll.u32 2131351028, %v729
        %v739 = vshrl.u32 2102212464, %v730
        %v740 = vor.u32 %v738, %v739
        %v741 = vshll.u32 2102212464, %v729
        %v742 = vshrl.u32 920167782, %v730
        %v743 = vor.u32 %v741, %v742
        %v744 = vshll.u32 920167782, %v729
        %v745 = vshrl.u32 1326507024, %v730
        %v746 = vor.u32 %v744, %v745
        %vm747 = vcmp.lt.s32.totalorder %v728, 1
        %vm748 = vcmp.lt.s32.totalorder %v728, 2
        %vm749 = vcmp.lt.s32.totalorder %v728, 3
        %vm750 = vcmp.lt.s32.totalorder %v728, 4
        %v751 = vsel %vm747, %v731, %v734
        %v752 = vsel %vm750, %v740, 2102212464
        %v753 = vsel %vm749, %v737, %v752
        %v754 = vsel %vm748, %v751, %v753
        %v755 = vsel %vm747, %v734, %v737
        %v756 = vsel %vm750, %v743, 920167782
        %v757 = vsel %vm749, %v740, %v756
        %v758 = vsel %vm748, %v755, %v757
        %v759 = vsel %vm747, %v737, %v740
        %v760 = vsel %vm750, %v746, 1326507024
        %v761 = vsel %vm749, %v743, %v760
        %v762 = vsel %vm748, %v759, %v761
        %v763 = vshll.u32 %v723, 8
        %v764 = vmul.u32.u64.compose %v763, %v762
        %v765 = vextract.low.u32 %v764
        %v766 = vextract.high.u32 %v764
        %v767 = vmul.u32.u64.compose %v763, %v758
        %v768 = vextract.low.u32 %v767
        %v769 = vextract.high.u32 %v767
        %v770 = vmul.u32 %v763, %v754
        %v771 = vadd.s32 %v766, %v768
        %vm772 = vc.u32 %v766, %v768
        %v773 = vadd.s32 %v769, 1
        %v774 = vsel %vm772, %v773, %v769
        %v775 = vadd.s32 %v770, %v774
        %v776 = vadd.s32 %v775, 536870912
        %v777 = vshrl.u32 %v776, 30
        %v778 = vshll.u32 %v777, 30
        %v779 = vsub.s32 %v775, %v778
        %vm780 = vcmp.lt.s32.totalorder %v779, 0
        %v781 = vsub.s32 0, %v779
        %v782 = vsel %vm780, %v781, %v779
        %v783 = vclz %v782
        %v784 = vsub.s32 %v783, 2
        %vm785 = vcmp.gt.s32.totalorder 0, %v784
        %v786 = vsel %vm785, 0, %v784
        %v787 = vsub.s32 32, %v786
        %v788 = vshll.u32 %v779, %v786
        %v789 = vshrl.u32 %v771, %v787
        %v790 = vor.u32 %v788, %v789
        %v791 = vsub.s32 4294967266, %v786
        %v792 = vadd.s32 %v791, 127
        %v793 = vshll.u32 %v792, 23
        %v794 = vor.u32 4788187, %v793
        %v795 = vand.u32 2147483647, %v794
        %v797 = vcvt.s32.f32 %v790
        %v798 = vmul.f32 %v797, %v795
        %v799 = vxor.u32 %v798, 2147483648
        %v800 = vsel %vm717, %v799, %v798
        %v801 = vsub.s32 4, %v777
        %v802 = vsel %vm717, %v801, %v777
        %v803 = vsel %vm716, %v596, %v800
        %v804 = vsel %vm716, 0, %v802
        %v805 = vcosq.f32.pop %v803
        %v806 = vsinq.f32.pop %v803
        %vm807 = vweird.f32 %v596
        %v808 = vadd.s32 %v804, 3
        %v809 = vand.u32 %v808, 3
        %vm810 = vcmp.lt.s32.totalorder %v809, 2
        %vm811 = vcmp.eq.s32.totalorder %v809, 0
        %v812 = vxor.u32 %v806, 2147483648
        %v813 = vsel %vm811, %v805, %v812
        %vm814 = vcmp.eq.s32.totalorder %v809, 2
        %v815 = vxor.u32 %v805, 2147483648
        %v816 = vsel %vm814, %v815, %v806
        %v817 = vsel %vm810, %v813, %v816
        %v818 = vsel %vm807, nan, %v817
        %v819 = vand.u32 2147483647, %v597
        %vm820 = vcmp.le.f32.partialorder %v819, 0.7853982
        %vm821 = vcmp.lt.s32.totalorder %v597, 0
        %v822 = vand.u32 %v597, 2139095040
        %v823 = vshrl.u32 %v822, 23
        %v824 = vsub.s32 %v823, 127
        %v825 = vand.u32 2147483647, %v597
        %v826 = vand.u32 %v825, 8388607
        %v827 = vor.u32 %v826, 8388608
        %v828 = vsub.s32 0, %v827
        %v829 = vadd.s32 %v824, 1
        %vm830 = vcmp.gt.s32.totalorder %v829, 0
        %v831 = vsel %vm830, %v829, 0
        %v832 = vshrl.u32 %v831, 5
        %v833 = vand.u32 %v831, 31
        %v834 = vsub.s32 32, %v833
        %v835 = vshrl.u32 683565275, %v834
        %v836 = vshll.u32 683565275, %v833
        %v837 = vshrl.u32 2475754826, %v834
        %v838 = vor.u32 %v836, %v837
        %v839 = vshll.u32 2475754826, %v833
        %v840 = vshrl.u32 2131351028, %v834
        %v841 = vor.u32 %v839, %v840
        %v842 = vshll.u32 2131351028, %v833
        %v843 = vshrl.u32 2102212464, %v834
        %v844 = vor.u32 %v842, %v843
        %v845 = vshll.u32 2102212464, %v833
        %v846 = vshrl.u32 920167782, %v834
        %v847 = vor.u32 %v845, %v846
        %v848 = vshll.u32 920167782, %v833
        %v849 = vshrl.u32 1326507024, %v834
        %v850 = vor.u32 %v848, %v849
        %vm851 = vcmp.lt.s32.totalorder %v832, 1
        %vm852 = vcmp.lt.s32.totalorder %v832, 2
        %vm853 = vcmp.lt.s32.totalorder %v832, 3
        %vm854 = vcmp.lt.s32.totalorder %v832, 4
        %v855 = vsel %vm851, %v835, %v838
        %v856 = vsel %vm854, %v844, 2102212464
        %v857 = vsel %vm853, %v841, %v856
        %v858 = vsel %vm852, %v855, %v857
        %v859 = vsel %vm851, %v838, %v841
        %v860 = vsel %vm854, %v847, 920167782
        %v861 = vsel %vm853, %v844, %v860
        %v862 = vsel %vm852, %v859, %v861
        %v863 = vsel %vm851, %v841, %v844
        %v864 = vsel %vm854, %v850, 1326507024
        %v865 = vsel %vm853, %v847, %v864
        %v866 = vsel %vm852, %v863, %v865
        %v867 = vshll.u32 %v827, 8
        %v868 = vmul.u32.u64.compose %v867, %v866
        %v869 = vextract.low.u32 %v868
        %v870 = vextract.high.u32 %v868
        %v871 = vmul.u32.u64.compose %v867, %v862
        %v872 = vextract.low.u32 %v871
        %v873 = vextract.high.u32 %v871
        %v874 = vmul.u32 %v867, %v858
        %v875 = vadd.s32 %v870, %v872
        %vm876 = vc.u32 %v870, %v872
        %v877 = vadd.s32 %v873, 1
        %v878 = vsel %vm876, %v877, %v873
        %v879 = vadd.s32 %v874, %v878
        %v880 = vadd.s32 %v879, 536870912
        %v881 = vshrl.u32 %v880, 30
        %v882 = vshll.u32 %v881, 30
        %v883 = vsub.s32 %v879, %v882
        %vm884 = vcmp.lt.s32.totalorder %v883, 0
        %v885 = vsub.s32 0, %v883
        %v886 = vsel %vm884, %v885, %v883
        %v887 = vclz %v886
        %v888 = vsub.s32 %v887, 2
        %vm889 = vcmp.gt.s32.totalorder 0, %v888
        %v890 = vsel %vm889, 0, %v888
        %v891 = vsub.s32 32, %v890
        %v892 = vshll.u32 %v883, %v890
        %v893 = vshrl.u32 %v875, %v891
        %v894 = vor.u32 %v892, %v893
        %v895 = vsub.s32 4294967266, %v890
        %v896 = vadd.s32 %v895, 127
        %v897 = vshll.u32 %v896, 23
        %v898 = vor.u32 4788187, %v897
        %v899 = vand.u32 2147483647, %v898
        %v901 = vcvt.s32.f32 %v894
        %v902 = vmul.f32 %v901, %v899
        %v903 = vxor.u32 %v902, 2147483648
        %v904 = vsel %vm821, %v903, %v902
        %v905 = vsub.s32 4, %v881
        %v906 = vsel %vm821, %v905, %v881
        %v907 = vsel %vm820, %v597, %v904
        %v908 = vsel %vm820, 0, %v906
        %v909 = vcosq.f32.pop %v907
        %v910 = vsinq.f32.pop %v907
        %vm911 = vweird.f32 %v597
        %v912 = vadd.s32 %v908, 3
        %v913 = vand.u32 %v912, 3
        %vm914 = vcmp.lt.s32.totalorder %v913, 2
        %vm915 = vcmp.eq.s32.totalorder %v913, 0
        %v916 = vxor.u32 %v910, 2147483648
        %v917 = vsel %vm915, %v909, %v916
        %vm918 = vcmp.eq.s32.totalorder %v913, 2
        %v919 = vxor.u32 %v909, 2147483648
        %v920 = vsel %vm918, %v919, %v910
        %v921 = vsel %vm914, %v917, %v920
        %v922 = vsel %vm911, nan, %v921
        %v923 = vand.u32 2147483647, %v598
        %vm924 = vcmp.le.f32.partialorder %v923, 0.7853982
        %vm925 = vcmp.lt.s32.totalorder %v598, 0
        %v926 = vand.u32 %v598, 2139095040
        %v927 = vshrl.u32 %v926, 23
        %v928 = vsub.s32 %v927, 127
        %v929 = vand.u32 2147483647, %v598
        %v930 = vand.u32 %v929, 8388607
        %v931 = vor.u32 %v930, 8388608
        %v932 = vsub.s32 0, %v931
        %v933 = vadd.s32 %v928, 1
        %vm934 = vcmp.gt.s32.totalorder %v933, 0
        %v935 = vsel %vm934, %v933, 0
        %v936 = vshrl.u32 %v935, 5
        %v937 = vand.u32 %v935, 31
        %v938 = vsub.s32 32, %v937
        %v939 = vshrl.u32 683565275, %v938
        %v940 = vshll.u32 683565275, %v937
        %v941 = vshrl.u32 2475754826, %v938
        %v942 = vor.u32 %v940, %v941
        %v943 = vshll.u32 2475754826, %v937
        %v944 = vshrl.u32 2131351028, %v938
        %v945 = vor.u32 %v943, %v944
        %v946 = vshll.u32 2131351028, %v937
        %v947 = vshrl.u32 2102212464, %v938
        %v948 = vor.u32 %v946, %v947
        %v949 = vshll.u32 2102212464, %v937
        %v950 = vshrl.u32 920167782, %v938
        %v951 = vor.u32 %v949, %v950
        %v952 = vshll.u32 920167782, %v937
        %v953 = vshrl.u32 1326507024, %v938
        %v954 = vor.u32 %v952, %v953
        %vm955 = vcmp.lt.s32.totalorder %v936, 1
        %vm956 = vcmp.lt.s32.totalorder %v936, 2
        %vm957 = vcmp.lt.s32.totalorder %v936, 3
        %vm958 = vcmp.lt.s32.totalorder %v936, 4
        %v959 = vsel %vm955, %v939, %v942
        %v960 = vsel %vm958, %v948, 2102212464
        %v961 = vsel %vm957, %v945, %v960
        %v962 = vsel %vm956, %v959, %v961
        %v963 = vsel %vm955, %v942, %v945
        %v964 = vsel %vm958, %v951, 920167782
        %v965 = vsel %vm957, %v948, %v964
        %v966 = vsel %vm956, %v963, %v965
        %v967 = vsel %vm955, %v945, %v948
        %v968 = vsel %vm958, %v954, 1326507024
        %v969 = vsel %vm957, %v951, %v968
        %v970 = vsel %vm956, %v967, %v969
        %v971 = vshll.u32 %v931, 8
        %v972 = vmul.u32.u64.compose %v971, %v970
        %v973 = vextract.low.u32 %v972
        %v974 = vextract.high.u32 %v972
        %v975 = vmul.u32.u64.compose %v971, %v966
        %v976 = vextract.low.u32 %v975
        %v977 = vextract.high.u32 %v975
        %v978 = vmul.u32 %v971, %v962
        %v979 = vadd.s32 %v974, %v976
        %vm980 = vc.u32 %v974, %v976
        %v981 = vadd.s32 %v977, 1
        %v982 = vsel %vm980, %v981, %v977
        %v983 = vadd.s32 %v978, %v982
        %v984 = vadd.s32 %v983, 536870912
        %v985 = vshrl.u32 %v984, 30
        %v986 = vshll.u32 %v985, 30
        %v987 = vsub.s32 %v983, %v986
        %vm988 = vcmp.lt.s32.totalorder %v987, 0
        %v989 = vsub.s32 0, %v987
        %v990 = vsel %vm988, %v989, %v987
        %v991 = vclz %v990
        %v992 = vsub.s32 %v991, 2
        %vm993 = vcmp.gt.s32.totalorder 0, %v992
        %v994 = vsel %vm993, 0, %v992
        %v995 = vsub.s32 32, %v994
        %v996 = vshll.u32 %v987, %v994
        %v997 = vshrl.u32 %v979, %v995
        %v998 = vor.u32 %v996, %v997
        %v999 = vsub.s32 4294967266, %v994
        %v1000 = vadd.s32 %v999, 127
        %v1001 = vshll.u32 %v1000, 23
        %v1002 = vor.u32 4788187, %v1001
        %v1003 = vand.u32 2147483647, %v1002
        %v1005 = vcvt.s32.f32 %v998
        %v1006 = vmul.f32 %v1005, %v1003
        %v1007 = vxor.u32 %v1006, 2147483648
        %v1008 = vsel %vm925, %v1007, %v1006
        %v1009 = vsub.s32 4, %v985
        %v1010 = vsel %vm925, %v1009, %v985
        %v1011 = vsel %vm924, %v598, %v1008
        %v1012 = vsel %vm924, 0, %v1010
        %v1013 = vcosq.f32.pop %v1011
        %v1014 = vsinq.f32.pop %v1011
        %vm1015 = vweird.f32 %v598
        %v1016 = vadd.s32 %v1012, 3
        %v1017 = vand.u32 %v1016, 3
        %vm1018 = vcmp.lt.s32.totalorder %v1017, 2
        %vm1019 = vcmp.eq.s32.totalorder %v1017, 0
        %v1020 = vxor.u32 %v1014, 2147483648
        %v1021 = vsel %vm1019, %v1013, %v1020
        %vm1022 = vcmp.eq.s32.totalorder %v1017, 2
        %v1023 = vxor.u32 %v1013, 2147483648
        %v1024 = vsel %vm1022, %v1023, %v1014
        %v1025 = vsel %vm1018, %v1021, %v1024
        %v1026 = vsel %vm1015, nan, %v1025
        %v1027 = vand.u32 2147483647, %v599
        %vm1028 = vcmp.le.f32.partialorder %v1027, 0.7853982
        %vm1029 = vcmp.lt.s32.totalorder %v599, 0
        %v1030 = vand.u32 %v599, 2139095040
        %v1031 = vshrl.u32 %v1030, 23
        %v1032 = vsub.s32 %v1031, 127
        %v1033 = vand.u32 2147483647, %v599
        %v1034 = vand.u32 %v1033, 8388607
        %v1035 = vor.u32 %v1034, 8388608
        %v1036 = vsub.s32 0, %v1035
        %v1037 = vadd.s32 %v1032, 1
        %vm1038 = vcmp.gt.s32.totalorder %v1037, 0
        %v1039 = vsel %vm1038, %v1037, 0
        %v1040 = vshrl.u32 %v1039, 5
        %v1041 = vand.u32 %v1039, 31
        %v1042 = vsub.s32 32, %v1041
        %v1043 = vshrl.u32 683565275, %v1042
        %v1044 = vshll.u32 683565275, %v1041
        %v1045 = vshrl.u32 2475754826, %v1042
        %v1046 = vor.u32 %v1044, %v1045
        %v1047 = vshll.u32 2475754826, %v1041
        %v1048 = vshrl.u32 2131351028, %v1042
        %v1049 = vor.u32 %v1047, %v1048
        %v1050 = vshll.u32 2131351028, %v1041
        %v1051 = vshrl.u32 2102212464, %v1042
        %v1052 = vor.u32 %v1050, %v1051
        %v1053 = vshll.u32 2102212464, %v1041
        %v1054 = vshrl.u32 920167782, %v1042
        %v1055 = vor.u32 %v1053, %v1054
        %v1056 = vshll.u32 920167782, %v1041
        %v1057 = vshrl.u32 1326507024, %v1042
        %v1058 = vor.u32 %v1056, %v1057
        %vm1059 = vcmp.lt.s32.totalorder %v1040, 1
        %vm1060 = vcmp.lt.s32.totalorder %v1040, 2
        %vm1061 = vcmp.lt.s32.totalorder %v1040, 3
        %vm1062 = vcmp.lt.s32.totalorder %v1040, 4
        %v1063 = vsel %vm1059, %v1043, %v1046
        %v1064 = vsel %vm1062, %v1052, 2102212464
        %v1065 = vsel %vm1061, %v1049, %v1064
        %v1066 = vsel %vm1060, %v1063, %v1065
        %v1067 = vsel %vm1059, %v1046, %v1049
        %v1068 = vsel %vm1062, %v1055, 920167782
        %v1069 = vsel %vm1061, %v1052, %v1068
        %v1070 = vsel %vm1060, %v1067, %v1069
        %v1071 = vsel %vm1059, %v1049, %v1052
        %v1072 = vsel %vm1062, %v1058, 1326507024
        %v1073 = vsel %vm1061, %v1055, %v1072
        %v1074 = vsel %vm1060, %v1071, %v1073
        %v1075 = vshll.u32 %v1035, 8
        %v1076 = vmul.u32.u64.compose %v1075, %v1074
        %v1077 = vextract.low.u32 %v1076
        %v1078 = vextract.high.u32 %v1076
        %v1079 = vmul.u32.u64.compose %v1075, %v1070
        %v1080 = vextract.low.u32 %v1079
        %v1081 = vextract.high.u32 %v1079
        %v1082 = vmul.u32 %v1075, %v1066
        %v1083 = vadd.s32 %v1078, %v1080
        %vm1084 = vc.u32 %v1078, %v1080
        %v1085 = vadd.s32 %v1081, 1
        %v1086 = vsel %vm1084, %v1085, %v1081
        %v1087 = vadd.s32 %v1082, %v1086
        %v1088 = vadd.s32 %v1087, 536870912
        %v1089 = vshrl.u32 %v1088, 30
        %v1090 = vshll.u32 %v1089, 30
        %v1091 = vsub.s32 %v1087, %v1090
        %vm1092 = vcmp.lt.s32.totalorder %v1091, 0
        %v1093 = vsub.s32 0, %v1091
        %v1094 = vsel %vm1092, %v1093, %v1091
        %v1095 = vclz %v1094
        %v1096 = vsub.s32 %v1095, 2
        %vm1097 = vcmp.gt.s32.totalorder 0, %v1096
        %v1098 = vsel %vm1097, 0, %v1096
        %v1099 = vsub.s32 32, %v1098
        %v1100 = vshll.u32 %v1091, %v1098
        %v1101 = vshrl.u32 %v1083, %v1099
        %v1102 = vor.u32 %v1100, %v1101
        %v1103 = vsub.s32 4294967266, %v1098
        %v1104 = vadd.s32 %v1103, 127
        %v1105 = vshll.u32 %v1104, 23
        %v1106 = vor.u32 4788187, %v1105
        %v1107 = vand.u32 2147483647, %v1106
        %v1109 = vcvt.s32.f32 %v1102
        %v1110 = vmul.f32 %v1109, %v1107
        %v1111 = vxor.u32 %v1110, 2147483648
        %v1112 = vsel %vm1029, %v1111, %v1110
        %v1113 = vsub.s32 4, %v1089
        %v1114 = vsel %vm1029, %v1113, %v1089
        %v1115 = vsel %vm1028, %v599, %v1112
        %v1116 = vsel %vm1028, 0, %v1114
        %v1117 = vcosq.f32.pop %v1115
        %v1118 = vsinq.f32.pop %v1115
        %vm1119 = vweird.f32 %v599
        %v1120 = vadd.s32 %v1116, 3
        %v1121 = vand.u32 %v1120, 3
        %vm1122 = vcmp.lt.s32.totalorder %v1121, 2
        %vm1123 = vcmp.eq.s32.totalorder %v1121, 0
        %v1124 = vxor.u32 %v1118, 2147483648
        %v1125 = vsel %vm1123, %v1117, %v1124
        %vm1126 = vcmp.eq.s32.totalorder %v1121, 2
        %v1127 = vxor.u32 %v1117, 2147483648
        %v1128 = vsel %vm1126, %v1127, %v1118
        %v1129 = vsel %vm1122, %v1125, %v1128
        %v1130 = vsel %vm1119, nan, %v1129
        %v1131 = vand.u32 2147483647, %v600
        %vm1132 = vcmp.le.f32.partialorder %v1131, 0.7853982
        %vm1133 = vcmp.lt.s32.totalorder %v600, 0
        %v1134 = vand.u32 %v600, 2139095040
        %v1135 = vshrl.u32 %v1134, 23
        %v1136 = vsub.s32 %v1135, 127
        %v1137 = vand.u32 2147483647, %v600
        %v1138 = vand.u32 %v1137, 8388607
        %v1139 = vor.u32 %v1138, 8388608
        %v1140 = vsub.s32 0, %v1139
        %v1141 = vadd.s32 %v1136, 1
        %vm1142 = vcmp.gt.s32.totalorder %v1141, 0
        %v1143 = vsel %vm1142, %v1141, 0
        %v1144 = vshrl.u32 %v1143, 5
        %v1145 = vand.u32 %v1143, 31
        %v1146 = vsub.s32 32, %v1145
        %v1147 = vshrl.u32 683565275, %v1146
        %v1148 = vshll.u32 683565275, %v1145
        %v1149 = vshrl.u32 2475754826, %v1146
        %v1150 = vor.u32 %v1148, %v1149
        %v1151 = vshll.u32 2475754826, %v1145
        %v1152 = vshrl.u32 2131351028, %v1146
        %v1153 = vor.u32 %v1151, %v1152
        %v1154 = vshll.u32 2131351028, %v1145
        %v1155 = vshrl.u32 2102212464, %v1146
        %v1156 = vor.u32 %v1154, %v1155
        %v1157 = vshll.u32 2102212464, %v1145
        %v1158 = vshrl.u32 920167782, %v1146
        %v1159 = vor.u32 %v1157, %v1158
        %v1160 = vshll.u32 920167782, %v1145
        %v1161 = vshrl.u32 1326507024, %v1146
        %v1162 = vor.u32 %v1160, %v1161
        %vm1163 = vcmp.lt.s32.totalorder %v1144, 1
        %vm1164 = vcmp.lt.s32.totalorder %v1144, 2
        %vm1165 = vcmp.lt.s32.totalorder %v1144, 3
        %vm1166 = vcmp.lt.s32.totalorder %v1144, 4
        %v1167 = vsel %vm1163, %v1147, %v1150
        %v1168 = vsel %vm1166, %v1156, 2102212464
        %v1169 = vsel %vm1165, %v1153, %v1168
        %v1170 = vsel %vm1164, %v1167, %v1169
        %v1171 = vsel %vm1163, %v1150, %v1153
        %v1172 = vsel %vm1166, %v1159, 920167782
        %v1173 = vsel %vm1165, %v1156, %v1172
        %v1174 = vsel %vm1164, %v1171, %v1173
        %v1175 = vsel %vm1163, %v1153, %v1156
        %v1176 = vsel %vm1166, %v1162, 1326507024
        %v1177 = vsel %vm1165, %v1159, %v1176
        %v1178 = vsel %vm1164, %v1175, %v1177
        %v1179 = vshll.u32 %v1139, 8
        %v1180 = vmul.u32.u64.compose %v1179, %v1178
        %v1181 = vextract.low.u32 %v1180
        %v1182 = vextract.high.u32 %v1180
        %v1183 = vmul.u32.u64.compose %v1179, %v1174
        %v1184 = vextract.low.u32 %v1183
        %v1185 = vextract.high.u32 %v1183
        %v1186 = vmul.u32 %v1179, %v1170
        %v1187 = vadd.s32 %v1182, %v1184
        %vm1188 = vc.u32 %v1182, %v1184
        %v1189 = vadd.s32 %v1185, 1
        %v1190 = vsel %vm1188, %v1189, %v1185
        %v1191 = vadd.s32 %v1186, %v1190
        %v1192 = vadd.s32 %v1191, 536870912
        %v1193 = vshrl.u32 %v1192, 30
        %v1194 = vshll.u32 %v1193, 30
        %v1195 = vsub.s32 %v1191, %v1194
        %vm1196 = vcmp.lt.s32.totalorder %v1195, 0
        %v1197 = vsub.s32 0, %v1195
        %v1198 = vsel %vm1196, %v1197, %v1195
        %v1199 = vclz %v1198
        %v1200 = vsub.s32 %v1199, 2
        %vm1201 = vcmp.gt.s32.totalorder 0, %v1200
        %v1202 = vsel %vm1201, 0, %v1200
        %v1203 = vsub.s32 32, %v1202
        %v1204 = vshll.u32 %v1195, %v1202
        %v1205 = vshrl.u32 %v1187, %v1203
        %v1206 = vor.u32 %v1204, %v1205
        %v1207 = vsub.s32 4294967266, %v1202
        %v1208 = vadd.s32 %v1207, 127
        %v1209 = vshll.u32 %v1208, 23
        %v1210 = vor.u32 4788187, %v1209
        %v1211 = vand.u32 2147483647, %v1210
        %v1213 = vcvt.s32.f32 %v1206
        %v1214 = vmul.f32 %v1213, %v1211
        %v1215 = vxor.u32 %v1214, 2147483648
        %v1216 = vsel %vm1133, %v1215, %v1214
        %v1217 = vsub.s32 4, %v1193
        %v1218 = vsel %vm1133, %v1217, %v1193
        %v1219 = vsel %vm1132, %v600, %v1216
        %v1220 = vsel %vm1132, 0, %v1218
        %v1221 = vcosq.f32.pop %v1219
        %v1222 = vsinq.f32.pop %v1219
        %vm1223 = vweird.f32 %v600
        %v1224 = vadd.s32 %v1220, 3
        %v1225 = vand.u32 %v1224, 3
        %vm1226 = vcmp.lt.s32.totalorder %v1225, 2
        %vm1227 = vcmp.eq.s32.totalorder %v1225, 0
        %v1228 = vxor.u32 %v1222, 2147483648
        %v1229 = vsel %vm1227, %v1221, %v1228
        %vm1230 = vcmp.eq.s32.totalorder %v1225, 2
        %v1231 = vxor.u32 %v1221, 2147483648
        %v1232 = vsel %vm1230, %v1231, %v1222
        %v1233 = vsel %vm1226, %v1229, %v1232
        %v1234 = vsel %vm1223, nan, %v1233
        %v1235 = vand.u32 2147483647, %v601
        %vm1236 = vcmp.le.f32.partialorder %v1235, 0.7853982
        %vm1237 = vcmp.lt.s32.totalorder %v601, 0
        %v1238 = vand.u32 %v601, 2139095040
        %v1239 = vshrl.u32 %v1238, 23
        %v1240 = vsub.s32 %v1239, 127
        %v1241 = vand.u32 2147483647, %v601
        %v1242 = vand.u32 %v1241, 8388607
        %v1243 = vor.u32 %v1242, 8388608
        %v1244 = vsub.s32 0, %v1243
        %v1245 = vadd.s32 %v1240, 1
        %vm1246 = vcmp.gt.s32.totalorder %v1245, 0
        %v1247 = vsel %vm1246, %v1245, 0
        %v1248 = vshrl.u32 %v1247, 5
        %v1249 = vand.u32 %v1247, 31
        %v1250 = vsub.s32 32, %v1249
        %v1251 = vshrl.u32 683565275, %v1250
        %v1252 = vshll.u32 683565275, %v1249
        %v1253 = vshrl.u32 2475754826, %v1250
        %v1254 = vor.u32 %v1252, %v1253
        %v1255 = vshll.u32 2475754826, %v1249
        %v1256 = vshrl.u32 2131351028, %v1250
        %v1257 = vor.u32 %v1255, %v1256
        %v1258 = vshll.u32 2131351028, %v1249
        %v1259 = vshrl.u32 2102212464, %v1250
        %v1260 = vor.u32 %v1258, %v1259
        %v1261 = vshll.u32 2102212464, %v1249
        %v1262 = vshrl.u32 920167782, %v1250
        %v1263 = vor.u32 %v1261, %v1262
        %v1264 = vshll.u32 920167782, %v1249
        %v1265 = vshrl.u32 1326507024, %v1250
        %v1266 = vor.u32 %v1264, %v1265
        %vm1267 = vcmp.lt.s32.totalorder %v1248, 1
        %vm1268 = vcmp.lt.s32.totalorder %v1248, 2
        %vm1269 = vcmp.lt.s32.totalorder %v1248, 3
        %vm1270 = vcmp.lt.s32.totalorder %v1248, 4
        %v1271 = vsel %vm1267, %v1251, %v1254
        %v1272 = vsel %vm1270, %v1260, 2102212464
        %v1273 = vsel %vm1269, %v1257, %v1272
        %v1274 = vsel %vm1268, %v1271, %v1273
        %v1275 = vsel %vm1267, %v1254, %v1257
        %v1276 = vsel %vm1270, %v1263, 920167782
        %v1277 = vsel %vm1269, %v1260, %v1276
        %v1278 = vsel %vm1268, %v1275, %v1277
        %v1279 = vsel %vm1267, %v1257, %v1260
        %v1280 = vsel %vm1270, %v1266, 1326507024
        %v1281 = vsel %vm1269, %v1263, %v1280
        %v1282 = vsel %vm1268, %v1279, %v1281
        %v1283 = vshll.u32 %v1243, 8
        %v1284 = vmul.u32.u64.compose %v1283, %v1282
        %v1285 = vextract.low.u32 %v1284
        %v1286 = vextract.high.u32 %v1284
        %v1287 = vmul.u32.u64.compose %v1283, %v1278
        %v1288 = vextract.low.u32 %v1287
        %v1289 = vextract.high.u32 %v1287
        %v1290 = vmul.u32 %v1283, %v1274
        %v1291 = vadd.s32 %v1286, %v1288
        %vm1292 = vc.u32 %v1286, %v1288
        %v1293 = vadd.s32 %v1289, 1
        %v1294 = vsel %vm1292, %v1293, %v1289
        %v1295 = vadd.s32 %v1290, %v1294
        %v1296 = vadd.s32 %v1295, 536870912
        %v1297 = vshrl.u32 %v1296, 30
        %v1298 = vshll.u32 %v1297, 30
        %v1299 = vsub.s32 %v1295, %v1298
        %vm1300 = vcmp.lt.s32.totalorder %v1299, 0
        %v1301 = vsub.s32 0, %v1299
        %v1302 = vsel %vm1300, %v1301, %v1299
        %v1303 = vclz %v1302
        %v1304 = vsub.s32 %v1303, 2
        %vm1305 = vcmp.gt.s32.totalorder 0, %v1304
        %v1306 = vsel %vm1305, 0, %v1304
        %v1307 = vsub.s32 32, %v1306
        %v1308 = vshll.u32 %v1299, %v1306
        %v1309 = vshrl.u32 %v1291, %v1307
        %v1310 = vor.u32 %v1308, %v1309
        %v1311 = vsub.s32 4294967266, %v1306
        %v1312 = vadd.s32 %v1311, 127
        %v1313 = vshll.u32 %v1312, 23
        %v1314 = vor.u32 4788187, %v1313
        %v1315 = vand.u32 2147483647, %v1314
        %v1317 = vcvt.s32.f32 %v1310
        %v1318 = vmul.f32 %v1317, %v1315
        %v1319 = vxor.u32 %v1318, 2147483648
        %v1320 = vsel %vm1237, %v1319, %v1318
        %v1321 = vsub.s32 4, %v1297
        %v1322 = vsel %vm1237, %v1321, %v1297
        %v1323 = vsel %vm1236, %v601, %v1320
        %v1324 = vsel %vm1236, 0, %v1322
        %v1325 = vcosq.f32.pop %v1323
        %v1326 = vsinq.f32.pop %v1323
        %vm1327 = vweird.f32 %v601
        %v1328 = vadd.s32 %v1324, 3
        %v1329 = vand.u32 %v1328, 3
        %vm1330 = vcmp.lt.s32.totalorder %v1329, 2
        %vm1331 = vcmp.eq.s32.totalorder %v1329, 0
        %v1332 = vxor.u32 %v1326, 2147483648
        %v1333 = vsel %vm1331, %v1325, %v1332
        %vm1334 = vcmp.eq.s32.totalorder %v1329, 2
        %v1335 = vxor.u32 %v1325, 2147483648
        %v1336 = vsel %vm1334, %v1335, %v1326
        %v1337 = vsel %vm1330, %v1333, %v1336
        %v1338 = vsel %vm1327, nan, %v1337
        %v1339 = vand.u32 2147483647, %v602
        %vm1340 = vcmp.le.f32.partialorder %v1339, 0.7853982
        %vm1341 = vcmp.lt.s32.totalorder %v602, 0
        %v1342 = vand.u32 %v602, 2139095040
        %v1343 = vshrl.u32 %v1342, 23
        %v1344 = vsub.s32 %v1343, 127
        %v1345 = vand.u32 2147483647, %v602
        %v1346 = vand.u32 %v1345, 8388607
        %v1347 = vor.u32 %v1346, 8388608
        %v1348 = vsub.s32 0, %v1347
        %v1349 = vadd.s32 %v1344, 1
        %vm1350 = vcmp.gt.s32.totalorder %v1349, 0
        %v1351 = vsel %vm1350, %v1349, 0
        %v1352 = vshrl.u32 %v1351, 5
        %v1353 = vand.u32 %v1351, 31
        %v1354 = vsub.s32 32, %v1353
        %v1355 = vshrl.u32 683565275, %v1354
        %v1356 = vshll.u32 683565275, %v1353
        %v1357 = vshrl.u32 2475754826, %v1354
        %v1358 = vor.u32 %v1356, %v1357
        %v1359 = vshll.u32 2475754826, %v1353
        %v1360 = vshrl.u32 2131351028, %v1354
        %v1361 = vor.u32 %v1359, %v1360
        %v1362 = vshll.u32 2131351028, %v1353
        %v1363 = vshrl.u32 2102212464, %v1354
        %v1364 = vor.u32 %v1362, %v1363
        %v1365 = vshll.u32 2102212464, %v1353
        %v1366 = vshrl.u32 920167782, %v1354
        %v1367 = vor.u32 %v1365, %v1366
        %v1368 = vshll.u32 920167782, %v1353
        %v1369 = vshrl.u32 1326507024, %v1354
        %v1370 = vor.u32 %v1368, %v1369
        %vm1371 = vcmp.lt.s32.totalorder %v1352, 1
        %vm1372 = vcmp.lt.s32.totalorder %v1352, 2
        %vm1373 = vcmp.lt.s32.totalorder %v1352, 3
        %vm1374 = vcmp.lt.s32.totalorder %v1352, 4
        %v1375 = vsel %vm1371, %v1355, %v1358
        %v1376 = vsel %vm1374, %v1364, 2102212464
        %v1377 = vsel %vm1373, %v1361, %v1376
        %v1378 = vsel %vm1372, %v1375, %v1377
        %v1379 = vsel %vm1371, %v1358, %v1361
        %v1380 = vsel %vm1374, %v1367, 920167782
        %v1381 = vsel %vm1373, %v1364, %v1380
        %v1382 = vsel %vm1372, %v1379, %v1381
        %v1383 = vsel %vm1371, %v1361, %v1364
        %v1384 = vsel %vm1374, %v1370, 1326507024
        %v1385 = vsel %vm1373, %v1367, %v1384
        %v1386 = vsel %vm1372, %v1383, %v1385
        %v1387 = vshll.u32 %v1347, 8
        %v1388 = vmul.u32.u64.compose %v1387, %v1386
        %v1389 = vextract.low.u32 %v1388
        %v1390 = vextract.high.u32 %v1388
        %v1391 = vmul.u32.u64.compose %v1387, %v1382
        %v1392 = vextract.low.u32 %v1391
        %v1393 = vextract.high.u32 %v1391
        %v1394 = vmul.u32 %v1387, %v1378
        %v1395 = vadd.s32 %v1390, %v1392
        %vm1396 = vc.u32 %v1390, %v1392
        %v1397 = vadd.s32 %v1393, 1
        %v1398 = vsel %vm1396, %v1397, %v1393
        %v1399 = vadd.s32 %v1394, %v1398
        %v1400 = vadd.s32 %v1399, 536870912
        %v1401 = vshrl.u32 %v1400, 30
        %v1402 = vshll.u32 %v1401, 30
        %v1403 = vsub.s32 %v1399, %v1402
        %vm1404 = vcmp.lt.s32.totalorder %v1403, 0
        %v1405 = vsub.s32 0, %v1403
        %v1406 = vsel %vm1404, %v1405, %v1403
        %v1407 = vclz %v1406
        %v1408 = vsub.s32 %v1407, 2
        %vm1409 = vcmp.gt.s32.totalorder 0, %v1408
        %v1410 = vsel %vm1409, 0, %v1408
        %v1411 = vsub.s32 32, %v1410
        %v1412 = vshll.u32 %v1403, %v1410
        %v1413 = vshrl.u32 %v1395, %v1411
        %v1414 = vor.u32 %v1412, %v1413
        %v1415 = vsub.s32 4294967266, %v1410
        %v1416 = vadd.s32 %v1415, 127
        %v1417 = vshll.u32 %v1416, 23
        %v1418 = vor.u32 4788187, %v1417
        %v1419 = vand.u32 2147483647, %v1418
        %v1421 = vcvt.s32.f32 %v1414
        %v1422 = vmul.f32 %v1421, %v1419
        %v1423 = vxor.u32 %v1422, 2147483648
        %v1424 = vsel %vm1341, %v1423, %v1422
        %v1425 = vsub.s32 4, %v1401
        %v1426 = vsel %vm1341, %v1425, %v1401
        %v1427 = vsel %vm1340, %v602, %v1424
        %v1428 = vsel %vm1340, 0, %v1426
        %v1429 = vcosq.f32.pop %v1427
        %v1430 = vsinq.f32.pop %v1427
        %vm1431 = vweird.f32 %v602
        %v1432 = vadd.s32 %v1428, 3
        %v1433 = vand.u32 %v1432, 3
        %vm1434 = vcmp.lt.s32.totalorder %v1433, 2
        %vm1435 = vcmp.eq.s32.totalorder %v1433, 0
        %v1436 = vxor.u32 %v1430, 2147483648
        %v1437 = vsel %vm1435, %v1429, %v1436
        %vm1438 = vcmp.eq.s32.totalorder %v1433, 2
        %v1439 = vxor.u32 %v1429, 2147483648
        %v1440 = vsel %vm1438, %v1439, %v1430
        %v1441 = vsel %vm1434, %v1437, %v1440
        %v1442 = vsel %vm1431, nan, %v1441
        %v1443 = vand.u32 2147483647, %v603
        %vm1444 = vcmp.le.f32.partialorder %v1443, 0.7853982
        %vm1445 = vcmp.lt.s32.totalorder %v603, 0
        %v1446 = vand.u32 %v603, 2139095040
        %v1447 = vshrl.u32 %v1446, 23
        %v1448 = vsub.s32 %v1447, 127
        %v1449 = vand.u32 2147483647, %v603
        %v1450 = vand.u32 %v1449, 8388607
        %v1451 = vor.u32 %v1450, 8388608
        %v1452 = vsub.s32 0, %v1451
        %v1453 = vadd.s32 %v1448, 1
        %vm1454 = vcmp.gt.s32.totalorder %v1453, 0
        %v1455 = vsel %vm1454, %v1453, 0
        %v1456 = vshrl.u32 %v1455, 5
        %v1457 = vand.u32 %v1455, 31
        %v1458 = vsub.s32 32, %v1457
        %v1459 = vshrl.u32 683565275, %v1458
        %v1460 = vshll.u32 683565275, %v1457
        %v1461 = vshrl.u32 2475754826, %v1458
        %v1462 = vor.u32 %v1460, %v1461
        %v1463 = vshll.u32 2475754826, %v1457
        %v1464 = vshrl.u32 2131351028, %v1458
        %v1465 = vor.u32 %v1463, %v1464
        %v1466 = vshll.u32 2131351028, %v1457
        %v1467 = vshrl.u32 2102212464, %v1458
        %v1468 = vor.u32 %v1466, %v1467
        %v1469 = vshll.u32 2102212464, %v1457
        %v1470 = vshrl.u32 920167782, %v1458
        %v1471 = vor.u32 %v1469, %v1470
        %v1472 = vshll.u32 920167782, %v1457
        %v1473 = vshrl.u32 1326507024, %v1458
        %v1474 = vor.u32 %v1472, %v1473
        %vm1475 = vcmp.lt.s32.totalorder %v1456, 1
        %vm1476 = vcmp.lt.s32.totalorder %v1456, 2
        %vm1477 = vcmp.lt.s32.totalorder %v1456, 3
        %vm1478 = vcmp.lt.s32.totalorder %v1456, 4
        %v1479 = vsel %vm1475, %v1459, %v1462
        %v1480 = vsel %vm1478, %v1468, 2102212464
        %v1481 = vsel %vm1477, %v1465, %v1480
        %v1482 = vsel %vm1476, %v1479, %v1481
        %v1483 = vsel %vm1475, %v1462, %v1465
        %v1484 = vsel %vm1478, %v1471, 920167782
        %v1485 = vsel %vm1477, %v1468, %v1484
        %v1486 = vsel %vm1476, %v1483, %v1485
        %v1487 = vsel %vm1475, %v1465, %v1468
        %v1488 = vsel %vm1478, %v1474, 1326507024
        %v1489 = vsel %vm1477, %v1471, %v1488
        %v1490 = vsel %vm1476, %v1487, %v1489
        %v1491 = vshll.u32 %v1451, 8
        %v1492 = vmul.u32.u64.compose %v1491, %v1490
        %v1493 = vextract.low.u32 %v1492
        %v1494 = vextract.high.u32 %v1492
        %v1495 = vmul.u32.u64.compose %v1491, %v1486
        %v1496 = vextract.low.u32 %v1495
        %v1497 = vextract.high.u32 %v1495
        %v1498 = vmul.u32 %v1491, %v1482
        %v1499 = vadd.s32 %v1494, %v1496
        %vm1500 = vc.u32 %v1494, %v1496
        %v1501 = vadd.s32 %v1497, 1
        %v1502 = vsel %vm1500, %v1501, %v1497
        %v1503 = vadd.s32 %v1498, %v1502
        %v1504 = vadd.s32 %v1503, 536870912
        %v1505 = vshrl.u32 %v1504, 30
        %v1506 = vshll.u32 %v1505, 30
        %v1507 = vsub.s32 %v1503, %v1506
        %vm1508 = vcmp.lt.s32.totalorder %v1507, 0
        %v1509 = vsub.s32 0, %v1507
        %v1510 = vsel %vm1508, %v1509, %v1507
        %v1511 = vclz %v1510
        %v1512 = vsub.s32 %v1511, 2
        %vm1513 = vcmp.gt.s32.totalorder 0, %v1512
        %v1514 = vsel %vm1513, 0, %v1512
        %v1515 = vsub.s32 32, %v1514
        %v1516 = vshll.u32 %v1507, %v1514
        %v1517 = vshrl.u32 %v1499, %v1515
        %v1518 = vor.u32 %v1516, %v1517
        %v1519 = vsub.s32 4294967266, %v1514
        %v1520 = vadd.s32 %v1519, 127
        %v1521 = vshll.u32 %v1520, 23
        %v1522 = vor.u32 4788187, %v1521
        %v1523 = vand.u32 2147483647, %v1522
        %v1525 = vcvt.s32.f32 %v1518
        %v1526 = vmul.f32 %v1525, %v1523
        %v1527 = vxor.u32 %v1526, 2147483648
        %v1528 = vsel %vm1445, %v1527, %v1526
        %v1529 = vsub.s32 4, %v1505
        %v1530 = vsel %vm1445, %v1529, %v1505
        %v1531 = vsel %vm1444, %v603, %v1528
        %v1532 = vsel %vm1444, 0, %v1530
        %v1533 = vcosq.f32.pop %v1531
        %v1534 = vsinq.f32.pop %v1531
        %vm1535 = vweird.f32 %v603
        %v1536 = vadd.s32 %v1532, 3
        %v1537 = vand.u32 %v1536, 3
        %vm1538 = vcmp.lt.s32.totalorder %v1537, 2
        %vm1539 = vcmp.eq.s32.totalorder %v1537, 0
        %v1540 = vxor.u32 %v1534, 2147483648
        %v1541 = vsel %vm1539, %v1533, %v1540
        %vm1542 = vcmp.eq.s32.totalorder %v1537, 2
        %v1543 = vxor.u32 %v1533, 2147483648
        %v1544 = vsel %vm1542, %v1543, %v1534
        %v1545 = vsel %vm1538, %v1541, %v1544
        %v1546 = vsel %vm1535, nan, %v1545
        %v1547 = vand.u32 2147483647, %v604
        %vm1548 = vcmp.le.f32.partialorder %v1547, 0.7853982
        %vm1549 = vcmp.lt.s32.totalorder %v604, 0
        %v1550 = vand.u32 %v604, 2139095040
        %v1551 = vshrl.u32 %v1550, 23
        %v1552 = vsub.s32 %v1551, 127
        %v1553 = vand.u32 2147483647, %v604
        %v1554 = vand.u32 %v1553, 8388607
        %v1555 = vor.u32 %v1554, 8388608
        %v1556 = vsub.s32 0, %v1555
        %v1557 = vadd.s32 %v1552, 1
        %vm1558 = vcmp.gt.s32.totalorder %v1557, 0
        %v1559 = vsel %vm1558, %v1557, 0
        %v1560 = vshrl.u32 %v1559, 5
        %v1561 = vand.u32 %v1559, 31
        %v1562 = vsub.s32 32, %v1561
        %v1563 = vshrl.u32 683565275, %v1562
        %v1564 = vshll.u32 683565275, %v1561
        %v1565 = vshrl.u32 2475754826, %v1562
        %v1566 = vor.u32 %v1564, %v1565
        %v1567 = vshll.u32 2475754826, %v1561
        %v1568 = vshrl.u32 2131351028, %v1562
        %v1569 = vor.u32 %v1567, %v1568
        %v1570 = vshll.u32 2131351028, %v1561
        %v1571 = vshrl.u32 2102212464, %v1562
        %v1572 = vor.u32 %v1570, %v1571
        %v1573 = vshll.u32 2102212464, %v1561
        %v1574 = vshrl.u32 920167782, %v1562
        %v1575 = vor.u32 %v1573, %v1574
        %v1576 = vshll.u32 920167782, %v1561
        %v1577 = vshrl.u32 1326507024, %v1562
        %v1578 = vor.u32 %v1576, %v1577
        %vm1579 = vcmp.lt.s32.totalorder %v1560, 1
        %vm1580 = vcmp.lt.s32.totalorder %v1560, 2
        %vm1581 = vcmp.lt.s32.totalorder %v1560, 3
        %vm1582 = vcmp.lt.s32.totalorder %v1560, 4
        %v1583 = vsel %vm1579, %v1563, %v1566
        %v1584 = vsel %vm1582, %v1572, 2102212464
        %v1585 = vsel %vm1581, %v1569, %v1584
        %v1586 = vsel %vm1580, %v1583, %v1585
        %v1587 = vsel %vm1579, %v1566, %v1569
        %v1588 = vsel %vm1582, %v1575, 920167782
        %v1589 = vsel %vm1581, %v1572, %v1588
        %v1590 = vsel %vm1580, %v1587, %v1589
        %v1591 = vsel %vm1579, %v1569, %v1572
        %v1592 = vsel %vm1582, %v1578, 1326507024
        %v1593 = vsel %vm1581, %v1575, %v1592
        %v1594 = vsel %vm1580, %v1591, %v1593
        %v1595 = vshll.u32 %v1555, 8
        %v1596 = vmul.u32.u64.compose %v1595, %v1594
        %v1597 = vextract.low.u32 %v1596
        %v1598 = vextract.high.u32 %v1596
        %v1599 = vmul.u32.u64.compose %v1595, %v1590
        %v1600 = vextract.low.u32 %v1599
        %v1601 = vextract.high.u32 %v1599
        %v1602 = vmul.u32 %v1595, %v1586
        %v1603 = vadd.s32 %v1598, %v1600
        %vm1604 = vc.u32 %v1598, %v1600
        %v1605 = vadd.s32 %v1601, 1
        %v1606 = vsel %vm1604, %v1605, %v1601
        %v1607 = vadd.s32 %v1602, %v1606
        %v1608 = vadd.s32 %v1607, 536870912
        %v1609 = vshrl.u32 %v1608, 30
        %v1610 = vshll.u32 %v1609, 30
        %v1611 = vsub.s32 %v1607, %v1610
        %vm1612 = vcmp.lt.s32.totalorder %v1611, 0
        %v1613 = vsub.s32 0, %v1611
        %v1614 = vsel %vm1612, %v1613, %v1611
        %v1615 = vclz %v1614
        %v1616 = vsub.s32 %v1615, 2
        %vm1617 = vcmp.gt.s32.totalorder 0, %v1616
        %v1618 = vsel %vm1617, 0, %v1616
        %v1619 = vsub.s32 32, %v1618
        %v1620 = vshll.u32 %v1611, %v1618
        %v1621 = vshrl.u32 %v1603, %v1619
        %v1622 = vor.u32 %v1620, %v1621
        %v1623 = vsub.s32 4294967266, %v1618
        %v1624 = vadd.s32 %v1623, 127
        %v1625 = vshll.u32 %v1624, 23
        %v1626 = vor.u32 4788187, %v1625
        %v1627 = vand.u32 2147483647, %v1626
        %v1629 = vcvt.s32.f32 %v1622
        %v1630 = vmul.f32 %v1629, %v1627
        %v1631 = vxor.u32 %v1630, 2147483648
        %v1632 = vsel %vm1549, %v1631, %v1630
        %v1633 = vsub.s32 4, %v1609
        %v1634 = vsel %vm1549, %v1633, %v1609
        %v1635 = vsel %vm1548, %v604, %v1632
        %v1636 = vsel %vm1548, 0, %v1634
        %v1637 = vcosq.f32.pop %v1635
        %v1638 = vsinq.f32.pop %v1635
        %vm1639 = vweird.f32 %v604
        %v1640 = vadd.s32 %v1636, 3
        %v1641 = vand.u32 %v1640, 3
        %vm1642 = vcmp.lt.s32.totalorder %v1641, 2
        %vm1643 = vcmp.eq.s32.totalorder %v1641, 0
        %v1644 = vxor.u32 %v1638, 2147483648
        %v1645 = vsel %vm1643, %v1637, %v1644
        %vm1646 = vcmp.eq.s32.totalorder %v1641, 2
        %v1647 = vxor.u32 %v1637, 2147483648
        %v1648 = vsel %vm1646, %v1647, %v1638
        %v1649 = vsel %vm1642, %v1645, %v1648
        %v1650 = vsel %vm1639, nan, %v1649
        %v1651 = vand.u32 2147483647, %v605
        %vm1652 = vcmp.le.f32.partialorder %v1651, 0.7853982
        %vm1653 = vcmp.lt.s32.totalorder %v605, 0
        %v1654 = vand.u32 %v605, 2139095040
        %v1655 = vshrl.u32 %v1654, 23
        %v1656 = vsub.s32 %v1655, 127
        %v1657 = vand.u32 2147483647, %v605
        %v1658 = vand.u32 %v1657, 8388607
        %v1659 = vor.u32 %v1658, 8388608
        %v1660 = vsub.s32 0, %v1659
        %v1661 = vadd.s32 %v1656, 1
        %vm1662 = vcmp.gt.s32.totalorder %v1661, 0
        %v1663 = vsel %vm1662, %v1661, 0
        %v1664 = vshrl.u32 %v1663, 5
        %v1665 = vand.u32 %v1663, 31
        %v1666 = vsub.s32 32, %v1665
        %v1667 = vshrl.u32 683565275, %v1666
        %v1668 = vshll.u32 683565275, %v1665
        %v1669 = vshrl.u32 2475754826, %v1666
        %v1670 = vor.u32 %v1668, %v1669
        %v1671 = vshll.u32 2475754826, %v1665
        %v1672 = vshrl.u32 2131351028, %v1666
        %v1673 = vor.u32 %v1671, %v1672
        %v1674 = vshll.u32 2131351028, %v1665
        %v1675 = vshrl.u32 2102212464, %v1666
        %v1676 = vor.u32 %v1674, %v1675
        %v1677 = vshll.u32 2102212464, %v1665
        %v1678 = vshrl.u32 920167782, %v1666
        %v1679 = vor.u32 %v1677, %v1678
        %v1680 = vshll.u32 920167782, %v1665
        %v1681 = vshrl.u32 1326507024, %v1666
        %v1682 = vor.u32 %v1680, %v1681
        %vm1683 = vcmp.lt.s32.totalorder %v1664, 1
        %vm1684 = vcmp.lt.s32.totalorder %v1664, 2
        %vm1685 = vcmp.lt.s32.totalorder %v1664, 3
        %vm1686 = vcmp.lt.s32.totalorder %v1664, 4
        %v1687 = vsel %vm1683, %v1667, %v1670
        %v1688 = vsel %vm1686, %v1676, 2102212464
        %v1689 = vsel %vm1685, %v1673, %v1688
        %v1690 = vsel %vm1684, %v1687, %v1689
        %v1691 = vsel %vm1683, %v1670, %v1673
        %v1692 = vsel %vm1686, %v1679, 920167782
        %v1693 = vsel %vm1685, %v1676, %v1692
        %v1694 = vsel %vm1684, %v1691, %v1693
        %v1695 = vsel %vm1683, %v1673, %v1676
        %v1696 = vsel %vm1686, %v1682, 1326507024
        %v1697 = vsel %vm1685, %v1679, %v1696
        %v1698 = vsel %vm1684, %v1695, %v1697
        %v1699 = vshll.u32 %v1659, 8
        %v1700 = vmul.u32.u64.compose %v1699, %v1698
        %v1701 = vextract.low.u32 %v1700
        %v1702 = vextract.high.u32 %v1700
        %v1703 = vmul.u32.u64.compose %v1699, %v1694
        %v1704 = vextract.low.u32 %v1703
        %v1705 = vextract.high.u32 %v1703
        %v1706 = vmul.u32 %v1699, %v1690
        %v1707 = vadd.s32 %v1702, %v1704
        %vm1708 = vc.u32 %v1702, %v1704
        %v1709 = vadd.s32 %v1705, 1
        %v1710 = vsel %vm1708, %v1709, %v1705
        %v1711 = vadd.s32 %v1706, %v1710
        %v1712 = vadd.s32 %v1711, 536870912
        %v1713 = vshrl.u32 %v1712, 30
        %v1714 = vshll.u32 %v1713, 30
        %v1715 = vsub.s32 %v1711, %v1714
        %vm1716 = vcmp.lt.s32.totalorder %v1715, 0
        %v1717 = vsub.s32 0, %v1715
        %v1718 = vsel %vm1716, %v1717, %v1715
        %v1719 = vclz %v1718
        %v1720 = vsub.s32 %v1719, 2
        %vm1721 = vcmp.gt.s32.totalorder 0, %v1720
        %v1722 = vsel %vm1721, 0, %v1720
        %v1723 = vsub.s32 32, %v1722
        %v1724 = vshll.u32 %v1715, %v1722
        %v1725 = vshrl.u32 %v1707, %v1723
        %v1726 = vor.u32 %v1724, %v1725
        %v1727 = vsub.s32 4294967266, %v1722
        %v1728 = vadd.s32 %v1727, 127
        %v1729 = vshll.u32 %v1728, 23
        %v1730 = vor.u32 4788187, %v1729
        %v1731 = vand.u32 2147483647, %v1730
        %v1733 = vcvt.s32.f32 %v1726
        %v1734 = vmul.f32 %v1733, %v1731
        %v1735 = vxor.u32 %v1734, 2147483648
        %v1736 = vsel %vm1653, %v1735, %v1734
        %v1737 = vsub.s32 4, %v1713
        %v1738 = vsel %vm1653, %v1737, %v1713
        %v1739 = vsel %vm1652, %v605, %v1736
        %v1740 = vsel %vm1652, 0, %v1738
        %v1741 = vcosq.f32.pop %v1739
        %v1742 = vsinq.f32.pop %v1739
        %vm1743 = vweird.f32 %v605
        %v1744 = vadd.s32 %v1740, 3
        %v1745 = vand.u32 %v1744, 3
        %vm1746 = vcmp.lt.s32.totalorder %v1745, 2
        %vm1747 = vcmp.eq.s32.totalorder %v1745, 0
        %v1748 = vxor.u32 %v1742, 2147483648
        %v1749 = vsel %vm1747, %v1741, %v1748
        %vm1750 = vcmp.eq.s32.totalorder %v1745, 2
        %v1751 = vxor.u32 %v1741, 2147483648
        %v1752 = vsel %vm1750, %v1751, %v1742
        %v1753 = vsel %vm1746, %v1749, %v1752
        %v1754 = vsel %vm1743, nan, %v1753
        %v1755 = vand.u32 2147483647, %v606
        %vm1756 = vcmp.le.f32.partialorder %v1755, 0.7853982
        %vm1757 = vcmp.lt.s32.totalorder %v606, 0
        %v1758 = vand.u32 %v606, 2139095040
        %v1759 = vshrl.u32 %v1758, 23
        %v1760 = vsub.s32 %v1759, 127
        %v1761 = vand.u32 2147483647, %v606
        %v1762 = vand.u32 %v1761, 8388607
        %v1763 = vor.u32 %v1762, 8388608
        %v1764 = vsub.s32 0, %v1763
        %v1765 = vadd.s32 %v1760, 1
        %vm1766 = vcmp.gt.s32.totalorder %v1765, 0
        %v1767 = vsel %vm1766, %v1765, 0
        %v1768 = vshrl.u32 %v1767, 5
        %v1769 = vand.u32 %v1767, 31
        %v1770 = vsub.s32 32, %v1769
        %v1771 = vshrl.u32 683565275, %v1770
        %v1772 = vshll.u32 683565275, %v1769
        %v1773 = vshrl.u32 2475754826, %v1770
        %v1774 = vor.u32 %v1772, %v1773
        %v1775 = vshll.u32 2475754826, %v1769
        %v1776 = vshrl.u32 2131351028, %v1770
        %v1777 = vor.u32 %v1775, %v1776
        %v1778 = vshll.u32 2131351028, %v1769
        %v1779 = vshrl.u32 2102212464, %v1770
        %v1780 = vor.u32 %v1778, %v1779
        %v1781 = vshll.u32 2102212464, %v1769
        %v1782 = vshrl.u32 920167782, %v1770
        %v1783 = vor.u32 %v1781, %v1782
        %v1784 = vshll.u32 920167782, %v1769
        %v1785 = vshrl.u32 1326507024, %v1770
        %v1786 = vor.u32 %v1784, %v1785
        %vm1787 = vcmp.lt.s32.totalorder %v1768, 1
        %vm1788 = vcmp.lt.s32.totalorder %v1768, 2
        %vm1789 = vcmp.lt.s32.totalorder %v1768, 3
        %vm1790 = vcmp.lt.s32.totalorder %v1768, 4
        %v1791 = vsel %vm1787, %v1771, %v1774
        %v1792 = vsel %vm1790, %v1780, 2102212464
        %v1793 = vsel %vm1789, %v1777, %v1792
        %v1794 = vsel %vm1788, %v1791, %v1793
        %v1795 = vsel %vm1787, %v1774, %v1777
        %v1796 = vsel %vm1790, %v1783, 920167782
        %v1797 = vsel %vm1789, %v1780, %v1796
        %v1798 = vsel %vm1788, %v1795, %v1797
        %v1799 = vsel %vm1787, %v1777, %v1780
        %v1800 = vsel %vm1790, %v1786, 1326507024
        %v1801 = vsel %vm1789, %v1783, %v1800
        %v1802 = vsel %vm1788, %v1799, %v1801
        %v1803 = vshll.u32 %v1763, 8
        %v1804 = vmul.u32.u64.compose %v1803, %v1802
        %v1805 = vextract.low.u32 %v1804
        %v1806 = vextract.high.u32 %v1804
        %v1807 = vmul.u32.u64.compose %v1803, %v1798
        %v1808 = vextract.low.u32 %v1807
        %v1809 = vextract.high.u32 %v1807
        %v1810 = vmul.u32 %v1803, %v1794
        %v1811 = vadd.s32 %v1806, %v1808
        %vm1812 = vc.u32 %v1806, %v1808
        %v1813 = vadd.s32 %v1809, 1
        %v1814 = vsel %vm1812, %v1813, %v1809
        %v1815 = vadd.s32 %v1810, %v1814
        %v1816 = vadd.s32 %v1815, 536870912
        %v1817 = vshrl.u32 %v1816, 30
        %v1818 = vshll.u32 %v1817, 30
        %v1819 = vsub.s32 %v1815, %v1818
        %vm1820 = vcmp.lt.s32.totalorder %v1819, 0
        %v1821 = vsub.s32 0, %v1819
        %v1822 = vsel %vm1820, %v1821, %v1819
        %v1823 = vclz %v1822
        %v1824 = vsub.s32 %v1823, 2
        %vm1825 = vcmp.gt.s32.totalorder 0, %v1824
        %v1826 = vsel %vm1825, 0, %v1824
        %v1827 = vsub.s32 32, %v1826
        %v1828 = vshll.u32 %v1819, %v1826
        %v1829 = vshrl.u32 %v1811, %v1827
        %v1830 = vor.u32 %v1828, %v1829
        %v1831 = vsub.s32 4294967266, %v1826
        %v1832 = vadd.s32 %v1831, 127
        %v1833 = vshll.u32 %v1832, 23
        %v1834 = vor.u32 4788187, %v1833
        %v1835 = vand.u32 2147483647, %v1834
        %v1837 = vcvt.s32.f32 %v1830
        %v1838 = vmul.f32 %v1837, %v1835
        %v1839 = vxor.u32 %v1838, 2147483648
        %v1840 = vsel %vm1757, %v1839, %v1838
        %v1841 = vsub.s32 4, %v1817
        %v1842 = vsel %vm1757, %v1841, %v1817
        %v1843 = vsel %vm1756, %v606, %v1840
        %v1844 = vsel %vm1756, 0, %v1842
        %v1845 = vcosq.f32.pop %v1843
        %v1846 = vsinq.f32.pop %v1843
        %vm1847 = vweird.f32 %v606
        %v1848 = vadd.s32 %v1844, 3
        %v1849 = vand.u32 %v1848, 3
        %vm1850 = vcmp.lt.s32.totalorder %v1849, 2
        %vm1851 = vcmp.eq.s32.totalorder %v1849, 0
        %v1852 = vxor.u32 %v1846, 2147483648
        %v1853 = vsel %vm1851, %v1845, %v1852
        %vm1854 = vcmp.eq.s32.totalorder %v1849, 2
        %v1855 = vxor.u32 %v1845, 2147483648
        %v1856 = vsel %vm1854, %v1855, %v1846
        %v1857 = vsel %vm1850, %v1853, %v1856
        %v1858 = vsel %vm1847, nan, %v1857
        %v1859 = vand.u32 2147483647, %v607
        %vm1860 = vcmp.le.f32.partialorder %v1859, 0.7853982
        %vm1861 = vcmp.lt.s32.totalorder %v607, 0
        %v1862 = vand.u32 %v607, 2139095040
        %v1863 = vshrl.u32 %v1862, 23
        %v1864 = vsub.s32 %v1863, 127
        %v1865 = vand.u32 2147483647, %v607
        %v1866 = vand.u32 %v1865, 8388607
        %v1867 = vor.u32 %v1866, 8388608
        %v1868 = vsub.s32 0, %v1867
        %v1869 = vadd.s32 %v1864, 1
        %vm1870 = vcmp.gt.s32.totalorder %v1869, 0
        %v1871 = vsel %vm1870, %v1869, 0
        %v1872 = vshrl.u32 %v1871, 5
        %v1873 = vand.u32 %v1871, 31
        %v1874 = vsub.s32 32, %v1873
        %v1875 = vshrl.u32 683565275, %v1874
        %v1876 = vshll.u32 683565275, %v1873
        %v1877 = vshrl.u32 2475754826, %v1874
        %v1878 = vor.u32 %v1876, %v1877
        %v1879 = vshll.u32 2475754826, %v1873
        %v1880 = vshrl.u32 2131351028, %v1874
        %v1881 = vor.u32 %v1879, %v1880
        %v1882 = vshll.u32 2131351028, %v1873
        %v1883 = vshrl.u32 2102212464, %v1874
        %v1884 = vor.u32 %v1882, %v1883
        %v1885 = vshll.u32 2102212464, %v1873
        %v1886 = vshrl.u32 920167782, %v1874
        %v1887 = vor.u32 %v1885, %v1886
        %v1888 = vshll.u32 920167782, %v1873
        %v1889 = vshrl.u32 1326507024, %v1874
        %v1890 = vor.u32 %v1888, %v1889
        %vm1891 = vcmp.lt.s32.totalorder %v1872, 1
        %vm1892 = vcmp.lt.s32.totalorder %v1872, 2
        %vm1893 = vcmp.lt.s32.totalorder %v1872, 3
        %vm1894 = vcmp.lt.s32.totalorder %v1872, 4
        %v1895 = vsel %vm1891, %v1875, %v1878
        %v1896 = vsel %vm1894, %v1884, 2102212464
        %v1897 = vsel %vm1893, %v1881, %v1896
        %v1898 = vsel %vm1892, %v1895, %v1897
        %v1899 = vsel %vm1891, %v1878, %v1881
        %v1900 = vsel %vm1894, %v1887, 920167782
        %v1901 = vsel %vm1893, %v1884, %v1900
        %v1902 = vsel %vm1892, %v1899, %v1901
        %v1903 = vsel %vm1891, %v1881, %v1884
        %v1904 = vsel %vm1894, %v1890, 1326507024
        %v1905 = vsel %vm1893, %v1887, %v1904
        %v1906 = vsel %vm1892, %v1903, %v1905
        %v1907 = vshll.u32 %v1867, 8
        %v1908 = vmul.u32.u64.compose %v1907, %v1906
        %v1909 = vextract.low.u32 %v1908
        %v1910 = vextract.high.u32 %v1908
        %v1911 = vmul.u32.u64.compose %v1907, %v1902
        %v1912 = vextract.low.u32 %v1911
        %v1913 = vextract.high.u32 %v1911
        %v1914 = vmul.u32 %v1907, %v1898
        %v1915 = vadd.s32 %v1910, %v1912
        %vm1916 = vc.u32 %v1910, %v1912
        %v1917 = vadd.s32 %v1913, 1
        %v1918 = vsel %vm1916, %v1917, %v1913
        %v1919 = vadd.s32 %v1914, %v1918
        %v1920 = vadd.s32 %v1919, 536870912
        %v1921 = vshrl.u32 %v1920, 30
        %v1922 = vshll.u32 %v1921, 30
        %v1923 = vsub.s32 %v1919, %v1922
        %vm1924 = vcmp.lt.s32.totalorder %v1923, 0
        %v1925 = vsub.s32 0, %v1923
        %v1926 = vsel %vm1924, %v1925, %v1923
        %v1927 = vclz %v1926
        %v1928 = vsub.s32 %v1927, 2
        %vm1929 = vcmp.gt.s32.totalorder 0, %v1928
        %v1930 = vsel %vm1929, 0, %v1928
        %v1931 = vsub.s32 32, %v1930
        %v1932 = vshll.u32 %v1923, %v1930
        %v1933 = vshrl.u32 %v1915, %v1931
        %v1934 = vor.u32 %v1932, %v1933
        %v1935 = vsub.s32 4294967266, %v1930
        %v1936 = vadd.s32 %v1935, 127
        %v1937 = vshll.u32 %v1936, 23
        %v1938 = vor.u32 4788187, %v1937
        %v1939 = vand.u32 2147483647, %v1938
        %v1941 = vcvt.s32.f32 %v1934
        %v1942 = vmul.f32 %v1941, %v1939
        %v1943 = vxor.u32 %v1942, 2147483648
        %v1944 = vsel %vm1861, %v1943, %v1942
        %v1945 = vsub.s32 4, %v1921
        %v1946 = vsel %vm1861, %v1945, %v1921
        %v1947 = vsel %vm1860, %v607, %v1944
        %v1948 = vsel %vm1860, 0, %v1946
        %v1949 = vcosq.f32.pop %v1947
        %v1950 = vsinq.f32.pop %v1947
        %vm1951 = vweird.f32 %v607
        %v1952 = vadd.s32 %v1948, 3
        %v1953 = vand.u32 %v1952, 3
        %vm1954 = vcmp.lt.s32.totalorder %v1953, 2
        %vm1955 = vcmp.eq.s32.totalorder %v1953, 0
        %v1956 = vxor.u32 %v1950, 2147483648
        %v1957 = vsel %vm1955, %v1949, %v1956
        %vm1958 = vcmp.eq.s32.totalorder %v1953, 2
        %v1959 = vxor.u32 %v1949, 2147483648
        %v1960 = vsel %vm1958, %v1959, %v1950
        %v1961 = vsel %vm1954, %v1957, %v1960
        %v1962 = vsel %vm1951, nan, %v1961
        %v1963 = vand.u32 2147483647, %v608
        %vm1964 = vcmp.le.f32.partialorder %v1963, 0.7853982
        %vm1965 = vcmp.lt.s32.totalorder %v608, 0
        %v1966 = vand.u32 %v608, 2139095040
        %v1967 = vshrl.u32 %v1966, 23
        %v1968 = vsub.s32 %v1967, 127
        %v1969 = vand.u32 2147483647, %v608
        %v1970 = vand.u32 %v1969, 8388607
        %v1971 = vor.u32 %v1970, 8388608
        %v1972 = vsub.s32 0, %v1971
        %v1973 = vadd.s32 %v1968, 1
        %vm1974 = vcmp.gt.s32.totalorder %v1973, 0
        %v1975 = vsel %vm1974, %v1973, 0
        %v1976 = vshrl.u32 %v1975, 5
        %v1977 = vand.u32 %v1975, 31
        %v1978 = vsub.s32 32, %v1977
        %v1979 = vshrl.u32 683565275, %v1978
        %v1980 = vshll.u32 683565275, %v1977
        %v1981 = vshrl.u32 2475754826, %v1978
        %v1982 = vor.u32 %v1980, %v1981
        %v1983 = vshll.u32 2475754826, %v1977
        %v1984 = vshrl.u32 2131351028, %v1978
        %v1985 = vor.u32 %v1983, %v1984
        %v1986 = vshll.u32 2131351028, %v1977
        %v1987 = vshrl.u32 2102212464, %v1978
        %v1988 = vor.u32 %v1986, %v1987
        %v1989 = vshll.u32 2102212464, %v1977
        %v1990 = vshrl.u32 920167782, %v1978
        %v1991 = vor.u32 %v1989, %v1990
        %v1992 = vshll.u32 920167782, %v1977
        %v1993 = vshrl.u32 1326507024, %v1978
        %v1994 = vor.u32 %v1992, %v1993
        %vm1995 = vcmp.lt.s32.totalorder %v1976, 1
        %vm1996 = vcmp.lt.s32.totalorder %v1976, 2
        %vm1997 = vcmp.lt.s32.totalorder %v1976, 3
        %vm1998 = vcmp.lt.s32.totalorder %v1976, 4
        %v1999 = vsel %vm1995, %v1979, %v1982
        %v2000 = vsel %vm1998, %v1988, 2102212464
        %v2001 = vsel %vm1997, %v1985, %v2000
        %v2002 = vsel %vm1996, %v1999, %v2001
        %v2003 = vsel %vm1995, %v1982, %v1985
        %v2004 = vsel %vm1998, %v1991, 920167782
        %v2005 = vsel %vm1997, %v1988, %v2004
        %v2006 = vsel %vm1996, %v2003, %v2005
        %v2007 = vsel %vm1995, %v1985, %v1988
        %v2008 = vsel %vm1998, %v1994, 1326507024
        %v2009 = vsel %vm1997, %v1991, %v2008
        %v2010 = vsel %vm1996, %v2007, %v2009
        %v2011 = vshll.u32 %v1971, 8
        %v2012 = vmul.u32.u64.compose %v2011, %v2010
        %v2013 = vextract.low.u32 %v2012
        %v2014 = vextract.high.u32 %v2012
        %v2015 = vmul.u32.u64.compose %v2011, %v2006
        %v2016 = vextract.low.u32 %v2015
        %v2017 = vextract.high.u32 %v2015
        %v2018 = vmul.u32 %v2011, %v2002
        %v2019 = vadd.s32 %v2014, %v2016
        %vm2020 = vc.u32 %v2014, %v2016
        %v2021 = vadd.s32 %v2017, 1
        %v2022 = vsel %vm2020, %v2021, %v2017
        %v2023 = vadd.s32 %v2018, %v2022
        %v2024 = vadd.s32 %v2023, 536870912
        %v2025 = vshrl.u32 %v2024, 30
        %v2026 = vshll.u32 %v2025, 30
        %v2027 = vsub.s32 %v2023, %v2026
        %vm2028 = vcmp.lt.s32.totalorder %v2027, 0
        %v2029 = vsub.s32 0, %v2027
        %v2030 = vsel %vm2028, %v2029, %v2027
        %v2031 = vclz %v2030
        %v2032 = vsub.s32 %v2031, 2
        %vm2033 = vcmp.gt.s32.totalorder 0, %v2032
        %v2034 = vsel %vm2033, 0, %v2032
        %v2035 = vsub.s32 32, %v2034
        %v2036 = vshll.u32 %v2027, %v2034
        %v2037 = vshrl.u32 %v2019, %v2035
        %v2038 = vor.u32 %v2036, %v2037
        %v2039 = vsub.s32 4294967266, %v2034
        %v2040 = vadd.s32 %v2039, 127
        %v2041 = vshll.u32 %v2040, 23
        %v2042 = vor.u32 4788187, %v2041
        %v2043 = vand.u32 2147483647, %v2042
        %v2045 = vcvt.s32.f32 %v2038
        %v2046 = vmul.f32 %v2045, %v2043
        %v2047 = vxor.u32 %v2046, 2147483648
        %v2048 = vsel %vm1965, %v2047, %v2046
        %v2049 = vsub.s32 4, %v2025
        %v2050 = vsel %vm1965, %v2049, %v2025
        %v2051 = vsel %vm1964, %v608, %v2048
        %v2052 = vsel %vm1964, 0, %v2050
        %v2053 = vcosq.f32.pop %v2051
        %v2054 = vsinq.f32.pop %v2051
        %vm2055 = vweird.f32 %v608
        %v2056 = vadd.s32 %v2052, 3
        %v2057 = vand.u32 %v2056, 3
        %vm2058 = vcmp.lt.s32.totalorder %v2057, 2
        %vm2059 = vcmp.eq.s32.totalorder %v2057, 0
        %v2060 = vxor.u32 %v2054, 2147483648
        %v2061 = vsel %vm2059, %v2053, %v2060
        %vm2062 = vcmp.eq.s32.totalorder %v2057, 2
        %v2063 = vxor.u32 %v2053, 2147483648
        %v2064 = vsel %vm2062, %v2063, %v2054
        %v2065 = vsel %vm2058, %v2061, %v2064
        %v2066 = vsel %vm2055, nan, %v2065
        %v2067 = vand.u32 2147483647, %v609
        %vm2068 = vcmp.le.f32.partialorder %v2067, 0.7853982
        %vm2069 = vcmp.lt.s32.totalorder %v609, 0
        %v2070 = vand.u32 %v609, 2139095040
        %v2071 = vshrl.u32 %v2070, 23
        %v2072 = vsub.s32 %v2071, 127
        %v2073 = vand.u32 2147483647, %v609
        %v2074 = vand.u32 %v2073, 8388607
        %v2075 = vor.u32 %v2074, 8388608
        %v2076 = vsub.s32 0, %v2075
        %v2077 = vadd.s32 %v2072, 1
        %vm2078 = vcmp.gt.s32.totalorder %v2077, 0
        %v2079 = vsel %vm2078, %v2077, 0
        %v2080 = vshrl.u32 %v2079, 5
        %v2081 = vand.u32 %v2079, 31
        %v2082 = vsub.s32 32, %v2081
        %v2083 = vshrl.u32 683565275, %v2082
        %v2084 = vshll.u32 683565275, %v2081
        %v2085 = vshrl.u32 2475754826, %v2082
        %v2086 = vor.u32 %v2084, %v2085
        %v2087 = vshll.u32 2475754826, %v2081
        %v2088 = vshrl.u32 2131351028, %v2082
        %v2089 = vor.u32 %v2087, %v2088
        %v2090 = vshll.u32 2131351028, %v2081
        %v2091 = vshrl.u32 2102212464, %v2082
        %v2092 = vor.u32 %v2090, %v2091
        %v2093 = vshll.u32 2102212464, %v2081
        %v2094 = vshrl.u32 920167782, %v2082
        %v2095 = vor.u32 %v2093, %v2094
        %v2096 = vshll.u32 920167782, %v2081
        %v2097 = vshrl.u32 1326507024, %v2082
        %v2098 = vor.u32 %v2096, %v2097
        %vm2099 = vcmp.lt.s32.totalorder %v2080, 1
        %vm2100 = vcmp.lt.s32.totalorder %v2080, 2
        %vm2101 = vcmp.lt.s32.totalorder %v2080, 3
        %vm2102 = vcmp.lt.s32.totalorder %v2080, 4
        %v2103 = vsel %vm2099, %v2083, %v2086
        %v2104 = vsel %vm2102, %v2092, 2102212464
        %v2105 = vsel %vm2101, %v2089, %v2104
        %v2106 = vsel %vm2100, %v2103, %v2105
        %v2107 = vsel %vm2099, %v2086, %v2089
        %v2108 = vsel %vm2102, %v2095, 920167782
        %v2109 = vsel %vm2101, %v2092, %v2108
        %v2110 = vsel %vm2100, %v2107, %v2109
        %v2111 = vsel %vm2099, %v2089, %v2092
        %v2112 = vsel %vm2102, %v2098, 1326507024
        %v2113 = vsel %vm2101, %v2095, %v2112
        %v2114 = vsel %vm2100, %v2111, %v2113
        %v2115 = vshll.u32 %v2075, 8
        %v2116 = vmul.u32.u64.compose %v2115, %v2114
        %v2117 = vextract.low.u32 %v2116
        %v2118 = vextract.high.u32 %v2116
        %v2119 = vmul.u32.u64.compose %v2115, %v2110
        %v2120 = vextract.low.u32 %v2119
        %v2121 = vextract.high.u32 %v2119
        %v2122 = vmul.u32 %v2115, %v2106
        %v2123 = vadd.s32 %v2118, %v2120
        %vm2124 = vc.u32 %v2118, %v2120
        %v2125 = vadd.s32 %v2121, 1
        %v2126 = vsel %vm2124, %v2125, %v2121
        %v2127 = vadd.s32 %v2122, %v2126
        %v2128 = vadd.s32 %v2127, 536870912
        %v2129 = vshrl.u32 %v2128, 30
        %v2130 = vshll.u32 %v2129, 30
        %v2131 = vsub.s32 %v2127, %v2130
        %vm2132 = vcmp.lt.s32.totalorder %v2131, 0
        %v2133 = vsub.s32 0, %v2131
        %v2134 = vsel %vm2132, %v2133, %v2131
        %v2135 = vclz %v2134
        %v2136 = vsub.s32 %v2135, 2
        %vm2137 = vcmp.gt.s32.totalorder 0, %v2136
        %v2138 = vsel %vm2137, 0, %v2136
        %v2139 = vsub.s32 32, %v2138
        %v2140 = vshll.u32 %v2131, %v2138
        %v2141 = vshrl.u32 %v2123, %v2139
        %v2142 = vor.u32 %v2140, %v2141
        %v2143 = vsub.s32 4294967266, %v2138
        %v2144 = vadd.s32 %v2143, 127
        %v2145 = vshll.u32 %v2144, 23
        %v2146 = vor.u32 4788187, %v2145
        %v2147 = vand.u32 2147483647, %v2146
        %v2149 = vcvt.s32.f32 %v2142
        %v2150 = vmul.f32 %v2149, %v2147
        %v2151 = vxor.u32 %v2150, 2147483648
        %v2152 = vsel %vm2069, %v2151, %v2150
        %v2153 = vsub.s32 4, %v2129
        %v2154 = vsel %vm2069, %v2153, %v2129
        %v2155 = vsel %vm2068, %v609, %v2152
        %v2156 = vsel %vm2068, 0, %v2154
        %v2157 = vcosq.f32.pop %v2155
        %v2158 = vsinq.f32.pop %v2155
        %vm2159 = vweird.f32 %v609
        %v2160 = vadd.s32 %v2156, 3
        %v2161 = vand.u32 %v2160, 3
        %vm2162 = vcmp.lt.s32.totalorder %v2161, 2
        %vm2163 = vcmp.eq.s32.totalorder %v2161, 0
        %v2164 = vxor.u32 %v2158, 2147483648
        %v2165 = vsel %vm2163, %v2157, %v2164
        %vm2166 = vcmp.eq.s32.totalorder %v2161, 2
        %v2167 = vxor.u32 %v2157, 2147483648
        %v2168 = vsel %vm2166, %v2167, %v2158
        %v2169 = vsel %vm2162, %v2165, %v2168
        %v2170 = vsel %vm2159, nan, %v2169
        %v2171 = vand.u32 2147483647, %v610
        %vm2172 = vcmp.le.f32.partialorder %v2171, 0.7853982
        %vm2173 = vcmp.lt.s32.totalorder %v610, 0
        %v2174 = vand.u32 %v610, 2139095040
        %v2175 = vshrl.u32 %v2174, 23
        %v2176 = vsub.s32 %v2175, 127
        %v2177 = vand.u32 2147483647, %v610
        %v2178 = vand.u32 %v2177, 8388607
        %v2179 = vor.u32 %v2178, 8388608
        %v2180 = vsub.s32 0, %v2179
        %v2181 = vadd.s32 %v2176, 1
        %vm2182 = vcmp.gt.s32.totalorder %v2181, 0
        %v2183 = vsel %vm2182, %v2181, 0
        %v2184 = vshrl.u32 %v2183, 5
        %v2185 = vand.u32 %v2183, 31
        %v2186 = vsub.s32 32, %v2185
        %v2187 = vshrl.u32 683565275, %v2186
        %v2188 = vshll.u32 683565275, %v2185
        %v2189 = vshrl.u32 2475754826, %v2186
        %v2190 = vor.u32 %v2188, %v2189
        %v2191 = vshll.u32 2475754826, %v2185
        %v2192 = vshrl.u32 2131351028, %v2186
        %v2193 = vor.u32 %v2191, %v2192
        %v2194 = vshll.u32 2131351028, %v2185
        %v2195 = vshrl.u32 2102212464, %v2186
        %v2196 = vor.u32 %v2194, %v2195
        %v2197 = vshll.u32 2102212464, %v2185
        %v2198 = vshrl.u32 920167782, %v2186
        %v2199 = vor.u32 %v2197, %v2198
        %v2200 = vshll.u32 920167782, %v2185
        %v2201 = vshrl.u32 1326507024, %v2186
        %v2202 = vor.u32 %v2200, %v2201
        %vm2203 = vcmp.lt.s32.totalorder %v2184, 1
        %vm2204 = vcmp.lt.s32.totalorder %v2184, 2
        %vm2205 = vcmp.lt.s32.totalorder %v2184, 3
        %vm2206 = vcmp.lt.s32.totalorder %v2184, 4
        %v2207 = vsel %vm2203, %v2187, %v2190
        %v2208 = vsel %vm2206, %v2196, 2102212464
        %v2209 = vsel %vm2205, %v2193, %v2208
        %v2210 = vsel %vm2204, %v2207, %v2209
        %v2211 = vsel %vm2203, %v2190, %v2193
        %v2212 = vsel %vm2206, %v2199, 920167782
        %v2213 = vsel %vm2205, %v2196, %v2212
        %v2214 = vsel %vm2204, %v2211, %v2213
        %v2215 = vsel %vm2203, %v2193, %v2196
        %v2216 = vsel %vm2206, %v2202, 1326507024
        %v2217 = vsel %vm2205, %v2199, %v2216
        %v2218 = vsel %vm2204, %v2215, %v2217
        %v2219 = vshll.u32 %v2179, 8
        %v2220 = vmul.u32.u64.compose %v2219, %v2218
        %v2221 = vextract.low.u32 %v2220
        %v2222 = vextract.high.u32 %v2220
        %v2223 = vmul.u32.u64.compose %v2219, %v2214
        %v2224 = vextract.low.u32 %v2223
        %v2225 = vextract.high.u32 %v2223
        %v2226 = vmul.u32 %v2219, %v2210
        %v2227 = vadd.s32 %v2222, %v2224
        %vm2228 = vc.u32 %v2222, %v2224
        %v2229 = vadd.s32 %v2225, 1
        %v2230 = vsel %vm2228, %v2229, %v2225
        %v2231 = vadd.s32 %v2226, %v2230
        %v2232 = vadd.s32 %v2231, 536870912
        %v2233 = vshrl.u32 %v2232, 30
        %v2234 = vshll.u32 %v2233, 30
        %v2235 = vsub.s32 %v2231, %v2234
        %vm2236 = vcmp.lt.s32.totalorder %v2235, 0
        %v2237 = vsub.s32 0, %v2235
        %v2238 = vsel %vm2236, %v2237, %v2235
        %v2239 = vclz %v2238
        %v2240 = vsub.s32 %v2239, 2
        %vm2241 = vcmp.gt.s32.totalorder 0, %v2240
        %v2242 = vsel %vm2241, 0, %v2240
        %v2243 = vsub.s32 32, %v2242
        %v2244 = vshll.u32 %v2235, %v2242
        %v2245 = vshrl.u32 %v2227, %v2243
        %v2246 = vor.u32 %v2244, %v2245
        %v2247 = vsub.s32 4294967266, %v2242
        %v2248 = vadd.s32 %v2247, 127
        %v2249 = vshll.u32 %v2248, 23
        %v2250 = vor.u32 4788187, %v2249
        %v2251 = vand.u32 2147483647, %v2250
        %v2253 = vcvt.s32.f32 %v2246
        %v2254 = vmul.f32 %v2253, %v2251
        %v2255 = vxor.u32 %v2254, 2147483648
        %v2256 = vsel %vm2173, %v2255, %v2254
        %v2257 = vsub.s32 4, %v2233
        %v2258 = vsel %vm2173, %v2257, %v2233
        %v2259 = vsel %vm2172, %v610, %v2256
        %v2260 = vsel %vm2172, 0, %v2258
        %v2261 = vcosq.f32.pop %v2259
        %v2262 = vsinq.f32.pop %v2259
        %vm2263 = vweird.f32 %v610
        %v2264 = vadd.s32 %v2260, 3
        %v2265 = vand.u32 %v2264, 3
        %vm2266 = vcmp.lt.s32.totalorder %v2265, 2
        %vm2267 = vcmp.eq.s32.totalorder %v2265, 0
        %v2268 = vxor.u32 %v2262, 2147483648
        %v2269 = vsel %vm2267, %v2261, %v2268
        %vm2270 = vcmp.eq.s32.totalorder %v2265, 2
        %v2271 = vxor.u32 %v2261, 2147483648
        %v2272 = vsel %vm2270, %v2271, %v2262
        %v2273 = vsel %vm2266, %v2269, %v2272
        %v2274 = vsel %vm2263, nan, %v2273
        %v2275 = vld [vmem:[%s3] sm:$0xff]
        %v2276 = vld [vmem:[%s3 + $0x8] sm:$0xff]
        %v2277 = vld [vmem:[%s3 + $0x10] sm:$0xff]
        %v2278 = vld [vmem:[%s3 + $0x18] sm:$0xff]
        %v2279 = vld [vmem:[%s3 + $0x20] sm:$0xff]
        %v2280 = vld [vmem:[%s3 + $0x28] sm:$0xff]
        %v2281 = vld [vmem:[%s3 + $0x30] sm:$0xff]
        %v2282 = vld [vmem:[%s3 + $0x38] sm:$0xff]
        %v2283 = vld [vmem:[%s3 + $0x40] sm:$0xff]
        %v2284 = vld [vmem:[%s3 + $0x48] sm:$0xff]
        %v2285 = vld [vmem:[%s3 + $0x50] sm:$0xff]
        %v2286 = vld [vmem:[%s3 + $0x58] sm:$0xff]
        %v2287 = vld [vmem:[%s3 + $0x60] sm:$0xff]
        %v2288 = vld [vmem:[%s3 + $0x68] sm:$0xff]
        %v2289 = vld [vmem:[%s3 + $0x70] sm:$0xff]
        %v2290 = vld [vmem:[%s3 + $0x78] sm:$0xff]
        %v2291 = vld [vmem:[%s4] sm:$0xff]
        %v2292 = vld [vmem:[%s4 + $0x8] sm:$0xff]
        %v2293 = vld [vmem:[%s4 + $0x10] sm:$0xff]
        %v2294 = vld [vmem:[%s4 + $0x18] sm:$0xff]
        %v2295 = vld [vmem:[%s4 + $0x20] sm:$0xff]
        %v2296 = vld [vmem:[%s4 + $0x28] sm:$0xff]
        %v2297 = vld [vmem:[%s4 + $0x30] sm:$0xff]
        %v2298 = vld [vmem:[%s4 + $0x38] sm:$0xff]
        %v2299 = vld [vmem:[%s4 + $0x40] sm:$0xff]
        %v2300 = vld [vmem:[%s4 + $0x48] sm:$0xff]
        %v2301 = vld [vmem:[%s4 + $0x50] sm:$0xff]
        %v2302 = vld [vmem:[%s4 + $0x58] sm:$0xff]
        %v2303 = vld [vmem:[%s4 + $0x60] sm:$0xff]
        %v2304 = vld [vmem:[%s4 + $0x68] sm:$0xff]
        %v2305 = vld [vmem:[%s4 + $0x70] sm:$0xff]
        %v2306 = vld [vmem:[%s4 + $0x78] sm:$0xff]
        %2308 = vset.pattern.permute.xlu0 0
        %2309 = vperm.xlu0 %2308, %v2291
        %v2310 = vpop.permute.xlu0 %2309
        %2313 = vset.pattern.permute.xlu0 0
        %2314 = vperm.xlu0 %2313, %v2292
        %v2315 = vpop.permute.xlu0 %2314
        %2318 = vset.pattern.permute.xlu0 0
        %2319 = vperm.xlu0 %2318, %v2293
        %v2320 = vpop.permute.xlu0 %2319
        %2323 = vset.pattern.permute.xlu0 0
        %2324 = vperm.xlu0 %2323, %v2294
        %v2325 = vpop.permute.xlu0 %2324
        %2328 = vset.pattern.permute.xlu0 0
        %2329 = vperm.xlu0 %2328, %v2295
        %v2330 = vpop.permute.xlu0 %2329
        %2333 = vset.pattern.permute.xlu0 0
        %2334 = vperm.xlu0 %2333, %v2296
        %v2335 = vpop.permute.xlu0 %2334
        %2338 = vset.pattern.permute.xlu0 0
        %2339 = vperm.xlu0 %2338, %v2297
        %v2340 = vpop.permute.xlu0 %2339
        %2343 = vset.pattern.permute.xlu0 0
        %2344 = vperm.xlu0 %2343, %v2298
        %v2345 = vpop.permute.xlu0 %2344
        %2348 = vset.pattern.permute.xlu0 0
        %2349 = vperm.xlu0 %2348, %v2299
        %v2350 = vpop.permute.xlu0 %2349
        %2353 = vset.pattern.permute.xlu0 0
        %2354 = vperm.xlu0 %2353, %v2300
        %v2355 = vpop.permute.xlu0 %2354
        %2358 = vset.pattern.permute.xlu0 0
        %2359 = vperm.xlu0 %2358, %v2301
        %v2360 = vpop.permute.xlu0 %2359
        %2363 = vset.pattern.permute.xlu0 0
        %2364 = vperm.xlu0 %2363, %v2302
        %v2365 = vpop.permute.xlu0 %2364
        %2368 = vset.pattern.permute.xlu0 0
        %2369 = vperm.xlu0 %2368, %v2303
        %v2370 = vpop.permute.xlu0 %2369
        %2373 = vset.pattern.permute.xlu0 0
        %2374 = vperm.xlu0 %2373, %v2304
        %v2375 = vpop.permute.xlu0 %2374
        %2378 = vset.pattern.permute.xlu0 0
        %2379 = vperm.xlu0 %2378, %v2305
        %v2380 = vpop.permute.xlu0 %2379
        %2383 = vset.pattern.permute.xlu0 0
        %2384 = vperm.xlu0 %2383, %v2306
        %v2385 = vpop.permute.xlu0 %2384
        %2387 = vmatprep.subr.mxu0 0.0
        %2388 = vmatpush1.msra.mxu0 %v714
        %2389 = vmatprep.subr.mxu0 0.0
        %2390 = vmatpush1.msra.mxu0 %v818
        %2391 = vmatprep.subr.mxu0 0.0
        %2392 = vmatpush1.msra.mxu0 %v922
        %2393 = vmatprep.subr.mxu0 0.0
        %2394 = vmatpush1.msra.mxu0 %v1026
        %2395 = vmatprep.subr.mxu0 0.0
        %2396 = vmatpush1.msra.mxu0 %v1130
        %2397 = vmatprep.subr.mxu0 0.0
        %2398 = vmatpush1.msra.mxu0 %v1234
        %2399 = vmatprep.subr.mxu0 0.0
        %2400 = vmatpush1.msra.mxu0 %v1338
        %2401 = vmatprep.subr.mxu0 0.0
        %2402 = vmatpush1.msra.mxu0 %v1442
        %2403 = vmatprep.subr.mxu0 0.0
        %2404 = vmatpush1.msra.mxu0 %v1546
        %2405 = vmatprep.subr.mxu0 0.0
        %2406 = vmatpush1.msra.mxu0 %v1650
        %2407 = vmatprep.subr.mxu0 0.0
        %2408 = vmatpush1.msra.mxu0 %v1754
        %2409 = vmatprep.subr.mxu0 0.0
        %2410 = vmatpush1.msra.mxu0 %v1858
        %2411 = vmatprep.subr.mxu0 0.0
        %2412 = vmatpush1.msra.mxu0 %v1962
        %2413 = vmatprep.subr.mxu0 0.0
        %2414 = vmatpush1.msra.mxu0 %v2066
        %2415 = vmatprep.subr.mxu0 0.0
        %2416 = vmatpush1.msra.mxu0 %v2170
        %2417 = vmatprep.subr.mxu0 0.0
        %2418 = vmatpush1.msra.mxu0 %v2274
        %2419 = vmatprep.subr.mxu0 0.0
        %2420 = vmatpush1.msra.mxu0 0.0
        %2421 = vmatprep.subr.mxu0 0.0
        %2422 = vmatpush1.msra.mxu0 0.0
        %2423 = vmatprep.subr.mxu0 0.0
        %2424 = vmatpush1.msra.mxu0 0.0
        %2425 = vmatprep.subr.mxu0 0.0
        %2426 = vmatpush1.msra.mxu0 0.0
        %2427 = vmatprep.subr.mxu0 0.0
        %2428 = vmatpush1.msra.mxu0 0.0
        %2429 = vmatprep.subr.mxu0 0.0
        %2430 = vmatpush1.msra.mxu0 0.0
        %2431 = vmatprep.subr.mxu0 0.0
        %2432 = vmatpush1.msra.mxu0 0.0
        %2433 = vmatprep.subr.mxu0 0.0
        %2434 = vmatpush1.msra.mxu0 0.0
        %2435 = vmatprep.subr.mxu0 0.0
        %2436 = vmatpush1.msra.mxu0 0.0
        %2437 = vmatprep.subr.mxu0 0.0
        %2438 = vmatpush1.msra.mxu0 0.0
        %2439 = vmatprep.subr.mxu0 0.0
        %2440 = vmatpush1.msra.mxu0 0.0
        %2441 = vmatprep.subr.mxu0 0.0
        %2442 = vmatpush1.msra.mxu0 0.0
        %2443 = vmatprep.subr.mxu0 0.0
        %2444 = vmatpush1.msra.mxu0 0.0
        %2445 = vmatprep.subr.mxu0 0.0
        %2446 = vmatpush1.msra.mxu0 0.0
        %2447 = vmatprep.subr.mxu0 0.0
        %2448 = vmatpush1.msra.mxu0 0.0
        %2449 = vmatprep.subr.mxu0 0.0
        %2450 = vmatpush1.msra.mxu0 0.0
        %2451 = vmatprep.mubr.f32.mxu0 0.0
        %2452 = vmatmul.mubr.f32.gmra.mrb[0].mxu0 %v2275
        %v2453 = vpop.f32.mrb[0].mxu0
        %v2454 = vadd.f32 %v2310, %v2453
        %v2455 = vpop.f32.mrb[0].mxu0
        %2456 = vmatprep.mubr.f32.mxu0 0.0
        %2457 = vmatmul.mubr.f32.gmra.mrb[0].mxu0 %v2276
        %v2458 = vpop.f32.mrb[0].mxu0
        %v2459 = vadd.f32 %v2315, %v2458
        %v2460 = vpop.f32.mrb[0].mxu0
        %2461 = vmatprep.mubr.f32.mxu0 0.0
        %2462 = vmatmul.mubr.f32.gmra.mrb[0].mxu0 %v2277
        %v2463 = vpop.f32.mrb[0].mxu0
        %v2464 = vadd.f32 %v2320, %v2463
        %v2465 = vpop.f32.mrb[0].mxu0
        %2466 = vmatprep.mubr.f32.mxu0 0.0
        %2467 = vmatmul.mubr.f32.gmra.mrb[0].mxu0 %v2278
        %v2468 = vpop.f32.mrb[0].mxu0
        %v2469 = vadd.f32 %v2325, %v2468
        %v2470 = vpop.f32.mrb[0].mxu0
        %2471 = vmatprep.mubr.f32.mxu0 0.0
        %2472 = vmatmul.mubr.f32.gmra.mrb[0].mxu0 %v2279
        %v2473 = vpop.f32.mrb[0].mxu0
        %v2474 = vadd.f32 %v2330, %v2473
        %v2475 = vpop.f32.mrb[0].mxu0
        %2476 = vmatprep.mubr.f32.mxu0 0.0
        %2477 = vmatmul.mubr.f32.gmra.mrb[0].mxu0 %v2280
        %v2478 = vpop.f32.mrb[0].mxu0
        %v2479 = vadd.f32 %v2335, %v2478
        %v2480 = vpop.f32.mrb[0].mxu0
        %2481 = vmatprep.mubr.f32.mxu0 0.0
        %2482 = vmatmul.mubr.f32.gmra.mrb[0].mxu0 %v2281
        %v2483 = vpop.f32.mrb[0].mxu0
        %v2484 = vadd.f32 %v2340, %v2483
        %v2485 = vpop.f32.mrb[0].mxu0
        %2486 = vmatprep.mubr.f32.mxu0 0.0
        %2487 = vmatmul.mubr.f32.gmra.mrb[0].mxu0 %v2282
        %v2488 = vpop.f32.mrb[0].mxu0
        %v2489 = vadd.f32 %v2345, %v2488
        %v2490 = vpop.f32.mrb[0].mxu0
        %2491 = vmatprep.mubr.f32.mxu0 0.0
        %2492 = vmatmul.mubr.f32.gmra.mrb[0].mxu0 %v2283
        %v2493 = vpop.f32.mrb[0].mxu0
        %v2494 = vadd.f32 %v2350, %v2493
        %v2495 = vpop.f32.mrb[0].mxu0
        %2496 = vmatprep.mubr.f32.mxu0 0.0
        %2497 = vmatmul.mubr.f32.gmra.mrb[0].mxu0 %v2284
        %v2498 = vpop.f32.mrb[0].mxu0
        %v2499 = vadd.f32 %v2355, %v2498
        %v2500 = vpop.f32.mrb[0].mxu0
        %2501 = vmatprep.mubr.f32.mxu0 0.0
        %2502 = vmatmul.mubr.f32.gmra.mrb[0].mxu0 %v2285
        %v2503 = vpop.f32.mrb[0].mxu0
        %v2504 = vadd.f32 %v2360, %v2503
        %v2505 = vpop.f32.mrb[0].mxu0
        %2506 = vmatprep.mubr.f32.mxu0 0.0
        %2507 = vmatmul.mubr.f32.gmra.mrb[0].mxu0 %v2286
        %v2508 = vpop.f32.mrb[0].mxu0
        %v2509 = vadd.f32 %v2365, %v2508
        %v2510 = vpop.f32.mrb[0].mxu0
        %2511 = vmatprep.mubr.f32.mxu0 0.0
        %2512 = vmatmul.mubr.f32.gmra.mrb[0].mxu0 %v2287
        %v2513 = vpop.f32.mrb[0].mxu0
        %v2514 = vadd.f32 %v2370, %v2513
        %v2515 = vpop.f32.mrb[0].mxu0
        %2516 = vmatprep.mubr.f32.mxu0 0.0
        %2517 = vmatmul.mubr.f32.gmra.mrb[0].mxu0 %v2288
        %v2518 = vpop.f32.mrb[0].mxu0
        %v2519 = vadd.f32 %v2375, %v2518
        %v2520 = vpop.f32.mrb[0].mxu0
        %2521 = vmatprep.mubr.f32.mxu0 0.0
        %2522 = vmatmul.mubr.f32.gmra.mrb[0].mxu0 %v2289
        %v2523 = vpop.f32.mrb[0].mxu0
        %v2524 = vadd.f32 %v2380, %v2523
        %v2525 = vpop.f32.mrb[0].mxu0
        %2526 = vmatprep.mubr.f32.mxu0 0.0
        %2527 = vmatmul.mubr.f32.gmra.mrb[0].mxu0 %v2290
        %v2528 = vpop.f32.mrb[0].mxu0
        %v2529 = vadd.f32 %v2385, %v2528
        %v2530 = vpop.f32.mrb[0].mxu0
        %2531 = vdwg.mxu0
        %v2532 = vand.u32 2147483647, %v2454
        %vm2533 = vcmp.le.f32.partialorder %v2532, 0.7853982
        %vm2534 = vcmp.lt.s32.totalorder %v2454, 0
        %v2535 = vand.u32 %v2454, 2139095040
        %v2536 = vshrl.u32 %v2535, 23
        %v2537 = vsub.s32 %v2536, 127
        %v2538 = vand.u32 2147483647, %v2454
        %v2539 = vand.u32 %v2538, 8388607
        %v2540 = vor.u32 %v2539, 8388608
        %v2541 = vsub.s32 0, %v2540
        %v2542 = vadd.s32 %v2537, 1
        %vm2543 = vcmp.gt.s32.totalorder %v2542, 0
        %v2544 = vsel %vm2543, %v2542, 0
        %v2545 = vshrl.u32 %v2544, 5
        %v2546 = vand.u32 %v2544, 31
        %v2547 = vsub.s32 32, %v2546
        %v2548 = vshrl.u32 683565275, %v2547
        %v2549 = vshll.u32 683565275, %v2546
        %v2550 = vshrl.u32 2475754826, %v2547
        %v2551 = vor.u32 %v2549, %v2550
        %v2552 = vshll.u32 2475754826, %v2546
        %v2553 = vshrl.u32 2131351028, %v2547
        %v2554 = vor.u32 %v2552, %v2553
        %v2555 = vshll.u32 2131351028, %v2546
        %v2556 = vshrl.u32 2102212464, %v2547
        %v2557 = vor.u32 %v2555, %v2556
        %v2558 = vshll.u32 2102212464, %v2546
        %v2559 = vshrl.u32 920167782, %v2547
        %v2560 = vor.u32 %v2558, %v2559
        %v2561 = vshll.u32 920167782, %v2546
        %v2562 = vshrl.u32 1326507024, %v2547
        %v2563 = vor.u32 %v2561, %v2562
        %vm2564 = vcmp.lt.s32.totalorder %v2545, 1
        %vm2565 = vcmp.lt.s32.totalorder %v2545, 2
        %vm2566 = vcmp.lt.s32.totalorder %v2545, 3
        %vm2567 = vcmp.lt.s32.totalorder %v2545, 4
        %v2568 = vsel %vm2564, %v2548, %v2551
        %v2569 = vsel %vm2567, %v2557, 2102212464
        %v2570 = vsel %vm2566, %v2554, %v2569
        %v2571 = vsel %vm2565, %v2568, %v2570
        %v2572 = vsel %vm2564, %v2551, %v2554
        %v2573 = vsel %vm2567, %v2560, 920167782
        %v2574 = vsel %vm2566, %v2557, %v2573
        %v2575 = vsel %vm2565, %v2572, %v2574
        %v2576 = vsel %vm2564, %v2554, %v2557
        %v2577 = vsel %vm2567, %v2563, 1326507024
        %v2578 = vsel %vm2566, %v2560, %v2577
        %v2579 = vsel %vm2565, %v2576, %v2578
        %v2580 = vshll.u32 %v2540, 8
        %v2581 = vmul.u32.u64.compose %v2580, %v2579
        %v2582 = vextract.low.u32 %v2581
        %v2583 = vextract.high.u32 %v2581
        %v2584 = vmul.u32.u64.compose %v2580, %v2575
        %v2585 = vextract.low.u32 %v2584
        %v2586 = vextract.high.u32 %v2584
        %v2587 = vmul.u32 %v2580, %v2571
        %v2588 = vadd.s32 %v2583, %v2585
        %vm2589 = vc.u32 %v2583, %v2585
        %v2590 = vadd.s32 %v2586, 1
        %v2591 = vsel %vm2589, %v2590, %v2586
        %v2592 = vadd.s32 %v2587, %v2591
        %v2593 = vadd.s32 %v2592, 536870912
        %v2594 = vshrl.u32 %v2593, 30
        %v2595 = vshll.u32 %v2594, 30
        %v2596 = vsub.s32 %v2592, %v2595
        %vm2597 = vcmp.lt.s32.totalorder %v2596, 0
        %v2598 = vsub.s32 0, %v2596
        %v2599 = vsel %vm2597, %v2598, %v2596
        %v2600 = vclz %v2599
        %v2601 = vsub.s32 %v2600, 2
        %vm2602 = vcmp.gt.s32.totalorder 0, %v2601
        %v2603 = vsel %vm2602, 0, %v2601
        %v2604 = vsub.s32 32, %v2603
        %v2605 = vshll.u32 %v2596, %v2603
        %v2606 = vshrl.u32 %v2588, %v2604
        %v2607 = vor.u32 %v2605, %v2606
        %v2608 = vsub.s32 4294967266, %v2603
        %v2609 = vadd.s32 %v2608, 127
        %v2610 = vshll.u32 %v2609, 23
        %v2611 = vor.u32 4788187, %v2610
        %v2612 = vand.u32 2147483647, %v2611
        %v2614 = vcvt.s32.f32 %v2607
        %v2615 = vmul.f32 %v2614, %v2612
        %v2616 = vxor.u32 %v2615, 2147483648
        %v2617 = vsel %vm2534, %v2616, %v2615
        %v2618 = vsub.s32 4, %v2594
        %v2619 = vsel %vm2534, %v2618, %v2594
        %v2620 = vsel %vm2533, %v2454, %v2617
        %v2621 = vsel %vm2533, 0, %v2619
        %v2622 = vcosq.f32.pop %v2620
        %v2623 = vsinq.f32.pop %v2620
        %vm2624 = vweird.f32 %v2454
        %v2625 = vadd.s32 %v2621, 3
        %v2626 = vand.u32 %v2625, 3
        %vm2627 = vcmp.lt.s32.totalorder %v2626, 2
        %vm2628 = vcmp.eq.s32.totalorder %v2626, 0
        %v2629 = vxor.u32 %v2623, 2147483648
        %v2630 = vsel %vm2628, %v2622, %v2629
        %vm2631 = vcmp.eq.s32.totalorder %v2626, 2
        %v2632 = vxor.u32 %v2622, 2147483648
        %v2633 = vsel %vm2631, %v2632, %v2623
        %v2634 = vsel %vm2627, %v2630, %v2633
        %v2635 = vsel %vm2624, nan, %v2634
        %v2636 = vand.u32 2147483647, %v2459
        %vm2637 = vcmp.le.f32.partialorder %v2636, 0.7853982
        %vm2638 = vcmp.lt.s32.totalorder %v2459, 0
        %v2639 = vand.u32 %v2459, 2139095040
        %v2640 = vshrl.u32 %v2639, 23
        %v2641 = vsub.s32 %v2640, 127
        %v2642 = vand.u32 2147483647, %v2459
        %v2643 = vand.u32 %v2642, 8388607
        %v2644 = vor.u32 %v2643, 8388608
        %v2645 = vsub.s32 0, %v2644
        %v2646 = vadd.s32 %v2641, 1
        %vm2647 = vcmp.gt.s32.totalorder %v2646, 0
        %v2648 = vsel %vm2647, %v2646, 0
        %v2649 = vshrl.u32 %v2648, 5
        %v2650 = vand.u32 %v2648, 31
        %v2651 = vsub.s32 32, %v2650
        %v2652 = vshrl.u32 683565275, %v2651
        %v2653 = vshll.u32 683565275, %v2650
        %v2654 = vshrl.u32 2475754826, %v2651
        %v2655 = vor.u32 %v2653, %v2654
        %v2656 = vshll.u32 2475754826, %v2650
        %v2657 = vshrl.u32 2131351028, %v2651
        %v2658 = vor.u32 %v2656, %v2657
        %v2659 = vshll.u32 2131351028, %v2650
        %v2660 = vshrl.u32 2102212464, %v2651
        %v2661 = vor.u32 %v2659, %v2660
        %v2662 = vshll.u32 2102212464, %v2650
        %v2663 = vshrl.u32 920167782, %v2651
        %v2664 = vor.u32 %v2662, %v2663
        %v2665 = vshll.u32 920167782, %v2650
        %v2666 = vshrl.u32 1326507024, %v2651
        %v2667 = vor.u32 %v2665, %v2666
        %vm2668 = vcmp.lt.s32.totalorder %v2649, 1
        %vm2669 = vcmp.lt.s32.totalorder %v2649, 2
        %vm2670 = vcmp.lt.s32.totalorder %v2649, 3
        %vm2671 = vcmp.lt.s32.totalorder %v2649, 4
        %v2672 = vsel %vm2668, %v2652, %v2655
        %v2673 = vsel %vm2671, %v2661, 2102212464
        %v2674 = vsel %vm2670, %v2658, %v2673
        %v2675 = vsel %vm2669, %v2672, %v2674
        %v2676 = vsel %vm2668, %v2655, %v2658
        %v2677 = vsel %vm2671, %v2664, 920167782
        %v2678 = vsel %vm2670, %v2661, %v2677
        %v2679 = vsel %vm2669, %v2676, %v2678
        %v2680 = vsel %vm2668, %v2658, %v2661
        %v2681 = vsel %vm2671, %v2667, 1326507024
        %v2682 = vsel %vm2670, %v2664, %v2681
        %v2683 = vsel %vm2669, %v2680, %v2682
        %v2684 = vshll.u32 %v2644, 8
        %v2685 = vmul.u32.u64.compose %v2684, %v2683
        %v2686 = vextract.low.u32 %v2685
        %v2687 = vextract.high.u32 %v2685
        %v2688 = vmul.u32.u64.compose %v2684, %v2679
        %v2689 = vextract.low.u32 %v2688
        %v2690 = vextract.high.u32 %v2688
        %v2691 = vmul.u32 %v2684, %v2675
        %v2692 = vadd.s32 %v2687, %v2689
        %vm2693 = vc.u32 %v2687, %v2689
        %v2694 = vadd.s32 %v2690, 1
        %v2695 = vsel %vm2693, %v2694, %v2690
        %v2696 = vadd.s32 %v2691, %v2695
        %v2697 = vadd.s32 %v2696, 536870912
        %v2698 = vshrl.u32 %v2697, 30
        %v2699 = vshll.u32 %v2698, 30
        %v2700 = vsub.s32 %v2696, %v2699
        %vm2701 = vcmp.lt.s32.totalorder %v2700, 0
        %v2702 = vsub.s32 0, %v2700
        %v2703 = vsel %vm2701, %v2702, %v2700
        %v2704 = vclz %v2703
        %v2705 = vsub.s32 %v2704, 2
        %vm2706 = vcmp.gt.s32.totalorder 0, %v2705
        %v2707 = vsel %vm2706, 0, %v2705
        %v2708 = vsub.s32 32, %v2707
        %v2709 = vshll.u32 %v2700, %v2707
        %v2710 = vshrl.u32 %v2692, %v2708
        %v2711 = vor.u32 %v2709, %v2710
        %v2712 = vsub.s32 4294967266, %v2707
        %v2713 = vadd.s32 %v2712, 127
        %v2714 = vshll.u32 %v2713, 23
        %v2715 = vor.u32 4788187, %v2714
        %v2716 = vand.u32 2147483647, %v2715
        %v2718 = vcvt.s32.f32 %v2711
        %v2719 = vmul.f32 %v2718, %v2716
        %v2720 = vxor.u32 %v2719, 2147483648
        %v2721 = vsel %vm2638, %v2720, %v2719
        %v2722 = vsub.s32 4, %v2698
        %v2723 = vsel %vm2638, %v2722, %v2698
        %v2724 = vsel %vm2637, %v2459, %v2721
        %v2725 = vsel %vm2637, 0, %v2723
        %v2726 = vcosq.f32.pop %v2724
        %v2727 = vsinq.f32.pop %v2724
        %vm2728 = vweird.f32 %v2459
        %v2729 = vadd.s32 %v2725, 3
        %v2730 = vand.u32 %v2729, 3
        %vm2731 = vcmp.lt.s32.totalorder %v2730, 2
        %vm2732 = vcmp.eq.s32.totalorder %v2730, 0
        %v2733 = vxor.u32 %v2727, 2147483648
        %v2734 = vsel %vm2732, %v2726, %v2733
        %vm2735 = vcmp.eq.s32.totalorder %v2730, 2
        %v2736 = vxor.u32 %v2726, 2147483648
        %v2737 = vsel %vm2735, %v2736, %v2727
        %v2738 = vsel %vm2731, %v2734, %v2737
        %v2739 = vsel %vm2728, nan, %v2738
        %v2740 = vand.u32 2147483647, %v2464
        %vm2741 = vcmp.le.f32.partialorder %v2740, 0.7853982
        %vm2742 = vcmp.lt.s32.totalorder %v2464, 0
        %v2743 = vand.u32 %v2464, 2139095040
        %v2744 = vshrl.u32 %v2743, 23
        %v2745 = vsub.s32 %v2744, 127
        %v2746 = vand.u32 2147483647, %v2464
        %v2747 = vand.u32 %v2746, 8388607
        %v2748 = vor.u32 %v2747, 8388608
        %v2749 = vsub.s32 0, %v2748
        %v2750 = vadd.s32 %v2745, 1
        %vm2751 = vcmp.gt.s32.totalorder %v2750, 0
        %v2752 = vsel %vm2751, %v2750, 0
        %v2753 = vshrl.u32 %v2752, 5
        %v2754 = vand.u32 %v2752, 31
        %v2755 = vsub.s32 32, %v2754
        %v2756 = vshrl.u32 683565275, %v2755
        %v2757 = vshll.u32 683565275, %v2754
        %v2758 = vshrl.u32 2475754826, %v2755
        %v2759 = vor.u32 %v2757, %v2758
        %v2760 = vshll.u32 2475754826, %v2754
        %v2761 = vshrl.u32 2131351028, %v2755
        %v2762 = vor.u32 %v2760, %v2761
        %v2763 = vshll.u32 2131351028, %v2754
        %v2764 = vshrl.u32 2102212464, %v2755
        %v2765 = vor.u32 %v2763, %v2764
        %v2766 = vshll.u32 2102212464, %v2754
        %v2767 = vshrl.u32 920167782, %v2755
        %v2768 = vor.u32 %v2766, %v2767
        %v2769 = vshll.u32 920167782, %v2754
        %v2770 = vshrl.u32 1326507024, %v2755
        %v2771 = vor.u32 %v2769, %v2770
        %vm2772 = vcmp.lt.s32.totalorder %v2753, 1
        %vm2773 = vcmp.lt.s32.totalorder %v2753, 2
        %vm2774 = vcmp.lt.s32.totalorder %v2753, 3
        %vm2775 = vcmp.lt.s32.totalorder %v2753, 4
        %v2776 = vsel %vm2772, %v2756, %v2759
        %v2777 = vsel %vm2775, %v2765, 2102212464
        %v2778 = vsel %vm2774, %v2762, %v2777
        %v2779 = vsel %vm2773, %v2776, %v2778
        %v2780 = vsel %vm2772, %v2759, %v2762
        %v2781 = vsel %vm2775, %v2768, 920167782
        %v2782 = vsel %vm2774, %v2765, %v2781
        %v2783 = vsel %vm2773, %v2780, %v2782
        %v2784 = vsel %vm2772, %v2762, %v2765
        %v2785 = vsel %vm2775, %v2771, 1326507024
        %v2786 = vsel %vm2774, %v2768, %v2785
        %v2787 = vsel %vm2773, %v2784, %v2786
        %v2788 = vshll.u32 %v2748, 8
        %v2789 = vmul.u32.u64.compose %v2788, %v2787
        %v2790 = vextract.low.u32 %v2789
        %v2791 = vextract.high.u32 %v2789
        %v2792 = vmul.u32.u64.compose %v2788, %v2783
        %v2793 = vextract.low.u32 %v2792
        %v2794 = vextract.high.u32 %v2792
        %v2795 = vmul.u32 %v2788, %v2779
        %v2796 = vadd.s32 %v2791, %v2793
        %vm2797 = vc.u32 %v2791, %v2793
        %v2798 = vadd.s32 %v2794, 1
        %v2799 = vsel %vm2797, %v2798, %v2794
        %v2800 = vadd.s32 %v2795, %v2799
        %v2801 = vadd.s32 %v2800, 536870912
        %v2802 = vshrl.u32 %v2801, 30
        %v2803 = vshll.u32 %v2802, 30
        %v2804 = vsub.s32 %v2800, %v2803
        %vm2805 = vcmp.lt.s32.totalorder %v2804, 0
        %v2806 = vsub.s32 0, %v2804
        %v2807 = vsel %vm2805, %v2806, %v2804
        %v2808 = vclz %v2807
        %v2809 = vsub.s32 %v2808, 2
        %vm2810 = vcmp.gt.s32.totalorder 0, %v2809
        %v2811 = vsel %vm2810, 0, %v2809
        %v2812 = vsub.s32 32, %v2811
        %v2813 = vshll.u32 %v2804, %v2811
        %v2814 = vshrl.u32 %v2796, %v2812
        %v2815 = vor.u32 %v2813, %v2814
        %v2816 = vsub.s32 4294967266, %v2811
        %v2817 = vadd.s32 %v2816, 127
        %v2818 = vshll.u32 %v2817, 23
        %v2819 = vor.u32 4788187, %v2818
        %v2820 = vand.u32 2147483647, %v2819
        %v2822 = vcvt.s32.f32 %v2815
        %v2823 = vmul.f32 %v2822, %v2820
        %v2824 = vxor.u32 %v2823, 2147483648
        %v2825 = vsel %vm2742, %v2824, %v2823
        %v2826 = vsub.s32 4, %v2802
        %v2827 = vsel %vm2742, %v2826, %v2802
        %v2828 = vsel %vm2741, %v2464, %v2825
        %v2829 = vsel %vm2741, 0, %v2827
        %v2830 = vcosq.f32.pop %v2828
        %v2831 = vsinq.f32.pop %v2828
        %vm2832 = vweird.f32 %v2464
        %v2833 = vadd.s32 %v2829, 3
        %v2834 = vand.u32 %v2833, 3
        %vm2835 = vcmp.lt.s32.totalorder %v2834, 2
        %vm2836 = vcmp.eq.s32.totalorder %v2834, 0
        %v2837 = vxor.u32 %v2831, 2147483648
        %v2838 = vsel %vm2836, %v2830, %v2837
        %vm2839 = vcmp.eq.s32.totalorder %v2834, 2
        %v2840 = vxor.u32 %v2830, 2147483648
        %v2841 = vsel %vm2839, %v2840, %v2831
        %v2842 = vsel %vm2835, %v2838, %v2841
        %v2843 = vsel %vm2832, nan, %v2842
        %v2844 = vand.u32 2147483647, %v2469
        %vm2845 = vcmp.le.f32.partialorder %v2844, 0.7853982
        %vm2846 = vcmp.lt.s32.totalorder %v2469, 0
        %v2847 = vand.u32 %v2469, 2139095040
        %v2848 = vshrl.u32 %v2847, 23
        %v2849 = vsub.s32 %v2848, 127
        %v2850 = vand.u32 2147483647, %v2469
        %v2851 = vand.u32 %v2850, 8388607
        %v2852 = vor.u32 %v2851, 8388608
        %v2853 = vsub.s32 0, %v2852
        %v2854 = vadd.s32 %v2849, 1
        %vm2855 = vcmp.gt.s32.totalorder %v2854, 0
        %v2856 = vsel %vm2855, %v2854, 0
        %v2857 = vshrl.u32 %v2856, 5
        %v2858 = vand.u32 %v2856, 31
        %v2859 = vsub.s32 32, %v2858
        %v2860 = vshrl.u32 683565275, %v2859
        %v2861 = vshll.u32 683565275, %v2858
        %v2862 = vshrl.u32 2475754826, %v2859
        %v2863 = vor.u32 %v2861, %v2862
        %v2864 = vshll.u32 2475754826, %v2858
        %v2865 = vshrl.u32 2131351028, %v2859
        %v2866 = vor.u32 %v2864, %v2865
        %v2867 = vshll.u32 2131351028, %v2858
        %v2868 = vshrl.u32 2102212464, %v2859
        %v2869 = vor.u32 %v2867, %v2868
        %v2870 = vshll.u32 2102212464, %v2858
        %v2871 = vshrl.u32 920167782, %v2859
        %v2872 = vor.u32 %v2870, %v2871
        %v2873 = vshll.u32 920167782, %v2858
        %v2874 = vshrl.u32 1326507024, %v2859
        %v2875 = vor.u32 %v2873, %v2874
        %vm2876 = vcmp.lt.s32.totalorder %v2857, 1
        %vm2877 = vcmp.lt.s32.totalorder %v2857, 2
        %vm2878 = vcmp.lt.s32.totalorder %v2857, 3
        %vm2879 = vcmp.lt.s32.totalorder %v2857, 4
        %v2880 = vsel %vm2876, %v2860, %v2863
        %v2881 = vsel %vm2879, %v2869, 2102212464
        %v2882 = vsel %vm2878, %v2866, %v2881
        %v2883 = vsel %vm2877, %v2880, %v2882
        %v2884 = vsel %vm2876, %v2863, %v2866
        %v2885 = vsel %vm2879, %v2872, 920167782
        %v2886 = vsel %vm2878, %v2869, %v2885
        %v2887 = vsel %vm2877, %v2884, %v2886
        %v2888 = vsel %vm2876, %v2866, %v2869
        %v2889 = vsel %vm2879, %v2875, 1326507024
        %v2890 = vsel %vm2878, %v2872, %v2889
        %v2891 = vsel %vm2877, %v2888, %v2890
        %v2892 = vshll.u32 %v2852, 8
        %v2893 = vmul.u32.u64.compose %v2892, %v2891
        %v2894 = vextract.low.u32 %v2893
        %v2895 = vextract.high.u32 %v2893
        %v2896 = vmul.u32.u64.compose %v2892, %v2887
        %v2897 = vextract.low.u32 %v2896
        %v2898 = vextract.high.u32 %v2896
        %v2899 = vmul.u32 %v2892, %v2883
        %v2900 = vadd.s32 %v2895, %v2897
        %vm2901 = vc.u32 %v2895, %v2897
        %v2902 = vadd.s32 %v2898, 1
        %v2903 = vsel %vm2901, %v2902, %v2898
        %v2904 = vadd.s32 %v2899, %v2903
        %v2905 = vadd.s32 %v2904, 536870912
        %v2906 = vshrl.u32 %v2905, 30
        %v2907 = vshll.u32 %v2906, 30
        %v2908 = vsub.s32 %v2904, %v2907
        %vm2909 = vcmp.lt.s32.totalorder %v2908, 0
        %v2910 = vsub.s32 0, %v2908
        %v2911 = vsel %vm2909, %v2910, %v2908
        %v2912 = vclz %v2911
        %v2913 = vsub.s32 %v2912, 2
        %vm2914 = vcmp.gt.s32.totalorder 0, %v2913
        %v2915 = vsel %vm2914, 0, %v2913
        %v2916 = vsub.s32 32, %v2915
        %v2917 = vshll.u32 %v2908, %v2915
        %v2918 = vshrl.u32 %v2900, %v2916
        %v2919 = vor.u32 %v2917, %v2918
        %v2920 = vsub.s32 4294967266, %v2915
        %v2921 = vadd.s32 %v2920, 127
        %v2922 = vshll.u32 %v2921, 23
        %v2923 = vor.u32 4788187, %v2922
        %v2924 = vand.u32 2147483647, %v2923
        %v2926 = vcvt.s32.f32 %v2919
        %v2927 = vmul.f32 %v2926, %v2924
        %v2928 = vxor.u32 %v2927, 2147483648
        %v2929 = vsel %vm2846, %v2928, %v2927
        %v2930 = vsub.s32 4, %v2906
        %v2931 = vsel %vm2846, %v2930, %v2906
        %v2932 = vsel %vm2845, %v2469, %v2929
        %v2933 = vsel %vm2845, 0, %v2931
        %v2934 = vcosq.f32.pop %v2932
        %v2935 = vsinq.f32.pop %v2932
        %vm2936 = vweird.f32 %v2469
        %v2937 = vadd.s32 %v2933, 3
        %v2938 = vand.u32 %v2937, 3
        %vm2939 = vcmp.lt.s32.totalorder %v2938, 2
        %vm2940 = vcmp.eq.s32.totalorder %v2938, 0
        %v2941 = vxor.u32 %v2935, 2147483648
        %v2942 = vsel %vm2940, %v2934, %v2941
        %vm2943 = vcmp.eq.s32.totalorder %v2938, 2
        %v2944 = vxor.u32 %v2934, 2147483648
        %v2945 = vsel %vm2943, %v2944, %v2935
        %v2946 = vsel %vm2939, %v2942, %v2945
        %v2947 = vsel %vm2936, nan, %v2946
        %v2948 = vand.u32 2147483647, %v2474
        %vm2949 = vcmp.le.f32.partialorder %v2948, 0.7853982
        %vm2950 = vcmp.lt.s32.totalorder %v2474, 0
        %v2951 = vand.u32 %v2474, 2139095040
        %v2952 = vshrl.u32 %v2951, 23
        %v2953 = vsub.s32 %v2952, 127
        %v2954 = vand.u32 2147483647, %v2474
        %v2955 = vand.u32 %v2954, 8388607
        %v2956 = vor.u32 %v2955, 8388608
        %v2957 = vsub.s32 0, %v2956
        %v2958 = vadd.s32 %v2953, 1
        %vm2959 = vcmp.gt.s32.totalorder %v2958, 0
        %v2960 = vsel %vm2959, %v2958, 0
        %v2961 = vshrl.u32 %v2960, 5
        %v2962 = vand.u32 %v2960, 31
        %v2963 = vsub.s32 32, %v2962
        %v2964 = vshrl.u32 683565275, %v2963
        %v2965 = vshll.u32 683565275, %v2962
        %v2966 = vshrl.u32 2475754826, %v2963
        %v2967 = vor.u32 %v2965, %v2966
        %v2968 = vshll.u32 2475754826, %v2962
        %v2969 = vshrl.u32 2131351028, %v2963
        %v2970 = vor.u32 %v2968, %v2969
        %v2971 = vshll.u32 2131351028, %v2962
        %v2972 = vshrl.u32 2102212464, %v2963
        %v2973 = vor.u32 %v2971, %v2972
        %v2974 = vshll.u32 2102212464, %v2962
        %v2975 = vshrl.u32 920167782, %v2963
        %v2976 = vor.u32 %v2974, %v2975
        %v2977 = vshll.u32 920167782, %v2962
        %v2978 = vshrl.u32 1326507024, %v2963
        %v2979 = vor.u32 %v2977, %v2978
        %vm2980 = vcmp.lt.s32.totalorder %v2961, 1
        %vm2981 = vcmp.lt.s32.totalorder %v2961, 2
        %vm2982 = vcmp.lt.s32.totalorder %v2961, 3
        %vm2983 = vcmp.lt.s32.totalorder %v2961, 4
        %v2984 = vsel %vm2980, %v2964, %v2967
        %v2985 = vsel %vm2983, %v2973, 2102212464
        %v2986 = vsel %vm2982, %v2970, %v2985
        %v2987 = vsel %vm2981, %v2984, %v2986
        %v2988 = vsel %vm2980, %v2967, %v2970
        %v2989 = vsel %vm2983, %v2976, 920167782
        %v2990 = vsel %vm2982, %v2973, %v2989
        %v2991 = vsel %vm2981, %v2988, %v2990
        %v2992 = vsel %vm2980, %v2970, %v2973
        %v2993 = vsel %vm2983, %v2979, 1326507024
        %v2994 = vsel %vm2982, %v2976, %v2993
        %v2995 = vsel %vm2981, %v2992, %v2994
        %v2996 = vshll.u32 %v2956, 8
        %v2997 = vmul.u32.u64.compose %v2996, %v2995
        %v2998 = vextract.low.u32 %v2997
        %v2999 = vextract.high.u32 %v2997
        %v3000 = vmul.u32.u64.compose %v2996, %v2991
        %v3001 = vextract.low.u32 %v3000
        %v3002 = vextract.high.u32 %v3000
        %v3003 = vmul.u32 %v2996, %v2987
        %v3004 = vadd.s32 %v2999, %v3001
        %vm3005 = vc.u32 %v2999, %v3001
        %v3006 = vadd.s32 %v3002, 1
        %v3007 = vsel %vm3005, %v3006, %v3002
        %v3008 = vadd.s32 %v3003, %v3007
        %v3009 = vadd.s32 %v3008, 536870912
        %v3010 = vshrl.u32 %v3009, 30
        %v3011 = vshll.u32 %v3010, 30
        %v3012 = vsub.s32 %v3008, %v3011
        %vm3013 = vcmp.lt.s32.totalorder %v3012, 0
        %v3014 = vsub.s32 0, %v3012
        %v3015 = vsel %vm3013, %v3014, %v3012
        %v3016 = vclz %v3015
        %v3017 = vsub.s32 %v3016, 2
        %vm3018 = vcmp.gt.s32.totalorder 0, %v3017
        %v3019 = vsel %vm3018, 0, %v3017
        %v3020 = vsub.s32 32, %v3019
        %v3021 = vshll.u32 %v3012, %v3019
        %v3022 = vshrl.u32 %v3004, %v3020
        %v3023 = vor.u32 %v3021, %v3022
        %v3024 = vsub.s32 4294967266, %v3019
        %v3025 = vadd.s32 %v3024, 127
        %v3026 = vshll.u32 %v3025, 23
        %v3027 = vor.u32 4788187, %v3026
        %v3028 = vand.u32 2147483647, %v3027
        %v3030 = vcvt.s32.f32 %v3023
        %v3031 = vmul.f32 %v3030, %v3028
        %v3032 = vxor.u32 %v3031, 2147483648
        %v3033 = vsel %vm2950, %v3032, %v3031
        %v3034 = vsub.s32 4, %v3010
        %v3035 = vsel %vm2950, %v3034, %v3010
        %v3036 = vsel %vm2949, %v2474, %v3033
        %v3037 = vsel %vm2949, 0, %v3035
        %v3038 = vcosq.f32.pop %v3036
        %v3039 = vsinq.f32.pop %v3036
        %vm3040 = vweird.f32 %v2474
        %v3041 = vadd.s32 %v3037, 3
        %v3042 = vand.u32 %v3041, 3
        %vm3043 = vcmp.lt.s32.totalorder %v3042, 2
        %vm3044 = vcmp.eq.s32.totalorder %v3042, 0
        %v3045 = vxor.u32 %v3039, 2147483648
        %v3046 = vsel %vm3044, %v3038, %v3045
        %vm3047 = vcmp.eq.s32.totalorder %v3042, 2
        %v3048 = vxor.u32 %v3038, 2147483648
        %v3049 = vsel %vm3047, %v3048, %v3039
        %v3050 = vsel %vm3043, %v3046, %v3049
        %v3051 = vsel %vm3040, nan, %v3050
        %v3052 = vand.u32 2147483647, %v2479
        %vm3053 = vcmp.le.f32.partialorder %v3052, 0.7853982
        %vm3054 = vcmp.lt.s32.totalorder %v2479, 0
        %v3055 = vand.u32 %v2479, 2139095040
        %v3056 = vshrl.u32 %v3055, 23
        %v3057 = vsub.s32 %v3056, 127
        %v3058 = vand.u32 2147483647, %v2479
        %v3059 = vand.u32 %v3058, 8388607
        %v3060 = vor.u32 %v3059, 8388608
        %v3061 = vsub.s32 0, %v3060
        %v3062 = vadd.s32 %v3057, 1
        %vm3063 = vcmp.gt.s32.totalorder %v3062, 0
        %v3064 = vsel %vm3063, %v3062, 0
        %v3065 = vshrl.u32 %v3064, 5
        %v3066 = vand.u32 %v3064, 31
        %v3067 = vsub.s32 32, %v3066
        %v3068 = vshrl.u32 683565275, %v3067
        %v3069 = vshll.u32 683565275, %v3066
        %v3070 = vshrl.u32 2475754826, %v3067
        %v3071 = vor.u32 %v3069, %v3070
        %v3072 = vshll.u32 2475754826, %v3066
        %v3073 = vshrl.u32 2131351028, %v3067
        %v3074 = vor.u32 %v3072, %v3073
        %v3075 = vshll.u32 2131351028, %v3066
        %v3076 = vshrl.u32 2102212464, %v3067
        %v3077 = vor.u32 %v3075, %v3076
        %v3078 = vshll.u32 2102212464, %v3066
        %v3079 = vshrl.u32 920167782, %v3067
        %v3080 = vor.u32 %v3078, %v3079
        %v3081 = vshll.u32 920167782, %v3066
        %v3082 = vshrl.u32 1326507024, %v3067
        %v3083 = vor.u32 %v3081, %v3082
        %vm3084 = vcmp.lt.s32.totalorder %v3065, 1
        %vm3085 = vcmp.lt.s32.totalorder %v3065, 2
        %vm3086 = vcmp.lt.s32.totalorder %v3065, 3
        %vm3087 = vcmp.lt.s32.totalorder %v3065, 4
        %v3088 = vsel %vm3084, %v3068, %v3071
        %v3089 = vsel %vm3087, %v3077, 2102212464
        %v3090 = vsel %vm3086, %v3074, %v3089
        %v3091 = vsel %vm3085, %v3088, %v3090
        %v3092 = vsel %vm3084, %v3071, %v3074
        %v3093 = vsel %vm3087, %v3080, 920167782
        %v3094 = vsel %vm3086, %v3077, %v3093
        %v3095 = vsel %vm3085, %v3092, %v3094
        %v3096 = vsel %vm3084, %v3074, %v3077
        %v3097 = vsel %vm3087, %v3083, 1326507024
        %v3098 = vsel %vm3086, %v3080, %v3097
        %v3099 = vsel %vm3085, %v3096, %v3098
        %v3100 = vshll.u32 %v3060, 8
        %v3101 = vmul.u32.u64.compose %v3100, %v3099
        %v3102 = vextract.low.u32 %v3101
        %v3103 = vextract.high.u32 %v3101
        %v3104 = vmul.u32.u64.compose %v3100, %v3095
        %v3105 = vextract.low.u32 %v3104
        %v3106 = vextract.high.u32 %v3104
        %v3107 = vmul.u32 %v3100, %v3091
        %v3108 = vadd.s32 %v3103, %v3105
        %vm3109 = vc.u32 %v3103, %v3105
        %v3110 = vadd.s32 %v3106, 1
        %v3111 = vsel %vm3109, %v3110, %v3106
        %v3112 = vadd.s32 %v3107, %v3111
        %v3113 = vadd.s32 %v3112, 536870912
        %v3114 = vshrl.u32 %v3113, 30
        %v3115 = vshll.u32 %v3114, 30
        %v3116 = vsub.s32 %v3112, %v3115
        %vm3117 = vcmp.lt.s32.totalorder %v3116, 0
        %v3118 = vsub.s32 0, %v3116
        %v3119 = vsel %vm3117, %v3118, %v3116
        %v3120 = vclz %v3119
        %v3121 = vsub.s32 %v3120, 2
        %vm3122 = vcmp.gt.s32.totalorder 0, %v3121
        %v3123 = vsel %vm3122, 0, %v3121
        %v3124 = vsub.s32 32, %v3123
        %v3125 = vshll.u32 %v3116, %v3123
        %v3126 = vshrl.u32 %v3108, %v3124
        %v3127 = vor.u32 %v3125, %v3126
        %v3128 = vsub.s32 4294967266, %v3123
        %v3129 = vadd.s32 %v3128, 127
        %v3130 = vshll.u32 %v3129, 23
        %v3131 = vor.u32 4788187, %v3130
        %v3132 = vand.u32 2147483647, %v3131
        %v3134 = vcvt.s32.f32 %v3127
        %v3135 = vmul.f32 %v3134, %v3132
        %v3136 = vxor.u32 %v3135, 2147483648
        %v3137 = vsel %vm3054, %v3136, %v3135
        %v3138 = vsub.s32 4, %v3114
        %v3139 = vsel %vm3054, %v3138, %v3114
        %v3140 = vsel %vm3053, %v2479, %v3137
        %v3141 = vsel %vm3053, 0, %v3139
        %v3142 = vcosq.f32.pop %v3140
        %v3143 = vsinq.f32.pop %v3140
        %vm3144 = vweird.f32 %v2479
        %v3145 = vadd.s32 %v3141, 3
        %v3146 = vand.u32 %v3145, 3
        %vm3147 = vcmp.lt.s32.totalorder %v3146, 2
        %vm3148 = vcmp.eq.s32.totalorder %v3146, 0
        %v3149 = vxor.u32 %v3143, 2147483648
        %v3150 = vsel %vm3148, %v3142, %v3149
        %vm3151 = vcmp.eq.s32.totalorder %v3146, 2
        %v3152 = vxor.u32 %v3142, 2147483648
        %v3153 = vsel %vm3151, %v3152, %v3143
        %v3154 = vsel %vm3147, %v3150, %v3153
        %v3155 = vsel %vm3144, nan, %v3154
        %v3156 = vand.u32 2147483647, %v2484
        %vm3157 = vcmp.le.f32.partialorder %v3156, 0.7853982
        %vm3158 = vcmp.lt.s32.totalorder %v2484, 0
        %v3159 = vand.u32 %v2484, 2139095040
        %v3160 = vshrl.u32 %v3159, 23
        %v3161 = vsub.s32 %v3160, 127
        %v3162 = vand.u32 2147483647, %v2484
        %v3163 = vand.u32 %v3162, 8388607
        %v3164 = vor.u32 %v3163, 8388608
        %v3165 = vsub.s32 0, %v3164
        %v3166 = vadd.s32 %v3161, 1
        %vm3167 = vcmp.gt.s32.totalorder %v3166, 0
        %v3168 = vsel %vm3167, %v3166, 0
        %v3169 = vshrl.u32 %v3168, 5
        %v3170 = vand.u32 %v3168, 31
        %v3171 = vsub.s32 32, %v3170
        %v3172 = vshrl.u32 683565275, %v3171
        %v3173 = vshll.u32 683565275, %v3170
        %v3174 = vshrl.u32 2475754826, %v3171
        %v3175 = vor.u32 %v3173, %v3174
        %v3176 = vshll.u32 2475754826, %v3170
        %v3177 = vshrl.u32 2131351028, %v3171
        %v3178 = vor.u32 %v3176, %v3177
        %v3179 = vshll.u32 2131351028, %v3170
        %v3180 = vshrl.u32 2102212464, %v3171
        %v3181 = vor.u32 %v3179, %v3180
        %v3182 = vshll.u32 2102212464, %v3170
        %v3183 = vshrl.u32 920167782, %v3171
        %v3184 = vor.u32 %v3182, %v3183
        %v3185 = vshll.u32 920167782, %v3170
        %v3186 = vshrl.u32 1326507024, %v3171
        %v3187 = vor.u32 %v3185, %v3186
        %vm3188 = vcmp.lt.s32.totalorder %v3169, 1
        %vm3189 = vcmp.lt.s32.totalorder %v3169, 2
        %vm3190 = vcmp.lt.s32.totalorder %v3169, 3
        %vm3191 = vcmp.lt.s32.totalorder %v3169, 4
        %v3192 = vsel %vm3188, %v3172, %v3175
        %v3193 = vsel %vm3191, %v3181, 2102212464
        %v3194 = vsel %vm3190, %v3178, %v3193
        %v3195 = vsel %vm3189, %v3192, %v3194
        %v3196 = vsel %vm3188, %v3175, %v3178
        %v3197 = vsel %vm3191, %v3184, 920167782
        %v3198 = vsel %vm3190, %v3181, %v3197
        %v3199 = vsel %vm3189, %v3196, %v3198
        %v3200 = vsel %vm3188, %v3178, %v3181
        %v3201 = vsel %vm3191, %v3187, 1326507024
        %v3202 = vsel %vm3190, %v3184, %v3201
        %v3203 = vsel %vm3189, %v3200, %v3202
        %v3204 = vshll.u32 %v3164, 8
        %v3205 = vmul.u32.u64.compose %v3204, %v3203
        %v3206 = vextract.low.u32 %v3205
        %v3207 = vextract.high.u32 %v3205
        %v3208 = vmul.u32.u64.compose %v3204, %v3199
        %v3209 = vextract.low.u32 %v3208
        %v3210 = vextract.high.u32 %v3208
        %v3211 = vmul.u32 %v3204, %v3195
        %v3212 = vadd.s32 %v3207, %v3209
        %vm3213 = vc.u32 %v3207, %v3209
        %v3214 = vadd.s32 %v3210, 1
        %v3215 = vsel %vm3213, %v3214, %v3210
        %v3216 = vadd.s32 %v3211, %v3215
        %v3217 = vadd.s32 %v3216, 536870912
        %v3218 = vshrl.u32 %v3217, 30
        %v3219 = vshll.u32 %v3218, 30
        %v3220 = vsub.s32 %v3216, %v3219
        %vm3221 = vcmp.lt.s32.totalorder %v3220, 0
        %v3222 = vsub.s32 0, %v3220
        %v3223 = vsel %vm3221, %v3222, %v3220
        %v3224 = vclz %v3223
        %v3225 = vsub.s32 %v3224, 2
        %vm3226 = vcmp.gt.s32.totalorder 0, %v3225
        %v3227 = vsel %vm3226, 0, %v3225
        %v3228 = vsub.s32 32, %v3227
        %v3229 = vshll.u32 %v3220, %v3227
        %v3230 = vshrl.u32 %v3212, %v3228
        %v3231 = vor.u32 %v3229, %v3230
        %v3232 = vsub.s32 4294967266, %v3227
        %v3233 = vadd.s32 %v3232, 127
        %v3234 = vshll.u32 %v3233, 23
        %v3235 = vor.u32 4788187, %v3234
        %v3236 = vand.u32 2147483647, %v3235
        %v3238 = vcvt.s32.f32 %v3231
        %v3239 = vmul.f32 %v3238, %v3236
        %v3240 = vxor.u32 %v3239, 2147483648
        %v3241 = vsel %vm3158, %v3240, %v3239
        %v3242 = vsub.s32 4, %v3218
        %v3243 = vsel %vm3158, %v3242, %v3218
        %v3244 = vsel %vm3157, %v2484, %v3241
        %v3245 = vsel %vm3157, 0, %v3243
        %v3246 = vcosq.f32.pop %v3244
        %v3247 = vsinq.f32.pop %v3244
        %vm3248 = vweird.f32 %v2484
        %v3249 = vadd.s32 %v3245, 3
        %v3250 = vand.u32 %v3249, 3
        %vm3251 = vcmp.lt.s32.totalorder %v3250, 2
        %vm3252 = vcmp.eq.s32.totalorder %v3250, 0
        %v3253 = vxor.u32 %v3247, 2147483648
        %v3254 = vsel %vm3252, %v3246, %v3253
        %vm3255 = vcmp.eq.s32.totalorder %v3250, 2
        %v3256 = vxor.u32 %v3246, 2147483648
        %v3257 = vsel %vm3255, %v3256, %v3247
        %v3258 = vsel %vm3251, %v3254, %v3257
        %v3259 = vsel %vm3248, nan, %v3258
        %v3260 = vand.u32 2147483647, %v2489
        %vm3261 = vcmp.le.f32.partialorder %v3260, 0.7853982
        %vm3262 = vcmp.lt.s32.totalorder %v2489, 0
        %v3263 = vand.u32 %v2489, 2139095040
        %v3264 = vshrl.u32 %v3263, 23
        %v3265 = vsub.s32 %v3264, 127
        %v3266 = vand.u32 2147483647, %v2489
        %v3267 = vand.u32 %v3266, 8388607
        %v3268 = vor.u32 %v3267, 8388608
        %v3269 = vsub.s32 0, %v3268
        %v3270 = vadd.s32 %v3265, 1
        %vm3271 = vcmp.gt.s32.totalorder %v3270, 0
        %v3272 = vsel %vm3271, %v3270, 0
        %v3273 = vshrl.u32 %v3272, 5
        %v3274 = vand.u32 %v3272, 31
        %v3275 = vsub.s32 32, %v3274
        %v3276 = vshrl.u32 683565275, %v3275
        %v3277 = vshll.u32 683565275, %v3274
        %v3278 = vshrl.u32 2475754826, %v3275
        %v3279 = vor.u32 %v3277, %v3278
        %v3280 = vshll.u32 2475754826, %v3274
        %v3281 = vshrl.u32 2131351028, %v3275
        %v3282 = vor.u32 %v3280, %v3281
        %v3283 = vshll.u32 2131351028, %v3274
        %v3284 = vshrl.u32 2102212464, %v3275
        %v3285 = vor.u32 %v3283, %v3284
        %v3286 = vshll.u32 2102212464, %v3274
        %v3287 = vshrl.u32 920167782, %v3275
        %v3288 = vor.u32 %v3286, %v3287
        %v3289 = vshll.u32 920167782, %v3274
        %v3290 = vshrl.u32 1326507024, %v3275
        %v3291 = vor.u32 %v3289, %v3290
        %vm3292 = vcmp.lt.s32.totalorder %v3273, 1
        %vm3293 = vcmp.lt.s32.totalorder %v3273, 2
        %vm3294 = vcmp.lt.s32.totalorder %v3273, 3
        %vm3295 = vcmp.lt.s32.totalorder %v3273, 4
        %v3296 = vsel %vm3292, %v3276, %v3279
        %v3297 = vsel %vm3295, %v3285, 2102212464
        %v3298 = vsel %vm3294, %v3282, %v3297
        %v3299 = vsel %vm3293, %v3296, %v3298
        %v3300 = vsel %vm3292, %v3279, %v3282
        %v3301 = vsel %vm3295, %v3288, 920167782
        %v3302 = vsel %vm3294, %v3285, %v3301
        %v3303 = vsel %vm3293, %v3300, %v3302
        %v3304 = vsel %vm3292, %v3282, %v3285
        %v3305 = vsel %vm3295, %v3291, 1326507024
        %v3306 = vsel %vm3294, %v3288, %v3305
        %v3307 = vsel %vm3293, %v3304, %v3306
        %v3308 = vshll.u32 %v3268, 8
        %v3309 = vmul.u32.u64.compose %v3308, %v3307
        %v3310 = vextract.low.u32 %v3309
        %v3311 = vextract.high.u32 %v3309
        %v3312 = vmul.u32.u64.compose %v3308, %v3303
        %v3313 = vextract.low.u32 %v3312
        %v3314 = vextract.high.u32 %v3312
        %v3315 = vmul.u32 %v3308, %v3299
        %v3316 = vadd.s32 %v3311, %v3313
        %vm3317 = vc.u32 %v3311, %v3313
        %v3318 = vadd.s32 %v3314, 1
        %v3319 = vsel %vm3317, %v3318, %v3314
        %v3320 = vadd.s32 %v3315, %v3319
        %v3321 = vadd.s32 %v3320, 536870912
        %v3322 = vshrl.u32 %v3321, 30
        %v3323 = vshll.u32 %v3322, 30
        %v3324 = vsub.s32 %v3320, %v3323
        %vm3325 = vcmp.lt.s32.totalorder %v3324, 0
        %v3326 = vsub.s32 0, %v3324
        %v3327 = vsel %vm3325, %v3326, %v3324
        %v3328 = vclz %v3327
        %v3329 = vsub.s32 %v3328, 2
        %vm3330 = vcmp.gt.s32.totalorder 0, %v3329
        %v3331 = vsel %vm3330, 0, %v3329
        %v3332 = vsub.s32 32, %v3331
        %v3333 = vshll.u32 %v3324, %v3331
        %v3334 = vshrl.u32 %v3316, %v3332
        %v3335 = vor.u32 %v3333, %v3334
        %v3336 = vsub.s32 4294967266, %v3331
        %v3337 = vadd.s32 %v3336, 127
        %v3338 = vshll.u32 %v3337, 23
        %v3339 = vor.u32 4788187, %v3338
        %v3340 = vand.u32 2147483647, %v3339
        %v3342 = vcvt.s32.f32 %v3335
        %v3343 = vmul.f32 %v3342, %v3340
        %v3344 = vxor.u32 %v3343, 2147483648
        %v3345 = vsel %vm3262, %v3344, %v3343
        %v3346 = vsub.s32 4, %v3322
        %v3347 = vsel %vm3262, %v3346, %v3322
        %v3348 = vsel %vm3261, %v2489, %v3345
        %v3349 = vsel %vm3261, 0, %v3347
        %v3350 = vcosq.f32.pop %v3348
        %v3351 = vsinq.f32.pop %v3348
        %vm3352 = vweird.f32 %v2489
        %v3353 = vadd.s32 %v3349, 3
        %v3354 = vand.u32 %v3353, 3
        %vm3355 = vcmp.lt.s32.totalorder %v3354, 2
        %vm3356 = vcmp.eq.s32.totalorder %v3354, 0
        %v3357 = vxor.u32 %v3351, 2147483648
        %v3358 = vsel %vm3356, %v3350, %v3357
        %vm3359 = vcmp.eq.s32.totalorder %v3354, 2
        %v3360 = vxor.u32 %v3350, 2147483648
        %v3361 = vsel %vm3359, %v3360, %v3351
        %v3362 = vsel %vm3355, %v3358, %v3361
        %v3363 = vsel %vm3352, nan, %v3362
        %v3364 = vand.u32 2147483647, %v2494
        %vm3365 = vcmp.le.f32.partialorder %v3364, 0.7853982
        %vm3366 = vcmp.lt.s32.totalorder %v2494, 0
        %v3367 = vand.u32 %v2494, 2139095040
        %v3368 = vshrl.u32 %v3367, 23
        %v3369 = vsub.s32 %v3368, 127
        %v3370 = vand.u32 2147483647, %v2494
        %v3371 = vand.u32 %v3370, 8388607
        %v3372 = vor.u32 %v3371, 8388608
        %v3373 = vsub.s32 0, %v3372
        %v3374 = vadd.s32 %v3369, 1
        %vm3375 = vcmp.gt.s32.totalorder %v3374, 0
        %v3376 = vsel %vm3375, %v3374, 0
        %v3377 = vshrl.u32 %v3376, 5
        %v3378 = vand.u32 %v3376, 31
        %v3379 = vsub.s32 32, %v3378
        %v3380 = vshrl.u32 683565275, %v3379
        %v3381 = vshll.u32 683565275, %v3378
        %v3382 = vshrl.u32 2475754826, %v3379
        %v3383 = vor.u32 %v3381, %v3382
        %v3384 = vshll.u32 2475754826, %v3378
        %v3385 = vshrl.u32 2131351028, %v3379
        %v3386 = vor.u32 %v3384, %v3385
        %v3387 = vshll.u32 2131351028, %v3378
        %v3388 = vshrl.u32 2102212464, %v3379
        %v3389 = vor.u32 %v3387, %v3388
        %v3390 = vshll.u32 2102212464, %v3378
        %v3391 = vshrl.u32 920167782, %v3379
        %v3392 = vor.u32 %v3390, %v3391
        %v3393 = vshll.u32 920167782, %v3378
        %v3394 = vshrl.u32 1326507024, %v3379
        %v3395 = vor.u32 %v3393, %v3394
        %vm3396 = vcmp.lt.s32.totalorder %v3377, 1
        %vm3397 = vcmp.lt.s32.totalorder %v3377, 2
        %vm3398 = vcmp.lt.s32.totalorder %v3377, 3
        %vm3399 = vcmp.lt.s32.totalorder %v3377, 4
        %v3400 = vsel %vm3396, %v3380, %v3383
        %v3401 = vsel %vm3399, %v3389, 2102212464
        %v3402 = vsel %vm3398, %v3386, %v3401
        %v3403 = vsel %vm3397, %v3400, %v3402
        %v3404 = vsel %vm3396, %v3383, %v3386
        %v3405 = vsel %vm3399, %v3392, 920167782
        %v3406 = vsel %vm3398, %v3389, %v3405
        %v3407 = vsel %vm3397, %v3404, %v3406
        %v3408 = vsel %vm3396, %v3386, %v3389
        %v3409 = vsel %vm3399, %v3395, 1326507024
        %v3410 = vsel %vm3398, %v3392, %v3409
        %v3411 = vsel %vm3397, %v3408, %v3410
        %v3412 = vshll.u32 %v3372, 8
        %v3413 = vmul.u32.u64.compose %v3412, %v3411
        %v3414 = vextract.low.u32 %v3413
        %v3415 = vextract.high.u32 %v3413
        %v3416 = vmul.u32.u64.compose %v3412, %v3407
        %v3417 = vextract.low.u32 %v3416
        %v3418 = vextract.high.u32 %v3416
        %v3419 = vmul.u32 %v3412, %v3403
        %v3420 = vadd.s32 %v3415, %v3417
        %vm3421 = vc.u32 %v3415, %v3417
        %v3422 = vadd.s32 %v3418, 1
        %v3423 = vsel %vm3421, %v3422, %v3418
        %v3424 = vadd.s32 %v3419, %v3423
        %v3425 = vadd.s32 %v3424, 536870912
        %v3426 = vshrl.u32 %v3425, 30
        %v3427 = vshll.u32 %v3426, 30
        %v3428 = vsub.s32 %v3424, %v3427
        %vm3429 = vcmp.lt.s32.totalorder %v3428, 0
        %v3430 = vsub.s32 0, %v3428
        %v3431 = vsel %vm3429, %v3430, %v3428
        %v3432 = vclz %v3431
        %v3433 = vsub.s32 %v3432, 2
        %vm3434 = vcmp.gt.s32.totalorder 0, %v3433
        %v3435 = vsel %vm3434, 0, %v3433
        %v3436 = vsub.s32 32, %v3435
        %v3437 = vshll.u32 %v3428, %v3435
        %v3438 = vshrl.u32 %v3420, %v3436
        %v3439 = vor.u32 %v3437, %v3438
        %v3440 = vsub.s32 4294967266, %v3435
        %v3441 = vadd.s32 %v3440, 127
        %v3442 = vshll.u32 %v3441, 23
        %v3443 = vor.u32 4788187, %v3442
        %v3444 = vand.u32 2147483647, %v3443
        %v3446 = vcvt.s32.f32 %v3439
        %v3447 = vmul.f32 %v3446, %v3444
        %v3448 = vxor.u32 %v3447, 2147483648
        %v3449 = vsel %vm3366, %v3448, %v3447
        %v3450 = vsub.s32 4, %v3426
        %v3451 = vsel %vm3366, %v3450, %v3426
        %v3452 = vsel %vm3365, %v2494, %v3449
        %v3453 = vsel %vm3365, 0, %v3451
        %v3454 = vcosq.f32.pop %v3452
        %v3455 = vsinq.f32.pop %v3452
        %vm3456 = vweird.f32 %v2494
        %v3457 = vadd.s32 %v3453, 3
        %v3458 = vand.u32 %v3457, 3
        %vm3459 = vcmp.lt.s32.totalorder %v3458, 2
        %vm3460 = vcmp.eq.s32.totalorder %v3458, 0
        %v3461 = vxor.u32 %v3455, 2147483648
        %v3462 = vsel %vm3460, %v3454, %v3461
        %vm3463 = vcmp.eq.s32.totalorder %v3458, 2
        %v3464 = vxor.u32 %v3454, 2147483648
        %v3465 = vsel %vm3463, %v3464, %v3455
        %v3466 = vsel %vm3459, %v3462, %v3465
        %v3467 = vsel %vm3456, nan, %v3466
        %v3468 = vand.u32 2147483647, %v2499
        %vm3469 = vcmp.le.f32.partialorder %v3468, 0.7853982
        %vm3470 = vcmp.lt.s32.totalorder %v2499, 0
        %v3471 = vand.u32 %v2499, 2139095040
        %v3472 = vshrl.u32 %v3471, 23
        %v3473 = vsub.s32 %v3472, 127
        %v3474 = vand.u32 2147483647, %v2499
        %v3475 = vand.u32 %v3474, 8388607
        %v3476 = vor.u32 %v3475, 8388608
        %v3477 = vsub.s32 0, %v3476
        %v3478 = vadd.s32 %v3473, 1
        %vm3479 = vcmp.gt.s32.totalorder %v3478, 0
        %v3480 = vsel %vm3479, %v3478, 0
        %v3481 = vshrl.u32 %v3480, 5
        %v3482 = vand.u32 %v3480, 31
        %v3483 = vsub.s32 32, %v3482
        %v3484 = vshrl.u32 683565275, %v3483
        %v3485 = vshll.u32 683565275, %v3482
        %v3486 = vshrl.u32 2475754826, %v3483
        %v3487 = vor.u32 %v3485, %v3486
        %v3488 = vshll.u32 2475754826, %v3482
        %v3489 = vshrl.u32 2131351028, %v3483
        %v3490 = vor.u32 %v3488, %v3489
        %v3491 = vshll.u32 2131351028, %v3482
        %v3492 = vshrl.u32 2102212464, %v3483
        %v3493 = vor.u32 %v3491, %v3492
        %v3494 = vshll.u32 2102212464, %v3482
        %v3495 = vshrl.u32 920167782, %v3483
        %v3496 = vor.u32 %v3494, %v3495
        %v3497 = vshll.u32 920167782, %v3482
        %v3498 = vshrl.u32 1326507024, %v3483
        %v3499 = vor.u32 %v3497, %v3498
        %vm3500 = vcmp.lt.s32.totalorder %v3481, 1
        %vm3501 = vcmp.lt.s32.totalorder %v3481, 2
        %vm3502 = vcmp.lt.s32.totalorder %v3481, 3
        %vm3503 = vcmp.lt.s32.totalorder %v3481, 4
        %v3504 = vsel %vm3500, %v3484, %v3487
        %v3505 = vsel %vm3503, %v3493, 2102212464
        %v3506 = vsel %vm3502, %v3490, %v3505
        %v3507 = vsel %vm3501, %v3504, %v3506
        %v3508 = vsel %vm3500, %v3487, %v3490
        %v3509 = vsel %vm3503, %v3496, 920167782
        %v3510 = vsel %vm3502, %v3493, %v3509
        %v3511 = vsel %vm3501, %v3508, %v3510
        %v3512 = vsel %vm3500, %v3490, %v3493
        %v3513 = vsel %vm3503, %v3499, 1326507024
        %v3514 = vsel %vm3502, %v3496, %v3513
        %v3515 = vsel %vm3501, %v3512, %v3514
        %v3516 = vshll.u32 %v3476, 8
        %v3517 = vmul.u32.u64.compose %v3516, %v3515
        %v3518 = vextract.low.u32 %v3517
        %v3519 = vextract.high.u32 %v3517
        %v3520 = vmul.u32.u64.compose %v3516, %v3511
        %v3521 = vextract.low.u32 %v3520
        %v3522 = vextract.high.u32 %v3520
        %v3523 = vmul.u32 %v3516, %v3507
        %v3524 = vadd.s32 %v3519, %v3521
        %vm3525 = vc.u32 %v3519, %v3521
        %v3526 = vadd.s32 %v3522, 1
        %v3527 = vsel %vm3525, %v3526, %v3522
        %v3528 = vadd.s32 %v3523, %v3527
        %v3529 = vadd.s32 %v3528, 536870912
        %v3530 = vshrl.u32 %v3529, 30
        %v3531 = vshll.u32 %v3530, 30
        %v3532 = vsub.s32 %v3528, %v3531
        %vm3533 = vcmp.lt.s32.totalorder %v3532, 0
        %v3534 = vsub.s32 0, %v3532
        %v3535 = vsel %vm3533, %v3534, %v3532
        %v3536 = vclz %v3535
        %v3537 = vsub.s32 %v3536, 2
        %vm3538 = vcmp.gt.s32.totalorder 0, %v3537
        %v3539 = vsel %vm3538, 0, %v3537
        %v3540 = vsub.s32 32, %v3539
        %v3541 = vshll.u32 %v3532, %v3539
        %v3542 = vshrl.u32 %v3524, %v3540
        %v3543 = vor.u32 %v3541, %v3542
        %v3544 = vsub.s32 4294967266, %v3539
        %v3545 = vadd.s32 %v3544, 127
        %v3546 = vshll.u32 %v3545, 23
        %v3547 = vor.u32 4788187, %v3546
        %v3548 = vand.u32 2147483647, %v3547
        %v3550 = vcvt.s32.f32 %v3543
        %v3551 = vmul.f32 %v3550, %v3548
        %v3552 = vxor.u32 %v3551, 2147483648
        %v3553 = vsel %vm3470, %v3552, %v3551
        %v3554 = vsub.s32 4, %v3530
        %v3555 = vsel %vm3470, %v3554, %v3530
        %v3556 = vsel %vm3469, %v2499, %v3553
        %v3557 = vsel %vm3469, 0, %v3555
        %v3558 = vcosq.f32.pop %v3556
        %v3559 = vsinq.f32.pop %v3556
        %vm3560 = vweird.f32 %v2499
        %v3561 = vadd.s32 %v3557, 3
        %v3562 = vand.u32 %v3561, 3
        %vm3563 = vcmp.lt.s32.totalorder %v3562, 2
        %vm3564 = vcmp.eq.s32.totalorder %v3562, 0
        %v3565 = vxor.u32 %v3559, 2147483648
        %v3566 = vsel %vm3564, %v3558, %v3565
        %vm3567 = vcmp.eq.s32.totalorder %v3562, 2
        %v3568 = vxor.u32 %v3558, 2147483648
        %v3569 = vsel %vm3567, %v3568, %v3559
        %v3570 = vsel %vm3563, %v3566, %v3569
        %v3571 = vsel %vm3560, nan, %v3570
        %v3572 = vand.u32 2147483647, %v2504
        %vm3573 = vcmp.le.f32.partialorder %v3572, 0.7853982
        %vm3574 = vcmp.lt.s32.totalorder %v2504, 0
        %v3575 = vand.u32 %v2504, 2139095040
        %v3576 = vshrl.u32 %v3575, 23
        %v3577 = vsub.s32 %v3576, 127
        %v3578 = vand.u32 2147483647, %v2504
        %v3579 = vand.u32 %v3578, 8388607
        %v3580 = vor.u32 %v3579, 8388608
        %v3581 = vsub.s32 0, %v3580
        %v3582 = vadd.s32 %v3577, 1
        %vm3583 = vcmp.gt.s32.totalorder %v3582, 0
        %v3584 = vsel %vm3583, %v3582, 0
        %v3585 = vshrl.u32 %v3584, 5
        %v3586 = vand.u32 %v3584, 31
        %v3587 = vsub.s32 32, %v3586
        %v3588 = vshrl.u32 683565275, %v3587
        %v3589 = vshll.u32 683565275, %v3586
        %v3590 = vshrl.u32 2475754826, %v3587
        %v3591 = vor.u32 %v3589, %v3590
        %v3592 = vshll.u32 2475754826, %v3586
        %v3593 = vshrl.u32 2131351028, %v3587
        %v3594 = vor.u32 %v3592, %v3593
        %v3595 = vshll.u32 2131351028, %v3586
        %v3596 = vshrl.u32 2102212464, %v3587
        %v3597 = vor.u32 %v3595, %v3596
        %v3598 = vshll.u32 2102212464, %v3586
        %v3599 = vshrl.u32 920167782, %v3587
        %v3600 = vor.u32 %v3598, %v3599
        %v3601 = vshll.u32 920167782, %v3586
        %v3602 = vshrl.u32 1326507024, %v3587
        %v3603 = vor.u32 %v3601, %v3602
        %vm3604 = vcmp.lt.s32.totalorder %v3585, 1
        %vm3605 = vcmp.lt.s32.totalorder %v3585, 2
        %vm3606 = vcmp.lt.s32.totalorder %v3585, 3
        %vm3607 = vcmp.lt.s32.totalorder %v3585, 4
        %v3608 = vsel %vm3604, %v3588, %v3591
        %v3609 = vsel %vm3607, %v3597, 2102212464
        %v3610 = vsel %vm3606, %v3594, %v3609
        %v3611 = vsel %vm3605, %v3608, %v3610
        %v3612 = vsel %vm3604, %v3591, %v3594
        %v3613 = vsel %vm3607, %v3600, 920167782
        %v3614 = vsel %vm3606, %v3597, %v3613
        %v3615 = vsel %vm3605, %v3612, %v3614
        %v3616 = vsel %vm3604, %v3594, %v3597
        %v3617 = vsel %vm3607, %v3603, 1326507024
        %v3618 = vsel %vm3606, %v3600, %v3617
        %v3619 = vsel %vm3605, %v3616, %v3618
        %v3620 = vshll.u32 %v3580, 8
        %v3621 = vmul.u32.u64.compose %v3620, %v3619
        %v3622 = vextract.low.u32 %v3621
        %v3623 = vextract.high.u32 %v3621
        %v3624 = vmul.u32.u64.compose %v3620, %v3615
        %v3625 = vextract.low.u32 %v3624
        %v3626 = vextract.high.u32 %v3624
        %v3627 = vmul.u32 %v3620, %v3611
        %v3628 = vadd.s32 %v3623, %v3625
        %vm3629 = vc.u32 %v3623, %v3625
        %v3630 = vadd.s32 %v3626, 1
        %v3631 = vsel %vm3629, %v3630, %v3626
        %v3632 = vadd.s32 %v3627, %v3631
        %v3633 = vadd.s32 %v3632, 536870912
        %v3634 = vshrl.u32 %v3633, 30
        %v3635 = vshll.u32 %v3634, 30
        %v3636 = vsub.s32 %v3632, %v3635
        %vm3637 = vcmp.lt.s32.totalorder %v3636, 0
        %v3638 = vsub.s32 0, %v3636
        %v3639 = vsel %vm3637, %v3638, %v3636
        %v3640 = vclz %v3639
        %v3641 = vsub.s32 %v3640, 2
        %vm3642 = vcmp.gt.s32.totalorder 0, %v3641
        %v3643 = vsel %vm3642, 0, %v3641
        %v3644 = vsub.s32 32, %v3643
        %v3645 = vshll.u32 %v3636, %v3643
        %v3646 = vshrl.u32 %v3628, %v3644
        %v3647 = vor.u32 %v3645, %v3646
        %v3648 = vsub.s32 4294967266, %v3643
        %v3649 = vadd.s32 %v3648, 127
        %v3650 = vshll.u32 %v3649, 23
        %v3651 = vor.u32 4788187, %v3650
        %v3652 = vand.u32 2147483647, %v3651
        %v3654 = vcvt.s32.f32 %v3647
        %v3655 = vmul.f32 %v3654, %v3652
        %v3656 = vxor.u32 %v3655, 2147483648
        %v3657 = vsel %vm3574, %v3656, %v3655
        %v3658 = vsub.s32 4, %v3634
        %v3659 = vsel %vm3574, %v3658, %v3634
        %v3660 = vsel %vm3573, %v2504, %v3657
        %v3661 = vsel %vm3573, 0, %v3659
        %v3662 = vcosq.f32.pop %v3660
        %v3663 = vsinq.f32.pop %v3660
        %vm3664 = vweird.f32 %v2504
        %v3665 = vadd.s32 %v3661, 3
        %v3666 = vand.u32 %v3665, 3
        %vm3667 = vcmp.lt.s32.totalorder %v3666, 2
        %vm3668 = vcmp.eq.s32.totalorder %v3666, 0
        %v3669 = vxor.u32 %v3663, 2147483648
        %v3670 = vsel %vm3668, %v3662, %v3669
        %vm3671 = vcmp.eq.s32.totalorder %v3666, 2
        %v3672 = vxor.u32 %v3662, 2147483648
        %v3673 = vsel %vm3671, %v3672, %v3663
        %v3674 = vsel %vm3667, %v3670, %v3673
        %v3675 = vsel %vm3664, nan, %v3674
        %v3676 = vand.u32 2147483647, %v2509
        %vm3677 = vcmp.le.f32.partialorder %v3676, 0.7853982
        %vm3678 = vcmp.lt.s32.totalorder %v2509, 0
        %v3679 = vand.u32 %v2509, 2139095040
        %v3680 = vshrl.u32 %v3679, 23
        %v3681 = vsub.s32 %v3680, 127
        %v3682 = vand.u32 2147483647, %v2509
        %v3683 = vand.u32 %v3682, 8388607
        %v3684 = vor.u32 %v3683, 8388608
        %v3685 = vsub.s32 0, %v3684
        %v3686 = vadd.s32 %v3681, 1
        %vm3687 = vcmp.gt.s32.totalorder %v3686, 0
        %v3688 = vsel %vm3687, %v3686, 0
        %v3689 = vshrl.u32 %v3688, 5
        %v3690 = vand.u32 %v3688, 31
        %v3691 = vsub.s32 32, %v3690
        %v3692 = vshrl.u32 683565275, %v3691
        %v3693 = vshll.u32 683565275, %v3690
        %v3694 = vshrl.u32 2475754826, %v3691
        %v3695 = vor.u32 %v3693, %v3694
        %v3696 = vshll.u32 2475754826, %v3690
        %v3697 = vshrl.u32 2131351028, %v3691
        %v3698 = vor.u32 %v3696, %v3697
        %v3699 = vshll.u32 2131351028, %v3690
        %v3700 = vshrl.u32 2102212464, %v3691
        %v3701 = vor.u32 %v3699, %v3700
        %v3702 = vshll.u32 2102212464, %v3690
        %v3703 = vshrl.u32 920167782, %v3691
        %v3704 = vor.u32 %v3702, %v3703
        %v3705 = vshll.u32 920167782, %v3690
        %v3706 = vshrl.u32 1326507024, %v3691
        %v3707 = vor.u32 %v3705, %v3706
        %vm3708 = vcmp.lt.s32.totalorder %v3689, 1
        %vm3709 = vcmp.lt.s32.totalorder %v3689, 2
        %vm3710 = vcmp.lt.s32.totalorder %v3689, 3
        %vm3711 = vcmp.lt.s32.totalorder %v3689, 4
        %v3712 = vsel %vm3708, %v3692, %v3695
        %v3713 = vsel %vm3711, %v3701, 2102212464
        %v3714 = vsel %vm3710, %v3698, %v3713
        %v3715 = vsel %vm3709, %v3712, %v3714
        %v3716 = vsel %vm3708, %v3695, %v3698
        %v3717 = vsel %vm3711, %v3704, 920167782
        %v3718 = vsel %vm3710, %v3701, %v3717
        %v3719 = vsel %vm3709, %v3716, %v3718
        %v3720 = vsel %vm3708, %v3698, %v3701
        %v3721 = vsel %vm3711, %v3707, 1326507024
        %v3722 = vsel %vm3710, %v3704, %v3721
        %v3723 = vsel %vm3709, %v3720, %v3722
        %v3724 = vshll.u32 %v3684, 8
        %v3725 = vmul.u32.u64.compose %v3724, %v3723
        %v3726 = vextract.low.u32 %v3725
        %v3727 = vextract.high.u32 %v3725
        %v3728 = vmul.u32.u64.compose %v3724, %v3719
        %v3729 = vextract.low.u32 %v3728
        %v3730 = vextract.high.u32 %v3728
        %v3731 = vmul.u32 %v3724, %v3715
        %v3732 = vadd.s32 %v3727, %v3729
        %vm3733 = vc.u32 %v3727, %v3729
        %v3734 = vadd.s32 %v3730, 1
        %v3735 = vsel %vm3733, %v3734, %v3730
        %v3736 = vadd.s32 %v3731, %v3735
        %v3737 = vadd.s32 %v3736, 536870912
        %v3738 = vshrl.u32 %v3737, 30
        %v3739 = vshll.u32 %v3738, 30
        %v3740 = vsub.s32 %v3736, %v3739
        %vm3741 = vcmp.lt.s32.totalorder %v3740, 0
        %v3742 = vsub.s32 0, %v3740
        %v3743 = vsel %vm3741, %v3742, %v3740
        %v3744 = vclz %v3743
        %v3745 = vsub.s32 %v3744, 2
        %vm3746 = vcmp.gt.s32.totalorder 0, %v3745
        %v3747 = vsel %vm3746, 0, %v3745
        %v3748 = vsub.s32 32, %v3747
        %v3749 = vshll.u32 %v3740, %v3747
        %v3750 = vshrl.u32 %v3732, %v3748
        %v3751 = vor.u32 %v3749, %v3750
        %v3752 = vsub.s32 4294967266, %v3747
        %v3753 = vadd.s32 %v3752, 127
        %v3754 = vshll.u32 %v3753, 23
        %v3755 = vor.u32 4788187, %v3754
        %v3756 = vand.u32 2147483647, %v3755
        %v3758 = vcvt.s32.f32 %v3751
        %v3759 = vmul.f32 %v3758, %v3756
        %v3760 = vxor.u32 %v3759, 2147483648
        %v3761 = vsel %vm3678, %v3760, %v3759
        %v3762 = vsub.s32 4, %v3738
        %v3763 = vsel %vm3678, %v3762, %v3738
        %v3764 = vsel %vm3677, %v2509, %v3761
        %v3765 = vsel %vm3677, 0, %v3763
        %v3766 = vcosq.f32.pop %v3764
        %v3767 = vsinq.f32.pop %v3764
        %vm3768 = vweird.f32 %v2509
        %v3769 = vadd.s32 %v3765, 3
        %v3770 = vand.u32 %v3769, 3
        %vm3771 = vcmp.lt.s32.totalorder %v3770, 2
        %vm3772 = vcmp.eq.s32.totalorder %v3770, 0
        %v3773 = vxor.u32 %v3767, 2147483648
        %v3774 = vsel %vm3772, %v3766, %v3773
        %vm3775 = vcmp.eq.s32.totalorder %v3770, 2
        %v3776 = vxor.u32 %v3766, 2147483648
        %v3777 = vsel %vm3775, %v3776, %v3767
        %v3778 = vsel %vm3771, %v3774, %v3777
        %v3779 = vsel %vm3768, nan, %v3778
        %v3780 = vand.u32 2147483647, %v2514
        %vm3781 = vcmp.le.f32.partialorder %v3780, 0.7853982
        %vm3782 = vcmp.lt.s32.totalorder %v2514, 0
        %v3783 = vand.u32 %v2514, 2139095040
        %v3784 = vshrl.u32 %v3783, 23
        %v3785 = vsub.s32 %v3784, 127
        %v3786 = vand.u32 2147483647, %v2514
        %v3787 = vand.u32 %v3786, 8388607
        %v3788 = vor.u32 %v3787, 8388608
        %v3789 = vsub.s32 0, %v3788
        %v3790 = vadd.s32 %v3785, 1
        %vm3791 = vcmp.gt.s32.totalorder %v3790, 0
        %v3792 = vsel %vm3791, %v3790, 0
        %v3793 = vshrl.u32 %v3792, 5
        %v3794 = vand.u32 %v3792, 31
        %v3795 = vsub.s32 32, %v3794
        %v3796 = vshrl.u32 683565275, %v3795
        %v3797 = vshll.u32 683565275, %v3794
        %v3798 = vshrl.u32 2475754826, %v3795
        %v3799 = vor.u32 %v3797, %v3798
        %v3800 = vshll.u32 2475754826, %v3794
        %v3801 = vshrl.u32 2131351028, %v3795
        %v3802 = vor.u32 %v3800, %v3801
        %v3803 = vshll.u32 2131351028, %v3794
        %v3804 = vshrl.u32 2102212464, %v3795
        %v3805 = vor.u32 %v3803, %v3804
        %v3806 = vshll.u32 2102212464, %v3794
        %v3807 = vshrl.u32 920167782, %v3795
        %v3808 = vor.u32 %v3806, %v3807
        %v3809 = vshll.u32 920167782, %v3794
        %v3810 = vshrl.u32 1326507024, %v3795
        %v3811 = vor.u32 %v3809, %v3810
        %vm3812 = vcmp.lt.s32.totalorder %v3793, 1
        %vm3813 = vcmp.lt.s32.totalorder %v3793, 2
        %vm3814 = vcmp.lt.s32.totalorder %v3793, 3
        %vm3815 = vcmp.lt.s32.totalorder %v3793, 4
        %v3816 = vsel %vm3812, %v3796, %v3799
        %v3817 = vsel %vm3815, %v3805, 2102212464
        %v3818 = vsel %vm3814, %v3802, %v3817
        %v3819 = vsel %vm3813, %v3816, %v3818
        %v3820 = vsel %vm3812, %v3799, %v3802
        %v3821 = vsel %vm3815, %v3808, 920167782
        %v3822 = vsel %vm3814, %v3805, %v3821
        %v3823 = vsel %vm3813, %v3820, %v3822
        %v3824 = vsel %vm3812, %v3802, %v3805
        %v3825 = vsel %vm3815, %v3811, 1326507024
        %v3826 = vsel %vm3814, %v3808, %v3825
        %v3827 = vsel %vm3813, %v3824, %v3826
        %v3828 = vshll.u32 %v3788, 8
        %v3829 = vmul.u32.u64.compose %v3828, %v3827
        %v3830 = vextract.low.u32 %v3829
        %v3831 = vextract.high.u32 %v3829
        %v3832 = vmul.u32.u64.compose %v3828, %v3823
        %v3833 = vextract.low.u32 %v3832
        %v3834 = vextract.high.u32 %v3832
        %v3835 = vmul.u32 %v3828, %v3819
        %v3836 = vadd.s32 %v3831, %v3833
        %vm3837 = vc.u32 %v3831, %v3833
        %v3838 = vadd.s32 %v3834, 1
        %v3839 = vsel %vm3837, %v3838, %v3834
        %v3840 = vadd.s32 %v3835, %v3839
        %v3841 = vadd.s32 %v3840, 536870912
        %v3842 = vshrl.u32 %v3841, 30
        %v3843 = vshll.u32 %v3842, 30
        %v3844 = vsub.s32 %v3840, %v3843
        %vm3845 = vcmp.lt.s32.totalorder %v3844, 0
        %v3846 = vsub.s32 0, %v3844
        %v3847 = vsel %vm3845, %v3846, %v3844
        %v3848 = vclz %v3847
        %v3849 = vsub.s32 %v3848, 2
        %vm3850 = vcmp.gt.s32.totalorder 0, %v3849
        %v3851 = vsel %vm3850, 0, %v3849
        %v3852 = vsub.s32 32, %v3851
        %v3853 = vshll.u32 %v3844, %v3851
        %v3854 = vshrl.u32 %v3836, %v3852
        %v3855 = vor.u32 %v3853, %v3854
        %v3856 = vsub.s32 4294967266, %v3851
        %v3857 = vadd.s32 %v3856, 127
        %v3858 = vshll.u32 %v3857, 23
        %v3859 = vor.u32 4788187, %v3858
        %v3860 = vand.u32 2147483647, %v3859
        %v3862 = vcvt.s32.f32 %v3855
        %v3863 = vmul.f32 %v3862, %v3860
        %v3864 = vxor.u32 %v3863, 2147483648
        %v3865 = vsel %vm3782, %v3864, %v3863
        %v3866 = vsub.s32 4, %v3842
        %v3867 = vsel %vm3782, %v3866, %v3842
        %v3868 = vsel %vm3781, %v2514, %v3865
        %v3869 = vsel %vm3781, 0, %v3867
        %v3870 = vcosq.f32.pop %v3868
        %v3871 = vsinq.f32.pop %v3868
        %vm3872 = vweird.f32 %v2514
        %v3873 = vadd.s32 %v3869, 3
        %v3874 = vand.u32 %v3873, 3
        %vm3875 = vcmp.lt.s32.totalorder %v3874, 2
        %vm3876 = vcmp.eq.s32.totalorder %v3874, 0
        %v3877 = vxor.u32 %v3871, 2147483648
        %v3878 = vsel %vm3876, %v3870, %v3877
        %vm3879 = vcmp.eq.s32.totalorder %v3874, 2
        %v3880 = vxor.u32 %v3870, 2147483648
        %v3881 = vsel %vm3879, %v3880, %v3871
        %v3882 = vsel %vm3875, %v3878, %v3881
        %v3883 = vsel %vm3872, nan, %v3882
        %v3884 = vand.u32 2147483647, %v2519
        %vm3885 = vcmp.le.f32.partialorder %v3884, 0.7853982
        %vm3886 = vcmp.lt.s32.totalorder %v2519, 0
        %v3887 = vand.u32 %v2519, 2139095040
        %v3888 = vshrl.u32 %v3887, 23
        %v3889 = vsub.s32 %v3888, 127
        %v3890 = vand.u32 2147483647, %v2519
        %v3891 = vand.u32 %v3890, 8388607
        %v3892 = vor.u32 %v3891, 8388608
        %v3893 = vsub.s32 0, %v3892
        %v3894 = vadd.s32 %v3889, 1
        %vm3895 = vcmp.gt.s32.totalorder %v3894, 0
        %v3896 = vsel %vm3895, %v3894, 0
        %v3897 = vshrl.u32 %v3896, 5
        %v3898 = vand.u32 %v3896, 31
        %v3899 = vsub.s32 32, %v3898
        %v3900 = vshrl.u32 683565275, %v3899
        %v3901 = vshll.u32 683565275, %v3898
        %v3902 = vshrl.u32 2475754826, %v3899
        %v3903 = vor.u32 %v3901, %v3902
        %v3904 = vshll.u32 2475754826, %v3898
        %v3905 = vshrl.u32 2131351028, %v3899
        %v3906 = vor.u32 %v3904, %v3905
        %v3907 = vshll.u32 2131351028, %v3898
        %v3908 = vshrl.u32 2102212464, %v3899
        %v3909 = vor.u32 %v3907, %v3908
        %v3910 = vshll.u32 2102212464, %v3898
        %v3911 = vshrl.u32 920167782, %v3899
        %v3912 = vor.u32 %v3910, %v3911
        %v3913 = vshll.u32 920167782, %v3898
        %v3914 = vshrl.u32 1326507024, %v3899
        %v3915 = vor.u32 %v3913, %v3914
        %vm3916 = vcmp.lt.s32.totalorder %v3897, 1
        %vm3917 = vcmp.lt.s32.totalorder %v3897, 2
        %vm3918 = vcmp.lt.s32.totalorder %v3897, 3
        %vm3919 = vcmp.lt.s32.totalorder %v3897, 4
        %v3920 = vsel %vm3916, %v3900, %v3903
        %v3921 = vsel %vm3919, %v3909, 2102212464
        %v3922 = vsel %vm3918, %v3906, %v3921
        %v3923 = vsel %vm3917, %v3920, %v3922
        %v3924 = vsel %vm3916, %v3903, %v3906
        %v3925 = vsel %vm3919, %v3912, 920167782
        %v3926 = vsel %vm3918, %v3909, %v3925
        %v3927 = vsel %vm3917, %v3924, %v3926
        %v3928 = vsel %vm3916, %v3906, %v3909
        %v3929 = vsel %vm3919, %v3915, 1326507024
        %v3930 = vsel %vm3918, %v3912, %v3929
        %v3931 = vsel %vm3917, %v3928, %v3930
        %v3932 = vshll.u32 %v3892, 8
        %v3933 = vmul.u32.u64.compose %v3932, %v3931
        %v3934 = vextract.low.u32 %v3933
        %v3935 = vextract.high.u32 %v3933
        %v3936 = vmul.u32.u64.compose %v3932, %v3927
        %v3937 = vextract.low.u32 %v3936
        %v3938 = vextract.high.u32 %v3936
        %v3939 = vmul.u32 %v3932, %v3923
        %v3940 = vadd.s32 %v3935, %v3937
        %vm3941 = vc.u32 %v3935, %v3937
        %v3942 = vadd.s32 %v3938, 1
        %v3943 = vsel %vm3941, %v3942, %v3938
        %v3944 = vadd.s32 %v3939, %v3943
        %v3945 = vadd.s32 %v3944, 536870912
        %v3946 = vshrl.u32 %v3945, 30
        %v3947 = vshll.u32 %v3946, 30
        %v3948 = vsub.s32 %v3944, %v3947
        %vm3949 = vcmp.lt.s32.totalorder %v3948, 0
        %v3950 = vsub.s32 0, %v3948
        %v3951 = vsel %vm3949, %v3950, %v3948
        %v3952 = vclz %v3951
        %v3953 = vsub.s32 %v3952, 2
        %vm3954 = vcmp.gt.s32.totalorder 0, %v3953
        %v3955 = vsel %vm3954, 0, %v3953
        %v3956 = vsub.s32 32, %v3955
        %v3957 = vshll.u32 %v3948, %v3955
        %v3958 = vshrl.u32 %v3940, %v3956
        %v3959 = vor.u32 %v3957, %v3958
        %v3960 = vsub.s32 4294967266, %v3955
        %v3961 = vadd.s32 %v3960, 127
        %v3962 = vshll.u32 %v3961, 23
        %v3963 = vor.u32 4788187, %v3962
        %v3964 = vand.u32 2147483647, %v3963
        %v3966 = vcvt.s32.f32 %v3959
        %v3967 = vmul.f32 %v3966, %v3964
        %v3968 = vxor.u32 %v3967, 2147483648
        %v3969 = vsel %vm3886, %v3968, %v3967
        %v3970 = vsub.s32 4, %v3946
        %v3971 = vsel %vm3886, %v3970, %v3946
        %v3972 = vsel %vm3885, %v2519, %v3969
        %v3973 = vsel %vm3885, 0, %v3971
        %v3974 = vcosq.f32.pop %v3972
        %v3975 = vsinq.f32.pop %v3972
        %vm3976 = vweird.f32 %v2519
        %v3977 = vadd.s32 %v3973, 3
        %v3978 = vand.u32 %v3977, 3
        %vm3979 = vcmp.lt.s32.totalorder %v3978, 2
        %vm3980 = vcmp.eq.s32.totalorder %v3978, 0
        %v3981 = vxor.u32 %v3975, 2147483648
        %v3982 = vsel %vm3980, %v3974, %v3981
        %vm3983 = vcmp.eq.s32.totalorder %v3978, 2
        %v3984 = vxor.u32 %v3974, 2147483648
        %v3985 = vsel %vm3983, %v3984, %v3975
        %v3986 = vsel %vm3979, %v3982, %v3985
        %v3987 = vsel %vm3976, nan, %v3986
        %v3988 = vand.u32 2147483647, %v2524
        %vm3989 = vcmp.le.f32.partialorder %v3988, 0.7853982
        %vm3990 = vcmp.lt.s32.totalorder %v2524, 0
        %v3991 = vand.u32 %v2524, 2139095040
        %v3992 = vshrl.u32 %v3991, 23
        %v3993 = vsub.s32 %v3992, 127
        %v3994 = vand.u32 2147483647, %v2524
        %v3995 = vand.u32 %v3994, 8388607
        %v3996 = vor.u32 %v3995, 8388608
        %v3997 = vsub.s32 0, %v3996
        %v3998 = vadd.s32 %v3993, 1
        %vm3999 = vcmp.gt.s32.totalorder %v3998, 0
        %v4000 = vsel %vm3999, %v3998, 0
        %v4001 = vshrl.u32 %v4000, 5
        %v4002 = vand.u32 %v4000, 31
        %v4003 = vsub.s32 32, %v4002
        %v4004 = vshrl.u32 683565275, %v4003
        %v4005 = vshll.u32 683565275, %v4002
        %v4006 = vshrl.u32 2475754826, %v4003
        %v4007 = vor.u32 %v4005, %v4006
        %v4008 = vshll.u32 2475754826, %v4002
        %v4009 = vshrl.u32 2131351028, %v4003
        %v4010 = vor.u32 %v4008, %v4009
        %v4011 = vshll.u32 2131351028, %v4002
        %v4012 = vshrl.u32 2102212464, %v4003
        %v4013 = vor.u32 %v4011, %v4012
        %v4014 = vshll.u32 2102212464, %v4002
        %v4015 = vshrl.u32 920167782, %v4003
        %v4016 = vor.u32 %v4014, %v4015
        %v4017 = vshll.u32 920167782, %v4002
        %v4018 = vshrl.u32 1326507024, %v4003
        %v4019 = vor.u32 %v4017, %v4018
        %vm4020 = vcmp.lt.s32.totalorder %v4001, 1
        %vm4021 = vcmp.lt.s32.totalorder %v4001, 2
        %vm4022 = vcmp.lt.s32.totalorder %v4001, 3
        %vm4023 = vcmp.lt.s32.totalorder %v4001, 4
        %v4024 = vsel %vm4020, %v4004, %v4007
        %v4025 = vsel %vm4023, %v4013, 2102212464
        %v4026 = vsel %vm4022, %v4010, %v4025
        %v4027 = vsel %vm4021, %v4024, %v4026
        %v4028 = vsel %vm4020, %v4007, %v4010
        %v4029 = vsel %vm4023, %v4016, 920167782
        %v4030 = vsel %vm4022, %v4013, %v4029
        %v4031 = vsel %vm4021, %v4028, %v4030
        %v4032 = vsel %vm4020, %v4010, %v4013
        %v4033 = vsel %vm4023, %v4019, 1326507024
        %v4034 = vsel %vm4022, %v4016, %v4033
        %v4035 = vsel %vm4021, %v4032, %v4034
        %v4036 = vshll.u32 %v3996, 8
        %v4037 = vmul.u32.u64.compose %v4036, %v4035
        %v4038 = vextract.low.u32 %v4037
        %v4039 = vextract.high.u32 %v4037
        %v4040 = vmul.u32.u64.compose %v4036, %v4031
        %v4041 = vextract.low.u32 %v4040
        %v4042 = vextract.high.u32 %v4040
        %v4043 = vmul.u32 %v4036, %v4027
        %v4044 = vadd.s32 %v4039, %v4041
        %vm4045 = vc.u32 %v4039, %v4041
        %v4046 = vadd.s32 %v4042, 1
        %v4047 = vsel %vm4045, %v4046, %v4042
        %v4048 = vadd.s32 %v4043, %v4047
        %v4049 = vadd.s32 %v4048, 536870912
        %v4050 = vshrl.u32 %v4049, 30
        %v4051 = vshll.u32 %v4050, 30
        %v4052 = vsub.s32 %v4048, %v4051
        %vm4053 = vcmp.lt.s32.totalorder %v4052, 0
        %v4054 = vsub.s32 0, %v4052
        %v4055 = vsel %vm4053, %v4054, %v4052
        %v4056 = vclz %v4055
        %v4057 = vsub.s32 %v4056, 2
        %vm4058 = vcmp.gt.s32.totalorder 0, %v4057
        %v4059 = vsel %vm4058, 0, %v4057
        %v4060 = vsub.s32 32, %v4059
        %v4061 = vshll.u32 %v4052, %v4059
        %v4062 = vshrl.u32 %v4044, %v4060
        %v4063 = vor.u32 %v4061, %v4062
        %v4064 = vsub.s32 4294967266, %v4059
        %v4065 = vadd.s32 %v4064, 127
        %v4066 = vshll.u32 %v4065, 23
        %v4067 = vor.u32 4788187, %v4066
        %v4068 = vand.u32 2147483647, %v4067
        %v4070 = vcvt.s32.f32 %v4063
        %v4071 = vmul.f32 %v4070, %v4068
        %v4072 = vxor.u32 %v4071, 2147483648
        %v4073 = vsel %vm3990, %v4072, %v4071
        %v4074 = vsub.s32 4, %v4050
        %v4075 = vsel %vm3990, %v4074, %v4050
        %v4076 = vsel %vm3989, %v2524, %v4073
        %v4077 = vsel %vm3989, 0, %v4075
        %v4078 = vcosq.f32.pop %v4076
        %v4079 = vsinq.f32.pop %v4076
        %vm4080 = vweird.f32 %v2524
        %v4081 = vadd.s32 %v4077, 3
        %v4082 = vand.u32 %v4081, 3
        %vm4083 = vcmp.lt.s32.totalorder %v4082, 2
        %vm4084 = vcmp.eq.s32.totalorder %v4082, 0
        %v4085 = vxor.u32 %v4079, 2147483648
        %v4086 = vsel %vm4084, %v4078, %v4085
        %vm4087 = vcmp.eq.s32.totalorder %v4082, 2
        %v4088 = vxor.u32 %v4078, 2147483648
        %v4089 = vsel %vm4087, %v4088, %v4079
        %v4090 = vsel %vm4083, %v4086, %v4089
        %v4091 = vsel %vm4080, nan, %v4090
        %v4092 = vand.u32 2147483647, %v2529
        %vm4093 = vcmp.le.f32.partialorder %v4092, 0.7853982
        %vm4094 = vcmp.lt.s32.totalorder %v2529, 0
        %v4095 = vand.u32 %v2529, 2139095040
        %v4096 = vshrl.u32 %v4095, 23
        %v4097 = vsub.s32 %v4096, 127
        %v4098 = vand.u32 2147483647, %v2529
        %v4099 = vand.u32 %v4098, 8388607
        %v4100 = vor.u32 %v4099, 8388608
        %v4101 = vsub.s32 0, %v4100
        %v4102 = vadd.s32 %v4097, 1
        %vm4103 = vcmp.gt.s32.totalorder %v4102, 0
        %v4104 = vsel %vm4103, %v4102, 0
        %v4105 = vshrl.u32 %v4104, 5
        %v4106 = vand.u32 %v4104, 31
        %v4107 = vsub.s32 32, %v4106
        %v4108 = vshrl.u32 683565275, %v4107
        %v4109 = vshll.u32 683565275, %v4106
        %v4110 = vshrl.u32 2475754826, %v4107
        %v4111 = vor.u32 %v4109, %v4110
        %v4112 = vshll.u32 2475754826, %v4106
        %v4113 = vshrl.u32 2131351028, %v4107
        %v4114 = vor.u32 %v4112, %v4113
        %v4115 = vshll.u32 2131351028, %v4106
        %v4116 = vshrl.u32 2102212464, %v4107
        %v4117 = vor.u32 %v4115, %v4116
        %v4118 = vshll.u32 2102212464, %v4106
        %v4119 = vshrl.u32 920167782, %v4107
        %v4120 = vor.u32 %v4118, %v4119
        %v4121 = vshll.u32 920167782, %v4106
        %v4122 = vshrl.u32 1326507024, %v4107
        %v4123 = vor.u32 %v4121, %v4122
        %vm4124 = vcmp.lt.s32.totalorder %v4105, 1
        %vm4125 = vcmp.lt.s32.totalorder %v4105, 2
        %vm4126 = vcmp.lt.s32.totalorder %v4105, 3
        %vm4127 = vcmp.lt.s32.totalorder %v4105, 4
        %v4128 = vsel %vm4124, %v4108, %v4111
        %v4129 = vsel %vm4127, %v4117, 2102212464
        %v4130 = vsel %vm4126, %v4114, %v4129
        %v4131 = vsel %vm4125, %v4128, %v4130
        %v4132 = vsel %vm4124, %v4111, %v4114
        %v4133 = vsel %vm4127, %v4120, 920167782
        %v4134 = vsel %vm4126, %v4117, %v4133
        %v4135 = vsel %vm4125, %v4132, %v4134
        %v4136 = vsel %vm4124, %v4114, %v4117
        %v4137 = vsel %vm4127, %v4123, 1326507024
        %v4138 = vsel %vm4126, %v4120, %v4137
        %v4139 = vsel %vm4125, %v4136, %v4138
        %v4140 = vshll.u32 %v4100, 8
        %v4141 = vmul.u32.u64.compose %v4140, %v4139
        %v4142 = vextract.low.u32 %v4141
        %v4143 = vextract.high.u32 %v4141
        %v4144 = vmul.u32.u64.compose %v4140, %v4135
        %v4145 = vextract.low.u32 %v4144
        %v4146 = vextract.high.u32 %v4144
        %v4147 = vmul.u32 %v4140, %v4131
        %v4148 = vadd.s32 %v4143, %v4145
        %vm4149 = vc.u32 %v4143, %v4145
        %v4150 = vadd.s32 %v4146, 1
        %v4151 = vsel %vm4149, %v4150, %v4146
        %v4152 = vadd.s32 %v4147, %v4151
        %v4153 = vadd.s32 %v4152, 536870912
        %v4154 = vshrl.u32 %v4153, 30
        %v4155 = vshll.u32 %v4154, 30
        %v4156 = vsub.s32 %v4152, %v4155
        %vm4157 = vcmp.lt.s32.totalorder %v4156, 0
        %v4158 = vsub.s32 0, %v4156
        %v4159 = vsel %vm4157, %v4158, %v4156
        %v4160 = vclz %v4159
        %v4161 = vsub.s32 %v4160, 2
        %vm4162 = vcmp.gt.s32.totalorder 0, %v4161
        %v4163 = vsel %vm4162, 0, %v4161
        %v4164 = vsub.s32 32, %v4163
        %v4165 = vshll.u32 %v4156, %v4163
        %v4166 = vshrl.u32 %v4148, %v4164
        %v4167 = vor.u32 %v4165, %v4166
        %v4168 = vsub.s32 4294967266, %v4163
        %v4169 = vadd.s32 %v4168, 127
        %v4170 = vshll.u32 %v4169, 23
        %v4171 = vor.u32 4788187, %v4170
        %v4172 = vand.u32 2147483647, %v4171
        %v4174 = vcvt.s32.f32 %v4167
        %v4175 = vmul.f32 %v4174, %v4172
        %v4176 = vxor.u32 %v4175, 2147483648
        %v4177 = vsel %vm4094, %v4176, %v4175
        %v4178 = vsub.s32 4, %v4154
        %v4179 = vsel %vm4094, %v4178, %v4154
        %v4180 = vsel %vm4093, %v2529, %v4177
        %v4181 = vsel %vm4093, 0, %v4179
        %v4182 = vcosq.f32.pop %v4180
        %v4183 = vsinq.f32.pop %v4180
        %vm4184 = vweird.f32 %v2529
        %v4185 = vadd.s32 %v4181, 3
        %v4186 = vand.u32 %v4185, 3
        %vm4187 = vcmp.lt.s32.totalorder %v4186, 2
        %vm4188 = vcmp.eq.s32.totalorder %v4186, 0
        %v4189 = vxor.u32 %v4183, 2147483648
        %v4190 = vsel %vm4188, %v4182, %v4189
        %vm4191 = vcmp.eq.s32.totalorder %v4186, 2
        %v4192 = vxor.u32 %v4182, 2147483648
        %v4193 = vsel %vm4191, %v4192, %v4183
        %v4194 = vsel %vm4187, %v4190, %v4193
        %v4195 = vsel %vm4184, nan, %v4194
        %v4196 = vld [vmem:[%s5] sm:$0xff]
        %v4197 = vld [vmem:[%s5 + $0x8] sm:$0xff]
        %v4198 = vld [vmem:[%s5 + $0x10] sm:$0xff]
        %v4199 = vld [vmem:[%s5 + $0x18] sm:$0xff]
        %v4200 = vld [vmem:[%s5 + $0x20] sm:$0xff]
        %v4201 = vld [vmem:[%s5 + $0x28] sm:$0xff]
        %v4202 = vld [vmem:[%s5 + $0x30] sm:$0xff]
        %v4203 = vld [vmem:[%s5 + $0x38] sm:$0xff]
        %v4204 = vld [vmem:[%s5 + $0x40] sm:$0xff]
        %v4205 = vld [vmem:[%s5 + $0x48] sm:$0xff]
        %v4206 = vld [vmem:[%s5 + $0x50] sm:$0xff]
        %v4207 = vld [vmem:[%s5 + $0x58] sm:$0xff]
        %v4208 = vld [vmem:[%s5 + $0x60] sm:$0xff]
        %v4209 = vld [vmem:[%s5 + $0x68] sm:$0xff]
        %v4210 = vld [vmem:[%s5 + $0x70] sm:$0xff]
        %v4211 = vld [vmem:[%s5 + $0x78] sm:$0xff]
        %v4212 = vld [vmem:[%s6] sm:$0xff]
        %v4213 = vld [vmem:[%s6 + $0x8] sm:$0xff]
        %v4214 = vld [vmem:[%s6 + $0x10] sm:$0xff]
        %v4215 = vld [vmem:[%s6 + $0x18] sm:$0xff]
        %v4216 = vld [vmem:[%s6 + $0x20] sm:$0xff]
        %v4217 = vld [vmem:[%s6 + $0x28] sm:$0xff]
        %v4218 = vld [vmem:[%s6 + $0x30] sm:$0xff]
        %v4219 = vld [vmem:[%s6 + $0x38] sm:$0xff]
        %v4220 = vld [vmem:[%s6 + $0x40] sm:$0xff]
        %v4221 = vld [vmem:[%s6 + $0x48] sm:$0xff]
        %v4222 = vld [vmem:[%s6 + $0x50] sm:$0xff]
        %v4223 = vld [vmem:[%s6 + $0x58] sm:$0xff]
        %v4224 = vld [vmem:[%s6 + $0x60] sm:$0xff]
        %v4225 = vld [vmem:[%s6 + $0x68] sm:$0xff]
        %v4226 = vld [vmem:[%s6 + $0x70] sm:$0xff]
        %v4227 = vld [vmem:[%s6 + $0x78] sm:$0xff]
        %4229 = vset.pattern.permute.xlu0 0
        %4230 = vperm.xlu0 %4229, %v4212
        %v4231 = vpop.permute.xlu0 %4230
        %4234 = vset.pattern.permute.xlu0 0
        %4235 = vperm.xlu0 %4234, %v4213
        %v4236 = vpop.permute.xlu0 %4235
        %4239 = vset.pattern.permute.xlu0 0
        %4240 = vperm.xlu0 %4239, %v4214
        %v4241 = vpop.permute.xlu0 %4240
        %4244 = vset.pattern.permute.xlu0 0
        %4245 = vperm.xlu0 %4244, %v4215
        %v4246 = vpop.permute.xlu0 %4245
        %4249 = vset.pattern.permute.xlu0 0
        %4250 = vperm.xlu0 %4249, %v4216
        %v4251 = vpop.permute.xlu0 %4250
        %4254 = vset.pattern.permute.xlu0 0
        %4255 = vperm.xlu0 %4254, %v4217
        %v4256 = vpop.permute.xlu0 %4255
        %4259 = vset.pattern.permute.xlu0 0
        %4260 = vperm.xlu0 %4259, %v4218
        %v4261 = vpop.permute.xlu0 %4260
        %4264 = vset.pattern.permute.xlu0 0
        %4265 = vperm.xlu0 %4264, %v4219
        %v4266 = vpop.permute.xlu0 %4265
        %4269 = vset.pattern.permute.xlu0 0
        %4270 = vperm.xlu0 %4269, %v4220
        %v4271 = vpop.permute.xlu0 %4270
        %4274 = vset.pattern.permute.xlu0 0
        %4275 = vperm.xlu0 %4274, %v4221
        %v4276 = vpop.permute.xlu0 %4275
        %4279 = vset.pattern.permute.xlu0 0
        %4280 = vperm.xlu0 %4279, %v4222
        %v4281 = vpop.permute.xlu0 %4280
        %4284 = vset.pattern.permute.xlu0 0
        %4285 = vperm.xlu0 %4284, %v4223
        %v4286 = vpop.permute.xlu0 %4285
        %4289 = vset.pattern.permute.xlu0 0
        %4290 = vperm.xlu0 %4289, %v4224
        %v4291 = vpop.permute.xlu0 %4290
        %4294 = vset.pattern.permute.xlu0 0
        %4295 = vperm.xlu0 %4294, %v4225
        %v4296 = vpop.permute.xlu0 %4295
        %4299 = vset.pattern.permute.xlu0 0
        %4300 = vperm.xlu0 %4299, %v4226
        %v4301 = vpop.permute.xlu0 %4300
        %4304 = vset.pattern.permute.xlu0 0
        %4305 = vperm.xlu0 %4304, %v4227
        %v4306 = vpop.permute.xlu0 %4305
        %4308 = vmatprep.subr.mxu0 0.0
        %4309 = vmatpush1.msra.mxu0 %v2635
        %4310 = vmatprep.subr.mxu0 0.0
        %4311 = vmatpush1.msra.mxu0 %v2739
        %4312 = vmatprep.subr.mxu0 0.0
        %4313 = vmatpush1.msra.mxu0 %v2843
        %4314 = vmatprep.subr.mxu0 0.0
        %4315 = vmatpush1.msra.mxu0 %v2947
        %4316 = vmatprep.subr.mxu0 0.0
        %4317 = vmatpush1.msra.mxu0 %v3051
        %4318 = vmatprep.subr.mxu0 0.0
        %4319 = vmatpush1.msra.mxu0 %v3155
        %4320 = vmatprep.subr.mxu0 0.0
        %4321 = vmatpush1.msra.mxu0 %v3259
        %4322 = vmatprep.subr.mxu0 0.0
        %4323 = vmatpush1.msra.mxu0 %v3363
        %4324 = vmatprep.subr.mxu0 0.0
        %4325 = vmatpush1.msra.mxu0 %v3467
        %4326 = vmatprep.subr.mxu0 0.0
        %4327 = vmatpush1.msra.mxu0 %v3571
        %4328 = vmatprep.subr.mxu0 0.0
        %4329 = vmatpush1.msra.mxu0 %v3675
        %4330 = vmatprep.subr.mxu0 0.0
        %4331 = vmatpush1.msra.mxu0 %v3779
        %4332 = vmatprep.subr.mxu0 0.0
        %4333 = vmatpush1.msra.mxu0 %v3883
        %4334 = vmatprep.subr.mxu0 0.0
        %4335 = vmatpush1.msra.mxu0 %v3987
        %4336 = vmatprep.subr.mxu0 0.0
        %4337 = vmatpush1.msra.mxu0 %v4091
        %4338 = vmatprep.subr.mxu0 0.0
        %4339 = vmatpush1.msra.mxu0 %v4195
        %4340 = vmatprep.subr.mxu0 0.0
        %4341 = vmatpush1.msra.mxu0 0.0
        %4342 = vmatprep.subr.mxu0 0.0
        %4343 = vmatpush1.msra.mxu0 0.0
        %4344 = vmatprep.subr.mxu0 0.0
        %4345 = vmatpush1.msra.mxu0 0.0
        %4346 = vmatprep.subr.mxu0 0.0
        %4347 = vmatpush1.msra.mxu0 0.0
        %4348 = vmatprep.subr.mxu0 0.0
        %4349 = vmatpush1.msra.mxu0 0.0
        %4350 = vmatprep.subr.mxu0 0.0
        %4351 = vmatpush1.msra.mxu0 0.0
        %4352 = vmatprep.subr.mxu0 0.0
        %4353 = vmatpush1.msra.mxu0 0.0
        %4354 = vmatprep.subr.mxu0 0.0
        %4355 = vmatpush1.msra.mxu0 0.0
        %4356 = vmatprep.subr.mxu0 0.0
        %4357 = vmatpush1.msra.mxu0 0.0
        %4358 = vmatprep.subr.mxu0 0.0
        %4359 = vmatpush1.msra.mxu0 0.0
        %4360 = vmatprep.subr.mxu0 0.0
        %4361 = vmatpush1.msra.mxu0 0.0
        %4362 = vmatprep.subr.mxu0 0.0
        %4363 = vmatpush1.msra.mxu0 0.0
        %4364 = vmatprep.subr.mxu0 0.0
        %4365 = vmatpush1.msra.mxu0 0.0
        %4366 = vmatprep.subr.mxu0 0.0
        %4367 = vmatpush1.msra.mxu0 0.0
        %4368 = vmatprep.subr.mxu0 0.0
        %4369 = vmatpush1.msra.mxu0 0.0
        %4370 = vmatprep.subr.mxu0 0.0
        %4371 = vmatpush1.msra.mxu0 0.0
        %4372 = vmatprep.mubr.f32.mxu0 0.0
        %4373 = vmatmul.mubr.f32.gmra.mrb[0].mxu0 %v4196
        %v4374 = vpop.f32.mrb[0].mxu0
        %v4375 = vadd.f32 %v4231, %v4374
        %v4376 = vpop.f32.mrb[0].mxu0
        %4377 = vmatprep.mubr.f32.mxu0 0.0
        %4378 = vmatmul.mubr.f32.gmra.mrb[0].mxu0 %v4197
        %v4379 = vpop.f32.mrb[0].mxu0
        %v4380 = vadd.f32 %v4236, %v4379
        %v4381 = vpop.f32.mrb[0].mxu0
        %4382 = vmatprep.mubr.f32.mxu0 0.0
        %4383 = vmatmul.mubr.f32.gmra.mrb[0].mxu0 %v4198
        %v4384 = vpop.f32.mrb[0].mxu0
        %v4385 = vadd.f32 %v4241, %v4384
        %v4386 = vpop.f32.mrb[0].mxu0
        %4387 = vmatprep.mubr.f32.mxu0 0.0
        %4388 = vmatmul.mubr.f32.gmra.mrb[0].mxu0 %v4199
        %v4389 = vpop.f32.mrb[0].mxu0
        %v4390 = vadd.f32 %v4246, %v4389
        %v4391 = vpop.f32.mrb[0].mxu0
        %4392 = vmatprep.mubr.f32.mxu0 0.0
        %4393 = vmatmul.mubr.f32.gmra.mrb[0].mxu0 %v4200
        %v4394 = vpop.f32.mrb[0].mxu0
        %v4395 = vadd.f32 %v4251, %v4394
        %v4396 = vpop.f32.mrb[0].mxu0
        %4397 = vmatprep.mubr.f32.mxu0 0.0
        %4398 = vmatmul.mubr.f32.gmra.mrb[0].mxu0 %v4201
        %v4399 = vpop.f32.mrb[0].mxu0
        %v4400 = vadd.f32 %v4256, %v4399
        %v4401 = vpop.f32.mrb[0].mxu0
        %4402 = vmatprep.mubr.f32.mxu0 0.0
        %4403 = vmatmul.mubr.f32.gmra.mrb[0].mxu0 %v4202
        %v4404 = vpop.f32.mrb[0].mxu0
        %v4405 = vadd.f32 %v4261, %v4404
        %v4406 = vpop.f32.mrb[0].mxu0
        %4407 = vmatprep.mubr.f32.mxu0 0.0
        %4408 = vmatmul.mubr.f32.gmra.mrb[0].mxu0 %v4203
        %v4409 = vpop.f32.mrb[0].mxu0
        %v4410 = vadd.f32 %v4266, %v4409
        %v4411 = vpop.f32.mrb[0].mxu0
        %4412 = vmatprep.mubr.f32.mxu0 0.0
        %4413 = vmatmul.mubr.f32.gmra.mrb[0].mxu0 %v4204
        %v4414 = vpop.f32.mrb[0].mxu0
        %v4415 = vadd.f32 %v4271, %v4414
        %v4416 = vpop.f32.mrb[0].mxu0
        %4417 = vmatprep.mubr.f32.mxu0 0.0
        %4418 = vmatmul.mubr.f32.gmra.mrb[0].mxu0 %v4205
        %v4419 = vpop.f32.mrb[0].mxu0
        %v4420 = vadd.f32 %v4276, %v4419
        %v4421 = vpop.f32.mrb[0].mxu0
        %4422 = vmatprep.mubr.f32.mxu0 0.0
        %4423 = vmatmul.mubr.f32.gmra.mrb[0].mxu0 %v4206
        %v4424 = vpop.f32.mrb[0].mxu0
        %v4425 = vadd.f32 %v4281, %v4424
        %v4426 = vpop.f32.mrb[0].mxu0
        %4427 = vmatprep.mubr.f32.mxu0 0.0
        %4428 = vmatmul.mubr.f32.gmra.mrb[0].mxu0 %v4207
        %v4429 = vpop.f32.mrb[0].mxu0
        %v4430 = vadd.f32 %v4286, %v4429
        %v4431 = vpop.f32.mrb[0].mxu0
        %4432 = vmatprep.mubr.f32.mxu0 0.0
        %4433 = vmatmul.mubr.f32.gmra.mrb[0].mxu0 %v4208
        %v4434 = vpop.f32.mrb[0].mxu0
        %v4435 = vadd.f32 %v4291, %v4434
        %v4436 = vpop.f32.mrb[0].mxu0
        %4437 = vmatprep.mubr.f32.mxu0 0.0
        %4438 = vmatmul.mubr.f32.gmra.mrb[0].mxu0 %v4209
        %v4439 = vpop.f32.mrb[0].mxu0
        %v4440 = vadd.f32 %v4296, %v4439
        %v4441 = vpop.f32.mrb[0].mxu0
        %4442 = vmatprep.mubr.f32.mxu0 0.0
        %4443 = vmatmul.mubr.f32.gmra.mrb[0].mxu0 %v4210
        %v4444 = vpop.f32.mrb[0].mxu0
        %v4445 = vadd.f32 %v4301, %v4444
        %v4446 = vpop.f32.mrb[0].mxu0
        %4447 = vmatprep.mubr.f32.mxu0 0.0
        %4448 = vmatmul.mubr.f32.gmra.mrb[0].mxu0 %v4211
        %v4449 = vpop.f32.mrb[0].mxu0
        %v4450 = vadd.f32 %v4306, %v4449
        %v4451 = vpop.f32.mrb[0].mxu0
        %4452 = vdwg.mxu0
        %v4453 = vand.u32 2147483647, %v4375
        %vm4454 = vcmp.le.f32.partialorder %v4453, 0.7853982
        %vm4455 = vcmp.lt.s32.totalorder %v4375, 0
        %v4456 = vand.u32 %v4375, 2139095040
        %v4457 = vshrl.u32 %v4456, 23
        %v4458 = vsub.s32 %v4457, 127
        %v4459 = vand.u32 2147483647, %v4375
        %v4460 = vand.u32 %v4459, 8388607
        %v4461 = vor.u32 %v4460, 8388608
        %v4462 = vsub.s32 0, %v4461
        %v4463 = vadd.s32 %v4458, 1
        %vm4464 = vcmp.gt.s32.totalorder %v4463, 0
        %v4465 = vsel %vm4464, %v4463, 0
        %v4466 = vshrl.u32 %v4465, 5
        %v4467 = vand.u32 %v4465, 31
        %v4468 = vsub.s32 32, %v4467
        %v4469 = vshrl.u32 683565275, %v4468
        %v4470 = vshll.u32 683565275, %v4467
        %v4471 = vshrl.u32 2475754826, %v4468
        %v4472 = vor.u32 %v4470, %v4471
        %v4473 = vshll.u32 2475754826, %v4467
        %v4474 = vshrl.u32 2131351028, %v4468
        %v4475 = vor.u32 %v4473, %v4474
        %v4476 = vshll.u32 2131351028, %v4467
        %v4477 = vshrl.u32 2102212464, %v4468
        %v4478 = vor.u32 %v4476, %v4477
        %v4479 = vshll.u32 2102212464, %v4467
        %v4480 = vshrl.u32 920167782, %v4468
        %v4481 = vor.u32 %v4479, %v4480
        %v4482 = vshll.u32 920167782, %v4467
        %v4483 = vshrl.u32 1326507024, %v4468
        %v4484 = vor.u32 %v4482, %v4483
        %vm4485 = vcmp.lt.s32.totalorder %v4466, 1
        %vm4486 = vcmp.lt.s32.totalorder %v4466, 2
        %vm4487 = vcmp.lt.s32.totalorder %v4466, 3
        %vm4488 = vcmp.lt.s32.totalorder %v4466, 4
        %v4489 = vsel %vm4485, %v4469, %v4472
        %v4490 = vsel %vm4488, %v4478, 2102212464
        %v4491 = vsel %vm4487, %v4475, %v4490
        %v4492 = vsel %vm4486, %v4489, %v4491
        %v4493 = vsel %vm4485, %v4472, %v4475
        %v4494 = vsel %vm4488, %v4481, 920167782
        %v4495 = vsel %vm4487, %v4478, %v4494
        %v4496 = vsel %vm4486, %v4493, %v4495
        %v4497 = vsel %vm4485, %v4475, %v4478
        %v4498 = vsel %vm4488, %v4484, 1326507024
        %v4499 = vsel %vm4487, %v4481, %v4498
        %v4500 = vsel %vm4486, %v4497, %v4499
        %v4501 = vshll.u32 %v4461, 8
        %v4502 = vmul.u32.u64.compose %v4501, %v4500
        %v4503 = vextract.low.u32 %v4502
        %v4504 = vextract.high.u32 %v4502
        %v4505 = vmul.u32.u64.compose %v4501, %v4496
        %v4506 = vextract.low.u32 %v4505
        %v4507 = vextract.high.u32 %v4505
        %v4508 = vmul.u32 %v4501, %v4492
        %v4509 = vadd.s32 %v4504, %v4506
        %vm4510 = vc.u32 %v4504, %v4506
        %v4511 = vadd.s32 %v4507, 1
        %v4512 = vsel %vm4510, %v4511, %v4507
        %v4513 = vadd.s32 %v4508, %v4512
        %v4514 = vadd.s32 %v4513, 536870912
        %v4515 = vshrl.u32 %v4514, 30
        %v4516 = vshll.u32 %v4515, 30
        %v4517 = vsub.s32 %v4513, %v4516
        %vm4518 = vcmp.lt.s32.totalorder %v4517, 0
        %v4519 = vsub.s32 0, %v4517
        %v4520 = vsel %vm4518, %v4519, %v4517
        %v4521 = vclz %v4520
        %v4522 = vsub.s32 %v4521, 2
        %vm4523 = vcmp.gt.s32.totalorder 0, %v4522
        %v4524 = vsel %vm4523, 0, %v4522
        %v4525 = vsub.s32 32, %v4524
        %v4526 = vshll.u32 %v4517, %v4524
        %v4527 = vshrl.u32 %v4509, %v4525
        %v4528 = vor.u32 %v4526, %v4527
        %v4529 = vsub.s32 4294967266, %v4524
        %v4530 = vadd.s32 %v4529, 127
        %v4531 = vshll.u32 %v4530, 23
        %v4532 = vor.u32 4788187, %v4531
        %v4533 = vand.u32 2147483647, %v4532
        %v4535 = vcvt.s32.f32 %v4528
        %v4536 = vmul.f32 %v4535, %v4533
        %v4537 = vxor.u32 %v4536, 2147483648
        %v4538 = vsel %vm4455, %v4537, %v4536
        %v4539 = vsub.s32 4, %v4515
        %v4540 = vsel %vm4455, %v4539, %v4515
        %v4541 = vsel %vm4454, %v4375, %v4538
        %v4542 = vsel %vm4454, 0, %v4540
        %v4543 = vcosq.f32.pop %v4541
        %v4544 = vsinq.f32.pop %v4541
        %vm4545 = vweird.f32 %v4375
        %v4546 = vadd.s32 %v4542, 3
        %v4547 = vand.u32 %v4546, 3
        %vm4548 = vcmp.lt.s32.totalorder %v4547, 2
        %vm4549 = vcmp.eq.s32.totalorder %v4547, 0
        %v4550 = vxor.u32 %v4544, 2147483648
        %v4551 = vsel %vm4549, %v4543, %v4550
        %vm4552 = vcmp.eq.s32.totalorder %v4547, 2
        %v4553 = vxor.u32 %v4543, 2147483648
        %v4554 = vsel %vm4552, %v4553, %v4544
        %v4555 = vsel %vm4548, %v4551, %v4554
        %v4556 = vsel %vm4545, nan, %v4555
        %v4557 = vand.u32 2147483647, %v4380
        %vm4558 = vcmp.le.f32.partialorder %v4557, 0.7853982
        %vm4559 = vcmp.lt.s32.totalorder %v4380, 0
        %v4560 = vand.u32 %v4380, 2139095040
        %v4561 = vshrl.u32 %v4560, 23
        %v4562 = vsub.s32 %v4561, 127
        %v4563 = vand.u32 2147483647, %v4380
        %v4564 = vand.u32 %v4563, 8388607
        %v4565 = vor.u32 %v4564, 8388608
        %v4566 = vsub.s32 0, %v4565
        %v4567 = vadd.s32 %v4562, 1
        %vm4568 = vcmp.gt.s32.totalorder %v4567, 0
        %v4569 = vsel %vm4568, %v4567, 0
        %v4570 = vshrl.u32 %v4569, 5
        %v4571 = vand.u32 %v4569, 31
        %v4572 = vsub.s32 32, %v4571
        %v4573 = vshrl.u32 683565275, %v4572
        %v4574 = vshll.u32 683565275, %v4571
        %v4575 = vshrl.u32 2475754826, %v4572
        %v4576 = vor.u32 %v4574, %v4575
        %v4577 = vshll.u32 2475754826, %v4571
        %v4578 = vshrl.u32 2131351028, %v4572
        %v4579 = vor.u32 %v4577, %v4578
        %v4580 = vshll.u32 2131351028, %v4571
        %v4581 = vshrl.u32 2102212464, %v4572
        %v4582 = vor.u32 %v4580, %v4581
        %v4583 = vshll.u32 2102212464, %v4571
        %v4584 = vshrl.u32 920167782, %v4572
        %v4585 = vor.u32 %v4583, %v4584
        %v4586 = vshll.u32 920167782, %v4571
        %v4587 = vshrl.u32 1326507024, %v4572
        %v4588 = vor.u32 %v4586, %v4587
        %vm4589 = vcmp.lt.s32.totalorder %v4570, 1
        %vm4590 = vcmp.lt.s32.totalorder %v4570, 2
        %vm4591 = vcmp.lt.s32.totalorder %v4570, 3
        %vm4592 = vcmp.lt.s32.totalorder %v4570, 4
        %v4593 = vsel %vm4589, %v4573, %v4576
        %v4594 = vsel %vm4592, %v4582, 2102212464
        %v4595 = vsel %vm4591, %v4579, %v4594
        %v4596 = vsel %vm4590, %v4593, %v4595
        %v4597 = vsel %vm4589, %v4576, %v4579
        %v4598 = vsel %vm4592, %v4585, 920167782
        %v4599 = vsel %vm4591, %v4582, %v4598
        %v4600 = vsel %vm4590, %v4597, %v4599
        %v4601 = vsel %vm4589, %v4579, %v4582
        %v4602 = vsel %vm4592, %v4588, 1326507024
        %v4603 = vsel %vm4591, %v4585, %v4602
        %v4604 = vsel %vm4590, %v4601, %v4603
        %v4605 = vshll.u32 %v4565, 8
        %v4606 = vmul.u32.u64.compose %v4605, %v4604
        %v4607 = vextract.low.u32 %v4606
        %v4608 = vextract.high.u32 %v4606
        %v4609 = vmul.u32.u64.compose %v4605, %v4600
        %v4610 = vextract.low.u32 %v4609
        %v4611 = vextract.high.u32 %v4609
        %v4612 = vmul.u32 %v4605, %v4596
        %v4613 = vadd.s32 %v4608, %v4610
        %vm4614 = vc.u32 %v4608, %v4610
        %v4615 = vadd.s32 %v4611, 1
        %v4616 = vsel %vm4614, %v4615, %v4611
        %v4617 = vadd.s32 %v4612, %v4616
        %v4618 = vadd.s32 %v4617, 536870912
        %v4619 = vshrl.u32 %v4618, 30
        %v4620 = vshll.u32 %v4619, 30
        %v4621 = vsub.s32 %v4617, %v4620
        %vm4622 = vcmp.lt.s32.totalorder %v4621, 0
        %v4623 = vsub.s32 0, %v4621
        %v4624 = vsel %vm4622, %v4623, %v4621
        %v4625 = vclz %v4624
        %v4626 = vsub.s32 %v4625, 2
        %vm4627 = vcmp.gt.s32.totalorder 0, %v4626
        %v4628 = vsel %vm4627, 0, %v4626
        %v4629 = vsub.s32 32, %v4628
        %v4630 = vshll.u32 %v4621, %v4628
        %v4631 = vshrl.u32 %v4613, %v4629
        %v4632 = vor.u32 %v4630, %v4631
        %v4633 = vsub.s32 4294967266, %v4628
        %v4634 = vadd.s32 %v4633, 127
        %v4635 = vshll.u32 %v4634, 23
        %v4636 = vor.u32 4788187, %v4635
        %v4637 = vand.u32 2147483647, %v4636
        %v4639 = vcvt.s32.f32 %v4632
        %v4640 = vmul.f32 %v4639, %v4637
        %v4641 = vxor.u32 %v4640, 2147483648
        %v4642 = vsel %vm4559, %v4641, %v4640
        %v4643 = vsub.s32 4, %v4619
        %v4644 = vsel %vm4559, %v4643, %v4619
        %v4645 = vsel %vm4558, %v4380, %v4642
        %v4646 = vsel %vm4558, 0, %v4644
        %v4647 = vcosq.f32.pop %v4645
        %v4648 = vsinq.f32.pop %v4645
        %vm4649 = vweird.f32 %v4380
        %v4650 = vadd.s32 %v4646, 3
        %v4651 = vand.u32 %v4650, 3
        %vm4652 = vcmp.lt.s32.totalorder %v4651, 2
        %vm4653 = vcmp.eq.s32.totalorder %v4651, 0
        %v4654 = vxor.u32 %v4648, 2147483648
        %v4655 = vsel %vm4653, %v4647, %v4654
        %vm4656 = vcmp.eq.s32.totalorder %v4651, 2
        %v4657 = vxor.u32 %v4647, 2147483648
        %v4658 = vsel %vm4656, %v4657, %v4648
        %v4659 = vsel %vm4652, %v4655, %v4658
        %v4660 = vsel %vm4649, nan, %v4659
        %v4661 = vand.u32 2147483647, %v4385
        %vm4662 = vcmp.le.f32.partialorder %v4661, 0.7853982
        %vm4663 = vcmp.lt.s32.totalorder %v4385, 0
        %v4664 = vand.u32 %v4385, 2139095040
        %v4665 = vshrl.u32 %v4664, 23
        %v4666 = vsub.s32 %v4665, 127
        %v4667 = vand.u32 2147483647, %v4385
        %v4668 = vand.u32 %v4667, 8388607
        %v4669 = vor.u32 %v4668, 8388608
        %v4670 = vsub.s32 0, %v4669
        %v4671 = vadd.s32 %v4666, 1
        %vm4672 = vcmp.gt.s32.totalorder %v4671, 0
        %v4673 = vsel %vm4672, %v4671, 0
        %v4674 = vshrl.u32 %v4673, 5
        %v4675 = vand.u32 %v4673, 31
        %v4676 = vsub.s32 32, %v4675
        %v4677 = vshrl.u32 683565275, %v4676
        %v4678 = vshll.u32 683565275, %v4675
        %v4679 = vshrl.u32 2475754826, %v4676
        %v4680 = vor.u32 %v4678, %v4679
        %v4681 = vshll.u32 2475754826, %v4675
        %v4682 = vshrl.u32 2131351028, %v4676
        %v4683 = vor.u32 %v4681, %v4682
        %v4684 = vshll.u32 2131351028, %v4675
        %v4685 = vshrl.u32 2102212464, %v4676
        %v4686 = vor.u32 %v4684, %v4685
        %v4687 = vshll.u32 2102212464, %v4675
        %v4688 = vshrl.u32 920167782, %v4676
        %v4689 = vor.u32 %v4687, %v4688
        %v4690 = vshll.u32 920167782, %v4675
        %v4691 = vshrl.u32 1326507024, %v4676
        %v4692 = vor.u32 %v4690, %v4691
        %vm4693 = vcmp.lt.s32.totalorder %v4674, 1
        %vm4694 = vcmp.lt.s32.totalorder %v4674, 2
        %vm4695 = vcmp.lt.s32.totalorder %v4674, 3
        %vm4696 = vcmp.lt.s32.totalorder %v4674, 4
        %v4697 = vsel %vm4693, %v4677, %v4680
        %v4698 = vsel %vm4696, %v4686, 2102212464
        %v4699 = vsel %vm4695, %v4683, %v4698
        %v4700 = vsel %vm4694, %v4697, %v4699
        %v4701 = vsel %vm4693, %v4680, %v4683
        %v4702 = vsel %vm4696, %v4689, 920167782
        %v4703 = vsel %vm4695, %v4686, %v4702
        %v4704 = vsel %vm4694, %v4701, %v4703
        %v4705 = vsel %vm4693, %v4683, %v4686
        %v4706 = vsel %vm4696, %v4692, 1326507024
        %v4707 = vsel %vm4695, %v4689, %v4706
        %v4708 = vsel %vm4694, %v4705, %v4707
        %v4709 = vshll.u32 %v4669, 8
        %v4710 = vmul.u32.u64.compose %v4709, %v4708
        %v4711 = vextract.low.u32 %v4710
        %v4712 = vextract.high.u32 %v4710
        %v4713 = vmul.u32.u64.compose %v4709, %v4704
        %v4714 = vextract.low.u32 %v4713
        %v4715 = vextract.high.u32 %v4713
        %v4716 = vmul.u32 %v4709, %v4700
        %v4717 = vadd.s32 %v4712, %v4714
        %vm4718 = vc.u32 %v4712, %v4714
        %v4719 = vadd.s32 %v4715, 1
        %v4720 = vsel %vm4718, %v4719, %v4715
        %v4721 = vadd.s32 %v4716, %v4720
        %v4722 = vadd.s32 %v4721, 536870912
        %v4723 = vshrl.u32 %v4722, 30
        %v4724 = vshll.u32 %v4723, 30
        %v4725 = vsub.s32 %v4721, %v4724
        %vm4726 = vcmp.lt.s32.totalorder %v4725, 0
        %v4727 = vsub.s32 0, %v4725
        %v4728 = vsel %vm4726, %v4727, %v4725
        %v4729 = vclz %v4728
        %v4730 = vsub.s32 %v4729, 2
        %vm4731 = vcmp.gt.s32.totalorder 0, %v4730
        %v4732 = vsel %vm4731, 0, %v4730
        %v4733 = vsub.s32 32, %v4732
        %v4734 = vshll.u32 %v4725, %v4732
        %v4735 = vshrl.u32 %v4717, %v4733
        %v4736 = vor.u32 %v4734, %v4735
        %v4737 = vsub.s32 4294967266, %v4732
        %v4738 = vadd.s32 %v4737, 127
        %v4739 = vshll.u32 %v4738, 23
        %v4740 = vor.u32 4788187, %v4739
        %v4741 = vand.u32 2147483647, %v4740
        %v4743 = vcvt.s32.f32 %v4736
        %v4744 = vmul.f32 %v4743, %v4741
        %v4745 = vxor.u32 %v4744, 2147483648
        %v4746 = vsel %vm4663, %v4745, %v4744
        %v4747 = vsub.s32 4, %v4723
        %v4748 = vsel %vm4663, %v4747, %v4723
        %v4749 = vsel %vm4662, %v4385, %v4746
        %v4750 = vsel %vm4662, 0, %v4748
        %v4751 = vcosq.f32.pop %v4749
        %v4752 = vsinq.f32.pop %v4749
        %vm4753 = vweird.f32 %v4385
        %v4754 = vadd.s32 %v4750, 3
        %v4755 = vand.u32 %v4754, 3
        %vm4756 = vcmp.lt.s32.totalorder %v4755, 2
        %vm4757 = vcmp.eq.s32.totalorder %v4755, 0
        %v4758 = vxor.u32 %v4752, 2147483648
        %v4759 = vsel %vm4757, %v4751, %v4758
        %vm4760 = vcmp.eq.s32.totalorder %v4755, 2
        %v4761 = vxor.u32 %v4751, 2147483648
        %v4762 = vsel %vm4760, %v4761, %v4752
        %v4763 = vsel %vm4756, %v4759, %v4762
        %v4764 = vsel %vm4753, nan, %v4763
        %v4765 = vand.u32 2147483647, %v4390
        %vm4766 = vcmp.le.f32.partialorder %v4765, 0.7853982
        %vm4767 = vcmp.lt.s32.totalorder %v4390, 0
        %v4768 = vand.u32 %v4390, 2139095040
        %v4769 = vshrl.u32 %v4768, 23
        %v4770 = vsub.s32 %v4769, 127
        %v4771 = vand.u32 2147483647, %v4390
        %v4772 = vand.u32 %v4771, 8388607
        %v4773 = vor.u32 %v4772, 8388608
        %v4774 = vsub.s32 0, %v4773
        %v4775 = vadd.s32 %v4770, 1
        %vm4776 = vcmp.gt.s32.totalorder %v4775, 0
        %v4777 = vsel %vm4776, %v4775, 0
        %v4778 = vshrl.u32 %v4777, 5
        %v4779 = vand.u32 %v4777, 31
        %v4780 = vsub.s32 32, %v4779
        %v4781 = vshrl.u32 683565275, %v4780
        %v4782 = vshll.u32 683565275, %v4779
        %v4783 = vshrl.u32 2475754826, %v4780
        %v4784 = vor.u32 %v4782, %v4783
        %v4785 = vshll.u32 2475754826, %v4779
        %v4786 = vshrl.u32 2131351028, %v4780
        %v4787 = vor.u32 %v4785, %v4786
        %v4788 = vshll.u32 2131351028, %v4779
        %v4789 = vshrl.u32 2102212464, %v4780
        %v4790 = vor.u32 %v4788, %v4789
        %v4791 = vshll.u32 2102212464, %v4779
        %v4792 = vshrl.u32 920167782, %v4780
        %v4793 = vor.u32 %v4791, %v4792
        %v4794 = vshll.u32 920167782, %v4779
        %v4795 = vshrl.u32 1326507024, %v4780
        %v4796 = vor.u32 %v4794, %v4795
        %vm4797 = vcmp.lt.s32.totalorder %v4778, 1
        %vm4798 = vcmp.lt.s32.totalorder %v4778, 2
        %vm4799 = vcmp.lt.s32.totalorder %v4778, 3
        %vm4800 = vcmp.lt.s32.totalorder %v4778, 4
        %v4801 = vsel %vm4797, %v4781, %v4784
        %v4802 = vsel %vm4800, %v4790, 2102212464
        %v4803 = vsel %vm4799, %v4787, %v4802
        %v4804 = vsel %vm4798, %v4801, %v4803
        %v4805 = vsel %vm4797, %v4784, %v4787
        %v4806 = vsel %vm4800, %v4793, 920167782
        %v4807 = vsel %vm4799, %v4790, %v4806
        %v4808 = vsel %vm4798, %v4805, %v4807
        %v4809 = vsel %vm4797, %v4787, %v4790
        %v4810 = vsel %vm4800, %v4796, 1326507024
        %v4811 = vsel %vm4799, %v4793, %v4810
        %v4812 = vsel %vm4798, %v4809, %v4811
        %v4813 = vshll.u32 %v4773, 8
        %v4814 = vmul.u32.u64.compose %v4813, %v4812
        %v4815 = vextract.low.u32 %v4814
        %v4816 = vextract.high.u32 %v4814
        %v4817 = vmul.u32.u64.compose %v4813, %v4808
        %v4818 = vextract.low.u32 %v4817
        %v4819 = vextract.high.u32 %v4817
        %v4820 = vmul.u32 %v4813, %v4804
        %v4821 = vadd.s32 %v4816, %v4818
        %vm4822 = vc.u32 %v4816, %v4818
        %v4823 = vadd.s32 %v4819, 1
        %v4824 = vsel %vm4822, %v4823, %v4819
        %v4825 = vadd.s32 %v4820, %v4824
        %v4826 = vadd.s32 %v4825, 536870912
        %v4827 = vshrl.u32 %v4826, 30
        %v4828 = vshll.u32 %v4827, 30
        %v4829 = vsub.s32 %v4825, %v4828
        %vm4830 = vcmp.lt.s32.totalorder %v4829, 0
        %v4831 = vsub.s32 0, %v4829
        %v4832 = vsel %vm4830, %v4831, %v4829
        %v4833 = vclz %v4832
        %v4834 = vsub.s32 %v4833, 2
        %vm4835 = vcmp.gt.s32.totalorder 0, %v4834
        %v4836 = vsel %vm4835, 0, %v4834
        %v4837 = vsub.s32 32, %v4836
        %v4838 = vshll.u32 %v4829, %v4836
        %v4839 = vshrl.u32 %v4821, %v4837
        %v4840 = vor.u32 %v4838, %v4839
        %v4841 = vsub.s32 4294967266, %v4836
        %v4842 = vadd.s32 %v4841, 127
        %v4843 = vshll.u32 %v4842, 23
        %v4844 = vor.u32 4788187, %v4843
        %v4845 = vand.u32 2147483647, %v4844
        %v4847 = vcvt.s32.f32 %v4840
        %v4848 = vmul.f32 %v4847, %v4845
        %v4849 = vxor.u32 %v4848, 2147483648
        %v4850 = vsel %vm4767, %v4849, %v4848
        %v4851 = vsub.s32 4, %v4827
        %v4852 = vsel %vm4767, %v4851, %v4827
        %v4853 = vsel %vm4766, %v4390, %v4850
        %v4854 = vsel %vm4766, 0, %v4852
        %v4855 = vcosq.f32.pop %v4853
        %v4856 = vsinq.f32.pop %v4853
        %vm4857 = vweird.f32 %v4390
        %v4858 = vadd.s32 %v4854, 3
        %v4859 = vand.u32 %v4858, 3
        %vm4860 = vcmp.lt.s32.totalorder %v4859, 2
        %vm4861 = vcmp.eq.s32.totalorder %v4859, 0
        %v4862 = vxor.u32 %v4856, 2147483648
        %v4863 = vsel %vm4861, %v4855, %v4862
        %vm4864 = vcmp.eq.s32.totalorder %v4859, 2
        %v4865 = vxor.u32 %v4855, 2147483648
        %v4866 = vsel %vm4864, %v4865, %v4856
        %v4867 = vsel %vm4860, %v4863, %v4866
        %v4868 = vsel %vm4857, nan, %v4867
        %v4869 = vand.u32 2147483647, %v4395
        %vm4870 = vcmp.le.f32.partialorder %v4869, 0.7853982
        %vm4871 = vcmp.lt.s32.totalorder %v4395, 0
        %v4872 = vand.u32 %v4395, 2139095040
        %v4873 = vshrl.u32 %v4872, 23
        %v4874 = vsub.s32 %v4873, 127
        %v4875 = vand.u32 2147483647, %v4395
        %v4876 = vand.u32 %v4875, 8388607
        %v4877 = vor.u32 %v4876, 8388608
        %v4878 = vsub.s32 0, %v4877
        %v4879 = vadd.s32 %v4874, 1
        %vm4880 = vcmp.gt.s32.totalorder %v4879, 0
        %v4881 = vsel %vm4880, %v4879, 0
        %v4882 = vshrl.u32 %v4881, 5
        %v4883 = vand.u32 %v4881, 31
        %v4884 = vsub.s32 32, %v4883
        %v4885 = vshrl.u32 683565275, %v4884
        %v4886 = vshll.u32 683565275, %v4883
        %v4887 = vshrl.u32 2475754826, %v4884
        %v4888 = vor.u32 %v4886, %v4887
        %v4889 = vshll.u32 2475754826, %v4883
        %v4890 = vshrl.u32 2131351028, %v4884
        %v4891 = vor.u32 %v4889, %v4890
        %v4892 = vshll.u32 2131351028, %v4883
        %v4893 = vshrl.u32 2102212464, %v4884
        %v4894 = vor.u32 %v4892, %v4893
        %v4895 = vshll.u32 2102212464, %v4883
        %v4896 = vshrl.u32 920167782, %v4884
        %v4897 = vor.u32 %v4895, %v4896
        %v4898 = vshll.u32 920167782, %v4883
        %v4899 = vshrl.u32 1326507024, %v4884
        %v4900 = vor.u32 %v4898, %v4899
        %vm4901 = vcmp.lt.s32.totalorder %v4882, 1
        %vm4902 = vcmp.lt.s32.totalorder %v4882, 2
        %vm4903 = vcmp.lt.s32.totalorder %v4882, 3
        %vm4904 = vcmp.lt.s32.totalorder %v4882, 4
        %v4905 = vsel %vm4901, %v4885, %v4888
        %v4906 = vsel %vm4904, %v4894, 2102212464
        %v4907 = vsel %vm4903, %v4891, %v4906
        %v4908 = vsel %vm4902, %v4905, %v4907
        %v4909 = vsel %vm4901, %v4888, %v4891
        %v4910 = vsel %vm4904, %v4897, 920167782
        %v4911 = vsel %vm4903, %v4894, %v4910
        %v4912 = vsel %vm4902, %v4909, %v4911
        %v4913 = vsel %vm4901, %v4891, %v4894
        %v4914 = vsel %vm4904, %v4900, 1326507024
        %v4915 = vsel %vm4903, %v4897, %v4914
        %v4916 = vsel %vm4902, %v4913, %v4915
        %v4917 = vshll.u32 %v4877, 8
        %v4918 = vmul.u32.u64.compose %v4917, %v4916
        %v4919 = vextract.low.u32 %v4918
        %v4920 = vextract.high.u32 %v4918
        %v4921 = vmul.u32.u64.compose %v4917, %v4912
        %v4922 = vextract.low.u32 %v4921
        %v4923 = vextract.high.u32 %v4921
        %v4924 = vmul.u32 %v4917, %v4908
        %v4925 = vadd.s32 %v4920, %v4922
        %vm4926 = vc.u32 %v4920, %v4922
        %v4927 = vadd.s32 %v4923, 1
        %v4928 = vsel %vm4926, %v4927, %v4923
        %v4929 = vadd.s32 %v4924, %v4928
        %v4930 = vadd.s32 %v4929, 536870912
        %v4931 = vshrl.u32 %v4930, 30
        %v4932 = vshll.u32 %v4931, 30
        %v4933 = vsub.s32 %v4929, %v4932
        %vm4934 = vcmp.lt.s32.totalorder %v4933, 0
        %v4935 = vsub.s32 0, %v4933
        %v4936 = vsel %vm4934, %v4935, %v4933
        %v4937 = vclz %v4936
        %v4938 = vsub.s32 %v4937, 2
        %vm4939 = vcmp.gt.s32.totalorder 0, %v4938
        %v4940 = vsel %vm4939, 0, %v4938
        %v4941 = vsub.s32 32, %v4940
        %v4942 = vshll.u32 %v4933, %v4940
        %v4943 = vshrl.u32 %v4925, %v4941
        %v4944 = vor.u32 %v4942, %v4943
        %v4945 = vsub.s32 4294967266, %v4940
        %v4946 = vadd.s32 %v4945, 127
        %v4947 = vshll.u32 %v4946, 23
        %v4948 = vor.u32 4788187, %v4947
        %v4949 = vand.u32 2147483647, %v4948
        %v4951 = vcvt.s32.f32 %v4944
        %v4952 = vmul.f32 %v4951, %v4949
        %v4953 = vxor.u32 %v4952, 2147483648
        %v4954 = vsel %vm4871, %v4953, %v4952
        %v4955 = vsub.s32 4, %v4931
        %v4956 = vsel %vm4871, %v4955, %v4931
        %v4957 = vsel %vm4870, %v4395, %v4954
        %v4958 = vsel %vm4870, 0, %v4956
        %v4959 = vcosq.f32.pop %v4957
        %v4960 = vsinq.f32.pop %v4957
        %vm4961 = vweird.f32 %v4395
        %v4962 = vadd.s32 %v4958, 3
        %v4963 = vand.u32 %v4962, 3
        %vm4964 = vcmp.lt.s32.totalorder %v4963, 2
        %vm4965 = vcmp.eq.s32.totalorder %v4963, 0
        %v4966 = vxor.u32 %v4960, 2147483648
        %v4967 = vsel %vm4965, %v4959, %v4966
        %vm4968 = vcmp.eq.s32.totalorder %v4963, 2
        %v4969 = vxor.u32 %v4959, 2147483648
        %v4970 = vsel %vm4968, %v4969, %v4960
        %v4971 = vsel %vm4964, %v4967, %v4970
        %v4972 = vsel %vm4961, nan, %v4971
        %v4973 = vand.u32 2147483647, %v4400
        %vm4974 = vcmp.le.f32.partialorder %v4973, 0.7853982
        %vm4975 = vcmp.lt.s32.totalorder %v4400, 0
        %v4976 = vand.u32 %v4400, 2139095040
        %v4977 = vshrl.u32 %v4976, 23
        %v4978 = vsub.s32 %v4977, 127
        %v4979 = vand.u32 2147483647, %v4400
        %v4980 = vand.u32 %v4979, 8388607
        %v4981 = vor.u32 %v4980, 8388608
        %v4982 = vsub.s32 0, %v4981
        %v4983 = vadd.s32 %v4978, 1
        %vm4984 = vcmp.gt.s32.totalorder %v4983, 0
        %v4985 = vsel %vm4984, %v4983, 0
        %v4986 = vshrl.u32 %v4985, 5
        %v4987 = vand.u32 %v4985, 31
        %v4988 = vsub.s32 32, %v4987
        %v4989 = vshrl.u32 683565275, %v4988
        %v4990 = vshll.u32 683565275, %v4987
        %v4991 = vshrl.u32 2475754826, %v4988
        %v4992 = vor.u32 %v4990, %v4991
        %v4993 = vshll.u32 2475754826, %v4987
        %v4994 = vshrl.u32 2131351028, %v4988
        %v4995 = vor.u32 %v4993, %v4994
        %v4996 = vshll.u32 2131351028, %v4987
        %v4997 = vshrl.u32 2102212464, %v4988
        %v4998 = vor.u32 %v4996, %v4997
        %v4999 = vshll.u32 2102212464, %v4987
        %v5000 = vshrl.u32 920167782, %v4988
        %v5001 = vor.u32 %v4999, %v5000
        %v5002 = vshll.u32 920167782, %v4987
        %v5003 = vshrl.u32 1326507024, %v4988
        %v5004 = vor.u32 %v5002, %v5003
        %vm5005 = vcmp.lt.s32.totalorder %v4986, 1
        %vm5006 = vcmp.lt.s32.totalorder %v4986, 2
        %vm5007 = vcmp.lt.s32.totalorder %v4986, 3
        %vm5008 = vcmp.lt.s32.totalorder %v4986, 4
        %v5009 = vsel %vm5005, %v4989, %v4992
        %v5010 = vsel %vm5008, %v4998, 2102212464
        %v5011 = vsel %vm5007, %v4995, %v5010
        %v5012 = vsel %vm5006, %v5009, %v5011
        %v5013 = vsel %vm5005, %v4992, %v4995
        %v5014 = vsel %vm5008, %v5001, 920167782
        %v5015 = vsel %vm5007, %v4998, %v5014
        %v5016 = vsel %vm5006, %v5013, %v5015
        %v5017 = vsel %vm5005, %v4995, %v4998
        %v5018 = vsel %vm5008, %v5004, 1326507024
        %v5019 = vsel %vm5007, %v5001, %v5018
        %v5020 = vsel %vm5006, %v5017, %v5019
        %v5021 = vshll.u32 %v4981, 8
        %v5022 = vmul.u32.u64.compose %v5021, %v5020
        %v5023 = vextract.low.u32 %v5022
        %v5024 = vextract.high.u32 %v5022
        %v5025 = vmul.u32.u64.compose %v5021, %v5016
        %v5026 = vextract.low.u32 %v5025
        %v5027 = vextract.high.u32 %v5025
        %v5028 = vmul.u32 %v5021, %v5012
        %v5029 = vadd.s32 %v5024, %v5026
        %vm5030 = vc.u32 %v5024, %v5026
        %v5031 = vadd.s32 %v5027, 1
        %v5032 = vsel %vm5030, %v5031, %v5027
        %v5033 = vadd.s32 %v5028, %v5032
        %v5034 = vadd.s32 %v5033, 536870912
        %v5035 = vshrl.u32 %v5034, 30
        %v5036 = vshll.u32 %v5035, 30
        %v5037 = vsub.s32 %v5033, %v5036
        %vm5038 = vcmp.lt.s32.totalorder %v5037, 0
        %v5039 = vsub.s32 0, %v5037
        %v5040 = vsel %vm5038, %v5039, %v5037
        %v5041 = vclz %v5040
        %v5042 = vsub.s32 %v5041, 2
        %vm5043 = vcmp.gt.s32.totalorder 0, %v5042
        %v5044 = vsel %vm5043, 0, %v5042
        %v5045 = vsub.s32 32, %v5044
        %v5046 = vshll.u32 %v5037, %v5044
        %v5047 = vshrl.u32 %v5029, %v5045
        %v5048 = vor.u32 %v5046, %v5047
        %v5049 = vsub.s32 4294967266, %v5044
        %v5050 = vadd.s32 %v5049, 127
        %v5051 = vshll.u32 %v5050, 23
        %v5052 = vor.u32 4788187, %v5051
        %v5053 = vand.u32 2147483647, %v5052
        %v5055 = vcvt.s32.f32 %v5048
        %v5056 = vmul.f32 %v5055, %v5053
        %v5057 = vxor.u32 %v5056, 2147483648
        %v5058 = vsel %vm4975, %v5057, %v5056
        %v5059 = vsub.s32 4, %v5035
        %v5060 = vsel %vm4975, %v5059, %v5035
        %v5061 = vsel %vm4974, %v4400, %v5058
        %v5062 = vsel %vm4974, 0, %v5060
        %v5063 = vcosq.f32.pop %v5061
        %v5064 = vsinq.f32.pop %v5061
        %vm5065 = vweird.f32 %v4400
        %v5066 = vadd.s32 %v5062, 3
        %v5067 = vand.u32 %v5066, 3
        %vm5068 = vcmp.lt.s32.totalorder %v5067, 2
        %vm5069 = vcmp.eq.s32.totalorder %v5067, 0
        %v5070 = vxor.u32 %v5064, 2147483648
        %v5071 = vsel %vm5069, %v5063, %v5070
        %vm5072 = vcmp.eq.s32.totalorder %v5067, 2
        %v5073 = vxor.u32 %v5063, 2147483648
        %v5074 = vsel %vm5072, %v5073, %v5064
        %v5075 = vsel %vm5068, %v5071, %v5074
        %v5076 = vsel %vm5065, nan, %v5075
        %v5077 = vand.u32 2147483647, %v4405
        %vm5078 = vcmp.le.f32.partialorder %v5077, 0.7853982
        %vm5079 = vcmp.lt.s32.totalorder %v4405, 0
        %v5080 = vand.u32 %v4405, 2139095040
        %v5081 = vshrl.u32 %v5080, 23
        %v5082 = vsub.s32 %v5081, 127
        %v5083 = vand.u32 2147483647, %v4405
        %v5084 = vand.u32 %v5083, 8388607
        %v5085 = vor.u32 %v5084, 8388608
        %v5086 = vsub.s32 0, %v5085
        %v5087 = vadd.s32 %v5082, 1
        %vm5088 = vcmp.gt.s32.totalorder %v5087, 0
        %v5089 = vsel %vm5088, %v5087, 0
        %v5090 = vshrl.u32 %v5089, 5
        %v5091 = vand.u32 %v5089, 31
        %v5092 = vsub.s32 32, %v5091
        %v5093 = vshrl.u32 683565275, %v5092
        %v5094 = vshll.u32 683565275, %v5091
        %v5095 = vshrl.u32 2475754826, %v5092
        %v5096 = vor.u32 %v5094, %v5095
        %v5097 = vshll.u32 2475754826, %v5091
        %v5098 = vshrl.u32 2131351028, %v5092
        %v5099 = vor.u32 %v5097, %v5098
        %v5100 = vshll.u32 2131351028, %v5091
        %v5101 = vshrl.u32 2102212464, %v5092
        %v5102 = vor.u32 %v5100, %v5101
        %v5103 = vshll.u32 2102212464, %v5091
        %v5104 = vshrl.u32 920167782, %v5092
        %v5105 = vor.u32 %v5103, %v5104
        %v5106 = vshll.u32 920167782, %v5091
        %v5107 = vshrl.u32 1326507024, %v5092
        %v5108 = vor.u32 %v5106, %v5107
        %vm5109 = vcmp.lt.s32.totalorder %v5090, 1
        %vm5110 = vcmp.lt.s32.totalorder %v5090, 2
        %vm5111 = vcmp.lt.s32.totalorder %v5090, 3
        %vm5112 = vcmp.lt.s32.totalorder %v5090, 4
        %v5113 = vsel %vm5109, %v5093, %v5096
        %v5114 = vsel %vm5112, %v5102, 2102212464
        %v5115 = vsel %vm5111, %v5099, %v5114
        %v5116 = vsel %vm5110, %v5113, %v5115
        %v5117 = vsel %vm5109, %v5096, %v5099
        %v5118 = vsel %vm5112, %v5105, 920167782
        %v5119 = vsel %vm5111, %v5102, %v5118
        %v5120 = vsel %vm5110, %v5117, %v5119
        %v5121 = vsel %vm5109, %v5099, %v5102
        %v5122 = vsel %vm5112, %v5108, 1326507024
        %v5123 = vsel %vm5111, %v5105, %v5122
        %v5124 = vsel %vm5110, %v5121, %v5123
        %v5125 = vshll.u32 %v5085, 8
        %v5126 = vmul.u32.u64.compose %v5125, %v5124
        %v5127 = vextract.low.u32 %v5126
        %v5128 = vextract.high.u32 %v5126
        %v5129 = vmul.u32.u64.compose %v5125, %v5120
        %v5130 = vextract.low.u32 %v5129
        %v5131 = vextract.high.u32 %v5129
        %v5132 = vmul.u32 %v5125, %v5116
        %v5133 = vadd.s32 %v5128, %v5130
        %vm5134 = vc.u32 %v5128, %v5130
        %v5135 = vadd.s32 %v5131, 1
        %v5136 = vsel %vm5134, %v5135, %v5131
        %v5137 = vadd.s32 %v5132, %v5136
        %v5138 = vadd.s32 %v5137, 536870912
        %v5139 = vshrl.u32 %v5138, 30
        %v5140 = vshll.u32 %v5139, 30
        %v5141 = vsub.s32 %v5137, %v5140
        %vm5142 = vcmp.lt.s32.totalorder %v5141, 0
        %v5143 = vsub.s32 0, %v5141
        %v5144 = vsel %vm5142, %v5143, %v5141
        %v5145 = vclz %v5144
        %v5146 = vsub.s32 %v5145, 2
        %vm5147 = vcmp.gt.s32.totalorder 0, %v5146
        %v5148 = vsel %vm5147, 0, %v5146
        %v5149 = vsub.s32 32, %v5148
        %v5150 = vshll.u32 %v5141, %v5148
        %v5151 = vshrl.u32 %v5133, %v5149
        %v5152 = vor.u32 %v5150, %v5151
        %v5153 = vsub.s32 4294967266, %v5148
        %v5154 = vadd.s32 %v5153, 127
        %v5155 = vshll.u32 %v5154, 23
        %v5156 = vor.u32 4788187, %v5155
        %v5157 = vand.u32 2147483647, %v5156
        %v5159 = vcvt.s32.f32 %v5152
        %v5160 = vmul.f32 %v5159, %v5157
        %v5161 = vxor.u32 %v5160, 2147483648
        %v5162 = vsel %vm5079, %v5161, %v5160
        %v5163 = vsub.s32 4, %v5139
        %v5164 = vsel %vm5079, %v5163, %v5139
        %v5165 = vsel %vm5078, %v4405, %v5162
        %v5166 = vsel %vm5078, 0, %v5164
        %v5167 = vcosq.f32.pop %v5165
        %v5168 = vsinq.f32.pop %v5165
        %vm5169 = vweird.f32 %v4405
        %v5170 = vadd.s32 %v5166, 3
        %v5171 = vand.u32 %v5170, 3
        %vm5172 = vcmp.lt.s32.totalorder %v5171, 2
        %vm5173 = vcmp.eq.s32.totalorder %v5171, 0
        %v5174 = vxor.u32 %v5168, 2147483648
        %v5175 = vsel %vm5173, %v5167, %v5174
        %vm5176 = vcmp.eq.s32.totalorder %v5171, 2
        %v5177 = vxor.u32 %v5167, 2147483648
        %v5178 = vsel %vm5176, %v5177, %v5168
        %v5179 = vsel %vm5172, %v5175, %v5178
        %v5180 = vsel %vm5169, nan, %v5179
        %v5181 = vand.u32 2147483647, %v4410
        %vm5182 = vcmp.le.f32.partialorder %v5181, 0.7853982
        %vm5183 = vcmp.lt.s32.totalorder %v4410, 0
        %v5184 = vand.u32 %v4410, 2139095040
        %v5185 = vshrl.u32 %v5184, 23
        %v5186 = vsub.s32 %v5185, 127
        %v5187 = vand.u32 2147483647, %v4410
        %v5188 = vand.u32 %v5187, 8388607
        %v5189 = vor.u32 %v5188, 8388608
        %v5190 = vsub.s32 0, %v5189
        %v5191 = vadd.s32 %v5186, 1
        %vm5192 = vcmp.gt.s32.totalorder %v5191, 0
        %v5193 = vsel %vm5192, %v5191, 0
        %v5194 = vshrl.u32 %v5193, 5
        %v5195 = vand.u32 %v5193, 31
        %v5196 = vsub.s32 32, %v5195
        %v5197 = vshrl.u32 683565275, %v5196
        %v5198 = vshll.u32 683565275, %v5195
        %v5199 = vshrl.u32 2475754826, %v5196
        %v5200 = vor.u32 %v5198, %v5199
        %v5201 = vshll.u32 2475754826, %v5195
        %v5202 = vshrl.u32 2131351028, %v5196
        %v5203 = vor.u32 %v5201, %v5202
        %v5204 = vshll.u32 2131351028, %v5195
        %v5205 = vshrl.u32 2102212464, %v5196
        %v5206 = vor.u32 %v5204, %v5205
        %v5207 = vshll.u32 2102212464, %v5195
        %v5208 = vshrl.u32 920167782, %v5196
        %v5209 = vor.u32 %v5207, %v5208
        %v5210 = vshll.u32 920167782, %v5195
        %v5211 = vshrl.u32 1326507024, %v5196
        %v5212 = vor.u32 %v5210, %v5211
        %vm5213 = vcmp.lt.s32.totalorder %v5194, 1
        %vm5214 = vcmp.lt.s32.totalorder %v5194, 2
        %vm5215 = vcmp.lt.s32.totalorder %v5194, 3
        %vm5216 = vcmp.lt.s32.totalorder %v5194, 4
        %v5217 = vsel %vm5213, %v5197, %v5200
        %v5218 = vsel %vm5216, %v5206, 2102212464
        %v5219 = vsel %vm5215, %v5203, %v5218
        %v5220 = vsel %vm5214, %v5217, %v5219
        %v5221 = vsel %vm5213, %v5200, %v5203
        %v5222 = vsel %vm5216, %v5209, 920167782
        %v5223 = vsel %vm5215, %v5206, %v5222
        %v5224 = vsel %vm5214, %v5221, %v5223
        %v5225 = vsel %vm5213, %v5203, %v5206
        %v5226 = vsel %vm5216, %v5212, 1326507024
        %v5227 = vsel %vm5215, %v5209, %v5226
        %v5228 = vsel %vm5214, %v5225, %v5227
        %v5229 = vshll.u32 %v5189, 8
        %v5230 = vmul.u32.u64.compose %v5229, %v5228
        %v5231 = vextract.low.u32 %v5230
        %v5232 = vextract.high.u32 %v5230
        %v5233 = vmul.u32.u64.compose %v5229, %v5224
        %v5234 = vextract.low.u32 %v5233
        %v5235 = vextract.high.u32 %v5233
        %v5236 = vmul.u32 %v5229, %v5220
        %v5237 = vadd.s32 %v5232, %v5234
        %vm5238 = vc.u32 %v5232, %v5234
        %v5239 = vadd.s32 %v5235, 1
        %v5240 = vsel %vm5238, %v5239, %v5235
        %v5241 = vadd.s32 %v5236, %v5240
        %v5242 = vadd.s32 %v5241, 536870912
        %v5243 = vshrl.u32 %v5242, 30
        %v5244 = vshll.u32 %v5243, 30
        %v5245 = vsub.s32 %v5241, %v5244
        %vm5246 = vcmp.lt.s32.totalorder %v5245, 0
        %v5247 = vsub.s32 0, %v5245
        %v5248 = vsel %vm5246, %v5247, %v5245
        %v5249 = vclz %v5248
        %v5250 = vsub.s32 %v5249, 2
        %vm5251 = vcmp.gt.s32.totalorder 0, %v5250
        %v5252 = vsel %vm5251, 0, %v5250
        %v5253 = vsub.s32 32, %v5252
        %v5254 = vshll.u32 %v5245, %v5252
        %v5255 = vshrl.u32 %v5237, %v5253
        %v5256 = vor.u32 %v5254, %v5255
        %v5257 = vsub.s32 4294967266, %v5252
        %v5258 = vadd.s32 %v5257, 127
        %v5259 = vshll.u32 %v5258, 23
        %v5260 = vor.u32 4788187, %v5259
        %v5261 = vand.u32 2147483647, %v5260
        %v5263 = vcvt.s32.f32 %v5256
        %v5264 = vmul.f32 %v5263, %v5261
        %v5265 = vxor.u32 %v5264, 2147483648
        %v5266 = vsel %vm5183, %v5265, %v5264
        %v5267 = vsub.s32 4, %v5243
        %v5268 = vsel %vm5183, %v5267, %v5243
        %v5269 = vsel %vm5182, %v4410, %v5266
        %v5270 = vsel %vm5182, 0, %v5268
        %v5271 = vcosq.f32.pop %v5269
        %v5272 = vsinq.f32.pop %v5269
        %vm5273 = vweird.f32 %v4410
        %v5274 = vadd.s32 %v5270, 3
        %v5275 = vand.u32 %v5274, 3
        %vm5276 = vcmp.lt.s32.totalorder %v5275, 2
        %vm5277 = vcmp.eq.s32.totalorder %v5275, 0
        %v5278 = vxor.u32 %v5272, 2147483648
        %v5279 = vsel %vm5277, %v5271, %v5278
        %vm5280 = vcmp.eq.s32.totalorder %v5275, 2
        %v5281 = vxor.u32 %v5271, 2147483648
        %v5282 = vsel %vm5280, %v5281, %v5272
        %v5283 = vsel %vm5276, %v5279, %v5282
        %v5284 = vsel %vm5273, nan, %v5283
        %v5285 = vand.u32 2147483647, %v4415
        %vm5286 = vcmp.le.f32.partialorder %v5285, 0.7853982
        %vm5287 = vcmp.lt.s32.totalorder %v4415, 0
        %v5288 = vand.u32 %v4415, 2139095040
        %v5289 = vshrl.u32 %v5288, 23
        %v5290 = vsub.s32 %v5289, 127
        %v5291 = vand.u32 2147483647, %v4415
        %v5292 = vand.u32 %v5291, 8388607
        %v5293 = vor.u32 %v5292, 8388608
        %v5294 = vsub.s32 0, %v5293
        %v5295 = vadd.s32 %v5290, 1
        %vm5296 = vcmp.gt.s32.totalorder %v5295, 0
        %v5297 = vsel %vm5296, %v5295, 0
        %v5298 = vshrl.u32 %v5297, 5
        %v5299 = vand.u32 %v5297, 31
        %v5300 = vsub.s32 32, %v5299
        %v5301 = vshrl.u32 683565275, %v5300
        %v5302 = vshll.u32 683565275, %v5299
        %v5303 = vshrl.u32 2475754826, %v5300
        %v5304 = vor.u32 %v5302, %v5303
        %v5305 = vshll.u32 2475754826, %v5299
        %v5306 = vshrl.u32 2131351028, %v5300
        %v5307 = vor.u32 %v5305, %v5306
        %v5308 = vshll.u32 2131351028, %v5299
        %v5309 = vshrl.u32 2102212464, %v5300
        %v5310 = vor.u32 %v5308, %v5309
        %v5311 = vshll.u32 2102212464, %v5299
        %v5312 = vshrl.u32 920167782, %v5300
        %v5313 = vor.u32 %v5311, %v5312
        %v5314 = vshll.u32 920167782, %v5299
        %v5315 = vshrl.u32 1326507024, %v5300
        %v5316 = vor.u32 %v5314, %v5315
        %vm5317 = vcmp.lt.s32.totalorder %v5298, 1
        %vm5318 = vcmp.lt.s32.totalorder %v5298, 2
        %vm5319 = vcmp.lt.s32.totalorder %v5298, 3
        %vm5320 = vcmp.lt.s32.totalorder %v5298, 4
        %v5321 = vsel %vm5317, %v5301, %v5304
        %v5322 = vsel %vm5320, %v5310, 2102212464
        %v5323 = vsel %vm5319, %v5307, %v5322
        %v5324 = vsel %vm5318, %v5321, %v5323
        %v5325 = vsel %vm5317, %v5304, %v5307
        %v5326 = vsel %vm5320, %v5313, 920167782
        %v5327 = vsel %vm5319, %v5310, %v5326
        %v5328 = vsel %vm5318, %v5325, %v5327
        %v5329 = vsel %vm5317, %v5307, %v5310
        %v5330 = vsel %vm5320, %v5316, 1326507024
        %v5331 = vsel %vm5319, %v5313, %v5330
        %v5332 = vsel %vm5318, %v5329, %v5331
        %v5333 = vshll.u32 %v5293, 8
        %v5334 = vmul.u32.u64.compose %v5333, %v5332
        %v5335 = vextract.low.u32 %v5334
        %v5336 = vextract.high.u32 %v5334
        %v5337 = vmul.u32.u64.compose %v5333, %v5328
        %v5338 = vextract.low.u32 %v5337
        %v5339 = vextract.high.u32 %v5337
        %v5340 = vmul.u32 %v5333, %v5324
        %v5341 = vadd.s32 %v5336, %v5338
        %vm5342 = vc.u32 %v5336, %v5338
        %v5343 = vadd.s32 %v5339, 1
        %v5344 = vsel %vm5342, %v5343, %v5339
        %v5345 = vadd.s32 %v5340, %v5344
        %v5346 = vadd.s32 %v5345, 536870912
        %v5347 = vshrl.u32 %v5346, 30
        %v5348 = vshll.u32 %v5347, 30
        %v5349 = vsub.s32 %v5345, %v5348
        %vm5350 = vcmp.lt.s32.totalorder %v5349, 0
        %v5351 = vsub.s32 0, %v5349
        %v5352 = vsel %vm5350, %v5351, %v5349
        %v5353 = vclz %v5352
        %v5354 = vsub.s32 %v5353, 2
        %vm5355 = vcmp.gt.s32.totalorder 0, %v5354
        %v5356 = vsel %vm5355, 0, %v5354
        %v5357 = vsub.s32 32, %v5356
        %v5358 = vshll.u32 %v5349, %v5356
        %v5359 = vshrl.u32 %v5341, %v5357
        %v5360 = vor.u32 %v5358, %v5359
        %v5361 = vsub.s32 4294967266, %v5356
        %v5362 = vadd.s32 %v5361, 127
        %v5363 = vshll.u32 %v5362, 23
        %v5364 = vor.u32 4788187, %v5363
        %v5365 = vand.u32 2147483647, %v5364
        %v5367 = vcvt.s32.f32 %v5360
        %v5368 = vmul.f32 %v5367, %v5365
        %v5369 = vxor.u32 %v5368, 2147483648
        %v5370 = vsel %vm5287, %v5369, %v5368
        %v5371 = vsub.s32 4, %v5347
        %v5372 = vsel %vm5287, %v5371, %v5347
        %v5373 = vsel %vm5286, %v4415, %v5370
        %v5374 = vsel %vm5286, 0, %v5372
        %v5375 = vcosq.f32.pop %v5373
        %v5376 = vsinq.f32.pop %v5373
        %vm5377 = vweird.f32 %v4415
        %v5378 = vadd.s32 %v5374, 3
        %v5379 = vand.u32 %v5378, 3
        %vm5380 = vcmp.lt.s32.totalorder %v5379, 2
        %vm5381 = vcmp.eq.s32.totalorder %v5379, 0
        %v5382 = vxor.u32 %v5376, 2147483648
        %v5383 = vsel %vm5381, %v5375, %v5382
        %vm5384 = vcmp.eq.s32.totalorder %v5379, 2
        %v5385 = vxor.u32 %v5375, 2147483648
        %v5386 = vsel %vm5384, %v5385, %v5376
        %v5387 = vsel %vm5380, %v5383, %v5386
        %v5388 = vsel %vm5377, nan, %v5387
        %v5389 = vand.u32 2147483647, %v4420
        %vm5390 = vcmp.le.f32.partialorder %v5389, 0.7853982
        %vm5391 = vcmp.lt.s32.totalorder %v4420, 0
        %v5392 = vand.u32 %v4420, 2139095040
        %v5393 = vshrl.u32 %v5392, 23
        %v5394 = vsub.s32 %v5393, 127
        %v5395 = vand.u32 2147483647, %v4420
        %v5396 = vand.u32 %v5395, 8388607
        %v5397 = vor.u32 %v5396, 8388608
        %v5398 = vsub.s32 0, %v5397
        %v5399 = vadd.s32 %v5394, 1
        %vm5400 = vcmp.gt.s32.totalorder %v5399, 0
        %v5401 = vsel %vm5400, %v5399, 0
        %v5402 = vshrl.u32 %v5401, 5
        %v5403 = vand.u32 %v5401, 31
        %v5404 = vsub.s32 32, %v5403
        %v5405 = vshrl.u32 683565275, %v5404
        %v5406 = vshll.u32 683565275, %v5403
        %v5407 = vshrl.u32 2475754826, %v5404
        %v5408 = vor.u32 %v5406, %v5407
        %v5409 = vshll.u32 2475754826, %v5403
        %v5410 = vshrl.u32 2131351028, %v5404
        %v5411 = vor.u32 %v5409, %v5410
        %v5412 = vshll.u32 2131351028, %v5403
        %v5413 = vshrl.u32 2102212464, %v5404
        %v5414 = vor.u32 %v5412, %v5413
        %v5415 = vshll.u32 2102212464, %v5403
        %v5416 = vshrl.u32 920167782, %v5404
        %v5417 = vor.u32 %v5415, %v5416
        %v5418 = vshll.u32 920167782, %v5403
        %v5419 = vshrl.u32 1326507024, %v5404
        %v5420 = vor.u32 %v5418, %v5419
        %vm5421 = vcmp.lt.s32.totalorder %v5402, 1
        %vm5422 = vcmp.lt.s32.totalorder %v5402, 2
        %vm5423 = vcmp.lt.s32.totalorder %v5402, 3
        %vm5424 = vcmp.lt.s32.totalorder %v5402, 4
        %v5425 = vsel %vm5421, %v5405, %v5408
        %v5426 = vsel %vm5424, %v5414, 2102212464
        %v5427 = vsel %vm5423, %v5411, %v5426
        %v5428 = vsel %vm5422, %v5425, %v5427
        %v5429 = vsel %vm5421, %v5408, %v5411
        %v5430 = vsel %vm5424, %v5417, 920167782
        %v5431 = vsel %vm5423, %v5414, %v5430
        %v5432 = vsel %vm5422, %v5429, %v5431
        %v5433 = vsel %vm5421, %v5411, %v5414
        %v5434 = vsel %vm5424, %v5420, 1326507024
        %v5435 = vsel %vm5423, %v5417, %v5434
        %v5436 = vsel %vm5422, %v5433, %v5435
        %v5437 = vshll.u32 %v5397, 8
        %v5438 = vmul.u32.u64.compose %v5437, %v5436
        %v5439 = vextract.low.u32 %v5438
        %v5440 = vextract.high.u32 %v5438
        %v5441 = vmul.u32.u64.compose %v5437, %v5432
        %v5442 = vextract.low.u32 %v5441
        %v5443 = vextract.high.u32 %v5441
        %v5444 = vmul.u32 %v5437, %v5428
        %v5445 = vadd.s32 %v5440, %v5442
        %vm5446 = vc.u32 %v5440, %v5442
        %v5447 = vadd.s32 %v5443, 1
        %v5448 = vsel %vm5446, %v5447, %v5443
        %v5449 = vadd.s32 %v5444, %v5448
        %v5450 = vadd.s32 %v5449, 536870912
        %v5451 = vshrl.u32 %v5450, 30
        %v5452 = vshll.u32 %v5451, 30
        %v5453 = vsub.s32 %v5449, %v5452
        %vm5454 = vcmp.lt.s32.totalorder %v5453, 0
        %v5455 = vsub.s32 0, %v5453
        %v5456 = vsel %vm5454, %v5455, %v5453
        %v5457 = vclz %v5456
        %v5458 = vsub.s32 %v5457, 2
        %vm5459 = vcmp.gt.s32.totalorder 0, %v5458
        %v5460 = vsel %vm5459, 0, %v5458
        %v5461 = vsub.s32 32, %v5460
        %v5462 = vshll.u32 %v5453, %v5460
        %v5463 = vshrl.u32 %v5445, %v5461
        %v5464 = vor.u32 %v5462, %v5463
        %v5465 = vsub.s32 4294967266, %v5460
        %v5466 = vadd.s32 %v5465, 127
        %v5467 = vshll.u32 %v5466, 23
        %v5468 = vor.u32 4788187, %v5467
        %v5469 = vand.u32 2147483647, %v5468
        %v5471 = vcvt.s32.f32 %v5464
        %v5472 = vmul.f32 %v5471, %v5469
        %v5473 = vxor.u32 %v5472, 2147483648
        %v5474 = vsel %vm5391, %v5473, %v5472
        %v5475 = vsub.s32 4, %v5451
        %v5476 = vsel %vm5391, %v5475, %v5451
        %v5477 = vsel %vm5390, %v4420, %v5474
        %v5478 = vsel %vm5390, 0, %v5476
        %v5479 = vcosq.f32.pop %v5477
        %v5480 = vsinq.f32.pop %v5477
        %vm5481 = vweird.f32 %v4420
        %v5482 = vadd.s32 %v5478, 3
        %v5483 = vand.u32 %v5482, 3
        %vm5484 = vcmp.lt.s32.totalorder %v5483, 2
        %vm5485 = vcmp.eq.s32.totalorder %v5483, 0
        %v5486 = vxor.u32 %v5480, 2147483648
        %v5487 = vsel %vm5485, %v5479, %v5486
        %vm5488 = vcmp.eq.s32.totalorder %v5483, 2
        %v5489 = vxor.u32 %v5479, 2147483648
        %v5490 = vsel %vm5488, %v5489, %v5480
        %v5491 = vsel %vm5484, %v5487, %v5490
        %v5492 = vsel %vm5481, nan, %v5491
        %v5493 = vand.u32 2147483647, %v4425
        %vm5494 = vcmp.le.f32.partialorder %v5493, 0.7853982
        %vm5495 = vcmp.lt.s32.totalorder %v4425, 0
        %v5496 = vand.u32 %v4425, 2139095040
        %v5497 = vshrl.u32 %v5496, 23
        %v5498 = vsub.s32 %v5497, 127
        %v5499 = vand.u32 2147483647, %v4425
        %v5500 = vand.u32 %v5499, 8388607
        %v5501 = vor.u32 %v5500, 8388608
        %v5502 = vsub.s32 0, %v5501
        %v5503 = vadd.s32 %v5498, 1
        %vm5504 = vcmp.gt.s32.totalorder %v5503, 0
        %v5505 = vsel %vm5504, %v5503, 0
        %v5506 = vshrl.u32 %v5505, 5
        %v5507 = vand.u32 %v5505, 31
        %v5508 = vsub.s32 32, %v5507
        %v5509 = vshrl.u32 683565275, %v5508
        %v5510 = vshll.u32 683565275, %v5507
        %v5511 = vshrl.u32 2475754826, %v5508
        %v5512 = vor.u32 %v5510, %v5511
        %v5513 = vshll.u32 2475754826, %v5507
        %v5514 = vshrl.u32 2131351028, %v5508
        %v5515 = vor.u32 %v5513, %v5514
        %v5516 = vshll.u32 2131351028, %v5507
        %v5517 = vshrl.u32 2102212464, %v5508
        %v5518 = vor.u32 %v5516, %v5517
        %v5519 = vshll.u32 2102212464, %v5507
        %v5520 = vshrl.u32 920167782, %v5508
        %v5521 = vor.u32 %v5519, %v5520
        %v5522 = vshll.u32 920167782, %v5507
        %v5523 = vshrl.u32 1326507024, %v5508
        %v5524 = vor.u32 %v5522, %v5523
        %vm5525 = vcmp.lt.s32.totalorder %v5506, 1
        %vm5526 = vcmp.lt.s32.totalorder %v5506, 2
        %vm5527 = vcmp.lt.s32.totalorder %v5506, 3
        %vm5528 = vcmp.lt.s32.totalorder %v5506, 4
        %v5529 = vsel %vm5525, %v5509, %v5512
        %v5530 = vsel %vm5528, %v5518, 2102212464
        %v5531 = vsel %vm5527, %v5515, %v5530
        %v5532 = vsel %vm5526, %v5529, %v5531
        %v5533 = vsel %vm5525, %v5512, %v5515
        %v5534 = vsel %vm5528, %v5521, 920167782
        %v5535 = vsel %vm5527, %v5518, %v5534
        %v5536 = vsel %vm5526, %v5533, %v5535
        %v5537 = vsel %vm5525, %v5515, %v5518
        %v5538 = vsel %vm5528, %v5524, 1326507024
        %v5539 = vsel %vm5527, %v5521, %v5538
        %v5540 = vsel %vm5526, %v5537, %v5539
        %v5541 = vshll.u32 %v5501, 8
        %v5542 = vmul.u32.u64.compose %v5541, %v5540
        %v5543 = vextract.low.u32 %v5542
        %v5544 = vextract.high.u32 %v5542
        %v5545 = vmul.u32.u64.compose %v5541, %v5536
        %v5546 = vextract.low.u32 %v5545
        %v5547 = vextract.high.u32 %v5545
        %v5548 = vmul.u32 %v5541, %v5532
        %v5549 = vadd.s32 %v5544, %v5546
        %vm5550 = vc.u32 %v5544, %v5546
        %v5551 = vadd.s32 %v5547, 1
        %v5552 = vsel %vm5550, %v5551, %v5547
        %v5553 = vadd.s32 %v5548, %v5552
        %v5554 = vadd.s32 %v5553, 536870912
        %v5555 = vshrl.u32 %v5554, 30
        %v5556 = vshll.u32 %v5555, 30
        %v5557 = vsub.s32 %v5553, %v5556
        %vm5558 = vcmp.lt.s32.totalorder %v5557, 0
        %v5559 = vsub.s32 0, %v5557
        %v5560 = vsel %vm5558, %v5559, %v5557
        %v5561 = vclz %v5560
        %v5562 = vsub.s32 %v5561, 2
        %vm5563 = vcmp.gt.s32.totalorder 0, %v5562
        %v5564 = vsel %vm5563, 0, %v5562
        %v5565 = vsub.s32 32, %v5564
        %v5566 = vshll.u32 %v5557, %v5564
        %v5567 = vshrl.u32 %v5549, %v5565
        %v5568 = vor.u32 %v5566, %v5567
        %v5569 = vsub.s32 4294967266, %v5564
        %v5570 = vadd.s32 %v5569, 127
        %v5571 = vshll.u32 %v5570, 23
        %v5572 = vor.u32 4788187, %v5571
        %v5573 = vand.u32 2147483647, %v5572
        %v5575 = vcvt.s32.f32 %v5568
        %v5576 = vmul.f32 %v5575, %v5573
        %v5577 = vxor.u32 %v5576, 2147483648
        %v5578 = vsel %vm5495, %v5577, %v5576
        %v5579 = vsub.s32 4, %v5555
        %v5580 = vsel %vm5495, %v5579, %v5555
        %v5581 = vsel %vm5494, %v4425, %v5578
        %v5582 = vsel %vm5494, 0, %v5580
        %v5583 = vcosq.f32.pop %v5581
        %v5584 = vsinq.f32.pop %v5581
        %vm5585 = vweird.f32 %v4425
        %v5586 = vadd.s32 %v5582, 3
        %v5587 = vand.u32 %v5586, 3
        %vm5588 = vcmp.lt.s32.totalorder %v5587, 2
        %vm5589 = vcmp.eq.s32.totalorder %v5587, 0
        %v5590 = vxor.u32 %v5584, 2147483648
        %v5591 = vsel %vm5589, %v5583, %v5590
        %vm5592 = vcmp.eq.s32.totalorder %v5587, 2
        %v5593 = vxor.u32 %v5583, 2147483648
        %v5594 = vsel %vm5592, %v5593, %v5584
        %v5595 = vsel %vm5588, %v5591, %v5594
        %v5596 = vsel %vm5585, nan, %v5595
        %v5597 = vand.u32 2147483647, %v4430
        %vm5598 = vcmp.le.f32.partialorder %v5597, 0.7853982
        %vm5599 = vcmp.lt.s32.totalorder %v4430, 0
        %v5600 = vand.u32 %v4430, 2139095040
        %v5601 = vshrl.u32 %v5600, 23
        %v5602 = vsub.s32 %v5601, 127
        %v5603 = vand.u32 2147483647, %v4430
        %v5604 = vand.u32 %v5603, 8388607
        %v5605 = vor.u32 %v5604, 8388608
        %v5606 = vsub.s32 0, %v5605
        %v5607 = vadd.s32 %v5602, 1
        %vm5608 = vcmp.gt.s32.totalorder %v5607, 0
        %v5609 = vsel %vm5608, %v5607, 0
        %v5610 = vshrl.u32 %v5609, 5
        %v5611 = vand.u32 %v5609, 31
        %v5612 = vsub.s32 32, %v5611
        %v5613 = vshrl.u32 683565275, %v5612
        %v5614 = vshll.u32 683565275, %v5611
        %v5615 = vshrl.u32 2475754826, %v5612
        %v5616 = vor.u32 %v5614, %v5615
        %v5617 = vshll.u32 2475754826, %v5611
        %v5618 = vshrl.u32 2131351028, %v5612
        %v5619 = vor.u32 %v5617, %v5618
        %v5620 = vshll.u32 2131351028, %v5611
        %v5621 = vshrl.u32 2102212464, %v5612
        %v5622 = vor.u32 %v5620, %v5621
        %v5623 = vshll.u32 2102212464, %v5611
        %v5624 = vshrl.u32 920167782, %v5612
        %v5625 = vor.u32 %v5623, %v5624
        %v5626 = vshll.u32 920167782, %v5611
        %v5627 = vshrl.u32 1326507024, %v5612
        %v5628 = vor.u32 %v5626, %v5627
        %vm5629 = vcmp.lt.s32.totalorder %v5610, 1
        %vm5630 = vcmp.lt.s32.totalorder %v5610, 2
        %vm5631 = vcmp.lt.s32.totalorder %v5610, 3
        %vm5632 = vcmp.lt.s32.totalorder %v5610, 4
        %v5633 = vsel %vm5629, %v5613, %v5616
        %v5634 = vsel %vm5632, %v5622, 2102212464
        %v5635 = vsel %vm5631, %v5619, %v5634
        %v5636 = vsel %vm5630, %v5633, %v5635
        %v5637 = vsel %vm5629, %v5616, %v5619
        %v5638 = vsel %vm5632, %v5625, 920167782
        %v5639 = vsel %vm5631, %v5622, %v5638
        %v5640 = vsel %vm5630, %v5637, %v5639
        %v5641 = vsel %vm5629, %v5619, %v5622
        %v5642 = vsel %vm5632, %v5628, 1326507024
        %v5643 = vsel %vm5631, %v5625, %v5642
        %v5644 = vsel %vm5630, %v5641, %v5643
        %v5645 = vshll.u32 %v5605, 8
        %v5646 = vmul.u32.u64.compose %v5645, %v5644
        %v5647 = vextract.low.u32 %v5646
        %v5648 = vextract.high.u32 %v5646
        %v5649 = vmul.u32.u64.compose %v5645, %v5640
        %v5650 = vextract.low.u32 %v5649
        %v5651 = vextract.high.u32 %v5649
        %v5652 = vmul.u32 %v5645, %v5636
        %v5653 = vadd.s32 %v5648, %v5650
        %vm5654 = vc.u32 %v5648, %v5650
        %v5655 = vadd.s32 %v5651, 1
        %v5656 = vsel %vm5654, %v5655, %v5651
        %v5657 = vadd.s32 %v5652, %v5656
        %v5658 = vadd.s32 %v5657, 536870912
        %v5659 = vshrl.u32 %v5658, 30
        %v5660 = vshll.u32 %v5659, 30
        %v5661 = vsub.s32 %v5657, %v5660
        %vm5662 = vcmp.lt.s32.totalorder %v5661, 0
        %v5663 = vsub.s32 0, %v5661
        %v5664 = vsel %vm5662, %v5663, %v5661
        %v5665 = vclz %v5664
        %v5666 = vsub.s32 %v5665, 2
        %vm5667 = vcmp.gt.s32.totalorder 0, %v5666
        %v5668 = vsel %vm5667, 0, %v5666
        %v5669 = vsub.s32 32, %v5668
        %v5670 = vshll.u32 %v5661, %v5668
        %v5671 = vshrl.u32 %v5653, %v5669
        %v5672 = vor.u32 %v5670, %v5671
        %v5673 = vsub.s32 4294967266, %v5668
        %v5674 = vadd.s32 %v5673, 127
        %v5675 = vshll.u32 %v5674, 23
        %v5676 = vor.u32 4788187, %v5675
        %v5677 = vand.u32 2147483647, %v5676
        %v5679 = vcvt.s32.f32 %v5672
        %v5680 = vmul.f32 %v5679, %v5677
        %v5681 = vxor.u32 %v5680, 2147483648
        %v5682 = vsel %vm5599, %v5681, %v5680
        %v5683 = vsub.s32 4, %v5659
        %v5684 = vsel %vm5599, %v5683, %v5659
        %v5685 = vsel %vm5598, %v4430, %v5682
        %v5686 = vsel %vm5598, 0, %v5684
        %v5687 = vcosq.f32.pop %v5685
        %v5688 = vsinq.f32.pop %v5685
        %vm5689 = vweird.f32 %v4430
        %v5690 = vadd.s32 %v5686, 3
        %v5691 = vand.u32 %v5690, 3
        %vm5692 = vcmp.lt.s32.totalorder %v5691, 2
        %vm5693 = vcmp.eq.s32.totalorder %v5691, 0
        %v5694 = vxor.u32 %v5688, 2147483648
        %v5695 = vsel %vm5693, %v5687, %v5694
        %vm5696 = vcmp.eq.s32.totalorder %v5691, 2
        %v5697 = vxor.u32 %v5687, 2147483648
        %v5698 = vsel %vm5696, %v5697, %v5688
        %v5699 = vsel %vm5692, %v5695, %v5698
        %v5700 = vsel %vm5689, nan, %v5699
        %v5701 = vand.u32 2147483647, %v4435
        %vm5702 = vcmp.le.f32.partialorder %v5701, 0.7853982
        %vm5703 = vcmp.lt.s32.totalorder %v4435, 0
        %v5704 = vand.u32 %v4435, 2139095040
        %v5705 = vshrl.u32 %v5704, 23
        %v5706 = vsub.s32 %v5705, 127
        %v5707 = vand.u32 2147483647, %v4435
        %v5708 = vand.u32 %v5707, 8388607
        %v5709 = vor.u32 %v5708, 8388608
        %v5710 = vsub.s32 0, %v5709
        %v5711 = vadd.s32 %v5706, 1
        %vm5712 = vcmp.gt.s32.totalorder %v5711, 0
        %v5713 = vsel %vm5712, %v5711, 0
        %v5714 = vshrl.u32 %v5713, 5
        %v5715 = vand.u32 %v5713, 31
        %v5716 = vsub.s32 32, %v5715
        %v5717 = vshrl.u32 683565275, %v5716
        %v5718 = vshll.u32 683565275, %v5715
        %v5719 = vshrl.u32 2475754826, %v5716
        %v5720 = vor.u32 %v5718, %v5719
        %v5721 = vshll.u32 2475754826, %v5715
        %v5722 = vshrl.u32 2131351028, %v5716
        %v5723 = vor.u32 %v5721, %v5722
        %v5724 = vshll.u32 2131351028, %v5715
        %v5725 = vshrl.u32 2102212464, %v5716
        %v5726 = vor.u32 %v5724, %v5725
        %v5727 = vshll.u32 2102212464, %v5715
        %v5728 = vshrl.u32 920167782, %v5716
        %v5729 = vor.u32 %v5727, %v5728
        %v5730 = vshll.u32 920167782, %v5715
        %v5731 = vshrl.u32 1326507024, %v5716
        %v5732 = vor.u32 %v5730, %v5731
        %vm5733 = vcmp.lt.s32.totalorder %v5714, 1
        %vm5734 = vcmp.lt.s32.totalorder %v5714, 2
        %vm5735 = vcmp.lt.s32.totalorder %v5714, 3
        %vm5736 = vcmp.lt.s32.totalorder %v5714, 4
        %v5737 = vsel %vm5733, %v5717, %v5720
        %v5738 = vsel %vm5736, %v5726, 2102212464
        %v5739 = vsel %vm5735, %v5723, %v5738
        %v5740 = vsel %vm5734, %v5737, %v5739
        %v5741 = vsel %vm5733, %v5720, %v5723
        %v5742 = vsel %vm5736, %v5729, 920167782
        %v5743 = vsel %vm5735, %v5726, %v5742
        %v5744 = vsel %vm5734, %v5741, %v5743
        %v5745 = vsel %vm5733, %v5723, %v5726
        %v5746 = vsel %vm5736, %v5732, 1326507024
        %v5747 = vsel %vm5735, %v5729, %v5746
        %v5748 = vsel %vm5734, %v5745, %v5747
        %v5749 = vshll.u32 %v5709, 8
        %v5750 = vmul.u32.u64.compose %v5749, %v5748
        %v5751 = vextract.low.u32 %v5750
        %v5752 = vextract.high.u32 %v5750
        %v5753 = vmul.u32.u64.compose %v5749, %v5744
        %v5754 = vextract.low.u32 %v5753
        %v5755 = vextract.high.u32 %v5753
        %v5756 = vmul.u32 %v5749, %v5740
        %v5757 = vadd.s32 %v5752, %v5754
        %vm5758 = vc.u32 %v5752, %v5754
        %v5759 = vadd.s32 %v5755, 1
        %v5760 = vsel %vm5758, %v5759, %v5755
        %v5761 = vadd.s32 %v5756, %v5760
        %v5762 = vadd.s32 %v5761, 536870912
        %v5763 = vshrl.u32 %v5762, 30
        %v5764 = vshll.u32 %v5763, 30
        %v5765 = vsub.s32 %v5761, %v5764
        %vm5766 = vcmp.lt.s32.totalorder %v5765, 0
        %v5767 = vsub.s32 0, %v5765
        %v5768 = vsel %vm5766, %v5767, %v5765
        %v5769 = vclz %v5768
        %v5770 = vsub.s32 %v5769, 2
        %vm5771 = vcmp.gt.s32.totalorder 0, %v5770
        %v5772 = vsel %vm5771, 0, %v5770
        %v5773 = vsub.s32 32, %v5772
        %v5774 = vshll.u32 %v5765, %v5772
        %v5775 = vshrl.u32 %v5757, %v5773
        %v5776 = vor.u32 %v5774, %v5775
        %v5777 = vsub.s32 4294967266, %v5772
        %v5778 = vadd.s32 %v5777, 127
        %v5779 = vshll.u32 %v5778, 23
        %v5780 = vor.u32 4788187, %v5779
        %v5781 = vand.u32 2147483647, %v5780
        %v5783 = vcvt.s32.f32 %v5776
        %v5784 = vmul.f32 %v5783, %v5781
        %v5785 = vxor.u32 %v5784, 2147483648
        %v5786 = vsel %vm5703, %v5785, %v5784
        %v5787 = vsub.s32 4, %v5763
        %v5788 = vsel %vm5703, %v5787, %v5763
        %v5789 = vsel %vm5702, %v4435, %v5786
        %v5790 = vsel %vm5702, 0, %v5788
        %v5791 = vcosq.f32.pop %v5789
        %v5792 = vsinq.f32.pop %v5789
        %vm5793 = vweird.f32 %v4435
        %v5794 = vadd.s32 %v5790, 3
        %v5795 = vand.u32 %v5794, 3
        %vm5796 = vcmp.lt.s32.totalorder %v5795, 2
        %vm5797 = vcmp.eq.s32.totalorder %v5795, 0
        %v5798 = vxor.u32 %v5792, 2147483648
        %v5799 = vsel %vm5797, %v5791, %v5798
        %vm5800 = vcmp.eq.s32.totalorder %v5795, 2
        %v5801 = vxor.u32 %v5791, 2147483648
        %v5802 = vsel %vm5800, %v5801, %v5792
        %v5803 = vsel %vm5796, %v5799, %v5802
        %v5804 = vsel %vm5793, nan, %v5803
        %v5805 = vand.u32 2147483647, %v4440
        %vm5806 = vcmp.le.f32.partialorder %v5805, 0.7853982
        %vm5807 = vcmp.lt.s32.totalorder %v4440, 0
        %v5808 = vand.u32 %v4440, 2139095040
        %v5809 = vshrl.u32 %v5808, 23
        %v5810 = vsub.s32 %v5809, 127
        %v5811 = vand.u32 2147483647, %v4440
        %v5812 = vand.u32 %v5811, 8388607
        %v5813 = vor.u32 %v5812, 8388608
        %v5814 = vsub.s32 0, %v5813
        %v5815 = vadd.s32 %v5810, 1
        %vm5816 = vcmp.gt.s32.totalorder %v5815, 0
        %v5817 = vsel %vm5816, %v5815, 0
        %v5818 = vshrl.u32 %v5817, 5
        %v5819 = vand.u32 %v5817, 31
        %v5820 = vsub.s32 32, %v5819
        %v5821 = vshrl.u32 683565275, %v5820
        %v5822 = vshll.u32 683565275, %v5819
        %v5823 = vshrl.u32 2475754826, %v5820
        %v5824 = vor.u32 %v5822, %v5823
        %v5825 = vshll.u32 2475754826, %v5819
        %v5826 = vshrl.u32 2131351028, %v5820
        %v5827 = vor.u32 %v5825, %v5826
        %v5828 = vshll.u32 2131351028, %v5819
        %v5829 = vshrl.u32 2102212464, %v5820
        %v5830 = vor.u32 %v5828, %v5829
        %v5831 = vshll.u32 2102212464, %v5819
        %v5832 = vshrl.u32 920167782, %v5820
        %v5833 = vor.u32 %v5831, %v5832
        %v5834 = vshll.u32 920167782, %v5819
        %v5835 = vshrl.u32 1326507024, %v5820
        %v5836 = vor.u32 %v5834, %v5835
        %vm5837 = vcmp.lt.s32.totalorder %v5818, 1
        %vm5838 = vcmp.lt.s32.totalorder %v5818, 2
        %vm5839 = vcmp.lt.s32.totalorder %v5818, 3
        %vm5840 = vcmp.lt.s32.totalorder %v5818, 4
        %v5841 = vsel %vm5837, %v5821, %v5824
        %v5842 = vsel %vm5840, %v5830, 2102212464
        %v5843 = vsel %vm5839, %v5827, %v5842
        %v5844 = vsel %vm5838, %v5841, %v5843
        %v5845 = vsel %vm5837, %v5824, %v5827
        %v5846 = vsel %vm5840, %v5833, 920167782
        %v5847 = vsel %vm5839, %v5830, %v5846
        %v5848 = vsel %vm5838, %v5845, %v5847
        %v5849 = vsel %vm5837, %v5827, %v5830
        %v5850 = vsel %vm5840, %v5836, 1326507024
        %v5851 = vsel %vm5839, %v5833, %v5850
        %v5852 = vsel %vm5838, %v5849, %v5851
        %v5853 = vshll.u32 %v5813, 8
        %v5854 = vmul.u32.u64.compose %v5853, %v5852
        %v5855 = vextract.low.u32 %v5854
        %v5856 = vextract.high.u32 %v5854
        %v5857 = vmul.u32.u64.compose %v5853, %v5848
        %v5858 = vextract.low.u32 %v5857
        %v5859 = vextract.high.u32 %v5857
        %v5860 = vmul.u32 %v5853, %v5844
        %v5861 = vadd.s32 %v5856, %v5858
        %vm5862 = vc.u32 %v5856, %v5858
        %v5863 = vadd.s32 %v5859, 1
        %v5864 = vsel %vm5862, %v5863, %v5859
        %v5865 = vadd.s32 %v5860, %v5864
        %v5866 = vadd.s32 %v5865, 536870912
        %v5867 = vshrl.u32 %v5866, 30
        %v5868 = vshll.u32 %v5867, 30
        %v5869 = vsub.s32 %v5865, %v5868
        %vm5870 = vcmp.lt.s32.totalorder %v5869, 0
        %v5871 = vsub.s32 0, %v5869
        %v5872 = vsel %vm5870, %v5871, %v5869
        %v5873 = vclz %v5872
        %v5874 = vsub.s32 %v5873, 2
        %vm5875 = vcmp.gt.s32.totalorder 0, %v5874
        %v5876 = vsel %vm5875, 0, %v5874
        %v5877 = vsub.s32 32, %v5876
        %v5878 = vshll.u32 %v5869, %v5876
        %v5879 = vshrl.u32 %v5861, %v5877
        %v5880 = vor.u32 %v5878, %v5879
        %v5881 = vsub.s32 4294967266, %v5876
        %v5882 = vadd.s32 %v5881, 127
        %v5883 = vshll.u32 %v5882, 23
        %v5884 = vor.u32 4788187, %v5883
        %v5885 = vand.u32 2147483647, %v5884
        %v5887 = vcvt.s32.f32 %v5880
        %v5888 = vmul.f32 %v5887, %v5885
        %v5889 = vxor.u32 %v5888, 2147483648
        %v5890 = vsel %vm5807, %v5889, %v5888
        %v5891 = vsub.s32 4, %v5867
        %v5892 = vsel %vm5807, %v5891, %v5867
        %v5893 = vsel %vm5806, %v4440, %v5890
        %v5894 = vsel %vm5806, 0, %v5892
        %v5895 = vcosq.f32.pop %v5893
        %v5896 = vsinq.f32.pop %v5893
        %vm5897 = vweird.f32 %v4440
        %v5898 = vadd.s32 %v5894, 3
        %v5899 = vand.u32 %v5898, 3
        %vm5900 = vcmp.lt.s32.totalorder %v5899, 2
        %vm5901 = vcmp.eq.s32.totalorder %v5899, 0
        %v5902 = vxor.u32 %v5896, 2147483648
        %v5903 = vsel %vm5901, %v5895, %v5902
        %vm5904 = vcmp.eq.s32.totalorder %v5899, 2
        %v5905 = vxor.u32 %v5895, 2147483648
        %v5906 = vsel %vm5904, %v5905, %v5896
        %v5907 = vsel %vm5900, %v5903, %v5906
        %v5908 = vsel %vm5897, nan, %v5907
        %v5909 = vand.u32 2147483647, %v4445
        %vm5910 = vcmp.le.f32.partialorder %v5909, 0.7853982
        %vm5911 = vcmp.lt.s32.totalorder %v4445, 0
        %v5912 = vand.u32 %v4445, 2139095040
        %v5913 = vshrl.u32 %v5912, 23
        %v5914 = vsub.s32 %v5913, 127
        %v5915 = vand.u32 2147483647, %v4445
        %v5916 = vand.u32 %v5915, 8388607
        %v5917 = vor.u32 %v5916, 8388608
        %v5918 = vsub.s32 0, %v5917
        %v5919 = vadd.s32 %v5914, 1
        %vm5920 = vcmp.gt.s32.totalorder %v5919, 0
        %v5921 = vsel %vm5920, %v5919, 0
        %v5922 = vshrl.u32 %v5921, 5
        %v5923 = vand.u32 %v5921, 31
        %v5924 = vsub.s32 32, %v5923
        %v5925 = vshrl.u32 683565275, %v5924
        %v5926 = vshll.u32 683565275, %v5923
        %v5927 = vshrl.u32 2475754826, %v5924
        %v5928 = vor.u32 %v5926, %v5927
        %v5929 = vshll.u32 2475754826, %v5923
        %v5930 = vshrl.u32 2131351028, %v5924
        %v5931 = vor.u32 %v5929, %v5930
        %v5932 = vshll.u32 2131351028, %v5923
        %v5933 = vshrl.u32 2102212464, %v5924
        %v5934 = vor.u32 %v5932, %v5933
        %v5935 = vshll.u32 2102212464, %v5923
        %v5936 = vshrl.u32 920167782, %v5924
        %v5937 = vor.u32 %v5935, %v5936
        %v5938 = vshll.u32 920167782, %v5923
        %v5939 = vshrl.u32 1326507024, %v5924
        %v5940 = vor.u32 %v5938, %v5939
        %vm5941 = vcmp.lt.s32.totalorder %v5922, 1
        %vm5942 = vcmp.lt.s32.totalorder %v5922, 2
        %vm5943 = vcmp.lt.s32.totalorder %v5922, 3
        %vm5944 = vcmp.lt.s32.totalorder %v5922, 4
        %v5945 = vsel %vm5941, %v5925, %v5928
        %v5946 = vsel %vm5944, %v5934, 2102212464
        %v5947 = vsel %vm5943, %v5931, %v5946
        %v5948 = vsel %vm5942, %v5945, %v5947
        %v5949 = vsel %vm5941, %v5928, %v5931
        %v5950 = vsel %vm5944, %v5937, 920167782
        %v5951 = vsel %vm5943, %v5934, %v5950
        %v5952 = vsel %vm5942, %v5949, %v5951
        %v5953 = vsel %vm5941, %v5931, %v5934
        %v5954 = vsel %vm5944, %v5940, 1326507024
        %v5955 = vsel %vm5943, %v5937, %v5954
        %v5956 = vsel %vm5942, %v5953, %v5955
        %v5957 = vshll.u32 %v5917, 8
        %v5958 = vmul.u32.u64.compose %v5957, %v5956
        %v5959 = vextract.low.u32 %v5958
        %v5960 = vextract.high.u32 %v5958
        %v5961 = vmul.u32.u64.compose %v5957, %v5952
        %v5962 = vextract.low.u32 %v5961
        %v5963 = vextract.high.u32 %v5961
        %v5964 = vmul.u32 %v5957, %v5948
        %v5965 = vadd.s32 %v5960, %v5962
        %vm5966 = vc.u32 %v5960, %v5962
        %v5967 = vadd.s32 %v5963, 1
        %v5968 = vsel %vm5966, %v5967, %v5963
        %v5969 = vadd.s32 %v5964, %v5968
        %v5970 = vadd.s32 %v5969, 536870912
        %v5971 = vshrl.u32 %v5970, 30
        %v5972 = vshll.u32 %v5971, 30
        %v5973 = vsub.s32 %v5969, %v5972
        %vm5974 = vcmp.lt.s32.totalorder %v5973, 0
        %v5975 = vsub.s32 0, %v5973
        %v5976 = vsel %vm5974, %v5975, %v5973
        %v5977 = vclz %v5976
        %v5978 = vsub.s32 %v5977, 2
        %vm5979 = vcmp.gt.s32.totalorder 0, %v5978
        %v5980 = vsel %vm5979, 0, %v5978
        %v5981 = vsub.s32 32, %v5980
        %v5982 = vshll.u32 %v5973, %v5980
        %v5983 = vshrl.u32 %v5965, %v5981
        %v5984 = vor.u32 %v5982, %v5983
        %v5985 = vsub.s32 4294967266, %v5980
        %v5986 = vadd.s32 %v5985, 127
        %v5987 = vshll.u32 %v5986, 23
        %v5988 = vor.u32 4788187, %v5987
        %v5989 = vand.u32 2147483647, %v5988
        %v5991 = vcvt.s32.f32 %v5984
        %v5992 = vmul.f32 %v5991, %v5989
        %v5993 = vxor.u32 %v5992, 2147483648
        %v5994 = vsel %vm5911, %v5993, %v5992
        %v5995 = vsub.s32 4, %v5971
        %v5996 = vsel %vm5911, %v5995, %v5971
        %v5997 = vsel %vm5910, %v4445, %v5994
        %v5998 = vsel %vm5910, 0, %v5996
        %v5999 = vcosq.f32.pop %v5997
        %v6000 = vsinq.f32.pop %v5997
        %vm6001 = vweird.f32 %v4445
        %v6002 = vadd.s32 %v5998, 3
        %v6003 = vand.u32 %v6002, 3
        %vm6004 = vcmp.lt.s32.totalorder %v6003, 2
        %vm6005 = vcmp.eq.s32.totalorder %v6003, 0
        %v6006 = vxor.u32 %v6000, 2147483648
        %v6007 = vsel %vm6005, %v5999, %v6006
        %vm6008 = vcmp.eq.s32.totalorder %v6003, 2
        %v6009 = vxor.u32 %v5999, 2147483648
        %v6010 = vsel %vm6008, %v6009, %v6000
        %v6011 = vsel %vm6004, %v6007, %v6010
        %v6012 = vsel %vm6001, nan, %v6011
        %v6013 = vand.u32 2147483647, %v4450
        %vm6014 = vcmp.le.f32.partialorder %v6013, 0.7853982
        %vm6015 = vcmp.lt.s32.totalorder %v4450, 0
        %v6016 = vand.u32 %v4450, 2139095040
        %v6017 = vshrl.u32 %v6016, 23
        %v6018 = vsub.s32 %v6017, 127
        %v6019 = vand.u32 2147483647, %v4450
        %v6020 = vand.u32 %v6019, 8388607
        %v6021 = vor.u32 %v6020, 8388608
        %v6022 = vsub.s32 0, %v6021
        %v6023 = vadd.s32 %v6018, 1
        %vm6024 = vcmp.gt.s32.totalorder %v6023, 0
        %v6025 = vsel %vm6024, %v6023, 0
        %v6026 = vshrl.u32 %v6025, 5
        %v6027 = vand.u32 %v6025, 31
        %v6028 = vsub.s32 32, %v6027
        %v6029 = vshrl.u32 683565275, %v6028
        %v6030 = vshll.u32 683565275, %v6027
        %v6031 = vshrl.u32 2475754826, %v6028
        %v6032 = vor.u32 %v6030, %v6031
        %v6033 = vshll.u32 2475754826, %v6027
        %v6034 = vshrl.u32 2131351028, %v6028
        %v6035 = vor.u32 %v6033, %v6034
        %v6036 = vshll.u32 2131351028, %v6027
        %v6037 = vshrl.u32 2102212464, %v6028
        %v6038 = vor.u32 %v6036, %v6037
        %v6039 = vshll.u32 2102212464, %v6027
        %v6040 = vshrl.u32 920167782, %v6028
        %v6041 = vor.u32 %v6039, %v6040
        %v6042 = vshll.u32 920167782, %v6027
        %v6043 = vshrl.u32 1326507024, %v6028
        %v6044 = vor.u32 %v6042, %v6043
        %vm6045 = vcmp.lt.s32.totalorder %v6026, 1
        %vm6046 = vcmp.lt.s32.totalorder %v6026, 2
        %vm6047 = vcmp.lt.s32.totalorder %v6026, 3
        %vm6048 = vcmp.lt.s32.totalorder %v6026, 4
        %v6049 = vsel %vm6045, %v6029, %v6032
        %v6050 = vsel %vm6048, %v6038, 2102212464
        %v6051 = vsel %vm6047, %v6035, %v6050
        %v6052 = vsel %vm6046, %v6049, %v6051
        %v6053 = vsel %vm6045, %v6032, %v6035
        %v6054 = vsel %vm6048, %v6041, 920167782
        %v6055 = vsel %vm6047, %v6038, %v6054
        %v6056 = vsel %vm6046, %v6053, %v6055
        %v6057 = vsel %vm6045, %v6035, %v6038
        %v6058 = vsel %vm6048, %v6044, 1326507024
        %v6059 = vsel %vm6047, %v6041, %v6058
        %v6060 = vsel %vm6046, %v6057, %v6059
        %v6061 = vshll.u32 %v6021, 8
        %v6062 = vmul.u32.u64.compose %v6061, %v6060
        %v6063 = vextract.low.u32 %v6062
        %v6064 = vextract.high.u32 %v6062
        %v6065 = vmul.u32.u64.compose %v6061, %v6056
        %v6066 = vextract.low.u32 %v6065
        %v6067 = vextract.high.u32 %v6065
        %v6068 = vmul.u32 %v6061, %v6052
        %v6069 = vadd.s32 %v6064, %v6066
        %vm6070 = vc.u32 %v6064, %v6066
        %v6071 = vadd.s32 %v6067, 1
        %v6072 = vsel %vm6070, %v6071, %v6067
        %v6073 = vadd.s32 %v6068, %v6072
        %v6074 = vadd.s32 %v6073, 536870912
        %v6075 = vshrl.u32 %v6074, 30
        %v6076 = vshll.u32 %v6075, 30
        %v6077 = vsub.s32 %v6073, %v6076
        %vm6078 = vcmp.lt.s32.totalorder %v6077, 0
        %v6079 = vsub.s32 0, %v6077
        %v6080 = vsel %vm6078, %v6079, %v6077
        %v6081 = vclz %v6080
        %v6082 = vsub.s32 %v6081, 2
        %vm6083 = vcmp.gt.s32.totalorder 0, %v6082
        %v6084 = vsel %vm6083, 0, %v6082
        %v6085 = vsub.s32 32, %v6084
        %v6086 = vshll.u32 %v6077, %v6084
        %v6087 = vshrl.u32 %v6069, %v6085
        %v6088 = vor.u32 %v6086, %v6087
        %v6089 = vsub.s32 4294967266, %v6084
        %v6090 = vadd.s32 %v6089, 127
        %v6091 = vshll.u32 %v6090, 23
        %v6092 = vor.u32 4788187, %v6091
        %v6093 = vand.u32 2147483647, %v6092
        %v6095 = vcvt.s32.f32 %v6088
        %v6096 = vmul.f32 %v6095, %v6093
        %v6097 = vxor.u32 %v6096, 2147483648
        %v6098 = vsel %vm6015, %v6097, %v6096
        %v6099 = vsub.s32 4, %v6075
        %v6100 = vsel %vm6015, %v6099, %v6075
        %v6101 = vsel %vm6014, %v4450, %v6098
        %v6102 = vsel %vm6014, 0, %v6100
        %v6103 = vcosq.f32.pop %v6101
        %v6104 = vsinq.f32.pop %v6101
        %vm6105 = vweird.f32 %v4450
        %v6106 = vadd.s32 %v6102, 3
        %v6107 = vand.u32 %v6106, 3
        %vm6108 = vcmp.lt.s32.totalorder %v6107, 2
        %vm6109 = vcmp.eq.s32.totalorder %v6107, 0
        %v6110 = vxor.u32 %v6104, 2147483648
        %v6111 = vsel %vm6109, %v6103, %v6110
        %vm6112 = vcmp.eq.s32.totalorder %v6107, 2
        %v6113 = vxor.u32 %v6103, 2147483648
        %v6114 = vsel %vm6112, %v6113, %v6104
        %v6115 = vsel %vm6108, %v6111, %v6114
        %v6116 = vsel %vm6105, nan, %v6115
        %v6117 = vld [vmem:[%s7] sm:$0xff]
        %v6118 = vld [vmem:[%s7 + $0x8] sm:$0xff]
        %v6119 = vld [vmem:[%s7 + $0x10] sm:$0xff]
        %v6120 = vld [vmem:[%s7 + $0x18] sm:$0xff]
        %v6121 = vld [vmem:[%s7 + $0x20] sm:$0xff]
        %v6122 = vld [vmem:[%s7 + $0x28] sm:$0xff]
        %v6123 = vld [vmem:[%s7 + $0x30] sm:$0xff]
        %v6124 = vld [vmem:[%s7 + $0x38] sm:$0xff]
        %v6125 = vld [vmem:[%s7 + $0x40] sm:$0xff]
        %v6126 = vld [vmem:[%s7 + $0x48] sm:$0xff]
        %v6127 = vld [vmem:[%s7 + $0x50] sm:$0xff]
        %v6128 = vld [vmem:[%s7 + $0x58] sm:$0xff]
        %v6129 = vld [vmem:[%s7 + $0x60] sm:$0xff]
        %v6130 = vld [vmem:[%s7 + $0x68] sm:$0xff]
        %v6131 = vld [vmem:[%s7 + $0x70] sm:$0xff]
        %v6132 = vld [vmem:[%s7 + $0x78] sm:$0xff]
        %v6133 = vld [vmem:[%s8] sm:$0xff]
        %v6134 = vld [vmem:[%s8 + $0x8] sm:$0xff]
        %v6135 = vld [vmem:[%s8 + $0x10] sm:$0xff]
        %v6136 = vld [vmem:[%s8 + $0x18] sm:$0xff]
        %v6137 = vld [vmem:[%s8 + $0x20] sm:$0xff]
        %v6138 = vld [vmem:[%s8 + $0x28] sm:$0xff]
        %v6139 = vld [vmem:[%s8 + $0x30] sm:$0xff]
        %v6140 = vld [vmem:[%s8 + $0x38] sm:$0xff]
        %v6141 = vld [vmem:[%s8 + $0x40] sm:$0xff]
        %v6142 = vld [vmem:[%s8 + $0x48] sm:$0xff]
        %v6143 = vld [vmem:[%s8 + $0x50] sm:$0xff]
        %v6144 = vld [vmem:[%s8 + $0x58] sm:$0xff]
        %v6145 = vld [vmem:[%s8 + $0x60] sm:$0xff]
        %v6146 = vld [vmem:[%s8 + $0x68] sm:$0xff]
        %v6147 = vld [vmem:[%s8 + $0x70] sm:$0xff]
        %v6148 = vld [vmem:[%s8 + $0x78] sm:$0xff]
        %6150 = vset.pattern.permute.xlu0 0
        %6151 = vperm.xlu0 %6150, %v6133
        %v6152 = vpop.permute.xlu0 %6151
        %6155 = vset.pattern.permute.xlu0 0
        %6156 = vperm.xlu0 %6155, %v6134
        %v6157 = vpop.permute.xlu0 %6156
        %6160 = vset.pattern.permute.xlu0 0
        %6161 = vperm.xlu0 %6160, %v6135
        %v6162 = vpop.permute.xlu0 %6161
        %6165 = vset.pattern.permute.xlu0 0
        %6166 = vperm.xlu0 %6165, %v6136
        %v6167 = vpop.permute.xlu0 %6166
        %6170 = vset.pattern.permute.xlu0 0
        %6171 = vperm.xlu0 %6170, %v6137
        %v6172 = vpop.permute.xlu0 %6171
        %6175 = vset.pattern.permute.xlu0 0
        %6176 = vperm.xlu0 %6175, %v6138
        %v6177 = vpop.permute.xlu0 %6176
        %6180 = vset.pattern.permute.xlu0 0
        %6181 = vperm.xlu0 %6180, %v6139
        %v6182 = vpop.permute.xlu0 %6181
        %6185 = vset.pattern.permute.xlu0 0
        %6186 = vperm.xlu0 %6185, %v6140
        %v6187 = vpop.permute.xlu0 %6186
        %6190 = vset.pattern.permute.xlu0 0
        %6191 = vperm.xlu0 %6190, %v6141
        %v6192 = vpop.permute.xlu0 %6191
        %6195 = vset.pattern.permute.xlu0 0
        %6196 = vperm.xlu0 %6195, %v6142
        %v6197 = vpop.permute.xlu0 %6196
        %6200 = vset.pattern.permute.xlu0 0
        %6201 = vperm.xlu0 %6200, %v6143
        %v6202 = vpop.permute.xlu0 %6201
        %6205 = vset.pattern.permute.xlu0 0
        %6206 = vperm.xlu0 %6205, %v6144
        %v6207 = vpop.permute.xlu0 %6206
        %6210 = vset.pattern.permute.xlu0 0
        %6211 = vperm.xlu0 %6210, %v6145
        %v6212 = vpop.permute.xlu0 %6211
        %6215 = vset.pattern.permute.xlu0 0
        %6216 = vperm.xlu0 %6215, %v6146
        %v6217 = vpop.permute.xlu0 %6216
        %6220 = vset.pattern.permute.xlu0 0
        %6221 = vperm.xlu0 %6220, %v6147
        %v6222 = vpop.permute.xlu0 %6221
        %6225 = vset.pattern.permute.xlu0 0
        %6226 = vperm.xlu0 %6225, %v6148
        %v6227 = vpop.permute.xlu0 %6226
        %6229 = vmatprep.subr.mxu0 0.0
        %6230 = vmatpush1.msra.mxu0 %v4556
        %6231 = vmatprep.subr.mxu0 0.0
        %6232 = vmatpush1.msra.mxu0 %v4660
        %6233 = vmatprep.subr.mxu0 0.0
        %6234 = vmatpush1.msra.mxu0 %v4764
        %6235 = vmatprep.subr.mxu0 0.0
        %6236 = vmatpush1.msra.mxu0 %v4868
        %6237 = vmatprep.subr.mxu0 0.0
        %6238 = vmatpush1.msra.mxu0 %v4972
        %6239 = vmatprep.subr.mxu0 0.0
        %6240 = vmatpush1.msra.mxu0 %v5076
        %6241 = vmatprep.subr.mxu0 0.0
        %6242 = vmatpush1.msra.mxu0 %v5180
        %6243 = vmatprep.subr.mxu0 0.0
        %6244 = vmatpush1.msra.mxu0 %v5284
        %6245 = vmatprep.subr.mxu0 0.0
        %6246 = vmatpush1.msra.mxu0 %v5388
        %6247 = vmatprep.subr.mxu0 0.0
        %6248 = vmatpush1.msra.mxu0 %v5492
        %6249 = vmatprep.subr.mxu0 0.0
        %6250 = vmatpush1.msra.mxu0 %v5596
        %6251 = vmatprep.subr.mxu0 0.0
        %6252 = vmatpush1.msra.mxu0 %v5700
        %6253 = vmatprep.subr.mxu0 0.0
        %6254 = vmatpush1.msra.mxu0 %v5804
        %6255 = vmatprep.subr.mxu0 0.0
        %6256 = vmatpush1.msra.mxu0 %v5908
        %6257 = vmatprep.subr.mxu0 0.0
        %6258 = vmatpush1.msra.mxu0 %v6012
        %6259 = vmatprep.subr.mxu0 0.0
        %6260 = vmatpush1.msra.mxu0 %v6116
        %6261 = vmatprep.subr.mxu0 0.0
        %6262 = vmatpush1.msra.mxu0 0.0
        %6263 = vmatprep.subr.mxu0 0.0
        %6264 = vmatpush1.msra.mxu0 0.0
        %6265 = vmatprep.subr.mxu0 0.0
        %6266 = vmatpush1.msra.mxu0 0.0
        %6267 = vmatprep.subr.mxu0 0.0
        %6268 = vmatpush1.msra.mxu0 0.0
        %6269 = vmatprep.subr.mxu0 0.0
        %6270 = vmatpush1.msra.mxu0 0.0
        %6271 = vmatprep.subr.mxu0 0.0
        %6272 = vmatpush1.msra.mxu0 0.0
        %6273 = vmatprep.subr.mxu0 0.0
        %6274 = vmatpush1.msra.mxu0 0.0
        %6275 = vmatprep.subr.mxu0 0.0
        %6276 = vmatpush1.msra.mxu0 0.0
        %6277 = vmatprep.subr.mxu0 0.0
        %6278 = vmatpush1.msra.mxu0 0.0
        %6279 = vmatprep.subr.mxu0 0.0
        %6280 = vmatpush1.msra.mxu0 0.0
        %6281 = vmatprep.subr.mxu0 0.0
        %6282 = vmatpush1.msra.mxu0 0.0
        %6283 = vmatprep.subr.mxu0 0.0
        %6284 = vmatpush1.msra.mxu0 0.0
        %6285 = vmatprep.subr.mxu0 0.0
        %6286 = vmatpush1.msra.mxu0 0.0
        %6287 = vmatprep.subr.mxu0 0.0
        %6288 = vmatpush1.msra.mxu0 0.0
        %6289 = vmatprep.subr.mxu0 0.0
        %6290 = vmatpush1.msra.mxu0 0.0
        %6291 = vmatprep.subr.mxu0 0.0
        %6292 = vmatpush1.msra.mxu0 0.0
        %6293 = vmatprep.mubr.f32.mxu0 0.0
        %6294 = vmatmul.mubr.f32.gmra.mrb[0].mxu0 %v6117
        %v6295 = vpop.f32.mrb[0].mxu0
        %v6296 = vadd.f32 %v6152, %v6295
        %v6297 = vpop.f32.mrb[0].mxu0
        %6298 = vmatprep.mubr.f32.mxu0 0.0
        %6299 = vmatmul.mubr.f32.gmra.mrb[0].mxu0 %v6118
        %v6300 = vpop.f32.mrb[0].mxu0
        %v6301 = vadd.f32 %v6157, %v6300
        %v6302 = vpop.f32.mrb[0].mxu0
        %6303 = vmatprep.mubr.f32.mxu0 0.0
        %6304 = vmatmul.mubr.f32.gmra.mrb[0].mxu0 %v6119
        %v6305 = vpop.f32.mrb[0].mxu0
        %v6306 = vadd.f32 %v6162, %v6305
        %v6307 = vpop.f32.mrb[0].mxu0
        %6308 = vmatprep.mubr.f32.mxu0 0.0
        %6309 = vmatmul.mubr.f32.gmra.mrb[0].mxu0 %v6120
        %v6310 = vpop.f32.mrb[0].mxu0
        %v6311 = vadd.f32 %v6167, %v6310
        %v6312 = vpop.f32.mrb[0].mxu0
        %6313 = vmatprep.mubr.f32.mxu0 0.0
        %6314 = vmatmul.mubr.f32.gmra.mrb[0].mxu0 %v6121
        %v6315 = vpop.f32.mrb[0].mxu0
        %v6316 = vadd.f32 %v6172, %v6315
        %v6317 = vpop.f32.mrb[0].mxu0
        %6318 = vmatprep.mubr.f32.mxu0 0.0
        %6319 = vmatmul.mubr.f32.gmra.mrb[0].mxu0 %v6122
        %v6320 = vpop.f32.mrb[0].mxu0
        %v6321 = vadd.f32 %v6177, %v6320
        %v6322 = vpop.f32.mrb[0].mxu0
        %6323 = vmatprep.mubr.f32.mxu0 0.0
        %6324 = vmatmul.mubr.f32.gmra.mrb[0].mxu0 %v6123
        %v6325 = vpop.f32.mrb[0].mxu0
        %v6326 = vadd.f32 %v6182, %v6325
        %v6327 = vpop.f32.mrb[0].mxu0
        %6328 = vmatprep.mubr.f32.mxu0 0.0
        %6329 = vmatmul.mubr.f32.gmra.mrb[0].mxu0 %v6124
        %v6330 = vpop.f32.mrb[0].mxu0
        %v6331 = vadd.f32 %v6187, %v6330
        %v6332 = vpop.f32.mrb[0].mxu0
        %6333 = vmatprep.mubr.f32.mxu0 0.0
        %6334 = vmatmul.mubr.f32.gmra.mrb[0].mxu0 %v6125
        %v6335 = vpop.f32.mrb[0].mxu0
        %v6336 = vadd.f32 %v6192, %v6335
        %v6337 = vpop.f32.mrb[0].mxu0
        %6338 = vmatprep.mubr.f32.mxu0 0.0
        %6339 = vmatmul.mubr.f32.gmra.mrb[0].mxu0 %v6126
        %v6340 = vpop.f32.mrb[0].mxu0
        %v6341 = vadd.f32 %v6197, %v6340
        %v6342 = vpop.f32.mrb[0].mxu0
        %6343 = vmatprep.mubr.f32.mxu0 0.0
        %6344 = vmatmul.mubr.f32.gmra.mrb[0].mxu0 %v6127
        %v6345 = vpop.f32.mrb[0].mxu0
        %v6346 = vadd.f32 %v6202, %v6345
        %v6347 = vpop.f32.mrb[0].mxu0
        %6348 = vmatprep.mubr.f32.mxu0 0.0
        %6349 = vmatmul.mubr.f32.gmra.mrb[0].mxu0 %v6128
        %v6350 = vpop.f32.mrb[0].mxu0
        %v6351 = vadd.f32 %v6207, %v6350
        %v6352 = vpop.f32.mrb[0].mxu0
        %6353 = vmatprep.mubr.f32.mxu0 0.0
        %6354 = vmatmul.mubr.f32.gmra.mrb[0].mxu0 %v6129
        %v6355 = vpop.f32.mrb[0].mxu0
        %v6356 = vadd.f32 %v6212, %v6355
        %v6357 = vpop.f32.mrb[0].mxu0
        %6358 = vmatprep.mubr.f32.mxu0 0.0
        %6359 = vmatmul.mubr.f32.gmra.mrb[0].mxu0 %v6130
        %v6360 = vpop.f32.mrb[0].mxu0
        %v6361 = vadd.f32 %v6217, %v6360
        %v6362 = vpop.f32.mrb[0].mxu0
        %6363 = vmatprep.mubr.f32.mxu0 0.0
        %6364 = vmatmul.mubr.f32.gmra.mrb[0].mxu0 %v6131
        %v6365 = vpop.f32.mrb[0].mxu0
        %v6366 = vadd.f32 %v6222, %v6365
        %v6367 = vpop.f32.mrb[0].mxu0
        %6368 = vmatprep.mubr.f32.mxu0 0.0
        %6369 = vmatmul.mubr.f32.gmra.mrb[0].mxu0 %v6132
        %v6370 = vpop.f32.mrb[0].mxu0
        %v6371 = vadd.f32 %v6227, %v6370
        %v6372 = vpop.f32.mrb[0].mxu0
        %6373 = vdwg.mxu0
        %v6374 = vand.u32 2147483647, %v6296
        %vm6375 = vcmp.le.f32.partialorder %v6374, 0.7853982
        %vm6376 = vcmp.lt.s32.totalorder %v6296, 0
        %v6377 = vand.u32 %v6296, 2139095040
        %v6378 = vshrl.u32 %v6377, 23
        %v6379 = vsub.s32 %v6378, 127
        %v6380 = vand.u32 2147483647, %v6296
        %v6381 = vand.u32 %v6380, 8388607
        %v6382 = vor.u32 %v6381, 8388608
        %v6383 = vsub.s32 0, %v6382
        %v6384 = vadd.s32 %v6379, 1
        %vm6385 = vcmp.gt.s32.totalorder %v6384, 0
        %v6386 = vsel %vm6385, %v6384, 0
        %v6387 = vshrl.u32 %v6386, 5
        %v6388 = vand.u32 %v6386, 31
        %v6389 = vsub.s32 32, %v6388
        %v6390 = vshrl.u32 683565275, %v6389
        %v6391 = vshll.u32 683565275, %v6388
        %v6392 = vshrl.u32 2475754826, %v6389
        %v6393 = vor.u32 %v6391, %v6392
        %v6394 = vshll.u32 2475754826, %v6388
        %v6395 = vshrl.u32 2131351028, %v6389
        %v6396 = vor.u32 %v6394, %v6395
        %v6397 = vshll.u32 2131351028, %v6388
        %v6398 = vshrl.u32 2102212464, %v6389
        %v6399 = vor.u32 %v6397, %v6398
        %v6400 = vshll.u32 2102212464, %v6388
        %v6401 = vshrl.u32 920167782, %v6389
        %v6402 = vor.u32 %v6400, %v6401
        %v6403 = vshll.u32 920167782, %v6388
        %v6404 = vshrl.u32 1326507024, %v6389
        %v6405 = vor.u32 %v6403, %v6404
        %vm6406 = vcmp.lt.s32.totalorder %v6387, 1
        %vm6407 = vcmp.lt.s32.totalorder %v6387, 2
        %vm6408 = vcmp.lt.s32.totalorder %v6387, 3
        %vm6409 = vcmp.lt.s32.totalorder %v6387, 4
        %v6410 = vsel %vm6406, %v6390, %v6393
        %v6411 = vsel %vm6409, %v6399, 2102212464
        %v6412 = vsel %vm6408, %v6396, %v6411
        %v6413 = vsel %vm6407, %v6410, %v6412
        %v6414 = vsel %vm6406, %v6393, %v6396
        %v6415 = vsel %vm6409, %v6402, 920167782
        %v6416 = vsel %vm6408, %v6399, %v6415
        %v6417 = vsel %vm6407, %v6414, %v6416
        %v6418 = vsel %vm6406, %v6396, %v6399
        %v6419 = vsel %vm6409, %v6405, 1326507024
        %v6420 = vsel %vm6408, %v6402, %v6419
        %v6421 = vsel %vm6407, %v6418, %v6420
        %v6422 = vshll.u32 %v6382, 8
        %v6423 = vmul.u32.u64.compose %v6422, %v6421
        %v6424 = vextract.low.u32 %v6423
        %v6425 = vextract.high.u32 %v6423
        %v6426 = vmul.u32.u64.compose %v6422, %v6417
        %v6427 = vextract.low.u32 %v6426
        %v6428 = vextract.high.u32 %v6426
        %v6429 = vmul.u32 %v6422, %v6413
        %v6430 = vadd.s32 %v6425, %v6427
        %vm6431 = vc.u32 %v6425, %v6427
        %v6432 = vadd.s32 %v6428, 1
        %v6433 = vsel %vm6431, %v6432, %v6428
        %v6434 = vadd.s32 %v6429, %v6433
        %v6435 = vadd.s32 %v6434, 536870912
        %v6436 = vshrl.u32 %v6435, 30
        %v6437 = vshll.u32 %v6436, 30
        %v6438 = vsub.s32 %v6434, %v6437
        %vm6439 = vcmp.lt.s32.totalorder %v6438, 0
        %v6440 = vsub.s32 0, %v6438
        %v6441 = vsel %vm6439, %v6440, %v6438
        %v6442 = vclz %v6441
        %v6443 = vsub.s32 %v6442, 2
        %vm6444 = vcmp.gt.s32.totalorder 0, %v6443
        %v6445 = vsel %vm6444, 0, %v6443
        %v6446 = vsub.s32 32, %v6445
        %v6447 = vshll.u32 %v6438, %v6445
        %v6448 = vshrl.u32 %v6430, %v6446
        %v6449 = vor.u32 %v6447, %v6448
        %v6450 = vsub.s32 4294967266, %v6445
        %v6451 = vadd.s32 %v6450, 127
        %v6452 = vshll.u32 %v6451, 23
        %v6453 = vor.u32 4788187, %v6452
        %v6454 = vand.u32 2147483647, %v6453
        %v6456 = vcvt.s32.f32 %v6449
        %v6457 = vmul.f32 %v6456, %v6454
        %v6458 = vxor.u32 %v6457, 2147483648
        %v6459 = vsel %vm6376, %v6458, %v6457
        %v6460 = vsub.s32 4, %v6436
        %v6461 = vsel %vm6376, %v6460, %v6436
        %v6462 = vsel %vm6375, %v6296, %v6459
        %v6463 = vsel %vm6375, 0, %v6461
        %v6464 = vcosq.f32.pop %v6462
        %v6465 = vsinq.f32.pop %v6462
        %vm6466 = vweird.f32 %v6296
        %v6467 = vadd.s32 %v6463, 3
        %v6468 = vand.u32 %v6467, 3
        %vm6469 = vcmp.lt.s32.totalorder %v6468, 2
        %vm6470 = vcmp.eq.s32.totalorder %v6468, 0
        %v6471 = vxor.u32 %v6465, 2147483648
        %v6472 = vsel %vm6470, %v6464, %v6471
        %vm6473 = vcmp.eq.s32.totalorder %v6468, 2
        %v6474 = vxor.u32 %v6464, 2147483648
        %v6475 = vsel %vm6473, %v6474, %v6465
        %v6476 = vsel %vm6469, %v6472, %v6475
        %v6477 = vsel %vm6466, nan, %v6476
        %v6478 = vand.u32 2147483647, %v6301
        %vm6479 = vcmp.le.f32.partialorder %v6478, 0.7853982
        %vm6480 = vcmp.lt.s32.totalorder %v6301, 0
        %v6481 = vand.u32 %v6301, 2139095040
        %v6482 = vshrl.u32 %v6481, 23
        %v6483 = vsub.s32 %v6482, 127
        %v6484 = vand.u32 2147483647, %v6301
        %v6485 = vand.u32 %v6484, 8388607
        %v6486 = vor.u32 %v6485, 8388608
        %v6487 = vsub.s32 0, %v6486
        %v6488 = vadd.s32 %v6483, 1
        %vm6489 = vcmp.gt.s32.totalorder %v6488, 0
        %v6490 = vsel %vm6489, %v6488, 0
        %v6491 = vshrl.u32 %v6490, 5
        %v6492 = vand.u32 %v6490, 31
        %v6493 = vsub.s32 32, %v6492
        %v6494 = vshrl.u32 683565275, %v6493
        %v6495 = vshll.u32 683565275, %v6492
        %v6496 = vshrl.u32 2475754826, %v6493
        %v6497 = vor.u32 %v6495, %v6496
        %v6498 = vshll.u32 2475754826, %v6492
        %v6499 = vshrl.u32 2131351028, %v6493
        %v6500 = vor.u32 %v6498, %v6499
        %v6501 = vshll.u32 2131351028, %v6492
        %v6502 = vshrl.u32 2102212464, %v6493
        %v6503 = vor.u32 %v6501, %v6502
        %v6504 = vshll.u32 2102212464, %v6492
        %v6505 = vshrl.u32 920167782, %v6493
        %v6506 = vor.u32 %v6504, %v6505
        %v6507 = vshll.u32 920167782, %v6492
        %v6508 = vshrl.u32 1326507024, %v6493
        %v6509 = vor.u32 %v6507, %v6508
        %vm6510 = vcmp.lt.s32.totalorder %v6491, 1
        %vm6511 = vcmp.lt.s32.totalorder %v6491, 2
        %vm6512 = vcmp.lt.s32.totalorder %v6491, 3
        %vm6513 = vcmp.lt.s32.totalorder %v6491, 4
        %v6514 = vsel %vm6510, %v6494, %v6497
        %v6515 = vsel %vm6513, %v6503, 2102212464
        %v6516 = vsel %vm6512, %v6500, %v6515
        %v6517 = vsel %vm6511, %v6514, %v6516
        %v6518 = vsel %vm6510, %v6497, %v6500
        %v6519 = vsel %vm6513, %v6506, 920167782
        %v6520 = vsel %vm6512, %v6503, %v6519
        %v6521 = vsel %vm6511, %v6518, %v6520
        %v6522 = vsel %vm6510, %v6500, %v6503
        %v6523 = vsel %vm6513, %v6509, 1326507024
        %v6524 = vsel %vm6512, %v6506, %v6523
        %v6525 = vsel %vm6511, %v6522, %v6524
        %v6526 = vshll.u32 %v6486, 8
        %v6527 = vmul.u32.u64.compose %v6526, %v6525
        %v6528 = vextract.low.u32 %v6527
        %v6529 = vextract.high.u32 %v6527
        %v6530 = vmul.u32.u64.compose %v6526, %v6521
        %v6531 = vextract.low.u32 %v6530
        %v6532 = vextract.high.u32 %v6530
        %v6533 = vmul.u32 %v6526, %v6517
        %v6534 = vadd.s32 %v6529, %v6531
        %vm6535 = vc.u32 %v6529, %v6531
        %v6536 = vadd.s32 %v6532, 1
        %v6537 = vsel %vm6535, %v6536, %v6532
        %v6538 = vadd.s32 %v6533, %v6537
        %v6539 = vadd.s32 %v6538, 536870912
        %v6540 = vshrl.u32 %v6539, 30
        %v6541 = vshll.u32 %v6540, 30
        %v6542 = vsub.s32 %v6538, %v6541
        %vm6543 = vcmp.lt.s32.totalorder %v6542, 0
        %v6544 = vsub.s32 0, %v6542
        %v6545 = vsel %vm6543, %v6544, %v6542
        %v6546 = vclz %v6545
        %v6547 = vsub.s32 %v6546, 2
        %vm6548 = vcmp.gt.s32.totalorder 0, %v6547
        %v6549 = vsel %vm6548, 0, %v6547
        %v6550 = vsub.s32 32, %v6549
        %v6551 = vshll.u32 %v6542, %v6549
        %v6552 = vshrl.u32 %v6534, %v6550
        %v6553 = vor.u32 %v6551, %v6552
        %v6554 = vsub.s32 4294967266, %v6549
        %v6555 = vadd.s32 %v6554, 127
        %v6556 = vshll.u32 %v6555, 23
        %v6557 = vor.u32 4788187, %v6556
        %v6558 = vand.u32 2147483647, %v6557
        %v6560 = vcvt.s32.f32 %v6553
        %v6561 = vmul.f32 %v6560, %v6558
        %v6562 = vxor.u32 %v6561, 2147483648
        %v6563 = vsel %vm6480, %v6562, %v6561
        %v6564 = vsub.s32 4, %v6540
        %v6565 = vsel %vm6480, %v6564, %v6540
        %v6566 = vsel %vm6479, %v6301, %v6563
        %v6567 = vsel %vm6479, 0, %v6565
        %v6568 = vcosq.f32.pop %v6566
        %v6569 = vsinq.f32.pop %v6566
        %vm6570 = vweird.f32 %v6301
        %v6571 = vadd.s32 %v6567, 3
        %v6572 = vand.u32 %v6571, 3
        %vm6573 = vcmp.lt.s32.totalorder %v6572, 2
        %vm6574 = vcmp.eq.s32.totalorder %v6572, 0
        %v6575 = vxor.u32 %v6569, 2147483648
        %v6576 = vsel %vm6574, %v6568, %v6575
        %vm6577 = vcmp.eq.s32.totalorder %v6572, 2
        %v6578 = vxor.u32 %v6568, 2147483648
        %v6579 = vsel %vm6577, %v6578, %v6569
        %v6580 = vsel %vm6573, %v6576, %v6579
        %v6581 = vsel %vm6570, nan, %v6580
        %v6582 = vand.u32 2147483647, %v6306
        %vm6583 = vcmp.le.f32.partialorder %v6582, 0.7853982
        %vm6584 = vcmp.lt.s32.totalorder %v6306, 0
        %v6585 = vand.u32 %v6306, 2139095040
        %v6586 = vshrl.u32 %v6585, 23
        %v6587 = vsub.s32 %v6586, 127
        %v6588 = vand.u32 2147483647, %v6306
        %v6589 = vand.u32 %v6588, 8388607
        %v6590 = vor.u32 %v6589, 8388608
        %v6591 = vsub.s32 0, %v6590
        %v6592 = vadd.s32 %v6587, 1
        %vm6593 = vcmp.gt.s32.totalorder %v6592, 0
        %v6594 = vsel %vm6593, %v6592, 0
        %v6595 = vshrl.u32 %v6594, 5
        %v6596 = vand.u32 %v6594, 31
        %v6597 = vsub.s32 32, %v6596
        %v6598 = vshrl.u32 683565275, %v6597
        %v6599 = vshll.u32 683565275, %v6596
        %v6600 = vshrl.u32 2475754826, %v6597
        %v6601 = vor.u32 %v6599, %v6600
        %v6602 = vshll.u32 2475754826, %v6596
        %v6603 = vshrl.u32 2131351028, %v6597
        %v6604 = vor.u32 %v6602, %v6603
        %v6605 = vshll.u32 2131351028, %v6596
        %v6606 = vshrl.u32 2102212464, %v6597
        %v6607 = vor.u32 %v6605, %v6606
        %v6608 = vshll.u32 2102212464, %v6596
        %v6609 = vshrl.u32 920167782, %v6597
        %v6610 = vor.u32 %v6608, %v6609
        %v6611 = vshll.u32 920167782, %v6596
        %v6612 = vshrl.u32 1326507024, %v6597
        %v6613 = vor.u32 %v6611, %v6612
        %vm6614 = vcmp.lt.s32.totalorder %v6595, 1
        %vm6615 = vcmp.lt.s32.totalorder %v6595, 2
        %vm6616 = vcmp.lt.s32.totalorder %v6595, 3
        %vm6617 = vcmp.lt.s32.totalorder %v6595, 4
        %v6618 = vsel %vm6614, %v6598, %v6601
        %v6619 = vsel %vm6617, %v6607, 2102212464
        %v6620 = vsel %vm6616, %v6604, %v6619
        %v6621 = vsel %vm6615, %v6618, %v6620
        %v6622 = vsel %vm6614, %v6601, %v6604
        %v6623 = vsel %vm6617, %v6610, 920167782
        %v6624 = vsel %vm6616, %v6607, %v6623
        %v6625 = vsel %vm6615, %v6622, %v6624
        %v6626 = vsel %vm6614, %v6604, %v6607
        %v6627 = vsel %vm6617, %v6613, 1326507024
        %v6628 = vsel %vm6616, %v6610, %v6627
        %v6629 = vsel %vm6615, %v6626, %v6628
        %v6630 = vshll.u32 %v6590, 8
        %v6631 = vmul.u32.u64.compose %v6630, %v6629
        %v6632 = vextract.low.u32 %v6631
        %v6633 = vextract.high.u32 %v6631
        %v6634 = vmul.u32.u64.compose %v6630, %v6625
        %v6635 = vextract.low.u32 %v6634
        %v6636 = vextract.high.u32 %v6634
        %v6637 = vmul.u32 %v6630, %v6621
        %v6638 = vadd.s32 %v6633, %v6635
        %vm6639 = vc.u32 %v6633, %v6635
        %v6640 = vadd.s32 %v6636, 1
        %v6641 = vsel %vm6639, %v6640, %v6636
        %v6642 = vadd.s32 %v6637, %v6641
        %v6643 = vadd.s32 %v6642, 536870912
        %v6644 = vshrl.u32 %v6643, 30
        %v6645 = vshll.u32 %v6644, 30
        %v6646 = vsub.s32 %v6642, %v6645
        %vm6647 = vcmp.lt.s32.totalorder %v6646, 0
        %v6648 = vsub.s32 0, %v6646
        %v6649 = vsel %vm6647, %v6648, %v6646
        %v6650 = vclz %v6649
        %v6651 = vsub.s32 %v6650, 2
        %vm6652 = vcmp.gt.s32.totalorder 0, %v6651
        %v6653 = vsel %vm6652, 0, %v6651
        %v6654 = vsub.s32 32, %v6653
        %v6655 = vshll.u32 %v6646, %v6653
        %v6656 = vshrl.u32 %v6638, %v6654
        %v6657 = vor.u32 %v6655, %v6656
        %v6658 = vsub.s32 4294967266, %v6653
        %v6659 = vadd.s32 %v6658, 127
        %v6660 = vshll.u32 %v6659, 23
        %v6661 = vor.u32 4788187, %v6660
        %v6662 = vand.u32 2147483647, %v6661
        %v6664 = vcvt.s32.f32 %v6657
        %v6665 = vmul.f32 %v6664, %v6662
        %v6666 = vxor.u32 %v6665, 2147483648
        %v6667 = vsel %vm6584, %v6666, %v6665
        %v6668 = vsub.s32 4, %v6644
        %v6669 = vsel %vm6584, %v6668, %v6644
        %v6670 = vsel %vm6583, %v6306, %v6667
        %v6671 = vsel %vm6583, 0, %v6669
        %v6672 = vcosq.f32.pop %v6670
        %v6673 = vsinq.f32.pop %v6670
        %vm6674 = vweird.f32 %v6306
        %v6675 = vadd.s32 %v6671, 3
        %v6676 = vand.u32 %v6675, 3
        %vm6677 = vcmp.lt.s32.totalorder %v6676, 2
        %vm6678 = vcmp.eq.s32.totalorder %v6676, 0
        %v6679 = vxor.u32 %v6673, 2147483648
        %v6680 = vsel %vm6678, %v6672, %v6679
        %vm6681 = vcmp.eq.s32.totalorder %v6676, 2
        %v6682 = vxor.u32 %v6672, 2147483648
        %v6683 = vsel %vm6681, %v6682, %v6673
        %v6684 = vsel %vm6677, %v6680, %v6683
        %v6685 = vsel %vm6674, nan, %v6684
        %v6686 = vand.u32 2147483647, %v6311
        %vm6687 = vcmp.le.f32.partialorder %v6686, 0.7853982
        %vm6688 = vcmp.lt.s32.totalorder %v6311, 0
        %v6689 = vand.u32 %v6311, 2139095040
        %v6690 = vshrl.u32 %v6689, 23
        %v6691 = vsub.s32 %v6690, 127
        %v6692 = vand.u32 2147483647, %v6311
        %v6693 = vand.u32 %v6692, 8388607
        %v6694 = vor.u32 %v6693, 8388608
        %v6695 = vsub.s32 0, %v6694
        %v6696 = vadd.s32 %v6691, 1
        %vm6697 = vcmp.gt.s32.totalorder %v6696, 0
        %v6698 = vsel %vm6697, %v6696, 0
        %v6699 = vshrl.u32 %v6698, 5
        %v6700 = vand.u32 %v6698, 31
        %v6701 = vsub.s32 32, %v6700
        %v6702 = vshrl.u32 683565275, %v6701
        %v6703 = vshll.u32 683565275, %v6700
        %v6704 = vshrl.u32 2475754826, %v6701
        %v6705 = vor.u32 %v6703, %v6704
        %v6706 = vshll.u32 2475754826, %v6700
        %v6707 = vshrl.u32 2131351028, %v6701
        %v6708 = vor.u32 %v6706, %v6707
        %v6709 = vshll.u32 2131351028, %v6700
        %v6710 = vshrl.u32 2102212464, %v6701
        %v6711 = vor.u32 %v6709, %v6710
        %v6712 = vshll.u32 2102212464, %v6700
        %v6713 = vshrl.u32 920167782, %v6701
        %v6714 = vor.u32 %v6712, %v6713
        %v6715 = vshll.u32 920167782, %v6700
        %v6716 = vshrl.u32 1326507024, %v6701
        %v6717 = vor.u32 %v6715, %v6716
        %vm6718 = vcmp.lt.s32.totalorder %v6699, 1
        %vm6719 = vcmp.lt.s32.totalorder %v6699, 2
        %vm6720 = vcmp.lt.s32.totalorder %v6699, 3
        %vm6721 = vcmp.lt.s32.totalorder %v6699, 4
        %v6722 = vsel %vm6718, %v6702, %v6705
        %v6723 = vsel %vm6721, %v6711, 2102212464
        %v6724 = vsel %vm6720, %v6708, %v6723
        %v6725 = vsel %vm6719, %v6722, %v6724
        %v6726 = vsel %vm6718, %v6705, %v6708
        %v6727 = vsel %vm6721, %v6714, 920167782
        %v6728 = vsel %vm6720, %v6711, %v6727
        %v6729 = vsel %vm6719, %v6726, %v6728
        %v6730 = vsel %vm6718, %v6708, %v6711
        %v6731 = vsel %vm6721, %v6717, 1326507024
        %v6732 = vsel %vm6720, %v6714, %v6731
        %v6733 = vsel %vm6719, %v6730, %v6732
        %v6734 = vshll.u32 %v6694, 8
        %v6735 = vmul.u32.u64.compose %v6734, %v6733
        %v6736 = vextract.low.u32 %v6735
        %v6737 = vextract.high.u32 %v6735
        %v6738 = vmul.u32.u64.compose %v6734, %v6729
        %v6739 = vextract.low.u32 %v6738
        %v6740 = vextract.high.u32 %v6738
        %v6741 = vmul.u32 %v6734, %v6725
        %v6742 = vadd.s32 %v6737, %v6739
        %vm6743 = vc.u32 %v6737, %v6739
        %v6744 = vadd.s32 %v6740, 1
        %v6745 = vsel %vm6743, %v6744, %v6740
        %v6746 = vadd.s32 %v6741, %v6745
        %v6747 = vadd.s32 %v6746, 536870912
        %v6748 = vshrl.u32 %v6747, 30
        %v6749 = vshll.u32 %v6748, 30
        %v6750 = vsub.s32 %v6746, %v6749
        %vm6751 = vcmp.lt.s32.totalorder %v6750, 0
        %v6752 = vsub.s32 0, %v6750
        %v6753 = vsel %vm6751, %v6752, %v6750
        %v6754 = vclz %v6753
        %v6755 = vsub.s32 %v6754, 2
        %vm6756 = vcmp.gt.s32.totalorder 0, %v6755
        %v6757 = vsel %vm6756, 0, %v6755
        %v6758 = vsub.s32 32, %v6757
        %v6759 = vshll.u32 %v6750, %v6757
        %v6760 = vshrl.u32 %v6742, %v6758
        %v6761 = vor.u32 %v6759, %v6760
        %v6762 = vsub.s32 4294967266, %v6757
        %v6763 = vadd.s32 %v6762, 127
        %v6764 = vshll.u32 %v6763, 23
        %v6765 = vor.u32 4788187, %v6764
        %v6766 = vand.u32 2147483647, %v6765
        %v6768 = vcvt.s32.f32 %v6761
        %v6769 = vmul.f32 %v6768, %v6766
        %v6770 = vxor.u32 %v6769, 2147483648
        %v6771 = vsel %vm6688, %v6770, %v6769
        %v6772 = vsub.s32 4, %v6748
        %v6773 = vsel %vm6688, %v6772, %v6748
        %v6774 = vsel %vm6687, %v6311, %v6771
        %v6775 = vsel %vm6687, 0, %v6773
        %v6776 = vcosq.f32.pop %v6774
        %v6777 = vsinq.f32.pop %v6774
        %vm6778 = vweird.f32 %v6311
        %v6779 = vadd.s32 %v6775, 3
        %v6780 = vand.u32 %v6779, 3
        %vm6781 = vcmp.lt.s32.totalorder %v6780, 2
        %vm6782 = vcmp.eq.s32.totalorder %v6780, 0
        %v6783 = vxor.u32 %v6777, 2147483648
        %v6784 = vsel %vm6782, %v6776, %v6783
        %vm6785 = vcmp.eq.s32.totalorder %v6780, 2
        %v6786 = vxor.u32 %v6776, 2147483648
        %v6787 = vsel %vm6785, %v6786, %v6777
        %v6788 = vsel %vm6781, %v6784, %v6787
        %v6789 = vsel %vm6778, nan, %v6788
        %v6790 = vand.u32 2147483647, %v6316
        %vm6791 = vcmp.le.f32.partialorder %v6790, 0.7853982
        %vm6792 = vcmp.lt.s32.totalorder %v6316, 0
        %v6793 = vand.u32 %v6316, 2139095040
        %v6794 = vshrl.u32 %v6793, 23
        %v6795 = vsub.s32 %v6794, 127
        %v6796 = vand.u32 2147483647, %v6316
        %v6797 = vand.u32 %v6796, 8388607
        %v6798 = vor.u32 %v6797, 8388608
        %v6799 = vsub.s32 0, %v6798
        %v6800 = vadd.s32 %v6795, 1
        %vm6801 = vcmp.gt.s32.totalorder %v6800, 0
        %v6802 = vsel %vm6801, %v6800, 0
        %v6803 = vshrl.u32 %v6802, 5
        %v6804 = vand.u32 %v6802, 31
        %v6805 = vsub.s32 32, %v6804
        %v6806 = vshrl.u32 683565275, %v6805
        %v6807 = vshll.u32 683565275, %v6804
        %v6808 = vshrl.u32 2475754826, %v6805
        %v6809 = vor.u32 %v6807, %v6808
        %v6810 = vshll.u32 2475754826, %v6804
        %v6811 = vshrl.u32 2131351028, %v6805
        %v6812 = vor.u32 %v6810, %v6811
        %v6813 = vshll.u32 2131351028, %v6804
        %v6814 = vshrl.u32 2102212464, %v6805
        %v6815 = vor.u32 %v6813, %v6814
        %v6816 = vshll.u32 2102212464, %v6804
        %v6817 = vshrl.u32 920167782, %v6805
        %v6818 = vor.u32 %v6816, %v6817
        %v6819 = vshll.u32 920167782, %v6804
        %v6820 = vshrl.u32 1326507024, %v6805
        %v6821 = vor.u32 %v6819, %v6820
        %vm6822 = vcmp.lt.s32.totalorder %v6803, 1
        %vm6823 = vcmp.lt.s32.totalorder %v6803, 2
        %vm6824 = vcmp.lt.s32.totalorder %v6803, 3
        %vm6825 = vcmp.lt.s32.totalorder %v6803, 4
        %v6826 = vsel %vm6822, %v6806, %v6809
        %v6827 = vsel %vm6825, %v6815, 2102212464
        %v6828 = vsel %vm6824, %v6812, %v6827
        %v6829 = vsel %vm6823, %v6826, %v6828
        %v6830 = vsel %vm6822, %v6809, %v6812
        %v6831 = vsel %vm6825, %v6818, 920167782
        %v6832 = vsel %vm6824, %v6815, %v6831
        %v6833 = vsel %vm6823, %v6830, %v6832
        %v6834 = vsel %vm6822, %v6812, %v6815
        %v6835 = vsel %vm6825, %v6821, 1326507024
        %v6836 = vsel %vm6824, %v6818, %v6835
        %v6837 = vsel %vm6823, %v6834, %v6836
        %v6838 = vshll.u32 %v6798, 8
        %v6839 = vmul.u32.u64.compose %v6838, %v6837
        %v6840 = vextract.low.u32 %v6839
        %v6841 = vextract.high.u32 %v6839
        %v6842 = vmul.u32.u64.compose %v6838, %v6833
        %v6843 = vextract.low.u32 %v6842
        %v6844 = vextract.high.u32 %v6842
        %v6845 = vmul.u32 %v6838, %v6829
        %v6846 = vadd.s32 %v6841, %v6843
        %vm6847 = vc.u32 %v6841, %v6843
        %v6848 = vadd.s32 %v6844, 1
        %v6849 = vsel %vm6847, %v6848, %v6844
        %v6850 = vadd.s32 %v6845, %v6849
        %v6851 = vadd.s32 %v6850, 536870912
        %v6852 = vshrl.u32 %v6851, 30
        %v6853 = vshll.u32 %v6852, 30
        %v6854 = vsub.s32 %v6850, %v6853
        %vm6855 = vcmp.lt.s32.totalorder %v6854, 0
        %v6856 = vsub.s32 0, %v6854
        %v6857 = vsel %vm6855, %v6856, %v6854
        %v6858 = vclz %v6857
        %v6859 = vsub.s32 %v6858, 2
        %vm6860 = vcmp.gt.s32.totalorder 0, %v6859
        %v6861 = vsel %vm6860, 0, %v6859
        %v6862 = vsub.s32 32, %v6861
        %v6863 = vshll.u32 %v6854, %v6861
        %v6864 = vshrl.u32 %v6846, %v6862
        %v6865 = vor.u32 %v6863, %v6864
        %v6866 = vsub.s32 4294967266, %v6861
        %v6867 = vadd.s32 %v6866, 127
        %v6868 = vshll.u32 %v6867, 23
        %v6869 = vor.u32 4788187, %v6868
        %v6870 = vand.u32 2147483647, %v6869
        %v6872 = vcvt.s32.f32 %v6865
        %v6873 = vmul.f32 %v6872, %v6870
        %v6874 = vxor.u32 %v6873, 2147483648
        %v6875 = vsel %vm6792, %v6874, %v6873
        %v6876 = vsub.s32 4, %v6852
        %v6877 = vsel %vm6792, %v6876, %v6852
        %v6878 = vsel %vm6791, %v6316, %v6875
        %v6879 = vsel %vm6791, 0, %v6877
        %v6880 = vcosq.f32.pop %v6878
        %v6881 = vsinq.f32.pop %v6878
        %vm6882 = vweird.f32 %v6316
        %v6883 = vadd.s32 %v6879, 3
        %v6884 = vand.u32 %v6883, 3
        %vm6885 = vcmp.lt.s32.totalorder %v6884, 2
        %vm6886 = vcmp.eq.s32.totalorder %v6884, 0
        %v6887 = vxor.u32 %v6881, 2147483648
        %v6888 = vsel %vm6886, %v6880, %v6887
        %vm6889 = vcmp.eq.s32.totalorder %v6884, 2
        %v6890 = vxor.u32 %v6880, 2147483648
        %v6891 = vsel %vm6889, %v6890, %v6881
        %v6892 = vsel %vm6885, %v6888, %v6891
        %v6893 = vsel %vm6882, nan, %v6892
        %v6894 = vand.u32 2147483647, %v6321
        %vm6895 = vcmp.le.f32.partialorder %v6894, 0.7853982
        %vm6896 = vcmp.lt.s32.totalorder %v6321, 0
        %v6897 = vand.u32 %v6321, 2139095040
        %v6898 = vshrl.u32 %v6897, 23
        %v6899 = vsub.s32 %v6898, 127
        %v6900 = vand.u32 2147483647, %v6321
        %v6901 = vand.u32 %v6900, 8388607
        %v6902 = vor.u32 %v6901, 8388608
        %v6903 = vsub.s32 0, %v6902
        %v6904 = vadd.s32 %v6899, 1
        %vm6905 = vcmp.gt.s32.totalorder %v6904, 0
        %v6906 = vsel %vm6905, %v6904, 0
        %v6907 = vshrl.u32 %v6906, 5
        %v6908 = vand.u32 %v6906, 31
        %v6909 = vsub.s32 32, %v6908
        %v6910 = vshrl.u32 683565275, %v6909
        %v6911 = vshll.u32 683565275, %v6908
        %v6912 = vshrl.u32 2475754826, %v6909
        %v6913 = vor.u32 %v6911, %v6912
        %v6914 = vshll.u32 2475754826, %v6908
        %v6915 = vshrl.u32 2131351028, %v6909
        %v6916 = vor.u32 %v6914, %v6915
        %v6917 = vshll.u32 2131351028, %v6908
        %v6918 = vshrl.u32 2102212464, %v6909
        %v6919 = vor.u32 %v6917, %v6918
        %v6920 = vshll.u32 2102212464, %v6908
        %v6921 = vshrl.u32 920167782, %v6909
        %v6922 = vor.u32 %v6920, %v6921
        %v6923 = vshll.u32 920167782, %v6908
        %v6924 = vshrl.u32 1326507024, %v6909
        %v6925 = vor.u32 %v6923, %v6924
        %vm6926 = vcmp.lt.s32.totalorder %v6907, 1
        %vm6927 = vcmp.lt.s32.totalorder %v6907, 2
        %vm6928 = vcmp.lt.s32.totalorder %v6907, 3
        %vm6929 = vcmp.lt.s32.totalorder %v6907, 4
        %v6930 = vsel %vm6926, %v6910, %v6913
        %v6931 = vsel %vm6929, %v6919, 2102212464
        %v6932 = vsel %vm6928, %v6916, %v6931
        %v6933 = vsel %vm6927, %v6930, %v6932
        %v6934 = vsel %vm6926, %v6913, %v6916
        %v6935 = vsel %vm6929, %v6922, 920167782
        %v6936 = vsel %vm6928, %v6919, %v6935
        %v6937 = vsel %vm6927, %v6934, %v6936
        %v6938 = vsel %vm6926, %v6916, %v6919
        %v6939 = vsel %vm6929, %v6925, 1326507024
        %v6940 = vsel %vm6928, %v6922, %v6939
        %v6941 = vsel %vm6927, %v6938, %v6940
        %v6942 = vshll.u32 %v6902, 8
        %v6943 = vmul.u32.u64.compose %v6942, %v6941
        %v6944 = vextract.low.u32 %v6943
        %v6945 = vextract.high.u32 %v6943
        %v6946 = vmul.u32.u64.compose %v6942, %v6937
        %v6947 = vextract.low.u32 %v6946
        %v6948 = vextract.high.u32 %v6946
        %v6949 = vmul.u32 %v6942, %v6933
        %v6950 = vadd.s32 %v6945, %v6947
        %vm6951 = vc.u32 %v6945, %v6947
        %v6952 = vadd.s32 %v6948, 1
        %v6953 = vsel %vm6951, %v6952, %v6948
        %v6954 = vadd.s32 %v6949, %v6953
        %v6955 = vadd.s32 %v6954, 536870912
        %v6956 = vshrl.u32 %v6955, 30
        %v6957 = vshll.u32 %v6956, 30
        %v6958 = vsub.s32 %v6954, %v6957
        %vm6959 = vcmp.lt.s32.totalorder %v6958, 0
        %v6960 = vsub.s32 0, %v6958
        %v6961 = vsel %vm6959, %v6960, %v6958
        %v6962 = vclz %v6961
        %v6963 = vsub.s32 %v6962, 2
        %vm6964 = vcmp.gt.s32.totalorder 0, %v6963
        %v6965 = vsel %vm6964, 0, %v6963
        %v6966 = vsub.s32 32, %v6965
        %v6967 = vshll.u32 %v6958, %v6965
        %v6968 = vshrl.u32 %v6950, %v6966
        %v6969 = vor.u32 %v6967, %v6968
        %v6970 = vsub.s32 4294967266, %v6965
        %v6971 = vadd.s32 %v6970, 127
        %v6972 = vshll.u32 %v6971, 23
        %v6973 = vor.u32 4788187, %v6972
        %v6974 = vand.u32 2147483647, %v6973
        %v6976 = vcvt.s32.f32 %v6969
        %v6977 = vmul.f32 %v6976, %v6974
        %v6978 = vxor.u32 %v6977, 2147483648
        %v6979 = vsel %vm6896, %v6978, %v6977
        %v6980 = vsub.s32 4, %v6956
        %v6981 = vsel %vm6896, %v6980, %v6956
        %v6982 = vsel %vm6895, %v6321, %v6979
        %v6983 = vsel %vm6895, 0, %v6981
        %v6984 = vcosq.f32.pop %v6982
        %v6985 = vsinq.f32.pop %v6982
        %vm6986 = vweird.f32 %v6321
        %v6987 = vadd.s32 %v6983, 3
        %v6988 = vand.u32 %v6987, 3
        %vm6989 = vcmp.lt.s32.totalorder %v6988, 2
        %vm6990 = vcmp.eq.s32.totalorder %v6988, 0
        %v6991 = vxor.u32 %v6985, 2147483648
        %v6992 = vsel %vm6990, %v6984, %v6991
        %vm6993 = vcmp.eq.s32.totalorder %v6988, 2
        %v6994 = vxor.u32 %v6984, 2147483648
        %v6995 = vsel %vm6993, %v6994, %v6985
        %v6996 = vsel %vm6989, %v6992, %v6995
        %v6997 = vsel %vm6986, nan, %v6996
        %v6998 = vand.u32 2147483647, %v6326
        %vm6999 = vcmp.le.f32.partialorder %v6998, 0.7853982
        %vm7000 = vcmp.lt.s32.totalorder %v6326, 0
        %v7001 = vand.u32 %v6326, 2139095040
        %v7002 = vshrl.u32 %v7001, 23
        %v7003 = vsub.s32 %v7002, 127
        %v7004 = vand.u32 2147483647, %v6326
        %v7005 = vand.u32 %v7004, 8388607
        %v7006 = vor.u32 %v7005, 8388608
        %v7007 = vsub.s32 0, %v7006
        %v7008 = vadd.s32 %v7003, 1
        %vm7009 = vcmp.gt.s32.totalorder %v7008, 0
        %v7010 = vsel %vm7009, %v7008, 0
        %v7011 = vshrl.u32 %v7010, 5
        %v7012 = vand.u32 %v7010, 31
        %v7013 = vsub.s32 32, %v7012
        %v7014 = vshrl.u32 683565275, %v7013
        %v7015 = vshll.u32 683565275, %v7012
        %v7016 = vshrl.u32 2475754826, %v7013
        %v7017 = vor.u32 %v7015, %v7016
        %v7018 = vshll.u32 2475754826, %v7012
        %v7019 = vshrl.u32 2131351028, %v7013
        %v7020 = vor.u32 %v7018, %v7019
        %v7021 = vshll.u32 2131351028, %v7012
        %v7022 = vshrl.u32 2102212464, %v7013
        %v7023 = vor.u32 %v7021, %v7022
        %v7024 = vshll.u32 2102212464, %v7012
        %v7025 = vshrl.u32 920167782, %v7013
        %v7026 = vor.u32 %v7024, %v7025
        %v7027 = vshll.u32 920167782, %v7012
        %v7028 = vshrl.u32 1326507024, %v7013
        %v7029 = vor.u32 %v7027, %v7028
        %vm7030 = vcmp.lt.s32.totalorder %v7011, 1
        %vm7031 = vcmp.lt.s32.totalorder %v7011, 2
        %vm7032 = vcmp.lt.s32.totalorder %v7011, 3
        %vm7033 = vcmp.lt.s32.totalorder %v7011, 4
        %v7034 = vsel %vm7030, %v7014, %v7017
        %v7035 = vsel %vm7033, %v7023, 2102212464
        %v7036 = vsel %vm7032, %v7020, %v7035
        %v7037 = vsel %vm7031, %v7034, %v7036
        %v7038 = vsel %vm7030, %v7017, %v7020
        %v7039 = vsel %vm7033, %v7026, 920167782
        %v7040 = vsel %vm7032, %v7023, %v7039
        %v7041 = vsel %vm7031, %v7038, %v7040
        %v7042 = vsel %vm7030, %v7020, %v7023
        %v7043 = vsel %vm7033, %v7029, 1326507024
        %v7044 = vsel %vm7032, %v7026, %v7043
        %v7045 = vsel %vm7031, %v7042, %v7044
        %v7046 = vshll.u32 %v7006, 8
        %v7047 = vmul.u32.u64.compose %v7046, %v7045
        %v7048 = vextract.low.u32 %v7047
        %v7049 = vextract.high.u32 %v7047
        %v7050 = vmul.u32.u64.compose %v7046, %v7041
        %v7051 = vextract.low.u32 %v7050
        %v7052 = vextract.high.u32 %v7050
        %v7053 = vmul.u32 %v7046, %v7037
        %v7054 = vadd.s32 %v7049, %v7051
        %vm7055 = vc.u32 %v7049, %v7051
        %v7056 = vadd.s32 %v7052, 1
        %v7057 = vsel %vm7055, %v7056, %v7052
        %v7058 = vadd.s32 %v7053, %v7057
        %v7059 = vadd.s32 %v7058, 536870912
        %v7060 = vshrl.u32 %v7059, 30
        %v7061 = vshll.u32 %v7060, 30
        %v7062 = vsub.s32 %v7058, %v7061
        %vm7063 = vcmp.lt.s32.totalorder %v7062, 0
        %v7064 = vsub.s32 0, %v7062
        %v7065 = vsel %vm7063, %v7064, %v7062
        %v7066 = vclz %v7065
        %v7067 = vsub.s32 %v7066, 2
        %vm7068 = vcmp.gt.s32.totalorder 0, %v7067
        %v7069 = vsel %vm7068, 0, %v7067
        %v7070 = vsub.s32 32, %v7069
        %v7071 = vshll.u32 %v7062, %v7069
        %v7072 = vshrl.u32 %v7054, %v7070
        %v7073 = vor.u32 %v7071, %v7072
        %v7074 = vsub.s32 4294967266, %v7069
        %v7075 = vadd.s32 %v7074, 127
        %v7076 = vshll.u32 %v7075, 23
        %v7077 = vor.u32 4788187, %v7076
        %v7078 = vand.u32 2147483647, %v7077
        %v7080 = vcvt.s32.f32 %v7073
        %v7081 = vmul.f32 %v7080, %v7078
        %v7082 = vxor.u32 %v7081, 2147483648
        %v7083 = vsel %vm7000, %v7082, %v7081
        %v7084 = vsub.s32 4, %v7060
        %v7085 = vsel %vm7000, %v7084, %v7060
        %v7086 = vsel %vm6999, %v6326, %v7083
        %v7087 = vsel %vm6999, 0, %v7085
        %v7088 = vcosq.f32.pop %v7086
        %v7089 = vsinq.f32.pop %v7086
        %vm7090 = vweird.f32 %v6326
        %v7091 = vadd.s32 %v7087, 3
        %v7092 = vand.u32 %v7091, 3
        %vm7093 = vcmp.lt.s32.totalorder %v7092, 2
        %vm7094 = vcmp.eq.s32.totalorder %v7092, 0
        %v7095 = vxor.u32 %v7089, 2147483648
        %v7096 = vsel %vm7094, %v7088, %v7095
        %vm7097 = vcmp.eq.s32.totalorder %v7092, 2
        %v7098 = vxor.u32 %v7088, 2147483648
        %v7099 = vsel %vm7097, %v7098, %v7089
        %v7100 = vsel %vm7093, %v7096, %v7099
        %v7101 = vsel %vm7090, nan, %v7100
        %v7102 = vand.u32 2147483647, %v6331
        %vm7103 = vcmp.le.f32.partialorder %v7102, 0.7853982
        %vm7104 = vcmp.lt.s32.totalorder %v6331, 0
        %v7105 = vand.u32 %v6331, 2139095040
        %v7106 = vshrl.u32 %v7105, 23
        %v7107 = vsub.s32 %v7106, 127
        %v7108 = vand.u32 2147483647, %v6331
        %v7109 = vand.u32 %v7108, 8388607
        %v7110 = vor.u32 %v7109, 8388608
        %v7111 = vsub.s32 0, %v7110
        %v7112 = vadd.s32 %v7107, 1
        %vm7113 = vcmp.gt.s32.totalorder %v7112, 0
        %v7114 = vsel %vm7113, %v7112, 0
        %v7115 = vshrl.u32 %v7114, 5
        %v7116 = vand.u32 %v7114, 31
        %v7117 = vsub.s32 32, %v7116
        %v7118 = vshrl.u32 683565275, %v7117
        %v7119 = vshll.u32 683565275, %v7116
        %v7120 = vshrl.u32 2475754826, %v7117
        %v7121 = vor.u32 %v7119, %v7120
        %v7122 = vshll.u32 2475754826, %v7116
        %v7123 = vshrl.u32 2131351028, %v7117
        %v7124 = vor.u32 %v7122, %v7123
        %v7125 = vshll.u32 2131351028, %v7116
        %v7126 = vshrl.u32 2102212464, %v7117
        %v7127 = vor.u32 %v7125, %v7126
        %v7128 = vshll.u32 2102212464, %v7116
        %v7129 = vshrl.u32 920167782, %v7117
        %v7130 = vor.u32 %v7128, %v7129
        %v7131 = vshll.u32 920167782, %v7116
        %v7132 = vshrl.u32 1326507024, %v7117
        %v7133 = vor.u32 %v7131, %v7132
        %vm7134 = vcmp.lt.s32.totalorder %v7115, 1
        %vm7135 = vcmp.lt.s32.totalorder %v7115, 2
        %vm7136 = vcmp.lt.s32.totalorder %v7115, 3
        %vm7137 = vcmp.lt.s32.totalorder %v7115, 4
        %v7138 = vsel %vm7134, %v7118, %v7121
        %v7139 = vsel %vm7137, %v7127, 2102212464
        %v7140 = vsel %vm7136, %v7124, %v7139
        %v7141 = vsel %vm7135, %v7138, %v7140
        %v7142 = vsel %vm7134, %v7121, %v7124
        %v7143 = vsel %vm7137, %v7130, 920167782
        %v7144 = vsel %vm7136, %v7127, %v7143
        %v7145 = vsel %vm7135, %v7142, %v7144
        %v7146 = vsel %vm7134, %v7124, %v7127
        %v7147 = vsel %vm7137, %v7133, 1326507024
        %v7148 = vsel %vm7136, %v7130, %v7147
        %v7149 = vsel %vm7135, %v7146, %v7148
        %v7150 = vshll.u32 %v7110, 8
        %v7151 = vmul.u32.u64.compose %v7150, %v7149
        %v7152 = vextract.low.u32 %v7151
        %v7153 = vextract.high.u32 %v7151
        %v7154 = vmul.u32.u64.compose %v7150, %v7145
        %v7155 = vextract.low.u32 %v7154
        %v7156 = vextract.high.u32 %v7154
        %v7157 = vmul.u32 %v7150, %v7141
        %v7158 = vadd.s32 %v7153, %v7155
        %vm7159 = vc.u32 %v7153, %v7155
        %v7160 = vadd.s32 %v7156, 1
        %v7161 = vsel %vm7159, %v7160, %v7156
        %v7162 = vadd.s32 %v7157, %v7161
        %v7163 = vadd.s32 %v7162, 536870912
        %v7164 = vshrl.u32 %v7163, 30
        %v7165 = vshll.u32 %v7164, 30
        %v7166 = vsub.s32 %v7162, %v7165
        %vm7167 = vcmp.lt.s32.totalorder %v7166, 0
        %v7168 = vsub.s32 0, %v7166
        %v7169 = vsel %vm7167, %v7168, %v7166
        %v7170 = vclz %v7169
        %v7171 = vsub.s32 %v7170, 2
        %vm7172 = vcmp.gt.s32.totalorder 0, %v7171
        %v7173 = vsel %vm7172, 0, %v7171
        %v7174 = vsub.s32 32, %v7173
        %v7175 = vshll.u32 %v7166, %v7173
        %v7176 = vshrl.u32 %v7158, %v7174
        %v7177 = vor.u32 %v7175, %v7176
        %v7178 = vsub.s32 4294967266, %v7173
        %v7179 = vadd.s32 %v7178, 127
        %v7180 = vshll.u32 %v7179, 23
        %v7181 = vor.u32 4788187, %v7180
        %v7182 = vand.u32 2147483647, %v7181
        %v7184 = vcvt.s32.f32 %v7177
        %v7185 = vmul.f32 %v7184, %v7182
        %v7186 = vxor.u32 %v7185, 2147483648
        %v7187 = vsel %vm7104, %v7186, %v7185
        %v7188 = vsub.s32 4, %v7164
        %v7189 = vsel %vm7104, %v7188, %v7164
        %v7190 = vsel %vm7103, %v6331, %v7187
        %v7191 = vsel %vm7103, 0, %v7189
        %v7192 = vcosq.f32.pop %v7190
        %v7193 = vsinq.f32.pop %v7190
        %vm7194 = vweird.f32 %v6331
        %v7195 = vadd.s32 %v7191, 3
        %v7196 = vand.u32 %v7195, 3
        %vm7197 = vcmp.lt.s32.totalorder %v7196, 2
        %vm7198 = vcmp.eq.s32.totalorder %v7196, 0
        %v7199 = vxor.u32 %v7193, 2147483648
        %v7200 = vsel %vm7198, %v7192, %v7199
        %vm7201 = vcmp.eq.s32.totalorder %v7196, 2
        %v7202 = vxor.u32 %v7192, 2147483648
        %v7203 = vsel %vm7201, %v7202, %v7193
        %v7204 = vsel %vm7197, %v7200, %v7203
        %v7205 = vsel %vm7194, nan, %v7204
        %v7206 = vand.u32 2147483647, %v6336
        %vm7207 = vcmp.le.f32.partialorder %v7206, 0.7853982
        %vm7208 = vcmp.lt.s32.totalorder %v6336, 0
        %v7209 = vand.u32 %v6336, 2139095040
        %v7210 = vshrl.u32 %v7209, 23
        %v7211 = vsub.s32 %v7210, 127
        %v7212 = vand.u32 2147483647, %v6336
        %v7213 = vand.u32 %v7212, 8388607
        %v7214 = vor.u32 %v7213, 8388608
        %v7215 = vsub.s32 0, %v7214
        %v7216 = vadd.s32 %v7211, 1
        %vm7217 = vcmp.gt.s32.totalorder %v7216, 0
        %v7218 = vsel %vm7217, %v7216, 0
        %v7219 = vshrl.u32 %v7218, 5
        %v7220 = vand.u32 %v7218, 31
        %v7221 = vsub.s32 32, %v7220
        %v7222 = vshrl.u32 683565275, %v7221
        %v7223 = vshll.u32 683565275, %v7220
        %v7224 = vshrl.u32 2475754826, %v7221
        %v7225 = vor.u32 %v7223, %v7224
        %v7226 = vshll.u32 2475754826, %v7220
        %v7227 = vshrl.u32 2131351028, %v7221
        %v7228 = vor.u32 %v7226, %v7227
        %v7229 = vshll.u32 2131351028, %v7220
        %v7230 = vshrl.u32 2102212464, %v7221
        %v7231 = vor.u32 %v7229, %v7230
        %v7232 = vshll.u32 2102212464, %v7220
        %v7233 = vshrl.u32 920167782, %v7221
        %v7234 = vor.u32 %v7232, %v7233
        %v7235 = vshll.u32 920167782, %v7220
        %v7236 = vshrl.u32 1326507024, %v7221
        %v7237 = vor.u32 %v7235, %v7236
        %vm7238 = vcmp.lt.s32.totalorder %v7219, 1
        %vm7239 = vcmp.lt.s32.totalorder %v7219, 2
        %vm7240 = vcmp.lt.s32.totalorder %v7219, 3
        %vm7241 = vcmp.lt.s32.totalorder %v7219, 4
        %v7242 = vsel %vm7238, %v7222, %v7225
        %v7243 = vsel %vm7241, %v7231, 2102212464
        %v7244 = vsel %vm7240, %v7228, %v7243
        %v7245 = vsel %vm7239, %v7242, %v7244
        %v7246 = vsel %vm7238, %v7225, %v7228
        %v7247 = vsel %vm7241, %v7234, 920167782
        %v7248 = vsel %vm7240, %v7231, %v7247
        %v7249 = vsel %vm7239, %v7246, %v7248
        %v7250 = vsel %vm7238, %v7228, %v7231
        %v7251 = vsel %vm7241, %v7237, 1326507024
        %v7252 = vsel %vm7240, %v7234, %v7251
        %v7253 = vsel %vm7239, %v7250, %v7252
        %v7254 = vshll.u32 %v7214, 8
        %v7255 = vmul.u32.u64.compose %v7254, %v7253
        %v7256 = vextract.low.u32 %v7255
        %v7257 = vextract.high.u32 %v7255
        %v7258 = vmul.u32.u64.compose %v7254, %v7249
        %v7259 = vextract.low.u32 %v7258
        %v7260 = vextract.high.u32 %v7258
        %v7261 = vmul.u32 %v7254, %v7245
        %v7262 = vadd.s32 %v7257, %v7259
        %vm7263 = vc.u32 %v7257, %v7259
        %v7264 = vadd.s32 %v7260, 1
        %v7265 = vsel %vm7263, %v7264, %v7260
        %v7266 = vadd.s32 %v7261, %v7265
        %v7267 = vadd.s32 %v7266, 536870912
        %v7268 = vshrl.u32 %v7267, 30
        %v7269 = vshll.u32 %v7268, 30
        %v7270 = vsub.s32 %v7266, %v7269
        %vm7271 = vcmp.lt.s32.totalorder %v7270, 0
        %v7272 = vsub.s32 0, %v7270
        %v7273 = vsel %vm7271, %v7272, %v7270
        %v7274 = vclz %v7273
        %v7275 = vsub.s32 %v7274, 2
        %vm7276 = vcmp.gt.s32.totalorder 0, %v7275
        %v7277 = vsel %vm7276, 0, %v7275
        %v7278 = vsub.s32 32, %v7277
        %v7279 = vshll.u32 %v7270, %v7277
        %v7280 = vshrl.u32 %v7262, %v7278
        %v7281 = vor.u32 %v7279, %v7280
        %v7282 = vsub.s32 4294967266, %v7277
        %v7283 = vadd.s32 %v7282, 127
        %v7284 = vshll.u32 %v7283, 23
        %v7285 = vor.u32 4788187, %v7284
        %v7286 = vand.u32 2147483647, %v7285
        %v7288 = vcvt.s32.f32 %v7281
        %v7289 = vmul.f32 %v7288, %v7286
        %v7290 = vxor.u32 %v7289, 2147483648
        %v7291 = vsel %vm7208, %v7290, %v7289
        %v7292 = vsub.s32 4, %v7268
        %v7293 = vsel %vm7208, %v7292, %v7268
        %v7294 = vsel %vm7207, %v6336, %v7291
        %v7295 = vsel %vm7207, 0, %v7293
        %v7296 = vcosq.f32.pop %v7294
        %v7297 = vsinq.f32.pop %v7294
        %vm7298 = vweird.f32 %v6336
        %v7299 = vadd.s32 %v7295, 3
        %v7300 = vand.u32 %v7299, 3
        %vm7301 = vcmp.lt.s32.totalorder %v7300, 2
        %vm7302 = vcmp.eq.s32.totalorder %v7300, 0
        %v7303 = vxor.u32 %v7297, 2147483648
        %v7304 = vsel %vm7302, %v7296, %v7303
        %vm7305 = vcmp.eq.s32.totalorder %v7300, 2
        %v7306 = vxor.u32 %v7296, 2147483648
        %v7307 = vsel %vm7305, %v7306, %v7297
        %v7308 = vsel %vm7301, %v7304, %v7307
        %v7309 = vsel %vm7298, nan, %v7308
        %v7310 = vand.u32 2147483647, %v6341
        %vm7311 = vcmp.le.f32.partialorder %v7310, 0.7853982
        %vm7312 = vcmp.lt.s32.totalorder %v6341, 0
        %v7313 = vand.u32 %v6341, 2139095040
        %v7314 = vshrl.u32 %v7313, 23
        %v7315 = vsub.s32 %v7314, 127
        %v7316 = vand.u32 2147483647, %v6341
        %v7317 = vand.u32 %v7316, 8388607
        %v7318 = vor.u32 %v7317, 8388608
        %v7319 = vsub.s32 0, %v7318
        %v7320 = vadd.s32 %v7315, 1
        %vm7321 = vcmp.gt.s32.totalorder %v7320, 0
        %v7322 = vsel %vm7321, %v7320, 0
        %v7323 = vshrl.u32 %v7322, 5
        %v7324 = vand.u32 %v7322, 31
        %v7325 = vsub.s32 32, %v7324
        %v7326 = vshrl.u32 683565275, %v7325
        %v7327 = vshll.u32 683565275, %v7324
        %v7328 = vshrl.u32 2475754826, %v7325
        %v7329 = vor.u32 %v7327, %v7328
        %v7330 = vshll.u32 2475754826, %v7324
        %v7331 = vshrl.u32 2131351028, %v7325
        %v7332 = vor.u32 %v7330, %v7331
        %v7333 = vshll.u32 2131351028, %v7324
        %v7334 = vshrl.u32 2102212464, %v7325
        %v7335 = vor.u32 %v7333, %v7334
        %v7336 = vshll.u32 2102212464, %v7324
        %v7337 = vshrl.u32 920167782, %v7325
        %v7338 = vor.u32 %v7336, %v7337
        %v7339 = vshll.u32 920167782, %v7324
        %v7340 = vshrl.u32 1326507024, %v7325
        %v7341 = vor.u32 %v7339, %v7340
        %vm7342 = vcmp.lt.s32.totalorder %v7323, 1
        %vm7343 = vcmp.lt.s32.totalorder %v7323, 2
        %vm7344 = vcmp.lt.s32.totalorder %v7323, 3
        %vm7345 = vcmp.lt.s32.totalorder %v7323, 4
        %v7346 = vsel %vm7342, %v7326, %v7329
        %v7347 = vsel %vm7345, %v7335, 2102212464
        %v7348 = vsel %vm7344, %v7332, %v7347
        %v7349 = vsel %vm7343, %v7346, %v7348
        %v7350 = vsel %vm7342, %v7329, %v7332
        %v7351 = vsel %vm7345, %v7338, 920167782
        %v7352 = vsel %vm7344, %v7335, %v7351
        %v7353 = vsel %vm7343, %v7350, %v7352
        %v7354 = vsel %vm7342, %v7332, %v7335
        %v7355 = vsel %vm7345, %v7341, 1326507024
        %v7356 = vsel %vm7344, %v7338, %v7355
        %v7357 = vsel %vm7343, %v7354, %v7356
        %v7358 = vshll.u32 %v7318, 8
        %v7359 = vmul.u32.u64.compose %v7358, %v7357
        %v7360 = vextract.low.u32 %v7359
        %v7361 = vextract.high.u32 %v7359
        %v7362 = vmul.u32.u64.compose %v7358, %v7353
        %v7363 = vextract.low.u32 %v7362
        %v7364 = vextract.high.u32 %v7362
        %v7365 = vmul.u32 %v7358, %v7349
        %v7366 = vadd.s32 %v7361, %v7363
        %vm7367 = vc.u32 %v7361, %v7363
        %v7368 = vadd.s32 %v7364, 1
        %v7369 = vsel %vm7367, %v7368, %v7364
        %v7370 = vadd.s32 %v7365, %v7369
        %v7371 = vadd.s32 %v7370, 536870912
        %v7372 = vshrl.u32 %v7371, 30
        %v7373 = vshll.u32 %v7372, 30
        %v7374 = vsub.s32 %v7370, %v7373
        %vm7375 = vcmp.lt.s32.totalorder %v7374, 0
        %v7376 = vsub.s32 0, %v7374
        %v7377 = vsel %vm7375, %v7376, %v7374
        %v7378 = vclz %v7377
        %v7379 = vsub.s32 %v7378, 2
        %vm7380 = vcmp.gt.s32.totalorder 0, %v7379
        %v7381 = vsel %vm7380, 0, %v7379
        %v7382 = vsub.s32 32, %v7381
        %v7383 = vshll.u32 %v7374, %v7381
        %v7384 = vshrl.u32 %v7366, %v7382
        %v7385 = vor.u32 %v7383, %v7384
        %v7386 = vsub.s32 4294967266, %v7381
        %v7387 = vadd.s32 %v7386, 127
        %v7388 = vshll.u32 %v7387, 23
        %v7389 = vor.u32 4788187, %v7388
        %v7390 = vand.u32 2147483647, %v7389
        %v7392 = vcvt.s32.f32 %v7385
        %v7393 = vmul.f32 %v7392, %v7390
        %v7394 = vxor.u32 %v7393, 2147483648
        %v7395 = vsel %vm7312, %v7394, %v7393
        %v7396 = vsub.s32 4, %v7372
        %v7397 = vsel %vm7312, %v7396, %v7372
        %v7398 = vsel %vm7311, %v6341, %v7395
        %v7399 = vsel %vm7311, 0, %v7397
        %v7400 = vcosq.f32.pop %v7398
        %v7401 = vsinq.f32.pop %v7398
        %vm7402 = vweird.f32 %v6341
        %v7403 = vadd.s32 %v7399, 3
        %v7404 = vand.u32 %v7403, 3
        %vm7405 = vcmp.lt.s32.totalorder %v7404, 2
        %vm7406 = vcmp.eq.s32.totalorder %v7404, 0
        %v7407 = vxor.u32 %v7401, 2147483648
        %v7408 = vsel %vm7406, %v7400, %v7407
        %vm7409 = vcmp.eq.s32.totalorder %v7404, 2
        %v7410 = vxor.u32 %v7400, 2147483648
        %v7411 = vsel %vm7409, %v7410, %v7401
        %v7412 = vsel %vm7405, %v7408, %v7411
        %v7413 = vsel %vm7402, nan, %v7412
        %v7414 = vand.u32 2147483647, %v6346
        %vm7415 = vcmp.le.f32.partialorder %v7414, 0.7853982
        %vm7416 = vcmp.lt.s32.totalorder %v6346, 0
        %v7417 = vand.u32 %v6346, 2139095040
        %v7418 = vshrl.u32 %v7417, 23
        %v7419 = vsub.s32 %v7418, 127
        %v7420 = vand.u32 2147483647, %v6346
        %v7421 = vand.u32 %v7420, 8388607
        %v7422 = vor.u32 %v7421, 8388608
        %v7423 = vsub.s32 0, %v7422
        %v7424 = vadd.s32 %v7419, 1
        %vm7425 = vcmp.gt.s32.totalorder %v7424, 0
        %v7426 = vsel %vm7425, %v7424, 0
        %v7427 = vshrl.u32 %v7426, 5
        %v7428 = vand.u32 %v7426, 31
        %v7429 = vsub.s32 32, %v7428
        %v7430 = vshrl.u32 683565275, %v7429
        %v7431 = vshll.u32 683565275, %v7428
        %v7432 = vshrl.u32 2475754826, %v7429
        %v7433 = vor.u32 %v7431, %v7432
        %v7434 = vshll.u32 2475754826, %v7428
        %v7435 = vshrl.u32 2131351028, %v7429
        %v7436 = vor.u32 %v7434, %v7435
        %v7437 = vshll.u32 2131351028, %v7428
        %v7438 = vshrl.u32 2102212464, %v7429
        %v7439 = vor.u32 %v7437, %v7438
        %v7440 = vshll.u32 2102212464, %v7428
        %v7441 = vshrl.u32 920167782, %v7429
        %v7442 = vor.u32 %v7440, %v7441
        %v7443 = vshll.u32 920167782, %v7428
        %v7444 = vshrl.u32 1326507024, %v7429
        %v7445 = vor.u32 %v7443, %v7444
        %vm7446 = vcmp.lt.s32.totalorder %v7427, 1
        %vm7447 = vcmp.lt.s32.totalorder %v7427, 2
        %vm7448 = vcmp.lt.s32.totalorder %v7427, 3
        %vm7449 = vcmp.lt.s32.totalorder %v7427, 4
        %v7450 = vsel %vm7446, %v7430, %v7433
        %v7451 = vsel %vm7449, %v7439, 2102212464
        %v7452 = vsel %vm7448, %v7436, %v7451
        %v7453 = vsel %vm7447, %v7450, %v7452
        %v7454 = vsel %vm7446, %v7433, %v7436
        %v7455 = vsel %vm7449, %v7442, 920167782
        %v7456 = vsel %vm7448, %v7439, %v7455
        %v7457 = vsel %vm7447, %v7454, %v7456
        %v7458 = vsel %vm7446, %v7436, %v7439
        %v7459 = vsel %vm7449, %v7445, 1326507024
        %v7460 = vsel %vm7448, %v7442, %v7459
        %v7461 = vsel %vm7447, %v7458, %v7460
        %v7462 = vshll.u32 %v7422, 8
        %v7463 = vmul.u32.u64.compose %v7462, %v7461
        %v7464 = vextract.low.u32 %v7463
        %v7465 = vextract.high.u32 %v7463
        %v7466 = vmul.u32.u64.compose %v7462, %v7457
        %v7467 = vextract.low.u32 %v7466
        %v7468 = vextract.high.u32 %v7466
        %v7469 = vmul.u32 %v7462, %v7453
        %v7470 = vadd.s32 %v7465, %v7467
        %vm7471 = vc.u32 %v7465, %v7467
        %v7472 = vadd.s32 %v7468, 1
        %v7473 = vsel %vm7471, %v7472, %v7468
        %v7474 = vadd.s32 %v7469, %v7473
        %v7475 = vadd.s32 %v7474, 536870912
        %v7476 = vshrl.u32 %v7475, 30
        %v7477 = vshll.u32 %v7476, 30
        %v7478 = vsub.s32 %v7474, %v7477
        %vm7479 = vcmp.lt.s32.totalorder %v7478, 0
        %v7480 = vsub.s32 0, %v7478
        %v7481 = vsel %vm7479, %v7480, %v7478
        %v7482 = vclz %v7481
        %v7483 = vsub.s32 %v7482, 2
        %vm7484 = vcmp.gt.s32.totalorder 0, %v7483
        %v7485 = vsel %vm7484, 0, %v7483
        %v7486 = vsub.s32 32, %v7485
        %v7487 = vshll.u32 %v7478, %v7485
        %v7488 = vshrl.u32 %v7470, %v7486
        %v7489 = vor.u32 %v7487, %v7488
        %v7490 = vsub.s32 4294967266, %v7485
        %v7491 = vadd.s32 %v7490, 127
        %v7492 = vshll.u32 %v7491, 23
        %v7493 = vor.u32 4788187, %v7492
        %v7494 = vand.u32 2147483647, %v7493
        %v7496 = vcvt.s32.f32 %v7489
        %v7497 = vmul.f32 %v7496, %v7494
        %v7498 = vxor.u32 %v7497, 2147483648
        %v7499 = vsel %vm7416, %v7498, %v7497
        %v7500 = vsub.s32 4, %v7476
        %v7501 = vsel %vm7416, %v7500, %v7476
        %v7502 = vsel %vm7415, %v6346, %v7499
        %v7503 = vsel %vm7415, 0, %v7501
        %v7504 = vcosq.f32.pop %v7502
        %v7505 = vsinq.f32.pop %v7502
        %vm7506 = vweird.f32 %v6346
        %v7507 = vadd.s32 %v7503, 3
        %v7508 = vand.u32 %v7507, 3
        %vm7509 = vcmp.lt.s32.totalorder %v7508, 2
        %vm7510 = vcmp.eq.s32.totalorder %v7508, 0
        %v7511 = vxor.u32 %v7505, 2147483648
        %v7512 = vsel %vm7510, %v7504, %v7511
        %vm7513 = vcmp.eq.s32.totalorder %v7508, 2
        %v7514 = vxor.u32 %v7504, 2147483648
        %v7515 = vsel %vm7513, %v7514, %v7505
        %v7516 = vsel %vm7509, %v7512, %v7515
        %v7517 = vsel %vm7506, nan, %v7516
        %v7518 = vand.u32 2147483647, %v6351
        %vm7519 = vcmp.le.f32.partialorder %v7518, 0.7853982
        %vm7520 = vcmp.lt.s32.totalorder %v6351, 0
        %v7521 = vand.u32 %v6351, 2139095040
        %v7522 = vshrl.u32 %v7521, 23
        %v7523 = vsub.s32 %v7522, 127
        %v7524 = vand.u32 2147483647, %v6351
        %v7525 = vand.u32 %v7524, 8388607
        %v7526 = vor.u32 %v7525, 8388608
        %v7527 = vsub.s32 0, %v7526
        %v7528 = vadd.s32 %v7523, 1
        %vm7529 = vcmp.gt.s32.totalorder %v7528, 0
        %v7530 = vsel %vm7529, %v7528, 0
        %v7531 = vshrl.u32 %v7530, 5
        %v7532 = vand.u32 %v7530, 31
        %v7533 = vsub.s32 32, %v7532
        %v7534 = vshrl.u32 683565275, %v7533
        %v7535 = vshll.u32 683565275, %v7532
        %v7536 = vshrl.u32 2475754826, %v7533
        %v7537 = vor.u32 %v7535, %v7536
        %v7538 = vshll.u32 2475754826, %v7532
        %v7539 = vshrl.u32 2131351028, %v7533
        %v7540 = vor.u32 %v7538, %v7539
        %v7541 = vshll.u32 2131351028, %v7532
        %v7542 = vshrl.u32 2102212464, %v7533
        %v7543 = vor.u32 %v7541, %v7542
        %v7544 = vshll.u32 2102212464, %v7532
        %v7545 = vshrl.u32 920167782, %v7533
        %v7546 = vor.u32 %v7544, %v7545
        %v7547 = vshll.u32 920167782, %v7532
        %v7548 = vshrl.u32 1326507024, %v7533
        %v7549 = vor.u32 %v7547, %v7548
        %vm7550 = vcmp.lt.s32.totalorder %v7531, 1
        %vm7551 = vcmp.lt.s32.totalorder %v7531, 2
        %vm7552 = vcmp.lt.s32.totalorder %v7531, 3
        %vm7553 = vcmp.lt.s32.totalorder %v7531, 4
        %v7554 = vsel %vm7550, %v7534, %v7537
        %v7555 = vsel %vm7553, %v7543, 2102212464
        %v7556 = vsel %vm7552, %v7540, %v7555
        %v7557 = vsel %vm7551, %v7554, %v7556
        %v7558 = vsel %vm7550, %v7537, %v7540
        %v7559 = vsel %vm7553, %v7546, 920167782
        %v7560 = vsel %vm7552, %v7543, %v7559
        %v7561 = vsel %vm7551, %v7558, %v7560
        %v7562 = vsel %vm7550, %v7540, %v7543
        %v7563 = vsel %vm7553, %v7549, 1326507024
        %v7564 = vsel %vm7552, %v7546, %v7563
        %v7565 = vsel %vm7551, %v7562, %v7564
        %v7566 = vshll.u32 %v7526, 8
        %v7567 = vmul.u32.u64.compose %v7566, %v7565
        %v7568 = vextract.low.u32 %v7567
        %v7569 = vextract.high.u32 %v7567
        %v7570 = vmul.u32.u64.compose %v7566, %v7561
        %v7571 = vextract.low.u32 %v7570
        %v7572 = vextract.high.u32 %v7570
        %v7573 = vmul.u32 %v7566, %v7557
        %v7574 = vadd.s32 %v7569, %v7571
        %vm7575 = vc.u32 %v7569, %v7571
        %v7576 = vadd.s32 %v7572, 1
        %v7577 = vsel %vm7575, %v7576, %v7572
        %v7578 = vadd.s32 %v7573, %v7577
        %v7579 = vadd.s32 %v7578, 536870912
        %v7580 = vshrl.u32 %v7579, 30
        %v7581 = vshll.u32 %v7580, 30
        %v7582 = vsub.s32 %v7578, %v7581
        %vm7583 = vcmp.lt.s32.totalorder %v7582, 0
        %v7584 = vsub.s32 0, %v7582
        %v7585 = vsel %vm7583, %v7584, %v7582
        %v7586 = vclz %v7585
        %v7587 = vsub.s32 %v7586, 2
        %vm7588 = vcmp.gt.s32.totalorder 0, %v7587
        %v7589 = vsel %vm7588, 0, %v7587
        %v7590 = vsub.s32 32, %v7589
        %v7591 = vshll.u32 %v7582, %v7589
        %v7592 = vshrl.u32 %v7574, %v7590
        %v7593 = vor.u32 %v7591, %v7592
        %v7594 = vsub.s32 4294967266, %v7589
        %v7595 = vadd.s32 %v7594, 127
        %v7596 = vshll.u32 %v7595, 23
        %v7597 = vor.u32 4788187, %v7596
        %v7598 = vand.u32 2147483647, %v7597
        %v7600 = vcvt.s32.f32 %v7593
        %v7601 = vmul.f32 %v7600, %v7598
        %v7602 = vxor.u32 %v7601, 2147483648
        %v7603 = vsel %vm7520, %v7602, %v7601
        %v7604 = vsub.s32 4, %v7580
        %v7605 = vsel %vm7520, %v7604, %v7580
        %v7606 = vsel %vm7519, %v6351, %v7603
        %v7607 = vsel %vm7519, 0, %v7605
        %v7608 = vcosq.f32.pop %v7606
        %v7609 = vsinq.f32.pop %v7606
        %vm7610 = vweird.f32 %v6351
        %v7611 = vadd.s32 %v7607, 3
        %v7612 = vand.u32 %v7611, 3
        %vm7613 = vcmp.lt.s32.totalorder %v7612, 2
        %vm7614 = vcmp.eq.s32.totalorder %v7612, 0
        %v7615 = vxor.u32 %v7609, 2147483648
        %v7616 = vsel %vm7614, %v7608, %v7615
        %vm7617 = vcmp.eq.s32.totalorder %v7612, 2
        %v7618 = vxor.u32 %v7608, 2147483648
        %v7619 = vsel %vm7617, %v7618, %v7609
        %v7620 = vsel %vm7613, %v7616, %v7619
        %v7621 = vsel %vm7610, nan, %v7620
        %v7622 = vand.u32 2147483647, %v6356
        %vm7623 = vcmp.le.f32.partialorder %v7622, 0.7853982
        %vm7624 = vcmp.lt.s32.totalorder %v6356, 0
        %v7625 = vand.u32 %v6356, 2139095040
        %v7626 = vshrl.u32 %v7625, 23
        %v7627 = vsub.s32 %v7626, 127
        %v7628 = vand.u32 2147483647, %v6356
        %v7629 = vand.u32 %v7628, 8388607
        %v7630 = vor.u32 %v7629, 8388608
        %v7631 = vsub.s32 0, %v7630
        %v7632 = vadd.s32 %v7627, 1
        %vm7633 = vcmp.gt.s32.totalorder %v7632, 0
        %v7634 = vsel %vm7633, %v7632, 0
        %v7635 = vshrl.u32 %v7634, 5
        %v7636 = vand.u32 %v7634, 31
        %v7637 = vsub.s32 32, %v7636
        %v7638 = vshrl.u32 683565275, %v7637
        %v7639 = vshll.u32 683565275, %v7636
        %v7640 = vshrl.u32 2475754826, %v7637
        %v7641 = vor.u32 %v7639, %v7640
        %v7642 = vshll.u32 2475754826, %v7636
        %v7643 = vshrl.u32 2131351028, %v7637
        %v7644 = vor.u32 %v7642, %v7643
        %v7645 = vshll.u32 2131351028, %v7636
        %v7646 = vshrl.u32 2102212464, %v7637
        %v7647 = vor.u32 %v7645, %v7646
        %v7648 = vshll.u32 2102212464, %v7636
        %v7649 = vshrl.u32 920167782, %v7637
        %v7650 = vor.u32 %v7648, %v7649
        %v7651 = vshll.u32 920167782, %v7636
        %v7652 = vshrl.u32 1326507024, %v7637
        %v7653 = vor.u32 %v7651, %v7652
        %vm7654 = vcmp.lt.s32.totalorder %v7635, 1
        %vm7655 = vcmp.lt.s32.totalorder %v7635, 2
        %vm7656 = vcmp.lt.s32.totalorder %v7635, 3
        %vm7657 = vcmp.lt.s32.totalorder %v7635, 4
        %v7658 = vsel %vm7654, %v7638, %v7641
        %v7659 = vsel %vm7657, %v7647, 2102212464
        %v7660 = vsel %vm7656, %v7644, %v7659
        %v7661 = vsel %vm7655, %v7658, %v7660
        %v7662 = vsel %vm7654, %v7641, %v7644
        %v7663 = vsel %vm7657, %v7650, 920167782
        %v7664 = vsel %vm7656, %v7647, %v7663
        %v7665 = vsel %vm7655, %v7662, %v7664
        %v7666 = vsel %vm7654, %v7644, %v7647
        %v7667 = vsel %vm7657, %v7653, 1326507024
        %v7668 = vsel %vm7656, %v7650, %v7667
        %v7669 = vsel %vm7655, %v7666, %v7668
        %v7670 = vshll.u32 %v7630, 8
        %v7671 = vmul.u32.u64.compose %v7670, %v7669
        %v7672 = vextract.low.u32 %v7671
        %v7673 = vextract.high.u32 %v7671
        %v7674 = vmul.u32.u64.compose %v7670, %v7665
        %v7675 = vextract.low.u32 %v7674
        %v7676 = vextract.high.u32 %v7674
        %v7677 = vmul.u32 %v7670, %v7661
        %v7678 = vadd.s32 %v7673, %v7675
        %vm7679 = vc.u32 %v7673, %v7675
        %v7680 = vadd.s32 %v7676, 1
        %v7681 = vsel %vm7679, %v7680, %v7676
        %v7682 = vadd.s32 %v7677, %v7681
        %v7683 = vadd.s32 %v7682, 536870912
        %v7684 = vshrl.u32 %v7683, 30
        %v7685 = vshll.u32 %v7684, 30
        %v7686 = vsub.s32 %v7682, %v7685
        %vm7687 = vcmp.lt.s32.totalorder %v7686, 0
        %v7688 = vsub.s32 0, %v7686
        %v7689 = vsel %vm7687, %v7688, %v7686
        %v7690 = vclz %v7689
        %v7691 = vsub.s32 %v7690, 2
        %vm7692 = vcmp.gt.s32.totalorder 0, %v7691
        %v7693 = vsel %vm7692, 0, %v7691
        %v7694 = vsub.s32 32, %v7693
        %v7695 = vshll.u32 %v7686, %v7693
        %v7696 = vshrl.u32 %v7678, %v7694
        %v7697 = vor.u32 %v7695, %v7696
        %v7698 = vsub.s32 4294967266, %v7693
        %v7699 = vadd.s32 %v7698, 127
        %v7700 = vshll.u32 %v7699, 23
        %v7701 = vor.u32 4788187, %v7700
        %v7702 = vand.u32 2147483647, %v7701
        %v7704 = vcvt.s32.f32 %v7697
        %v7705 = vmul.f32 %v7704, %v7702
        %v7706 = vxor.u32 %v7705, 2147483648
        %v7707 = vsel %vm7624, %v7706, %v7705
        %v7708 = vsub.s32 4, %v7684
        %v7709 = vsel %vm7624, %v7708, %v7684
        %v7710 = vsel %vm7623, %v6356, %v7707
        %v7711 = vsel %vm7623, 0, %v7709
        %v7712 = vcosq.f32.pop %v7710
        %v7713 = vsinq.f32.pop %v7710
        %vm7714 = vweird.f32 %v6356
        %v7715 = vadd.s32 %v7711, 3
        %v7716 = vand.u32 %v7715, 3
        %vm7717 = vcmp.lt.s32.totalorder %v7716, 2
        %vm7718 = vcmp.eq.s32.totalorder %v7716, 0
        %v7719 = vxor.u32 %v7713, 2147483648
        %v7720 = vsel %vm7718, %v7712, %v7719
        %vm7721 = vcmp.eq.s32.totalorder %v7716, 2
        %v7722 = vxor.u32 %v7712, 2147483648
        %v7723 = vsel %vm7721, %v7722, %v7713
        %v7724 = vsel %vm7717, %v7720, %v7723
        %v7725 = vsel %vm7714, nan, %v7724
        %v7726 = vand.u32 2147483647, %v6361
        %vm7727 = vcmp.le.f32.partialorder %v7726, 0.7853982
        %vm7728 = vcmp.lt.s32.totalorder %v6361, 0
        %v7729 = vand.u32 %v6361, 2139095040
        %v7730 = vshrl.u32 %v7729, 23
        %v7731 = vsub.s32 %v7730, 127
        %v7732 = vand.u32 2147483647, %v6361
        %v7733 = vand.u32 %v7732, 8388607
        %v7734 = vor.u32 %v7733, 8388608
        %v7735 = vsub.s32 0, %v7734
        %v7736 = vadd.s32 %v7731, 1
        %vm7737 = vcmp.gt.s32.totalorder %v7736, 0
        %v7738 = vsel %vm7737, %v7736, 0
        %v7739 = vshrl.u32 %v7738, 5
        %v7740 = vand.u32 %v7738, 31
        %v7741 = vsub.s32 32, %v7740
        %v7742 = vshrl.u32 683565275, %v7741
        %v7743 = vshll.u32 683565275, %v7740
        %v7744 = vshrl.u32 2475754826, %v7741
        %v7745 = vor.u32 %v7743, %v7744
        %v7746 = vshll.u32 2475754826, %v7740
        %v7747 = vshrl.u32 2131351028, %v7741
        %v7748 = vor.u32 %v7746, %v7747
        %v7749 = vshll.u32 2131351028, %v7740
        %v7750 = vshrl.u32 2102212464, %v7741
        %v7751 = vor.u32 %v7749, %v7750
        %v7752 = vshll.u32 2102212464, %v7740
        %v7753 = vshrl.u32 920167782, %v7741
        %v7754 = vor.u32 %v7752, %v7753
        %v7755 = vshll.u32 920167782, %v7740
        %v7756 = vshrl.u32 1326507024, %v7741
        %v7757 = vor.u32 %v7755, %v7756
        %vm7758 = vcmp.lt.s32.totalorder %v7739, 1
        %vm7759 = vcmp.lt.s32.totalorder %v7739, 2
        %vm7760 = vcmp.lt.s32.totalorder %v7739, 3
        %vm7761 = vcmp.lt.s32.totalorder %v7739, 4
        %v7762 = vsel %vm7758, %v7742, %v7745
        %v7763 = vsel %vm7761, %v7751, 2102212464
        %v7764 = vsel %vm7760, %v7748, %v7763
        %v7765 = vsel %vm7759, %v7762, %v7764
        %v7766 = vsel %vm7758, %v7745, %v7748
        %v7767 = vsel %vm7761, %v7754, 920167782
        %v7768 = vsel %vm7760, %v7751, %v7767
        %v7769 = vsel %vm7759, %v7766, %v7768
        %v7770 = vsel %vm7758, %v7748, %v7751
        %v7771 = vsel %vm7761, %v7757, 1326507024
        %v7772 = vsel %vm7760, %v7754, %v7771
        %v7773 = vsel %vm7759, %v7770, %v7772
        %v7774 = vshll.u32 %v7734, 8
        %v7775 = vmul.u32.u64.compose %v7774, %v7773
        %v7776 = vextract.low.u32 %v7775
        %v7777 = vextract.high.u32 %v7775
        %v7778 = vmul.u32.u64.compose %v7774, %v7769
        %v7779 = vextract.low.u32 %v7778
        %v7780 = vextract.high.u32 %v7778
        %v7781 = vmul.u32 %v7774, %v7765
        %v7782 = vadd.s32 %v7777, %v7779
        %vm7783 = vc.u32 %v7777, %v7779
        %v7784 = vadd.s32 %v7780, 1
        %v7785 = vsel %vm7783, %v7784, %v7780
        %v7786 = vadd.s32 %v7781, %v7785
        %v7787 = vadd.s32 %v7786, 536870912
        %v7788 = vshrl.u32 %v7787, 30
        %v7789 = vshll.u32 %v7788, 30
        %v7790 = vsub.s32 %v7786, %v7789
        %vm7791 = vcmp.lt.s32.totalorder %v7790, 0
        %v7792 = vsub.s32 0, %v7790
        %v7793 = vsel %vm7791, %v7792, %v7790
        %v7794 = vclz %v7793
        %v7795 = vsub.s32 %v7794, 2
        %vm7796 = vcmp.gt.s32.totalorder 0, %v7795
        %v7797 = vsel %vm7796, 0, %v7795
        %v7798 = vsub.s32 32, %v7797
        %v7799 = vshll.u32 %v7790, %v7797
        %v7800 = vshrl.u32 %v7782, %v7798
        %v7801 = vor.u32 %v7799, %v7800
        %v7802 = vsub.s32 4294967266, %v7797
        %v7803 = vadd.s32 %v7802, 127
        %v7804 = vshll.u32 %v7803, 23
        %v7805 = vor.u32 4788187, %v7804
        %v7806 = vand.u32 2147483647, %v7805
        %v7808 = vcvt.s32.f32 %v7801
        %v7809 = vmul.f32 %v7808, %v7806
        %v7810 = vxor.u32 %v7809, 2147483648
        %v7811 = vsel %vm7728, %v7810, %v7809
        %v7812 = vsub.s32 4, %v7788
        %v7813 = vsel %vm7728, %v7812, %v7788
        %v7814 = vsel %vm7727, %v6361, %v7811
        %v7815 = vsel %vm7727, 0, %v7813
        %v7816 = vcosq.f32.pop %v7814
        %v7817 = vsinq.f32.pop %v7814
        %vm7818 = vweird.f32 %v6361
        %v7819 = vadd.s32 %v7815, 3
        %v7820 = vand.u32 %v7819, 3
        %vm7821 = vcmp.lt.s32.totalorder %v7820, 2
        %vm7822 = vcmp.eq.s32.totalorder %v7820, 0
        %v7823 = vxor.u32 %v7817, 2147483648
        %v7824 = vsel %vm7822, %v7816, %v7823
        %vm7825 = vcmp.eq.s32.totalorder %v7820, 2
        %v7826 = vxor.u32 %v7816, 2147483648
        %v7827 = vsel %vm7825, %v7826, %v7817
        %v7828 = vsel %vm7821, %v7824, %v7827
        %v7829 = vsel %vm7818, nan, %v7828
        %v7830 = vand.u32 2147483647, %v6366
        %vm7831 = vcmp.le.f32.partialorder %v7830, 0.7853982
        %vm7832 = vcmp.lt.s32.totalorder %v6366, 0
        %v7833 = vand.u32 %v6366, 2139095040
        %v7834 = vshrl.u32 %v7833, 23
        %v7835 = vsub.s32 %v7834, 127
        %v7836 = vand.u32 2147483647, %v6366
        %v7837 = vand.u32 %v7836, 8388607
        %v7838 = vor.u32 %v7837, 8388608
        %v7839 = vsub.s32 0, %v7838
        %v7840 = vadd.s32 %v7835, 1
        %vm7841 = vcmp.gt.s32.totalorder %v7840, 0
        %v7842 = vsel %vm7841, %v7840, 0
        %v7843 = vshrl.u32 %v7842, 5
        %v7844 = vand.u32 %v7842, 31
        %v7845 = vsub.s32 32, %v7844
        %v7846 = vshrl.u32 683565275, %v7845
        %v7847 = vshll.u32 683565275, %v7844
        %v7848 = vshrl.u32 2475754826, %v7845
        %v7849 = vor.u32 %v7847, %v7848
        %v7850 = vshll.u32 2475754826, %v7844
        %v7851 = vshrl.u32 2131351028, %v7845
        %v7852 = vor.u32 %v7850, %v7851
        %v7853 = vshll.u32 2131351028, %v7844
        %v7854 = vshrl.u32 2102212464, %v7845
        %v7855 = vor.u32 %v7853, %v7854
        %v7856 = vshll.u32 2102212464, %v7844
        %v7857 = vshrl.u32 920167782, %v7845
        %v7858 = vor.u32 %v7856, %v7857
        %v7859 = vshll.u32 920167782, %v7844
        %v7860 = vshrl.u32 1326507024, %v7845
        %v7861 = vor.u32 %v7859, %v7860
        %vm7862 = vcmp.lt.s32.totalorder %v7843, 1
        %vm7863 = vcmp.lt.s32.totalorder %v7843, 2
        %vm7864 = vcmp.lt.s32.totalorder %v7843, 3
        %vm7865 = vcmp.lt.s32.totalorder %v7843, 4
        %v7866 = vsel %vm7862, %v7846, %v7849
        %v7867 = vsel %vm7865, %v7855, 2102212464
        %v7868 = vsel %vm7864, %v7852, %v7867
        %v7869 = vsel %vm7863, %v7866, %v7868
        %v7870 = vsel %vm7862, %v7849, %v7852
        %v7871 = vsel %vm7865, %v7858, 920167782
        %v7872 = vsel %vm7864, %v7855, %v7871
        %v7873 = vsel %vm7863, %v7870, %v7872
        %v7874 = vsel %vm7862, %v7852, %v7855
        %v7875 = vsel %vm7865, %v7861, 1326507024
        %v7876 = vsel %vm7864, %v7858, %v7875
        %v7877 = vsel %vm7863, %v7874, %v7876
        %v7878 = vshll.u32 %v7838, 8
        %v7879 = vmul.u32.u64.compose %v7878, %v7877
        %v7880 = vextract.low.u32 %v7879
        %v7881 = vextract.high.u32 %v7879
        %v7882 = vmul.u32.u64.compose %v7878, %v7873
        %v7883 = vextract.low.u32 %v7882
        %v7884 = vextract.high.u32 %v7882
        %v7885 = vmul.u32 %v7878, %v7869
        %v7886 = vadd.s32 %v7881, %v7883
        %vm7887 = vc.u32 %v7881, %v7883
        %v7888 = vadd.s32 %v7884, 1
        %v7889 = vsel %vm7887, %v7888, %v7884
        %v7890 = vadd.s32 %v7885, %v7889
        %v7891 = vadd.s32 %v7890, 536870912
        %v7892 = vshrl.u32 %v7891, 30
        %v7893 = vshll.u32 %v7892, 30
        %v7894 = vsub.s32 %v7890, %v7893
        %vm7895 = vcmp.lt.s32.totalorder %v7894, 0
        %v7896 = vsub.s32 0, %v7894
        %v7897 = vsel %vm7895, %v7896, %v7894
        %v7898 = vclz %v7897
        %v7899 = vsub.s32 %v7898, 2
        %vm7900 = vcmp.gt.s32.totalorder 0, %v7899
        %v7901 = vsel %vm7900, 0, %v7899
        %v7902 = vsub.s32 32, %v7901
        %v7903 = vshll.u32 %v7894, %v7901
        %v7904 = vshrl.u32 %v7886, %v7902
        %v7905 = vor.u32 %v7903, %v7904
        %v7906 = vsub.s32 4294967266, %v7901
        %v7907 = vadd.s32 %v7906, 127
        %v7908 = vshll.u32 %v7907, 23
        %v7909 = vor.u32 4788187, %v7908
        %v7910 = vand.u32 2147483647, %v7909
        %v7912 = vcvt.s32.f32 %v7905
        %v7913 = vmul.f32 %v7912, %v7910
        %v7914 = vxor.u32 %v7913, 2147483648
        %v7915 = vsel %vm7832, %v7914, %v7913
        %v7916 = vsub.s32 4, %v7892
        %v7917 = vsel %vm7832, %v7916, %v7892
        %v7918 = vsel %vm7831, %v6366, %v7915
        %v7919 = vsel %vm7831, 0, %v7917
        %v7920 = vcosq.f32.pop %v7918
        %v7921 = vsinq.f32.pop %v7918
        %vm7922 = vweird.f32 %v6366
        %v7923 = vadd.s32 %v7919, 3
        %v7924 = vand.u32 %v7923, 3
        %vm7925 = vcmp.lt.s32.totalorder %v7924, 2
        %vm7926 = vcmp.eq.s32.totalorder %v7924, 0
        %v7927 = vxor.u32 %v7921, 2147483648
        %v7928 = vsel %vm7926, %v7920, %v7927
        %vm7929 = vcmp.eq.s32.totalorder %v7924, 2
        %v7930 = vxor.u32 %v7920, 2147483648
        %v7931 = vsel %vm7929, %v7930, %v7921
        %v7932 = vsel %vm7925, %v7928, %v7931
        %v7933 = vsel %vm7922, nan, %v7932
        %v7934 = vand.u32 2147483647, %v6371
        %vm7935 = vcmp.le.f32.partialorder %v7934, 0.7853982
        %vm7936 = vcmp.lt.s32.totalorder %v6371, 0
        %v7937 = vand.u32 %v6371, 2139095040
        %v7938 = vshrl.u32 %v7937, 23
        %v7939 = vsub.s32 %v7938, 127
        %v7940 = vand.u32 2147483647, %v6371
        %v7941 = vand.u32 %v7940, 8388607
        %v7942 = vor.u32 %v7941, 8388608
        %v7943 = vsub.s32 0, %v7942
        %v7944 = vadd.s32 %v7939, 1
        %vm7945 = vcmp.gt.s32.totalorder %v7944, 0
        %v7946 = vsel %vm7945, %v7944, 0
        %v7947 = vshrl.u32 %v7946, 5
        %v7948 = vand.u32 %v7946, 31
        %v7949 = vsub.s32 32, %v7948
        %v7950 = vshrl.u32 683565275, %v7949
        %v7951 = vshll.u32 683565275, %v7948
        %v7952 = vshrl.u32 2475754826, %v7949
        %v7953 = vor.u32 %v7951, %v7952
        %v7954 = vshll.u32 2475754826, %v7948
        %v7955 = vshrl.u32 2131351028, %v7949
        %v7956 = vor.u32 %v7954, %v7955
        %v7957 = vshll.u32 2131351028, %v7948
        %v7958 = vshrl.u32 2102212464, %v7949
        %v7959 = vor.u32 %v7957, %v7958
        %v7960 = vshll.u32 2102212464, %v7948
        %v7961 = vshrl.u32 920167782, %v7949
        %v7962 = vor.u32 %v7960, %v7961
        %v7963 = vshll.u32 920167782, %v7948
        %v7964 = vshrl.u32 1326507024, %v7949
        %v7965 = vor.u32 %v7963, %v7964
        %vm7966 = vcmp.lt.s32.totalorder %v7947, 1
        %vm7967 = vcmp.lt.s32.totalorder %v7947, 2
        %vm7968 = vcmp.lt.s32.totalorder %v7947, 3
        %vm7969 = vcmp.lt.s32.totalorder %v7947, 4
        %v7970 = vsel %vm7966, %v7950, %v7953
        %v7971 = vsel %vm7969, %v7959, 2102212464
        %v7972 = vsel %vm7968, %v7956, %v7971
        %v7973 = vsel %vm7967, %v7970, %v7972
        %v7974 = vsel %vm7966, %v7953, %v7956
        %v7975 = vsel %vm7969, %v7962, 920167782
        %v7976 = vsel %vm7968, %v7959, %v7975
        %v7977 = vsel %vm7967, %v7974, %v7976
        %v7978 = vsel %vm7966, %v7956, %v7959
        %v7979 = vsel %vm7969, %v7965, 1326507024
        %v7980 = vsel %vm7968, %v7962, %v7979
        %v7981 = vsel %vm7967, %v7978, %v7980
        %v7982 = vshll.u32 %v7942, 8
        %v7983 = vmul.u32.u64.compose %v7982, %v7981
        %v7984 = vextract.low.u32 %v7983
        %v7985 = vextract.high.u32 %v7983
        %v7986 = vmul.u32.u64.compose %v7982, %v7977
        %v7987 = vextract.low.u32 %v7986
        %v7988 = vextract.high.u32 %v7986
        %v7989 = vmul.u32 %v7982, %v7973
        %v7990 = vadd.s32 %v7985, %v7987
        %vm7991 = vc.u32 %v7985, %v7987
        %v7992 = vadd.s32 %v7988, 1
        %v7993 = vsel %vm7991, %v7992, %v7988
        %v7994 = vadd.s32 %v7989, %v7993
        %v7995 = vadd.s32 %v7994, 536870912
        %v7996 = vshrl.u32 %v7995, 30
        %v7997 = vshll.u32 %v7996, 30
        %v7998 = vsub.s32 %v7994, %v7997
        %vm7999 = vcmp.lt.s32.totalorder %v7998, 0
        %v8000 = vsub.s32 0, %v7998
        %v8001 = vsel %vm7999, %v8000, %v7998
        %v8002 = vclz %v8001
        %v8003 = vsub.s32 %v8002, 2
        %vm8004 = vcmp.gt.s32.totalorder 0, %v8003
        %v8005 = vsel %vm8004, 0, %v8003
        %v8006 = vsub.s32 32, %v8005
        %v8007 = vshll.u32 %v7998, %v8005
        %v8008 = vshrl.u32 %v7990, %v8006
        %v8009 = vor.u32 %v8007, %v8008
        %v8010 = vsub.s32 4294967266, %v8005
        %v8011 = vadd.s32 %v8010, 127
        %v8012 = vshll.u32 %v8011, 23
        %v8013 = vor.u32 4788187, %v8012
        %v8014 = vand.u32 2147483647, %v8013
        %v8016 = vcvt.s32.f32 %v8009
        %v8017 = vmul.f32 %v8016, %v8014
        %v8018 = vxor.u32 %v8017, 2147483648
        %v8019 = vsel %vm7936, %v8018, %v8017
        %v8020 = vsub.s32 4, %v7996
        %v8021 = vsel %vm7936, %v8020, %v7996
        %v8022 = vsel %vm7935, %v6371, %v8019
        %v8023 = vsel %vm7935, 0, %v8021
        %v8024 = vcosq.f32.pop %v8022
        %v8025 = vsinq.f32.pop %v8022
        %vm8026 = vweird.f32 %v6371
        %v8027 = vadd.s32 %v8023, 3
        %v8028 = vand.u32 %v8027, 3
        %vm8029 = vcmp.lt.s32.totalorder %v8028, 2
        %vm8030 = vcmp.eq.s32.totalorder %v8028, 0
        %v8031 = vxor.u32 %v8025, 2147483648
        %v8032 = vsel %vm8030, %v8024, %v8031
        %vm8033 = vcmp.eq.s32.totalorder %v8028, 2
        %v8034 = vxor.u32 %v8024, 2147483648
        %v8035 = vsel %vm8033, %v8034, %v8025
        %v8036 = vsel %vm8029, %v8032, %v8035
        %v8037 = vsel %vm8026, nan, %v8036
        %v8038 = vld [vmem:[%s9] sm:$0x1]
        %v8039 = vld [vmem:[#allocation2] sm:$0x1]
        %8041 = vset.pattern.permute.xlu0 0
        %8042 = vperm.xlu0 %8041, %v8039
        %v8043 = vpop.permute.xlu0 %8042
        %v8045 = vlaneseq
        %v8046 = vshrl.u32 %v8045, 7
        %v8047 = vsub.s32 0, %v8046
        %v8048 = vrot.slane %v8043, %v8047
        %8049 = vmatprep.subr.mxu0 0.0
        %8050 = vmatpush1.msra.mxu0 %v6477
        %8051 = vmatprep.subr.mxu0 0.0
        %8052 = vmatpush1.msra.mxu0 %v6581
        %8053 = vmatprep.subr.mxu0 0.0
        %8054 = vmatpush1.msra.mxu0 %v6685
        %8055 = vmatprep.subr.mxu0 0.0
        %8056 = vmatpush1.msra.mxu0 %v6789
        %8057 = vmatprep.subr.mxu0 0.0
        %8058 = vmatpush1.msra.mxu0 %v6893
        %8059 = vmatprep.subr.mxu0 0.0
        %8060 = vmatpush1.msra.mxu0 %v6997
        %8061 = vmatprep.subr.mxu0 0.0
        %8062 = vmatpush1.msra.mxu0 %v7101
        %8063 = vmatprep.subr.mxu0 0.0
        %8064 = vmatpush1.msra.mxu0 %v7205
        %8065 = vmatprep.subr.mxu0 0.0
        %8066 = vmatpush1.msra.mxu0 %v7309
        %8067 = vmatprep.subr.mxu0 0.0
        %8068 = vmatpush1.msra.mxu0 %v7413
        %8069 = vmatprep.subr.mxu0 0.0
        %8070 = vmatpush1.msra.mxu0 %v7517
        %8071 = vmatprep.subr.mxu0 0.0
        %8072 = vmatpush1.msra.mxu0 %v7621
        %8073 = vmatprep.subr.mxu0 0.0
        %8074 = vmatpush1.msra.mxu0 %v7725
        %8075 = vmatprep.subr.mxu0 0.0
        %8076 = vmatpush1.msra.mxu0 %v7829
        %8077 = vmatprep.subr.mxu0 0.0
        %8078 = vmatpush1.msra.mxu0 %v7933
        %8079 = vmatprep.subr.mxu0 0.0
        %8080 = vmatpush1.msra.mxu0 %v8037
        %8081 = vmatprep.subr.mxu0 0.0
        %8082 = vmatpush1.msra.mxu0 0.0
        %8083 = vmatprep.subr.mxu0 0.0
        %8084 = vmatpush1.msra.mxu0 0.0
        %8085 = vmatprep.subr.mxu0 0.0
        %8086 = vmatpush1.msra.mxu0 0.0
        %8087 = vmatprep.subr.mxu0 0.0
        %8088 = vmatpush1.msra.mxu0 0.0
        %8089 = vmatprep.subr.mxu0 0.0
        %8090 = vmatpush1.msra.mxu0 0.0
        %8091 = vmatprep.subr.mxu0 0.0
        %8092 = vmatpush1.msra.mxu0 0.0
        %8093 = vmatprep.subr.mxu0 0.0
        %8094 = vmatpush1.msra.mxu0 0.0
        %8095 = vmatprep.subr.mxu0 0.0
        %8096 = vmatpush1.msra.mxu0 0.0
        %8097 = vmatprep.subr.mxu0 0.0
        %8098 = vmatpush1.msra.mxu0 0.0
        %8099 = vmatprep.subr.mxu0 0.0
        %8100 = vmatpush1.msra.mxu0 0.0
        %8101 = vmatprep.subr.mxu0 0.0
        %8102 = vmatpush1.msra.mxu0 0.0
        %8103 = vmatprep.subr.mxu0 0.0
        %8104 = vmatpush1.msra.mxu0 0.0
        %8105 = vmatprep.subr.mxu0 0.0
        %8106 = vmatpush1.msra.mxu0 0.0
        %8107 = vmatprep.subr.mxu0 0.0
        %8108 = vmatpush1.msra.mxu0 0.0
        %8109 = vmatprep.subr.mxu0 0.0
        %8110 = vmatpush1.msra.mxu0 0.0
        %8111 = vmatprep.subr.mxu0 0.0
        %8112 = vmatpush1.msra.mxu0 0.0
        %8113 = vmatprep.mubr.f32.mxu0 0.0
        %8114 = vmatmul.mubr.f32.gmra.mrb[0].mxu0 %v8038
        %v8115 = vpop.f32.mrb[0].mxu0
        %v8116 = vadd.f32 %v8048, %v8115
        %v8117 = vpop.f32.mrb[0].mxu0
        %8118 = vdwg.mxu0
        %8119 = vst [vmem:[%s376] sm:$0x1] %v8116
        %s8120 = sand.u32 %s271, 1
        %s8121 = scalar_lea.sflag [#allocation4], %s8120
        %s8122 = sand.u32 %s271, 1
        %s8123 = scalar_lea.vmem [#allocation3], %s8122
        // Predicated region
        $region65: #{_siren_pallas.1} parent=63 // pred_check
          %p8124 = pneg %p281
        $region66: #{_siren_pallas.1} parent=63 // pred_check_branch
          %8126 = sbr.rel (%p8124) target = $region68
        $region67: #{_siren_pallas.1} parent=63 // pred_region
          %s8128 = ssub.s32 16, 16
          %8129 = vsyncadd %s8121, %s8128
          %s8130 = smul.addr %s27, 16
          %s8131 = scalar_lea.hbm %s11, %s8130
          %s8133 = sshll.u32 %s8123, 4
          %s8134 = int_to_ptr.vmem [resolvable:$true] %s8133
          %8136 = dma.vmem_to_hbm [thread:$0]  %s8134, 16, %s8131, %s8121
        $region68: #{_siren_pallas.1} parent=63 // pred_fallthru
          _
      $region64: #{_siren_pallas.1} parent=5 // pred_fallthru
        _
      %p8137 = scmp.le.s32.totalorder 2, %s22
      // Predicated region
      $region69: #{_siren_pallas.1} parent=5 // pred_check
        %p8138 = pneg %p8137
      $region70: #{_siren_pallas.1} parent=5 // pred_check_branch
        %8140 = sbr.rel (%p8138) target = $region72
      $region71: #{_siren_pallas.1} parent=5 // pred_region
        %s8141 = ssub.s32 %s22, 2
        // Predicated region
        $region73: #{_siren_pallas.1} parent=71 // pred_check
          %p8142 = pneg %p287
        $region74: #{_siren_pallas.1} parent=71 // pred_check_branch
          %8144 = sbr.rel (%p8142) target = $region76
        $region75: #{_siren_pallas.1} parent=71 // pred_region
          %s8145 = sand.u32 %s272, 1
          %s8146 = scalar_lea.sflag [#allocation4], %s8145
          %s8147 = sand.u32 %s272, 1
          %s8148 = scalar_lea.vmem [#allocation3], %s8147
          %8149 = dma.done %s8146, 16
        $region76: #{_siren_pallas.1} parent=71 // pred_fallthru
          _
      $region72: #{_siren_pallas.1} parent=5 // pred_fallthru
        _
    $region6: #{_siren_pallas.1} parent=1 // loop_footer
      %s26 = sadd.s32 1, %s22
    $region7: #{_siren_pallas.1} parent=1 // loop_footer_branch
      %21 = sbr.rel target = $region3
    $region8: #{_siren_pallas.1} parent=1 // loop_exit
      _
    %8150 = vsyncpa [#allocation4], 1
    %s8151 = scalar_lea.sflag [#allocation4], 1
    %8152 = vsyncpa %s8151, 1

</llo_original>
